<compile_context>
chip_gen: v6e
topology: v6e:2x2x1
jax: 0.10.0
libtpu: 0.0.40
codegen_flags: <defaults>
</compile_context>

<pallas_src>
import math

import jax
import jax.numpy as jnp
from jax.experimental import pallas as pl
from jax.experimental.pallas import tpu as pltpu

# ---------------- small ViT config ----------------
B = 8                        # frames per clip (ActionCLIP 8-frame)
C = 3                        # image channels
IMG = 16                     # image height/width
PATCH = 8                    # patch size -> 2x2 patch grid
GRID = IMG // PATCH
NPATCH = GRID * GRID         # 4 patches per image
SEQ = NPATCH + 1             # + class token = 5
SEQ_PAD = 8                  # per-image rows padded to a full sublane tile
M_PAD = B * SEQ_PAD          # resident activation rows = 64
WIDTH = 128                  # transformer width
HEADS = 4
HEAD_DIM = WIDTH // HEADS    # 32
MLP_DIM = 4 * WIDTH          # 512
LAYERS = 2
OUTPUT_DIM = 64              # visual projection dim
FEAT_LANES = 128             # lane-dense (padded) projection output width
PATCH_K = C * PATCH * PATCH  # 192
EPS = 1e-5                   # nn.LayerNorm default


# ---------------- fused Pallas kernel ----------------
def _ln_rows(x, g, b):
    """Row-wise LayerNorm in f32. x:[M,D], g/b:[1,D]."""
    mean = jnp.mean(x, axis=-1, keepdims=True)
    xc = x - mean
    var = jnp.mean(xc * xc, axis=-1, keepdims=True)
    return xc * jax.lax.rsqrt(var + EPS) * g + b


def _mm(a_f32, w_bf16):
    """bf16 x bf16 MXU matmul with f32 accumulation."""
    return jnp.dot(a_f32.astype(jnp.bfloat16), w_bf16,
                   preferred_element_type=jnp.float32)


def _vit_kernel(patches_ref, conv_w_ref, embed_add_ref, lnpre_g_ref, lnpre_b_ref,
                attn_bias_ref, hmask_ref, cls_sel_ref,
                ln1_g_ref, ln1_b_ref, qkv_w_ref, qkv_b_ref, out_w_ref, out_b_ref,
                ln2_g_ref, ln2_b_ref, fc_w_ref, fc_b_ref, cproj_w_ref, cproj_b_ref,
                lnpost_g_ref, lnpost_b_ref, proj_ref,
                feat_ref):
    # ---- patch-embed matmul + (cls|pos) add + ln_pre ----
    pe = jnp.dot(patches_ref[...], conv_w_ref[...],
                 preferred_element_type=jnp.float32)                 # [M_PAD, W]
    x = pe + embed_add_ref[...]                                      # cls + pos (pad rows 0)
    x = _ln_rows(x, lnpre_g_ref[...], lnpre_b_ref[...])

    # precomputed masks (loaded once; review: no per-layer iota/compare rebuild)
    attn_bias = attn_bias_ref[...]                                   # [M_PAD, M_PAD] f32
    hmasks = [hmask_ref[pl.ds(hh, 1), :] for hh in range(HEADS)]     # each [1, WIDTH] f32

    inv_sqrt_d = 1.0 / math.sqrt(HEAD_DIM)

    for l in range(LAYERS):                                          # fully unrolled
        # ---- multi-head self-attention sub-block (pre-LN) ----
        h = _ln_rows(x, ln1_g_ref[l], ln1_b_ref[l])
        qkv = _mm(h, qkv_w_ref[l]) + qkv_b_ref[l]                    # [M_PAD, 3W] f32
        q = qkv[:, 0 * WIDTH:1 * WIDTH] * inv_sqrt_d                 # scale folded into q
        k = qkv[:, 1 * WIDTH:2 * WIDTH]
        v = qkv[:, 2 * WIDTH:3 * WIDTH]

        a = jnp.zeros((M_PAD, WIDTH), jnp.float32)
        for hh in range(HEADS):
            hmask = hmasks[hh]
            s = jax.lax.dot_general(q * hmask, k, (((1,), (1,)), ((), ())),
                                    preferred_element_type=jnp.float32)  # [M_PAD, M_PAD]
            s = s + attn_bias                                        # block-diag + pad mask
            s = s - jnp.max(s, axis=-1, keepdims=True)
            p = jnp.exp(s)
            p = p * pl.reciprocal(jnp.sum(p, axis=-1, keepdims=True), approx=False)
            a = a + jnp.dot(p, v * hmask, preferred_element_type=jnp.float32)
        a = _mm(a, out_w_ref[l]) + out_b_ref[l]
        x = x + a

        # ---- MLP sub-block (pre-LN, QuickGELU) ----
        h2 = _ln_rows(x, ln2_g_ref[l], ln2_b_ref[l])
        h2 = _mm(h2, fc_w_ref[l]) + fc_b_ref[l]
        h2 = h2 * jax.nn.sigmoid(1.702 * h2)                         # QuickGELU
        h2 = _mm(h2, cproj_w_ref[l]) + cproj_b_ref[l]
        x = x + h2

    # ---- head: pick class-token rows (0/1 selection matmul), ln_post, proj ----
    cls = jnp.dot(cls_sel_ref[...], x, preferred_element_type=jnp.float32)  # [B, W]
    cls = _ln_rows(cls, lnpost_g_ref[...], lnpost_b_ref[...])
    feat_ref[...] = _mm(cls, proj_ref[...]).astype(feat_ref.dtype)   # [B, FEAT_LANES]


# ---------------- Pallas wrapper (single fused pallas_call, no grid) ----------------
def encode_image_pallas(image, params):
    batch, c, hgt, wdt = image.shape
    assert (batch, c, hgt, wdt) == (B, C, IMG, IMG)
    gh, gw = hgt // PATCH, wdt // PATCH

    # one-time glue: NCHW patch unfold, per-patch order (C, ph, pw) matching the
    # conv1-weight reshape; padded to SEQ_PAD rows per image (cls row + pad rows = 0).
    x = image.reshape(batch, c, gh, PATCH, gw, PATCH)
    patches = x.transpose(0, 2, 4, 1, 3, 5).reshape(batch, gh * gw, PATCH_K)
    patches_pad = jnp.zeros((batch, SEQ_PAD, PATCH_K), jnp.float32)
    patches_pad = patches_pad.at[:, 1:1 + NPATCH, :].set(patches)
    patches_pad = patches_pad.reshape(M_PAD, PATCH_K).astype(jnp.bfloat16)

    # additive slab carrying class token + positional embedding (pad rows = 0)
    cls_pos = params["positional_embedding"].at[0].add(params["class_embedding"])
    embed_add = jnp.zeros((SEQ_PAD, WIDTH), jnp.float32).at[:SEQ].set(cls_pos)
    embed_add = jnp.broadcast_to(embed_add[None], (batch, SEQ_PAD, WIDTH))
    embed_add = embed_add.reshape(M_PAD, WIDTH)

    # precomputed attention constants (built once, outside the kernel)
    row = jnp.arange(M_PAD)[:, None]
    col = jnp.arange(M_PAD)[None, :]
    token_ok = (row // SEQ_PAD == col // SEQ_PAD) & (col % SEQ_PAD < SEQ)
    attn_bias = jnp.where(token_ok, 0.0, -1e30).astype(jnp.float32)     # [M_PAD, M_PAD]

    lane = jnp.arange(WIDTH)[None, :]
    head = jnp.arange(HEADS)[:, None]
    hmask = ((lane >= head * HEAD_DIM)
             & (lane < (head + 1) * HEAD_DIM)).astype(jnp.float32)      # [HEADS, WIDTH]

    # 0/1 selection matrix picking the class-token row of each image
    cls_sel = jnp.zeros((B, M_PAD), jnp.float32)
    cls_sel = cls_sel.at[jnp.arange(B), jnp.arange(B) * SEQ_PAD].set(1.0)

    # projection padded to 128 lanes so the final store is lane-dense
    proj_pad = jnp.zeros((WIDTH, FEAT_LANES), jnp.float32)
    proj_pad = proj_pad.at[:, :OUTPUT_DIM].set(params["proj"]).astype(jnp.bfloat16)

    lnpre_g = params["ln_pre_g"].reshape(1, WIDTH)
    lnpre_b = params["ln_pre_b"].reshape(1, WIDTH)
    lnpost_g = params["ln_post_g"].reshape(1, WIDTH)
    lnpost_b = params["ln_post_b"].reshape(1, WIDTH)

    # per-layer params stacked along a leading LAYERS axis; matrices in bf16
    def stack_vec(name):   # [L, 1, N] f32 (biases / LN params: negligible bytes)
        return jnp.stack([lp[name] for lp in params["layers"]])[:, None, :]

    def stack_mat(name):   # [L, K, N] bf16 (streamed weights)
        return jnp.stack([lp[name] for lp in params["layers"]]).astype(jnp.bfloat16)

    layer_args = (stack_vec("ln1_g"), stack_vec("ln1_b"),
                  stack_mat("qkv_w"), stack_vec("qkv_b"),
                  stack_mat("out_w"), stack_vec("out_b"),
                  stack_vec("ln2_g"), stack_vec("ln2_b"),
                  stack_mat("fc_w"), stack_vec("fc_b"),
                  stack_mat("cproj_w"), stack_vec("cproj_b"))

    conv_w = params["conv_w"].astype(jnp.bfloat16)

    args = (patches_pad, conv_w, embed_add, lnpre_g, lnpre_b,
            attn_bias, hmask, cls_sel,
            *layer_args, lnpost_g, lnpost_b, proj_pad)

    # advisory cost estimate (both attention matmuls counted; bf16 byte counts)
    mm_flops = 2 * M_PAD * PATCH_K * WIDTH
    mm_flops += LAYERS * 2 * M_PAD * WIDTH * (3 * WIDTH + WIDTH + 2 * MLP_DIM)
    mm_flops += LAYERS * HEADS * 2 * (2 * M_PAD * M_PAD * WIDTH)
    mm_flops += 2 * B * M_PAD * WIDTH + 2 * B * WIDTH * FEAT_LANES
    transcendentals = LAYERS * (HEADS * M_PAD * M_PAD + M_PAD * MLP_DIM)
    bytes_accessed = sum(int(a.size) * a.dtype.itemsize for a in args) + B * FEAT_LANES * 4

    feat = pl.pallas_call(
        _vit_kernel,
        out_shape=jax.ShapeDtypeStruct((B, FEAT_LANES), jnp.float32),
        cost_estimate=pl.CostEstimate(flops=int(mm_flops),
                                      transcendentals=int(transcendentals),
                                      bytes_accessed=int(bytes_accessed)),
    )(*args)

    # real projection lanes are [:OUTPUT_DIM]
    return feat[:, :OUTPUT_DIM]


# ---------------- pure-JAX reference (same bf16-weight / f32-accumulate math) ----------------
def _ln_ref(x, g, b):
    mean = jnp.mean(x, axis=-1, keepdims=True)
    var = jnp.mean((x - mean) ** 2, axis=-1, keepdims=True)
    return (x - mean) * jax.lax.rsqrt(var + EPS) * g + b


def _bmm(a, w):
    return jnp.dot(a.astype(jnp.bfloat16), w.astype(jnp.bfloat16),
                   preferred_element_type=jnp.float32)


def encode_image_ref(image, params):
    batch, c, hgt, wdt = image.shape
    gh, gw = hgt // PATCH, wdt // PATCH
    x = image.reshape(batch, c, gh, PATCH, gw, PATCH)
    x = x.transpose(0, 2, 4, 1, 3, 5).reshape(batch, gh * gw, PATCH_K)
    x = _bmm(x, params["conv_w"])
    cls = jnp.broadcast_to(params["class_embedding"][None, None, :], (batch, 1, WIDTH))
    x = jnp.concatenate([cls, x], axis=1) + params["positional_embedding"][None]
    x = _ln_ref(x, params["ln_pre_g"], params["ln_pre_b"])
    for lp in params["layers"]:
        h = _ln_ref(x, lp["ln1_g"], lp["ln1_b"])
        qkv = _bmm(h, lp["qkv_w"]) + lp["qkv_b"]
        q, k, v = jnp.split(qkv, 3, axis=-1)

        def heads(t):
            return t.reshape(batch, SEQ, HEADS, HEAD_DIM).transpose(0, 2, 1, 3)

        q, k, v = heads(q), heads(k), heads(v)
        s = jnp.einsum("bhqd,bhkd->bhqk", q, k) / math.sqrt(HEAD_DIM)
        p = jax.nn.softmax(s, axis=-1)
        a = jnp.einsum("bhqk,bhkd->bhqd", p, v)
        a = a.transpose(0, 2, 1, 3).reshape(batch, SEQ, WIDTH)
        x = x + (_bmm(a, lp["out_w"]) + lp["out_b"])
        h2 = _ln_ref(x, lp["ln2_g"], lp["ln2_b"])
        h2 = _bmm(h2, lp["fc_w"]) + lp["fc_b"]
        h2 = h2 * jax.nn.sigmoid(1.702 * h2)
        x = x + (_bmm(h2, lp["cproj_w"]) + lp["cproj_b"])
    cls_tok = _ln_ref(x[:, 0, :], params["ln_post_g"], params["ln_post_b"])
    return _bmm(cls_tok, params["proj"])


# ---------------- deterministic parameter init ----------------
def init_params(key):
    keys = iter(jax.random.split(key, 16 + 16 * LAYERS))

    def nrm(shape, std=0.02):
        return (std * jax.random.normal(next(keys), shape)).astype(jnp.float32)

    def layer_params():
        return {
            "ln1_g": jnp.ones((WIDTH,), jnp.float32),
            "ln1_b": jnp.zeros((WIDTH,), jnp.float32),
            "qkv_w": nrm((WIDTH, 3 * WIDTH)),          # in_proj_weight^T
            "qkv_b": nrm((3 * WIDTH,)),
            "out_w": nrm((WIDTH, WIDTH)),
            "out_b": nrm((WIDTH,)),
            "ln2_g": jnp.ones((WIDTH,), jnp.float32),
            "ln2_b": jnp.zeros((WIDTH,), jnp.float32),
            "fc_w": nrm((WIDTH, MLP_DIM)),
            "fc_b": nrm((MLP_DIM,)),
            "cproj_w": nrm((MLP_DIM, WIDTH)),
            "cproj_b": nrm((WIDTH,)),
        }

    return {
        # conv1 weight [WIDTH, C, P, P] reshaped/transposed to [C*P*P, WIDTH], bias=False
        "conv_w": nrm((PATCH_K, WIDTH)),
        "class_embedding": nrm((WIDTH,)),
        "positional_embedding": nrm((SEQ, WIDTH)),
        "ln_pre_g": jnp.ones((WIDTH,), jnp.float32),
        "ln_pre_b": jnp.zeros((WIDTH,), jnp.float32),
        "layers": [layer_params() for _ in range(LAYERS)],
        "ln_post_g": jnp.ones((WIDTH,), jnp.float32),
        "ln_post_b": jnp.zeros((WIDTH,), jnp.float32),
        "proj": nrm((WIDTH, OUTPUT_DIM)),
    }


if __name__ == "__main__":
    root = jax.random.PRNGKey(0)
    pkey, ikey = jax.random.split(root)
    params = init_params(pkey)
    image = jax.random.normal(ikey, (B, C, IMG, IMG), dtype=jnp.float32)

    # Pallas fused forward
    fwd = jax.jit(encode_image_pallas)
    out = jax.block_until_ready(fwd(image, params))
    assert out.shape == (B, OUTPUT_DIM)

    # pure-JAX reference with matching bf16-weight / f32-accumulate numerics
    ref = jax.block_until_ready(encode_image_ref(image, params))
    max_err = float(jnp.max(jnp.abs(out - ref)))
    assert jnp.allclose(out, ref, atol=2e-3, rtol=2e-3), max_err

    print("KERNEL_OK")
</pallas_src>

<mosaic_0001>
module attributes {stable_mosaic.version = 11 : i64} {
  func.func @_vit_kernel(%arg0: memref<64x192xbf16, #tpu.memory_space<vmem>>, %arg1: memref<192x128xbf16, #tpu.memory_space<vmem>>, %arg2: memref<64x128xf32, #tpu.memory_space<vmem>>, %arg3: memref<1x128xf32, #tpu.memory_space<vmem>>, %arg4: memref<1x128xf32, #tpu.memory_space<vmem>>, %arg5: memref<64x64xf32, #tpu.memory_space<vmem>>, %arg6: memref<4x128xf32, #tpu.memory_space<vmem>>, %arg7: memref<8x64xf32, #tpu.memory_space<vmem>>, %arg8: memref<2x1x128xf32, #tpu.memory_space<vmem>>, %arg9: memref<2x1x128xf32, #tpu.memory_space<vmem>>, %arg10: memref<2x128x384xbf16, #tpu.memory_space<vmem>>, %arg11: memref<2x1x384xf32, #tpu.memory_space<vmem>>, %arg12: memref<2x128x128xbf16, #tpu.memory_space<vmem>>, %arg13: memref<2x1x128xf32, #tpu.memory_space<vmem>>, %arg14: memref<2x1x128xf32, #tpu.memory_space<vmem>>, %arg15: memref<2x1x128xf32, #tpu.memory_space<vmem>>, %arg16: memref<2x128x512xbf16, #tpu.memory_space<vmem>>, %arg17: memref<2x1x512xf32, #tpu.memory_space<vmem>>, %arg18: memref<2x512x128xbf16, #tpu.memory_space<vmem>>, %arg19: memref<2x1x128xf32, #tpu.memory_space<vmem>>, %arg20: memref<1x128xf32, #tpu.memory_space<vmem>>, %arg21: memref<1x128xf32, #tpu.memory_space<vmem>>, %arg22: memref<128x128xbf16, #tpu.memory_space<vmem>>, %arg23: memref<8x128xf32, #tpu.memory_space<vmem>>) attributes {dimension_semantics = [], scalar_prefetch = 0 : i64, scratch_operands = 0 : i64, tpu.core_type = #tpu.core_type<tc>} {
    %c0 = arith.constant 0 : index
    %c0_0 = arith.constant 0 : index
    %0 = vector.load %arg0[%c0, %c0_0] : memref<64x192xbf16, #tpu.memory_space<vmem>>, vector<64x192xbf16>
    %c0_1 = arith.constant 0 : index
    %c0_2 = arith.constant 0 : index
    %1 = vector.load %arg1[%c0_1, %c0_2] : memref<192x128xbf16, #tpu.memory_space<vmem>>, vector<192x128xbf16>
    %cst = arith.constant dense<0.000000e+00> : vector<64x128xf32>
    %2 = tpu.matmul %0, %1, %cst {dimension_numbers = #tpu.dot_dimension_numbers<[1], [0], [0], [1], [0, 0, 1, 1], [], []>} : vector<64x192xbf16>, vector<192x128xbf16>, vector<64x128xf32> -> vector<64x128xf32>
    %c0_3 = arith.constant 0 : index
    %c0_4 = arith.constant 0 : index
    %3 = vector.load %arg2[%c0_3, %c0_4] : memref<64x128xf32, #tpu.memory_space<vmem>>, vector<64x128xf32>
    %4 = arith.addf %2, %3 : vector<64x128xf32>
    %c0_5 = arith.constant 0 : index
    %c0_6 = arith.constant 0 : index
    %5 = vector.load %arg3[%c0_5, %c0_6] : memref<1x128xf32, #tpu.memory_space<vmem>>, vector<1x128xf32>
    %c0_7 = arith.constant 0 : index
    %c0_8 = arith.constant 0 : index
    %6 = vector.load %arg4[%c0_7, %c0_8] : memref<1x128xf32, #tpu.memory_space<vmem>>, vector<1x128xf32>
    %cst_9 = arith.constant dense<0.000000e+00> : vector<64xf32>
    %7 = vector.multi_reduction <add>, %4, %cst_9 [1] : vector<64x128xf32> to vector<64xf32>
    %8 = vector.shape_cast %7 : vector<64xf32> to vector<64x1xf32>
    %cst_10 = arith.constant 1.280000e+02 : f32
    %9 = vector.broadcast %cst_10 : f32 to vector<64x1xf32>
    %10 = arith.divf %8, %9 : vector<64x1xf32>
    %11 = vector.broadcast %10 : vector<64x1xf32> to vector<64x128xf32>
    %12 = arith.subf %4, %11 : vector<64x128xf32>
    %13 = arith.mulf %12, %12 : vector<64x128xf32>
    %cst_11 = arith.constant dense<0.000000e+00> : vector<64xf32>
    %14 = vector.multi_reduction <add>, %13, %cst_11 [1] : vector<64x128xf32> to vector<64xf32>
    %15 = vector.shape_cast %14 : vector<64xf32> to vector<64x1xf32>
    %cst_12 = arith.constant 1.280000e+02 : f32
    %16 = vector.broadcast %cst_12 : f32 to vector<64x1xf32>
    %17 = arith.divf %15, %16 : vector<64x1xf32>
    %cst_13 = arith.constant 9.99999974E-6 : f32
    %18 = vector.broadcast %cst_13 : f32 to vector<64x1xf32>
    %19 = arith.addf %17, %18 : vector<64x1xf32>
    %20 = math.rsqrt %19 : vector<64x1xf32>
    %21 = vector.broadcast %20 : vector<64x1xf32> to vector<64x128xf32>
    %22 = arith.mulf %12, %21 : vector<64x128xf32>
    %23 = vector.broadcast %5 : vector<1x128xf32> to vector<64x128xf32>
    %24 = arith.mulf %22, %23 : vector<64x128xf32>
    %25 = vector.broadcast %6 : vector<1x128xf32> to vector<64x128xf32>
    %26 = arith.addf %24, %25 : vector<64x128xf32>
    %c0_14 = arith.constant 0 : index
    %c0_15 = arith.constant 0 : index
    %27 = vector.load %arg5[%c0_14, %c0_15] : memref<64x64xf32, #tpu.memory_space<vmem>>, vector<64x64xf32>
    %c0_16 = arith.constant 0 : index
    %c0_17 = arith.constant 0 : index
    %28 = vector.load %arg6[%c0_16, %c0_17] : memref<4x128xf32, #tpu.memory_space<vmem>>, vector<1x128xf32>
    %c1 = arith.constant 1 : index
    %c0_18 = arith.constant 0 : index
    %29 = vector.load %arg6[%c1, %c0_18] : memref<4x128xf32, #tpu.memory_space<vmem>>, vector<1x128xf32>
    %c2 = arith.constant 2 : index
    %c0_19 = arith.constant 0 : index
    %30 = vector.load %arg6[%c2, %c0_19] : memref<4x128xf32, #tpu.memory_space<vmem>>, vector<1x128xf32>
    %c3 = arith.constant 3 : index
    %c0_20 = arith.constant 0 : index
    %31 = vector.load %arg6[%c3, %c0_20] : memref<4x128xf32, #tpu.memory_space<vmem>>, vector<1x128xf32>
    %c0_21 = arith.constant 0 : index
    %c0_22 = arith.constant 0 : index
    %c0_23 = arith.constant 0 : index
    %32 = vector.load %arg8[%c0_21, %c0_22, %c0_23] : memref<2x1x128xf32, #tpu.memory_space<vmem>>, vector<1x1x128xf32>
    %33 = vector.shape_cast %32 : vector<1x1x128xf32> to vector<1x128xf32>
    %c0_24 = arith.constant 0 : index
    %c0_25 = arith.constant 0 : index
    %c0_26 = arith.constant 0 : index
    %34 = vector.load %arg9[%c0_24, %c0_25, %c0_26] : memref<2x1x128xf32, #tpu.memory_space<vmem>>, vector<1x1x128xf32>
    %35 = vector.shape_cast %34 : vector<1x1x128xf32> to vector<1x128xf32>
    %cst_27 = arith.constant dense<0.000000e+00> : vector<64xf32>
    %36 = vector.multi_reduction <add>, %26, %cst_27 [1] : vector<64x128xf32> to vector<64xf32>
    %37 = vector.shape_cast %36 : vector<64xf32> to vector<64x1xf32>
    %cst_28 = arith.constant 1.280000e+02 : f32
    %38 = vector.broadcast %cst_28 : f32 to vector<64x1xf32>
    %39 = arith.divf %37, %38 : vector<64x1xf32>
    %40 = vector.broadcast %39 : vector<64x1xf32> to vector<64x128xf32>
    %41 = arith.subf %26, %40 : vector<64x128xf32>
    %42 = arith.mulf %41, %41 : vector<64x128xf32>
    %cst_29 = arith.constant dense<0.000000e+00> : vector<64xf32>
    %43 = vector.multi_reduction <add>, %42, %cst_29 [1] : vector<64x128xf32> to vector<64xf32>
    %44 = vector.shape_cast %43 : vector<64xf32> to vector<64x1xf32>
    %cst_30 = arith.constant 1.280000e+02 : f32
    %45 = vector.broadcast %cst_30 : f32 to vector<64x1xf32>
    %46 = arith.divf %44, %45 : vector<64x1xf32>
    %cst_31 = arith.constant 9.99999974E-6 : f32
    %47 = vector.broadcast %cst_31 : f32 to vector<64x1xf32>
    %48 = arith.addf %46, %47 : vector<64x1xf32>
    %49 = math.rsqrt %48 : vector<64x1xf32>
    %50 = vector.broadcast %49 : vector<64x1xf32> to vector<64x128xf32>
    %51 = arith.mulf %41, %50 : vector<64x128xf32>
    %52 = vector.broadcast %33 : vector<1x128xf32> to vector<64x128xf32>
    %53 = arith.mulf %51, %52 : vector<64x128xf32>
    %54 = vector.broadcast %35 : vector<1x128xf32> to vector<64x128xf32>
    %55 = arith.addf %53, %54 : vector<64x128xf32>
    %c0_32 = arith.constant 0 : index
    %c0_33 = arith.constant 0 : index
    %c0_34 = arith.constant 0 : index
    %56 = vector.load %arg10[%c0_32, %c0_33, %c0_34] : memref<2x128x384xbf16, #tpu.memory_space<vmem>>, vector<1x128x384xbf16>
    %57 = vector.shape_cast %56 : vector<1x128x384xbf16> to vector<128x384xbf16>
    %58 = arith.truncf %55 : vector<64x128xf32> to vector<64x128xbf16>
    %cst_35 = arith.constant dense<0.000000e+00> : vector<64x384xf32>
    %59 = tpu.matmul %58, %57, %cst_35 {dimension_numbers = #tpu.dot_dimension_numbers<[1], [0], [0], [1], [0, 0, 1, 1], [], []>} : vector<64x128xbf16>, vector<128x384xbf16>, vector<64x384xf32> -> vector<64x384xf32>
    %c0_36 = arith.constant 0 : index
    %c0_37 = arith.constant 0 : index
    %c0_38 = arith.constant 0 : index
    %60 = vector.load %arg11[%c0_36, %c0_37, %c0_38] : memref<2x1x384xf32, #tpu.memory_space<vmem>>, vector<1x1x384xf32>
    %61 = vector.shape_cast %60 : vector<1x1x384xf32> to vector<1x384xf32>
    %62 = vector.broadcast %61 : vector<1x384xf32> to vector<64x384xf32>
    %63 = arith.addf %59, %62 : vector<64x384xf32>
    %64 = vector.extract_strided_slice %63 {offsets = [0, 0], sizes = [64, 128], strides = [1, 1]} : vector<64x384xf32> to vector<64x128xf32>
    %cst_39 = arith.constant 0.176776692 : f32
    %65 = vector.broadcast %cst_39 : f32 to vector<64x128xf32>
    %66 = arith.mulf %64, %65 : vector<64x128xf32>
    %67 = vector.extract_strided_slice %63 {offsets = [0, 128], sizes = [64, 128], strides = [1, 1]} : vector<64x384xf32> to vector<64x128xf32>
    %68 = vector.extract_strided_slice %63 {offsets = [0, 256], sizes = [64, 128], strides = [1, 1]} : vector<64x384xf32> to vector<64x128xf32>
    %cst_40 = arith.constant 0.000000e+00 : f32
    %69 = vector.broadcast %cst_40 : f32 to vector<64x128xf32>
    %70 = vector.broadcast %28 : vector<1x128xf32> to vector<64x128xf32>
    %71 = arith.mulf %66, %70 : vector<64x128xf32>
    %cst_41 = arith.constant dense<0.000000e+00> : vector<64x64xf32>
    %72 = tpu.matmul %71, %67, %cst_41 {dimension_numbers = #tpu.dot_dimension_numbers<[1], [1], [0], [0], [0, 0, 1, 0], [], []>} : vector<64x128xf32>, vector<64x128xf32>, vector<64x64xf32> -> vector<64x64xf32>
    %73 = arith.addf %72, %27 : vector<64x64xf32>
    %cst_42 = arith.constant dense<0xFF800000> : vector<64xf32>
    %74 = vector.multi_reduction <maximumf>, %73, %cst_42 [1] : vector<64x64xf32> to vector<64xf32>
    %75 = vector.shape_cast %74 : vector<64xf32> to vector<64x1xf32>
    %76 = vector.broadcast %75 : vector<64x1xf32> to vector<64x64xf32>
    %77 = arith.subf %73, %76 : vector<64x64xf32>
    %78 = math.exp %77 : vector<64x64xf32>
    %cst_43 = arith.constant dense<0.000000e+00> : vector<64xf32>
    %79 = vector.multi_reduction <add>, %78, %cst_43 [1] : vector<64x64xf32> to vector<64xf32>
    %80 = vector.shape_cast %79 : vector<64xf32> to vector<64x1xf32>
    %81 = tpu.reciprocal %80 : vector<64x1xf32> -> vector<64x1xf32>
    %82 = vector.broadcast %81 : vector<64x1xf32> to vector<64x64xf32>
    %83 = arith.mulf %78, %82 : vector<64x64xf32>
    %84 = vector.broadcast %28 : vector<1x128xf32> to vector<64x128xf32>
    %85 = arith.mulf %68, %84 : vector<64x128xf32>
    %cst_44 = arith.constant dense<0.000000e+00> : vector<64x128xf32>
    %86 = tpu.matmul %83, %85, %cst_44 {dimension_numbers = #tpu.dot_dimension_numbers<[1], [0], [0], [1], [0, 0, 1, 1], [], []>} : vector<64x64xf32>, vector<64x128xf32>, vector<64x128xf32> -> vector<64x128xf32>
    %87 = arith.addf %69, %86 : vector<64x128xf32>
    %88 = vector.broadcast %29 : vector<1x128xf32> to vector<64x128xf32>
    %89 = arith.mulf %66, %88 : vector<64x128xf32>
    %cst_45 = arith.constant dense<0.000000e+00> : vector<64x64xf32>
    %90 = tpu.matmul %89, %67, %cst_45 {dimension_numbers = #tpu.dot_dimension_numbers<[1], [1], [0], [0], [0, 0, 1, 0], [], []>} : vector<64x128xf32>, vector<64x128xf32>, vector<64x64xf32> -> vector<64x64xf32>
    %91 = arith.addf %90, %27 : vector<64x64xf32>
    %cst_46 = arith.constant dense<0xFF800000> : vector<64xf32>
    %92 = vector.multi_reduction <maximumf>, %91, %cst_46 [1] : vector<64x64xf32> to vector<64xf32>
    %93 = vector.shape_cast %92 : vector<64xf32> to vector<64x1xf32>
    %94 = vector.broadcast %93 : vector<64x1xf32> to vector<64x64xf32>
    %95 = arith.subf %91, %94 : vector<64x64xf32>
    %96 = math.exp %95 : vector<64x64xf32>
    %cst_47 = arith.constant dense<0.000000e+00> : vector<64xf32>
    %97 = vector.multi_reduction <add>, %96, %cst_47 [1] : vector<64x64xf32> to vector<64xf32>
    %98 = vector.shape_cast %97 : vector<64xf32> to vector<64x1xf32>
    %99 = tpu.reciprocal %98 : vector<64x1xf32> -> vector<64x1xf32>
    %100 = vector.broadcast %99 : vector<64x1xf32> to vector<64x64xf32>
    %101 = arith.mulf %96, %100 : vector<64x64xf32>
    %102 = vector.broadcast %29 : vector<1x128xf32> to vector<64x128xf32>
    %103 = arith.mulf %68, %102 : vector<64x128xf32>
    %cst_48 = arith.constant dense<0.000000e+00> : vector<64x128xf32>
    %104 = tpu.matmul %101, %103, %cst_48 {dimension_numbers = #tpu.dot_dimension_numbers<[1], [0], [0], [1], [0, 0, 1, 1], [], []>} : vector<64x64xf32>, vector<64x128xf32>, vector<64x128xf32> -> vector<64x128xf32>
    %105 = arith.addf %87, %104 : vector<64x128xf32>
    %106 = vector.broadcast %30 : vector<1x128xf32> to vector<64x128xf32>
    %107 = arith.mulf %66, %106 : vector<64x128xf32>
    %cst_49 = arith.constant dense<0.000000e+00> : vector<64x64xf32>
    %108 = tpu.matmul %107, %67, %cst_49 {dimension_numbers = #tpu.dot_dimension_numbers<[1], [1], [0], [0], [0, 0, 1, 0], [], []>} : vector<64x128xf32>, vector<64x128xf32>, vector<64x64xf32> -> vector<64x64xf32>
    %109 = arith.addf %108, %27 : vector<64x64xf32>
    %cst_50 = arith.constant dense<0xFF800000> : vector<64xf32>
    %110 = vector.multi_reduction <maximumf>, %109, %cst_50 [1] : vector<64x64xf32> to vector<64xf32>
    %111 = vector.shape_cast %110 : vector<64xf32> to vector<64x1xf32>
    %112 = vector.broadcast %111 : vector<64x1xf32> to vector<64x64xf32>
    %113 = arith.subf %109, %112 : vector<64x64xf32>
    %114 = math.exp %113 : vector<64x64xf32>
    %cst_51 = arith.constant dense<0.000000e+00> : vector<64xf32>
    %115 = vector.multi_reduction <add>, %114, %cst_51 [1] : vector<64x64xf32> to vector<64xf32>
    %116 = vector.shape_cast %115 : vector<64xf32> to vector<64x1xf32>
    %117 = tpu.reciprocal %116 : vector<64x1xf32> -> vector<64x1xf32>
    %118 = vector.broadcast %117 : vector<64x1xf32> to vector<64x64xf32>
    %119 = arith.mulf %114, %118 : vector<64x64xf32>
    %120 = vector.broadcast %30 : vector<1x128xf32> to vector<64x128xf32>
    %121 = arith.mulf %68, %120 : vector<64x128xf32>
    %cst_52 = arith.constant dense<0.000000e+00> : vector<64x128xf32>
    %122 = tpu.matmul %119, %121, %cst_52 {dimension_numbers = #tpu.dot_dimension_numbers<[1], [0], [0], [1], [0, 0, 1, 1], [], []>} : vector<64x64xf32>, vector<64x128xf32>, vector<64x128xf32> -> vector<64x128xf32>
    %123 = arith.addf %105, %122 : vector<64x128xf32>
    %124 = vector.broadcast %31 : vector<1x128xf32> to vector<64x128xf32>
    %125 = arith.mulf %66, %124 : vector<64x128xf32>
    %cst_53 = arith.constant dense<0.000000e+00> : vector<64x64xf32>
    %126 = tpu.matmul %125, %67, %cst_53 {dimension_numbers = #tpu.dot_dimension_numbers<[1], [1], [0], [0], [0, 0, 1, 0], [], []>} : vector<64x128xf32>, vector<64x128xf32>, vector<64x64xf32> -> vector<64x64xf32>
    %127 = arith.addf %126, %27 : vector<64x64xf32>
    %cst_54 = arith.constant dense<0xFF800000> : vector<64xf32>
    %128 = vector.multi_reduction <maximumf>, %127, %cst_54 [1] : vector<64x64xf32> to vector<64xf32>
    %129 = vector.shape_cast %128 : vector<64xf32> to vector<64x1xf32>
    %130 = vector.broadcast %129 : vector<64x1xf32> to vector<64x64xf32>
    %131 = arith.subf %127, %130 : vector<64x64xf32>
    %132 = math.exp %131 : vector<64x64xf32>
    %cst_55 = arith.constant dense<0.000000e+00> : vector<64xf32>
    %133 = vector.multi_reduction <add>, %132, %cst_55 [1] : vector<64x64xf32> to vector<64xf32>
    %134 = vector.shape_cast %133 : vector<64xf32> to vector<64x1xf32>
    %135 = tpu.reciprocal %134 : vector<64x1xf32> -> vector<64x1xf32>
    %136 = vector.broadcast %135 : vector<64x1xf32> to vector<64x64xf32>
    %137 = arith.mulf %132, %136 : vector<64x64xf32>
    %138 = vector.broadcast %31 : vector<1x128xf32> to vector<64x128xf32>
    %139 = arith.mulf %68, %138 : vector<64x128xf32>
    %cst_56 = arith.constant dense<0.000000e+00> : vector<64x128xf32>
    %140 = tpu.matmul %137, %139, %cst_56 {dimension_numbers = #tpu.dot_dimension_numbers<[1], [0], [0], [1], [0, 0, 1, 1], [], []>} : vector<64x64xf32>, vector<64x128xf32>, vector<64x128xf32> -> vector<64x128xf32>
    %141 = arith.addf %123, %140 : vector<64x128xf32>
    %c0_57 = arith.constant 0 : index
    %c0_58 = arith.constant 0 : index
    %c0_59 = arith.constant 0 : index
    %142 = vector.load %arg12[%c0_57, %c0_58, %c0_59] : memref<2x128x128xbf16, #tpu.memory_space<vmem>>, vector<1x128x128xbf16>
    %143 = vector.shape_cast %142 : vector<1x128x128xbf16> to vector<128x128xbf16>
    %144 = arith.truncf %141 : vector<64x128xf32> to vector<64x128xbf16>
    %cst_60 = arith.constant dense<0.000000e+00> : vector<64x128xf32>
    %145 = tpu.matmul %144, %143, %cst_60 {dimension_numbers = #tpu.dot_dimension_numbers<[1], [0], [0], [1], [0, 0, 1, 1], [], []>} : vector<64x128xbf16>, vector<128x128xbf16>, vector<64x128xf32> -> vector<64x128xf32>
    %c0_61 = arith.constant 0 : index
    %c0_62 = arith.constant 0 : index
    %c0_63 = arith.constant 0 : index
    %146 = vector.load %arg13[%c0_61, %c0_62, %c0_63] : memref<2x1x128xf32, #tpu.memory_space<vmem>>, vector<1x1x128xf32>
    %147 = vector.shape_cast %146 : vector<1x1x128xf32> to vector<1x128xf32>
    %148 = vector.broadcast %147 : vector<1x128xf32> to vector<64x128xf32>
    %149 = arith.addf %145, %148 : vector<64x128xf32>
    %150 = arith.addf %26, %149 : vector<64x128xf32>
    %c0_64 = arith.constant 0 : index
    %c0_65 = arith.constant 0 : index
    %c0_66 = arith.constant 0 : index
    %151 = vector.load %arg14[%c0_64, %c0_65, %c0_66] : memref<2x1x128xf32, #tpu.memory_space<vmem>>, vector<1x1x128xf32>
    %152 = vector.shape_cast %151 : vector<1x1x128xf32> to vector<1x128xf32>
    %c0_67 = arith.constant 0 : index
    %c0_68 = arith.constant 0 : index
    %c0_69 = arith.constant 0 : index
    %153 = vector.load %arg15[%c0_67, %c0_68, %c0_69] : memref<2x1x128xf32, #tpu.memory_space<vmem>>, vector<1x1x128xf32>
    %154 = vector.shape_cast %153 : vector<1x1x128xf32> to vector<1x128xf32>
    %cst_70 = arith.constant dense<0.000000e+00> : vector<64xf32>
    %155 = vector.multi_reduction <add>, %150, %cst_70 [1] : vector<64x128xf32> to vector<64xf32>
    %156 = vector.shape_cast %155 : vector<64xf32> to vector<64x1xf32>
    %cst_71 = arith.constant 1.280000e+02 : f32
    %157 = vector.broadcast %cst_71 : f32 to vector<64x1xf32>
    %158 = arith.divf %156, %157 : vector<64x1xf32>
    %159 = vector.broadcast %158 : vector<64x1xf32> to vector<64x128xf32>
    %160 = arith.subf %150, %159 : vector<64x128xf32>
    %161 = arith.mulf %160, %160 : vector<64x128xf32>
    %cst_72 = arith.constant dense<0.000000e+00> : vector<64xf32>
    %162 = vector.multi_reduction <add>, %161, %cst_72 [1] : vector<64x128xf32> to vector<64xf32>
    %163 = vector.shape_cast %162 : vector<64xf32> to vector<64x1xf32>
    %cst_73 = arith.constant 1.280000e+02 : f32
    %164 = vector.broadcast %cst_73 : f32 to vector<64x1xf32>
    %165 = arith.divf %163, %164 : vector<64x1xf32>
    %cst_74 = arith.constant 9.99999974E-6 : f32
    %166 = vector.broadcast %cst_74 : f32 to vector<64x1xf32>
    %167 = arith.addf %165, %166 : vector<64x1xf32>
    %168 = math.rsqrt %167 : vector<64x1xf32>
    %169 = vector.broadcast %168 : vector<64x1xf32> to vector<64x128xf32>
    %170 = arith.mulf %160, %169 : vector<64x128xf32>
    %171 = vector.broadcast %152 : vector<1x128xf32> to vector<64x128xf32>
    %172 = arith.mulf %170, %171 : vector<64x128xf32>
    %173 = vector.broadcast %154 : vector<1x128xf32> to vector<64x128xf32>
    %174 = arith.addf %172, %173 : vector<64x128xf32>
    %c0_75 = arith.constant 0 : index
    %c0_76 = arith.constant 0 : index
    %c0_77 = arith.constant 0 : index
    %175 = vector.load %arg16[%c0_75, %c0_76, %c0_77] : memref<2x128x512xbf16, #tpu.memory_space<vmem>>, vector<1x128x512xbf16>
    %176 = vector.shape_cast %175 : vector<1x128x512xbf16> to vector<128x512xbf16>
    %177 = arith.truncf %174 : vector<64x128xf32> to vector<64x128xbf16>
    %cst_78 = arith.constant dense<0.000000e+00> : vector<64x512xf32>
    %178 = tpu.matmul %177, %176, %cst_78 {dimension_numbers = #tpu.dot_dimension_numbers<[1], [0], [0], [1], [0, 0, 1, 1], [], []>} : vector<64x128xbf16>, vector<128x512xbf16>, vector<64x512xf32> -> vector<64x512xf32>
    %c0_79 = arith.constant 0 : index
    %c0_80 = arith.constant 0 : index
    %c0_81 = arith.constant 0 : index
    %179 = vector.load %arg17[%c0_79, %c0_80, %c0_81] : memref<2x1x512xf32, #tpu.memory_space<vmem>>, vector<1x1x512xf32>
    %180 = vector.shape_cast %179 : vector<1x1x512xf32> to vector<1x512xf32>
    %181 = vector.broadcast %180 : vector<1x512xf32> to vector<64x512xf32>
    %182 = arith.addf %178, %181 : vector<64x512xf32>
    %cst_82 = arith.constant 1.702000e+00 : f32
    %183 = vector.broadcast %cst_82 : f32 to vector<64x512xf32>
    %184 = arith.mulf %183, %182 : vector<64x512xf32>
    %185 = arith.negf %184 : vector<64x512xf32>
    %186 = math.exp %185 : vector<64x512xf32>
    %cst_83 = arith.constant 1.000000e+00 : f32
    %187 = vector.broadcast %cst_83 : f32 to vector<64x512xf32>
    %188 = arith.addf %187, %186 : vector<64x512xf32>
    %189 = arith.divf %187, %188 : vector<64x512xf32>
    %190 = arith.mulf %182, %189 : vector<64x512xf32>
    %c0_84 = arith.constant 0 : index
    %c0_85 = arith.constant 0 : index
    %c0_86 = arith.constant 0 : index
    %191 = vector.load %arg18[%c0_84, %c0_85, %c0_86] : memref<2x512x128xbf16, #tpu.memory_space<vmem>>, vector<1x512x128xbf16>
    %192 = vector.shape_cast %191 : vector<1x512x128xbf16> to vector<512x128xbf16>
    %193 = arith.truncf %190 : vector<64x512xf32> to vector<64x512xbf16>
    %cst_87 = arith.constant dense<0.000000e+00> : vector<64x128xf32>
    %194 = tpu.matmul %193, %192, %cst_87 {dimension_numbers = #tpu.dot_dimension_numbers<[1], [0], [0], [1], [0, 0, 1, 1], [], []>} : vector<64x512xbf16>, vector<512x128xbf16>, vector<64x128xf32> -> vector<64x128xf32>
    %c0_88 = arith.constant 0 : index
    %c0_89 = arith.constant 0 : index
    %c0_90 = arith.constant 0 : index
    %195 = vector.load %arg19[%c0_88, %c0_89, %c0_90] : memref<2x1x128xf32, #tpu.memory_space<vmem>>, vector<1x1x128xf32>
    %196 = vector.shape_cast %195 : vector<1x1x128xf32> to vector<1x128xf32>
    %197 = vector.broadcast %196 : vector<1x128xf32> to vector<64x128xf32>
    %198 = arith.addf %194, %197 : vector<64x128xf32>
    %199 = arith.addf %150, %198 : vector<64x128xf32>
    %c1_91 = arith.constant 1 : index
    %c0_92 = arith.constant 0 : index
    %c0_93 = arith.constant 0 : index
    %200 = vector.load %arg8[%c1_91, %c0_92, %c0_93] : memref<2x1x128xf32, #tpu.memory_space<vmem>>, vector<1x1x128xf32>
    %201 = vector.shape_cast %200 : vector<1x1x128xf32> to vector<1x128xf32>
    %c1_94 = arith.constant 1 : index
    %c0_95 = arith.constant 0 : index
    %c0_96 = arith.constant 0 : index
    %202 = vector.load %arg9[%c1_94, %c0_95, %c0_96] : memref<2x1x128xf32, #tpu.memory_space<vmem>>, vector<1x1x128xf32>
    %203 = vector.shape_cast %202 : vector<1x1x128xf32> to vector<1x128xf32>
    %cst_97 = arith.constant dense<0.000000e+00> : vector<64xf32>
    %204 = vector.multi_reduction <add>, %199, %cst_97 [1] : vector<64x128xf32> to vector<64xf32>
    %205 = vector.shape_cast %204 : vector<64xf32> to vector<64x1xf32>
    %cst_98 = arith.constant 1.280000e+02 : f32
    %206 = vector.broadcast %cst_98 : f32 to vector<64x1xf32>
    %207 = arith.divf %205, %206 : vector<64x1xf32>
    %208 = vector.broadcast %207 : vector<64x1xf32> to vector<64x128xf32>
    %209 = arith.subf %199, %208 : vector<64x128xf32>
    %210 = arith.mulf %209, %209 : vector<64x128xf32>
    %cst_99 = arith.constant dense<0.000000e+00> : vector<64xf32>
    %211 = vector.multi_reduction <add>, %210, %cst_99 [1] : vector<64x128xf32> to vector<64xf32>
    %212 = vector.shape_cast %211 : vector<64xf32> to vector<64x1xf32>
    %cst_100 = arith.constant 1.280000e+02 : f32
    %213 = vector.broadcast %cst_100 : f32 to vector<64x1xf32>
    %214 = arith.divf %212, %213 : vector<64x1xf32>
    %cst_101 = arith.constant 9.99999974E-6 : f32
    %215 = vector.broadcast %cst_101 : f32 to vector<64x1xf32>
    %216 = arith.addf %214, %215 : vector<64x1xf32>
    %217 = math.rsqrt %216 : vector<64x1xf32>
    %218 = vector.broadcast %217 : vector<64x1xf32> to vector<64x128xf32>
    %219 = arith.mulf %209, %218 : vector<64x128xf32>
    %220 = vector.broadcast %201 : vector<1x128xf32> to vector<64x128xf32>
    %221 = arith.mulf %219, %220 : vector<64x128xf32>
    %222 = vector.broadcast %203 : vector<1x128xf32> to vector<64x128xf32>
    %223 = arith.addf %221, %222 : vector<64x128xf32>
    %c1_102 = arith.constant 1 : index
    %c0_103 = arith.constant 0 : index
    %c0_104 = arith.constant 0 : index
    %224 = vector.load %arg10[%c1_102, %c0_103, %c0_104] : memref<2x128x384xbf16, #tpu.memory_space<vmem>>, vector<1x128x384xbf16>
    %225 = vector.shape_cast %224 : vector<1x128x384xbf16> to vector<128x384xbf16>
    %226 = arith.truncf %223 : vector<64x128xf32> to vector<64x128xbf16>
    %cst_105 = arith.constant dense<0.000000e+00> : vector<64x384xf32>
    %227 = tpu.matmul %226, %225, %cst_105 {dimension_numbers = #tpu.dot_dimension_numbers<[1], [0], [0], [1], [0, 0, 1, 1], [], []>} : vector<64x128xbf16>, vector<128x384xbf16>, vector<64x384xf32> -> vector<64x384xf32>
    %c1_106 = arith.constant 1 : index
    %c0_107 = arith.constant 0 : index
    %c0_108 = arith.constant 0 : index
    %228 = vector.load %arg11[%c1_106, %c0_107, %c0_108] : memref<2x1x384xf32, #tpu.memory_space<vmem>>, vector<1x1x384xf32>
    %229 = vector.shape_cast %228 : vector<1x1x384xf32> to vector<1x384xf32>
    %230 = vector.broadcast %229 : vector<1x384xf32> to vector<64x384xf32>
    %231 = arith.addf %227, %230 : vector<64x384xf32>
    %232 = vector.extract_strided_slice %231 {offsets = [0, 0], sizes = [64, 128], strides = [1, 1]} : vector<64x384xf32> to vector<64x128xf32>
    %cst_109 = arith.constant 0.176776692 : f32
    %233 = vector.broadcast %cst_109 : f32 to vector<64x128xf32>
    %234 = arith.mulf %232, %233 : vector<64x128xf32>
    %235 = vector.extract_strided_slice %231 {offsets = [0, 128], sizes = [64, 128], strides = [1, 1]} : vector<64x384xf32> to vector<64x128xf32>
    %236 = vector.extract_strided_slice %231 {offsets = [0, 256], sizes = [64, 128], strides = [1, 1]} : vector<64x384xf32> to vector<64x128xf32>
    %cst_110 = arith.constant 0.000000e+00 : f32
    %237 = vector.broadcast %cst_110 : f32 to vector<64x128xf32>
    %238 = vector.broadcast %28 : vector<1x128xf32> to vector<64x128xf32>
    %239 = arith.mulf %234, %238 : vector<64x128xf32>
    %cst_111 = arith.constant dense<0.000000e+00> : vector<64x64xf32>
    %240 = tpu.matmul %239, %235, %cst_111 {dimension_numbers = #tpu.dot_dimension_numbers<[1], [1], [0], [0], [0, 0, 1, 0], [], []>} : vector<64x128xf32>, vector<64x128xf32>, vector<64x64xf32> -> vector<64x64xf32>
    %241 = arith.addf %240, %27 : vector<64x64xf32>
    %cst_112 = arith.constant dense<0xFF800000> : vector<64xf32>
    %242 = vector.multi_reduction <maximumf>, %241, %cst_112 [1] : vector<64x64xf32> to vector<64xf32>
    %243 = vector.shape_cast %242 : vector<64xf32> to vector<64x1xf32>
    %244 = vector.broadcast %243 : vector<64x1xf32> to vector<64x64xf32>
    %245 = arith.subf %241, %244 : vector<64x64xf32>
    %246 = math.exp %245 : vector<64x64xf32>
    %cst_113 = arith.constant dense<0.000000e+00> : vector<64xf32>
    %247 = vector.multi_reduction <add>, %246, %cst_113 [1] : vector<64x64xf32> to vector<64xf32>
    %248 = vector.shape_cast %247 : vector<64xf32> to vector<64x1xf32>
    %249 = tpu.reciprocal %248 : vector<64x1xf32> -> vector<64x1xf32>
    %250 = vector.broadcast %249 : vector<64x1xf32> to vector<64x64xf32>
    %251 = arith.mulf %246, %250 : vector<64x64xf32>
    %252 = vector.broadcast %28 : vector<1x128xf32> to vector<64x128xf32>
    %253 = arith.mulf %236, %252 : vector<64x128xf32>
    %cst_114 = arith.constant dense<0.000000e+00> : vector<64x128xf32>
    %254 = tpu.matmul %251, %253, %cst_114 {dimension_numbers = #tpu.dot_dimension_numbers<[1], [0], [0], [1], [0, 0, 1, 1], [], []>} : vector<64x64xf32>, vector<64x128xf32>, vector<64x128xf32> -> vector<64x128xf32>
    %255 = arith.addf %237, %254 : vector<64x128xf32>
    %256 = vector.broadcast %29 : vector<1x128xf32> to vector<64x128xf32>
    %257 = arith.mulf %234, %256 : vector<64x128xf32>
    %cst_115 = arith.constant dense<0.000000e+00> : vector<64x64xf32>
    %258 = tpu.matmul %257, %235, %cst_115 {dimension_numbers = #tpu.dot_dimension_numbers<[1], [1], [0], [0], [0, 0, 1, 0], [], []>} : vector<64x128xf32>, vector<64x128xf32>, vector<64x64xf32> -> vector<64x64xf32>
    %259 = arith.addf %258, %27 : vector<64x64xf32>
    %cst_116 = arith.constant dense<0xFF800000> : vector<64xf32>
    %260 = vector.multi_reduction <maximumf>, %259, %cst_116 [1] : vector<64x64xf32> to vector<64xf32>
    %261 = vector.shape_cast %260 : vector<64xf32> to vector<64x1xf32>
    %262 = vector.broadcast %261 : vector<64x1xf32> to vector<64x64xf32>
    %263 = arith.subf %259, %262 : vector<64x64xf32>
    %264 = math.exp %263 : vector<64x64xf32>
    %cst_117 = arith.constant dense<0.000000e+00> : vector<64xf32>
    %265 = vector.multi_reduction <add>, %264, %cst_117 [1] : vector<64x64xf32> to vector<64xf32>
    %266 = vector.shape_cast %265 : vector<64xf32> to vector<64x1xf32>
    %267 = tpu.reciprocal %266 : vector<64x1xf32> -> vector<64x1xf32>
    %268 = vector.broadcast %267 : vector<64x1xf32> to vector<64x64xf32>
    %269 = arith.mulf %264, %268 : vector<64x64xf32>
    %270 = vector.broadcast %29 : vector<1x128xf32> to vector<64x128xf32>
    %271 = arith.mulf %236, %270 : vector<64x128xf32>
    %cst_118 = arith.constant dense<0.000000e+00> : vector<64x128xf32>
    %272 = tpu.matmul %269, %271, %cst_118 {dimension_numbers = #tpu.dot_dimension_numbers<[1], [0], [0], [1], [0, 0, 1, 1], [], []>} : vector<64x64xf32>, vector<64x128xf32>, vector<64x128xf32> -> vector<64x128xf32>
    %273 = arith.addf %255, %272 : vector<64x128xf32>
    %274 = vector.broadcast %30 : vector<1x128xf32> to vector<64x128xf32>
    %275 = arith.mulf %234, %274 : vector<64x128xf32>
    %cst_119 = arith.constant dense<0.000000e+00> : vector<64x64xf32>
    %276 = tpu.matmul %275, %235, %cst_119 {dimension_numbers = #tpu.dot_dimension_numbers<[1], [1], [0], [0], [0, 0, 1, 0], [], []>} : vector<64x128xf32>, vector<64x128xf32>, vector<64x64xf32> -> vector<64x64xf32>
    %277 = arith.addf %276, %27 : vector<64x64xf32>
    %cst_120 = arith.constant dense<0xFF800000> : vector<64xf32>
    %278 = vector.multi_reduction <maximumf>, %277, %cst_120 [1] : vector<64x64xf32> to vector<64xf32>
    %279 = vector.shape_cast %278 : vector<64xf32> to vector<64x1xf32>
    %280 = vector.broadcast %279 : vector<64x1xf32> to vector<64x64xf32>
    %281 = arith.subf %277, %280 : vector<64x64xf32>
    %282 = math.exp %281 : vector<64x64xf32>
    %cst_121 = arith.constant dense<0.000000e+00> : vector<64xf32>
    %283 = vector.multi_reduction <add>, %282, %cst_121 [1] : vector<64x64xf32> to vector<64xf32>
    %284 = vector.shape_cast %283 : vector<64xf32> to vector<64x1xf32>
    %285 = tpu.reciprocal %284 : vector<64x1xf32> -> vector<64x1xf32>
    %286 = vector.broadcast %285 : vector<64x1xf32> to vector<64x64xf32>
    %287 = arith.mulf %282, %286 : vector<64x64xf32>
    %288 = vector.broadcast %30 : vector<1x128xf32> to vector<64x128xf32>
    %289 = arith.mulf %236, %288 : vector<64x128xf32>
    %cst_122 = arith.constant dense<0.000000e+00> : vector<64x128xf32>
    %290 = tpu.matmul %287, %289, %cst_122 {dimension_numbers = #tpu.dot_dimension_numbers<[1], [0], [0], [1], [0, 0, 1, 1], [], []>} : vector<64x64xf32>, vector<64x128xf32>, vector<64x128xf32> -> vector<64x128xf32>
    %291 = arith.addf %273, %290 : vector<64x128xf32>
    %292 = vector.broadcast %31 : vector<1x128xf32> to vector<64x128xf32>
    %293 = arith.mulf %234, %292 : vector<64x128xf32>
    %cst_123 = arith.constant dense<0.000000e+00> : vector<64x64xf32>
    %294 = tpu.matmul %293, %235, %cst_123 {dimension_numbers = #tpu.dot_dimension_numbers<[1], [1], [0], [0], [0, 0, 1, 0], [], []>} : vector<64x128xf32>, vector<64x128xf32>, vector<64x64xf32> -> vector<64x64xf32>
    %295 = arith.addf %294, %27 : vector<64x64xf32>
    %cst_124 = arith.constant dense<0xFF800000> : vector<64xf32>
    %296 = vector.multi_reduction <maximumf>, %295, %cst_124 [1] : vector<64x64xf32> to vector<64xf32>
    %297 = vector.shape_cast %296 : vector<64xf32> to vector<64x1xf32>
    %298 = vector.broadcast %297 : vector<64x1xf32> to vector<64x64xf32>
    %299 = arith.subf %295, %298 : vector<64x64xf32>
    %300 = math.exp %299 : vector<64x64xf32>
    %cst_125 = arith.constant dense<0.000000e+00> : vector<64xf32>
    %301 = vector.multi_reduction <add>, %300, %cst_125 [1] : vector<64x64xf32> to vector<64xf32>
    %302 = vector.shape_cast %301 : vector<64xf32> to vector<64x1xf32>
    %303 = tpu.reciprocal %302 : vector<64x1xf32> -> vector<64x1xf32>
    %304 = vector.broadcast %303 : vector<64x1xf32> to vector<64x64xf32>
    %305 = arith.mulf %300, %304 : vector<64x64xf32>
    %306 = vector.broadcast %31 : vector<1x128xf32> to vector<64x128xf32>
    %307 = arith.mulf %236, %306 : vector<64x128xf32>
    %cst_126 = arith.constant dense<0.000000e+00> : vector<64x128xf32>
    %308 = tpu.matmul %305, %307, %cst_126 {dimension_numbers = #tpu.dot_dimension_numbers<[1], [0], [0], [1], [0, 0, 1, 1], [], []>} : vector<64x64xf32>, vector<64x128xf32>, vector<64x128xf32> -> vector<64x128xf32>
    %309 = arith.addf %291, %308 : vector<64x128xf32>
    %c1_127 = arith.constant 1 : index
    %c0_128 = arith.constant 0 : index
    %c0_129 = arith.constant 0 : index
    %310 = vector.load %arg12[%c1_127, %c0_128, %c0_129] : memref<2x128x128xbf16, #tpu.memory_space<vmem>>, vector<1x128x128xbf16>
    %311 = vector.shape_cast %310 : vector<1x128x128xbf16> to vector<128x128xbf16>
    %312 = arith.truncf %309 : vector<64x128xf32> to vector<64x128xbf16>
    %cst_130 = arith.constant dense<0.000000e+00> : vector<64x128xf32>
    %313 = tpu.matmul %312, %311, %cst_130 {dimension_numbers = #tpu.dot_dimension_numbers<[1], [0], [0], [1], [0, 0, 1, 1], [], []>} : vector<64x128xbf16>, vector<128x128xbf16>, vector<64x128xf32> -> vector<64x128xf32>
    %c1_131 = arith.constant 1 : index
    %c0_132 = arith.constant 0 : index
    %c0_133 = arith.constant 0 : index
    %314 = vector.load %arg13[%c1_131, %c0_132, %c0_133] : memref<2x1x128xf32, #tpu.memory_space<vmem>>, vector<1x1x128xf32>
    %315 = vector.shape_cast %314 : vector<1x1x128xf32> to vector<1x128xf32>
    %316 = vector.broadcast %315 : vector<1x128xf32> to vector<64x128xf32>
    %317 = arith.addf %313, %316 : vector<64x128xf32>
    %318 = arith.addf %199, %317 : vector<64x128xf32>
    %c1_134 = arith.constant 1 : index
    %c0_135 = arith.constant 0 : index
    %c0_136 = arith.constant 0 : index
    %319 = vector.load %arg14[%c1_134, %c0_135, %c0_136] : memref<2x1x128xf32, #tpu.memory_space<vmem>>, vector<1x1x128xf32>
    %320 = vector.shape_cast %319 : vector<1x1x128xf32> to vector<1x128xf32>
    %c1_137 = arith.constant 1 : index
    %c0_138 = arith.constant 0 : index
    %c0_139 = arith.constant 0 : index
    %321 = vector.load %arg15[%c1_137, %c0_138, %c0_139] : memref<2x1x128xf32, #tpu.memory_space<vmem>>, vector<1x1x128xf32>
    %322 = vector.shape_cast %321 : vector<1x1x128xf32> to vector<1x128xf32>
    %cst_140 = arith.constant dense<0.000000e+00> : vector<64xf32>
    %323 = vector.multi_reduction <add>, %318, %cst_140 [1] : vector<64x128xf32> to vector<64xf32>
    %324 = vector.shape_cast %323 : vector<64xf32> to vector<64x1xf32>
    %cst_141 = arith.constant 1.280000e+02 : f32
    %325 = vector.broadcast %cst_141 : f32 to vector<64x1xf32>
    %326 = arith.divf %324, %325 : vector<64x1xf32>
    %327 = vector.broadcast %326 : vector<64x1xf32> to vector<64x128xf32>
    %328 = arith.subf %318, %327 : vector<64x128xf32>
    %329 = arith.mulf %328, %328 : vector<64x128xf32>
    %cst_142 = arith.constant dense<0.000000e+00> : vector<64xf32>
    %330 = vector.multi_reduction <add>, %329, %cst_142 [1] : vector<64x128xf32> to vector<64xf32>
    %331 = vector.shape_cast %330 : vector<64xf32> to vector<64x1xf32>
    %cst_143 = arith.constant 1.280000e+02 : f32
    %332 = vector.broadcast %cst_143 : f32 to vector<64x1xf32>
    %333 = arith.divf %331, %332 : vector<64x1xf32>
    %cst_144 = arith.constant 9.99999974E-6 : f32
    %334 = vector.broadcast %cst_144 : f32 to vector<64x1xf32>
    %335 = arith.addf %333, %334 : vector<64x1xf32>
    %336 = math.rsqrt %335 : vector<64x1xf32>
    %337 = vector.broadcast %336 : vector<64x1xf32> to vector<64x128xf32>
    %338 = arith.mulf %328, %337 : vector<64x128xf32>
    %339 = vector.broadcast %320 : vector<1x128xf32> to vector<64x128xf32>
    %340 = arith.mulf %338, %339 : vector<64x128xf32>
    %341 = vector.broadcast %322 : vector<1x128xf32> to vector<64x128xf32>
    %342 = arith.addf %340, %341 : vector<64x128xf32>
    %c1_145 = arith.constant 1 : index
    %c0_146 = arith.constant 0 : index
    %c0_147 = arith.constant 0 : index
    %343 = vector.load %arg16[%c1_145, %c0_146, %c0_147] : memref<2x128x512xbf16, #tpu.memory_space<vmem>>, vector<1x128x512xbf16>
    %344 = vector.shape_cast %343 : vector<1x128x512xbf16> to vector<128x512xbf16>
    %345 = arith.truncf %342 : vector<64x128xf32> to vector<64x128xbf16>
    %cst_148 = arith.constant dense<0.000000e+00> : vector<64x512xf32>
    %346 = tpu.matmul %345, %344, %cst_148 {dimension_numbers = #tpu.dot_dimension_numbers<[1], [0], [0], [1], [0, 0, 1, 1], [], []>} : vector<64x128xbf16>, vector<128x512xbf16>, vector<64x512xf32> -> vector<64x512xf32>
    %c1_149 = arith.constant 1 : index
    %c0_150 = arith.constant 0 : index
    %c0_151 = arith.constant 0 : index
    %347 = vector.load %arg17[%c1_149, %c0_150, %c0_151] : memref<2x1x512xf32, #tpu.memory_space<vmem>>, vector<1x1x512xf32>
    %348 = vector.shape_cast %347 : vector<1x1x512xf32> to vector<1x512xf32>
    %349 = vector.broadcast %348 : vector<1x512xf32> to vector<64x512xf32>
    %350 = arith.addf %346, %349 : vector<64x512xf32>
    %cst_152 = arith.constant 1.702000e+00 : f32
    %351 = vector.broadcast %cst_152 : f32 to vector<64x512xf32>
    %352 = arith.mulf %351, %350 : vector<64x512xf32>
    %353 = arith.negf %352 : vector<64x512xf32>
    %354 = math.exp %353 : vector<64x512xf32>
    %cst_153 = arith.constant 1.000000e+00 : f32
    %355 = vector.broadcast %cst_153 : f32 to vector<64x512xf32>
    %356 = arith.addf %355, %354 : vector<64x512xf32>
    %357 = arith.divf %355, %356 : vector<64x512xf32>
    %358 = arith.mulf %350, %357 : vector<64x512xf32>
    %c1_154 = arith.constant 1 : index
    %c0_155 = arith.constant 0 : index
    %c0_156 = arith.constant 0 : index
    %359 = vector.load %arg18[%c1_154, %c0_155, %c0_156] : memref<2x512x128xbf16, #tpu.memory_space<vmem>>, vector<1x512x128xbf16>
    %360 = vector.shape_cast %359 : vector<1x512x128xbf16> to vector<512x128xbf16>
    %361 = arith.truncf %358 : vector<64x512xf32> to vector<64x512xbf16>
    %cst_157 = arith.constant dense<0.000000e+00> : vector<64x128xf32>
    %362 = tpu.matmul %361, %360, %cst_157 {dimension_numbers = #tpu.dot_dimension_numbers<[1], [0], [0], [1], [0, 0, 1, 1], [], []>} : vector<64x512xbf16>, vector<512x128xbf16>, vector<64x128xf32> -> vector<64x128xf32>
    %c1_158 = arith.constant 1 : index
    %c0_159 = arith.constant 0 : index
    %c0_160 = arith.constant 0 : index
    %363 = vector.load %arg19[%c1_158, %c0_159, %c0_160] : memref<2x1x128xf32, #tpu.memory_space<vmem>>, vector<1x1x128xf32>
    %364 = vector.shape_cast %363 : vector<1x1x128xf32> to vector<1x128xf32>
    %365 = vector.broadcast %364 : vector<1x128xf32> to vector<64x128xf32>
    %366 = arith.addf %362, %365 : vector<64x128xf32>
    %367 = arith.addf %318, %366 : vector<64x128xf32>
    %c0_161 = arith.constant 0 : index
    %c0_162 = arith.constant 0 : index
    %368 = vector.load %arg7[%c0_161, %c0_162] : memref<8x64xf32, #tpu.memory_space<vmem>>, vector<8x64xf32>
    %cst_163 = arith.constant dense<0.000000e+00> : vector<8x128xf32>
    %369 = tpu.matmul %368, %367, %cst_163 {dimension_numbers = #tpu.dot_dimension_numbers<[1], [0], [0], [1], [0, 0, 1, 1], [], []>} : vector<8x64xf32>, vector<64x128xf32>, vector<8x128xf32> -> vector<8x128xf32>
    %c0_164 = arith.constant 0 : index
    %c0_165 = arith.constant 0 : index
    %370 = vector.load %arg20[%c0_164, %c0_165] : memref<1x128xf32, #tpu.memory_space<vmem>>, vector<1x128xf32>
    %c0_166 = arith.constant 0 : index
    %c0_167 = arith.constant 0 : index
    %371 = vector.load %arg21[%c0_166, %c0_167] : memref<1x128xf32, #tpu.memory_space<vmem>>, vector<1x128xf32>
    %cst_168 = arith.constant dense<0.000000e+00> : vector<8xf32>
    %372 = vector.multi_reduction <add>, %369, %cst_168 [1] : vector<8x128xf32> to vector<8xf32>
    %373 = vector.shape_cast %372 : vector<8xf32> to vector<8x1xf32>
    %cst_169 = arith.constant 1.280000e+02 : f32
    %374 = vector.broadcast %cst_169 : f32 to vector<8x1xf32>
    %375 = arith.divf %373, %374 : vector<8x1xf32>
    %376 = vector.broadcast %375 : vector<8x1xf32> to vector<8x128xf32>
    %377 = arith.subf %369, %376 : vector<8x128xf32>
    %378 = arith.mulf %377, %377 : vector<8x128xf32>
    %cst_170 = arith.constant dense<0.000000e+00> : vector<8xf32>
    %379 = vector.multi_reduction <add>, %378, %cst_170 [1] : vector<8x128xf32> to vector<8xf32>
    %380 = vector.shape_cast %379 : vector<8xf32> to vector<8x1xf32>
    %cst_171 = arith.constant 1.280000e+02 : f32
    %381 = vector.broadcast %cst_171 : f32 to vector<8x1xf32>
    %382 = arith.divf %380, %381 : vector<8x1xf32>
    %cst_172 = arith.constant 9.99999974E-6 : f32
    %383 = vector.broadcast %cst_172 : f32 to vector<8x1xf32>
    %384 = arith.addf %382, %383 : vector<8x1xf32>
    %385 = math.rsqrt %384 : vector<8x1xf32>
    %386 = vector.broadcast %385 : vector<8x1xf32> to vector<8x128xf32>
    %387 = arith.mulf %377, %386 : vector<8x128xf32>
    %388 = vector.broadcast %370 : vector<1x128xf32> to vector<8x128xf32>
    %389 = arith.mulf %387, %388 : vector<8x128xf32>
    %390 = vector.broadcast %371 : vector<1x128xf32> to vector<8x128xf32>
    %391 = arith.addf %389, %390 : vector<8x128xf32>
    %c0_173 = arith.constant 0 : index
    %c0_174 = arith.constant 0 : index
    %392 = vector.load %arg22[%c0_173, %c0_174] : memref<128x128xbf16, #tpu.memory_space<vmem>>, vector<128x128xbf16>
    %393 = arith.truncf %391 : vector<8x128xf32> to vector<8x128xbf16>
    %cst_175 = arith.constant dense<0.000000e+00> : vector<8x128xf32>
    %394 = tpu.matmul %393, %392, %cst_175 {dimension_numbers = #tpu.dot_dimension_numbers<[1], [0], [0], [1], [0, 0, 1, 1], [], []>} : vector<8x128xbf16>, vector<128x128xbf16>, vector<8x128xf32> -> vector<8x128xf32>
    %c0_176 = arith.constant 0 : index
    %c0_177 = arith.constant 0 : index
    %395 = vector.load %arg23[%c0_176, %c0_177] : memref<8x128xf32, #tpu.memory_space<vmem>>, vector<8x128xf32>
    tpu.vector_store %arg23[%c0_176, %c0_177], %394 {strides = array<i32>} : memref<8x128xf32, #tpu.memory_space<vmem>>, vector<8x128xf32>,
    return
  }
}

</mosaic_0001>

<llo_original>
// kernel: encode_image_pallas.1
$region0: #{encode_image_pallas.1}
  #allocation0 [shape = 'u32[]', space=smem, size = 0x4, offset = 0x4, fixed_abs, tag = 'smem constant byte address 0x4 - core index']
  #allocation1 [shape = 'u32[144,128]{1,0:T(1,128)}', space=vmem, size = 0x12000, scoped, tag = 'internal scratch']
  %s0 = inlined_call_operand.vmem [shape: bf16[64,192], index: 0, kind: input, shape index: {}]
  %s1 = inlined_call_operand.vmem [shape: bf16[192,128], index: 1, kind: input, shape index: {}]
  %s2 = inlined_call_operand.vmem [shape: f32[64,128], index: 2, kind: input, shape index: {}]
  %s3 = inlined_call_operand.vmem [shape: f32[1,128], index: 3, kind: input, shape index: {}]
  %s4 = inlined_call_operand.vmem [shape: f32[1,128], index: 4, kind: input, shape index: {}]
  %s5 = inlined_call_operand.vmem [shape: f32[64,64], index: 5, kind: input, shape index: {}]
  %s6 = inlined_call_operand.vmem [shape: f32[4,128], index: 6, kind: input, shape index: {}]
  %s7 = inlined_call_operand.vmem [shape: f32[8,64], index: 7, kind: input, shape index: {}]
  %s8 = inlined_call_operand.vmem [shape: f32[2,1,128], index: 8, kind: input, shape index: {}]
  %s9 = inlined_call_operand.vmem [shape: f32[2,1,128], index: 9, kind: input, shape index: {}]
  %s10 = inlined_call_operand.vmem [shape: bf16[2,128,384], index: 10, kind: input, shape index: {}]
  %s11 = inlined_call_operand.vmem [shape: f32[2,1,384], index: 11, kind: input, shape index: {}]
  %s12 = inlined_call_operand.vmem [shape: bf16[2,128,128], index: 12, kind: input, shape index: {}]
  %s13 = inlined_call_operand.vmem [shape: f32[2,1,128], index: 13, kind: input, shape index: {}]
  %s14 = inlined_call_operand.vmem [shape: f32[2,1,128], index: 14, kind: input, shape index: {}]
  %s15 = inlined_call_operand.vmem [shape: f32[2,1,128], index: 15, kind: input, shape index: {}]
  %s16 = inlined_call_operand.vmem [shape: bf16[2,128,512], index: 16, kind: input, shape index: {}]
  %s17 = inlined_call_operand.vmem [shape: f32[2,1,512], index: 17, kind: input, shape index: {}]
  %s18 = inlined_call_operand.vmem [shape: bf16[2,512,128], index: 18, kind: input, shape index: {}]
  %s19 = inlined_call_operand.vmem [shape: f32[2,1,128], index: 19, kind: input, shape index: {}]
  %s20 = inlined_call_operand.vmem [shape: f32[1,128], index: 20, kind: input, shape index: {}]
  %s21 = inlined_call_operand.vmem [shape: f32[1,128], index: 21, kind: input, shape index: {}]
  %s22 = inlined_call_operand.vmem [shape: bf16[128,128], index: 22, kind: input, shape index: {}]
  %s23 = inlined_call_operand.hbm [shape: f32[8,128], index: 23, kind: output, shape index: {}]
  %s24 = sld [smem:[#allocation0]]
  $region102: #{encode_image_pallas.1} parent=0
    _
  %s26 = ssub.s32 1, %s24
  %s27 = scalar_select 0, %s26, %s24
  $region1: #{encode_image_pallas.1} parent=0
    #allocation2 [shape = 'u8[4096]{0}', space=vmem, size = 0x1000, scoped, tag = 'output window, operand 0, single buffered']
    #allocation3 [shape = 's32[1]{0}', space=sflag, size = 0x4, scoped, tag = 'scoped memory for encode_image_pallas.1']
    %28 = vsyncpa [#allocation3], 0
    // Predicated region
    $region2: #{encode_image_pallas.1} parent=1 // pred_check
      _
    $region3: #{encode_image_pallas.1} parent=1 // pred_check_branch
      %30 = sbr.rel (0) target = $region5
    $region4: #{encode_image_pallas.1} parent=1 // pred_region
      _
    $region5: #{encode_image_pallas.1} parent=1 // pred_fallthru
      _
    // Predicated region
    $region6: #{encode_image_pallas.1} parent=1 // pred_check
      _
    $region7: #{encode_image_pallas.1} parent=1 // pred_check_branch
      %32 = sbr.rel (0) target = $region9
    $region8: #{encode_image_pallas.1} parent=1 // pred_region
      _
    $region9: #{encode_image_pallas.1} parent=1 // pred_fallthru
      _
    // Predicated region
    $region10: #{encode_image_pallas.1} parent=1 // pred_check
      _
    $region11: #{encode_image_pallas.1} parent=1 // pred_check_branch
      %34 = sbr.rel (0) target = $region13
    $region12: #{encode_image_pallas.1} parent=1 // pred_region
      _
    $region13: #{encode_image_pallas.1} parent=1 // pred_fallthru
      _
    // Predicated region
    $region14: #{encode_image_pallas.1} parent=1 // pred_check
      _
    $region15: #{encode_image_pallas.1} parent=1 // pred_check_branch
      %36 = sbr.rel (0) target = $region17
    $region16: #{encode_image_pallas.1} parent=1 // pred_region
      _
    $region17: #{encode_image_pallas.1} parent=1 // pred_fallthru
      _
    // Predicated region
    $region18: #{encode_image_pallas.1} parent=1 // pred_check
      _
    $region19: #{encode_image_pallas.1} parent=1 // pred_check_branch
      %38 = sbr.rel (0) target = $region21
    $region20: #{encode_image_pallas.1} parent=1 // pred_region
      _
    $region21: #{encode_image_pallas.1} parent=1 // pred_fallthru
      _
    // Predicated region
    $region22: #{encode_image_pallas.1} parent=1 // pred_check
      _
    $region23: #{encode_image_pallas.1} parent=1 // pred_check_branch
      %40 = sbr.rel (0) target = $region25
    $region24: #{encode_image_pallas.1} parent=1 // pred_region
      _
    $region25: #{encode_image_pallas.1} parent=1 // pred_fallthru
      _
    // Predicated region
    $region26: #{encode_image_pallas.1} parent=1 // pred_check
      _
    $region27: #{encode_image_pallas.1} parent=1 // pred_check_branch
      %42 = sbr.rel (0) target = $region29
    $region28: #{encode_image_pallas.1} parent=1 // pred_region
      _
    $region29: #{encode_image_pallas.1} parent=1 // pred_fallthru
      _
    // Predicated region
    $region30: #{encode_image_pallas.1} parent=1 // pred_check
      _
    $region31: #{encode_image_pallas.1} parent=1 // pred_check_branch
      %44 = sbr.rel (0) target = $region33
    $region32: #{encode_image_pallas.1} parent=1 // pred_region
      _
    $region33: #{encode_image_pallas.1} parent=1 // pred_fallthru
      _
    // Predicated region
    $region34: #{encode_image_pallas.1} parent=1 // pred_check
      _
    $region35: #{encode_image_pallas.1} parent=1 // pred_check_branch
      %46 = sbr.rel (0) target = $region37
    $region36: #{encode_image_pallas.1} parent=1 // pred_region
      _
    $region37: #{encode_image_pallas.1} parent=1 // pred_fallthru
      _
    // Predicated region
    $region38: #{encode_image_pallas.1} parent=1 // pred_check
      _
    $region39: #{encode_image_pallas.1} parent=1 // pred_check_branch
      %48 = sbr.rel (0) target = $region41
    $region40: #{encode_image_pallas.1} parent=1 // pred_region
      _
    $region41: #{encode_image_pallas.1} parent=1 // pred_fallthru
      _
    // Predicated region
    $region42: #{encode_image_pallas.1} parent=1 // pred_check
      _
    $region43: #{encode_image_pallas.1} parent=1 // pred_check_branch
      %50 = sbr.rel (0) target = $region45
    $region44: #{encode_image_pallas.1} parent=1 // pred_region
      _
    $region45: #{encode_image_pallas.1} parent=1 // pred_fallthru
      _
    // Predicated region
    $region46: #{encode_image_pallas.1} parent=1 // pred_check
      _
    $region47: #{encode_image_pallas.1} parent=1 // pred_check_branch
      %52 = sbr.rel (0) target = $region49
    $region48: #{encode_image_pallas.1} parent=1 // pred_region
      _
    $region49: #{encode_image_pallas.1} parent=1 // pred_fallthru
      _
    // Predicated region
    $region50: #{encode_image_pallas.1} parent=1 // pred_check
      _
    $region51: #{encode_image_pallas.1} parent=1 // pred_check_branch
      %54 = sbr.rel (0) target = $region53
    $region52: #{encode_image_pallas.1} parent=1 // pred_region
      _
    $region53: #{encode_image_pallas.1} parent=1 // pred_fallthru
      _
    // Predicated region
    $region54: #{encode_image_pallas.1} parent=1 // pred_check
      _
    $region55: #{encode_image_pallas.1} parent=1 // pred_check_branch
      %56 = sbr.rel (0) target = $region57
    $region56: #{encode_image_pallas.1} parent=1 // pred_region
      _
    $region57: #{encode_image_pallas.1} parent=1 // pred_fallthru
      _
    // Predicated region
    $region58: #{encode_image_pallas.1} parent=1 // pred_check
      _
    $region59: #{encode_image_pallas.1} parent=1 // pred_check_branch
      %58 = sbr.rel (0) target = $region61
    $region60: #{encode_image_pallas.1} parent=1 // pred_region
      _
    $region61: #{encode_image_pallas.1} parent=1 // pred_fallthru
      _
    // Predicated region
    $region62: #{encode_image_pallas.1} parent=1 // pred_check
      _
    $region63: #{encode_image_pallas.1} parent=1 // pred_check_branch
      %60 = sbr.rel (0) target = $region65
    $region64: #{encode_image_pallas.1} parent=1 // pred_region
      _
    $region65: #{encode_image_pallas.1} parent=1 // pred_fallthru
      _
    // Predicated region
    $region66: #{encode_image_pallas.1} parent=1 // pred_check
      _
    $region67: #{encode_image_pallas.1} parent=1 // pred_check_branch
      %62 = sbr.rel (0) target = $region69
    $region68: #{encode_image_pallas.1} parent=1 // pred_region
      _
    $region69: #{encode_image_pallas.1} parent=1 // pred_fallthru
      _
    // Predicated region
    $region70: #{encode_image_pallas.1} parent=1 // pred_check
      _
    $region71: #{encode_image_pallas.1} parent=1 // pred_check_branch
      %64 = sbr.rel (0) target = $region73
    $region72: #{encode_image_pallas.1} parent=1 // pred_region
      _
    $region73: #{encode_image_pallas.1} parent=1 // pred_fallthru
      _
    // Predicated region
    $region74: #{encode_image_pallas.1} parent=1 // pred_check
      _
    $region75: #{encode_image_pallas.1} parent=1 // pred_check_branch
      %66 = sbr.rel (0) target = $region77
    $region76: #{encode_image_pallas.1} parent=1 // pred_region
      _
    $region77: #{encode_image_pallas.1} parent=1 // pred_fallthru
      _
    // Predicated region
    $region78: #{encode_image_pallas.1} parent=1 // pred_check
      _
    $region79: #{encode_image_pallas.1} parent=1 // pred_check_branch
      %68 = sbr.rel (0) target = $region81
    $region80: #{encode_image_pallas.1} parent=1 // pred_region
      _
    $region81: #{encode_image_pallas.1} parent=1 // pred_fallthru
      _
    // Predicated region
    $region82: #{encode_image_pallas.1} parent=1 // pred_check
      _
    $region83: #{encode_image_pallas.1} parent=1 // pred_check_branch
      %70 = sbr.rel (0) target = $region85
    $region84: #{encode_image_pallas.1} parent=1 // pred_region
      _
    $region85: #{encode_image_pallas.1} parent=1 // pred_fallthru
      _
    // Predicated region
    $region86: #{encode_image_pallas.1} parent=1 // pred_check
      _
    $region87: #{encode_image_pallas.1} parent=1 // pred_check_branch
      %72 = sbr.rel (0) target = $region89
    $region88: #{encode_image_pallas.1} parent=1 // pred_region
      _
    $region89: #{encode_image_pallas.1} parent=1 // pred_fallthru
      _
    // Predicated region
    $region90: #{encode_image_pallas.1} parent=1 // pred_check
      _
    $region91: #{encode_image_pallas.1} parent=1 // pred_check_branch
      %74 = sbr.rel (0) target = $region93
    $region92: #{encode_image_pallas.1} parent=1 // pred_region
      _
    $region93: #{encode_image_pallas.1} parent=1 // pred_fallthru
      _
    %v76 = vld [vmem:[%s0] sm:$0xff]
    %v77 = vld [vmem:[%s0 + $0x8] sm:$0xff]
    %v78 = vld [vmem:[%s0 + $0x10] sm:$0xff]
    %v79 = vld [vmem:[%s0 + $0x18] sm:$0xff]
    %v80 = vld [vmem:[%s0 + $0x20] sm:$0xff]
    %v81 = vld [vmem:[%s0 + $0x28] sm:$0xff]
    %v82 = vld [vmem:[%s0 + $0x30] sm:$0xff]
    %v83 = vld [vmem:[%s0 + $0x38] sm:$0xff]
    %v84 = vld [vmem:[%s1] sm:$0xf]
    %v85 = vld [vmem:[%s1 + $0x4] sm:$0xf]
    %v86 = vld [vmem:[%s1 + $0x8] sm:$0xf]
    %v87 = vld [vmem:[%s1 + $0xc] sm:$0xf]
    %v88 = vld [vmem:[%s1 + $0x10] sm:$0xf]
    %v89 = vld [vmem:[%s1 + $0x14] sm:$0xf]
    %v90 = vld [vmem:[%s1 + $0x18] sm:$0xf]
    %v91 = vld [vmem:[%s1 + $0x1c] sm:$0xf]
    %v92 = vld [vmem:[%s1 + $0x20] sm:$0xf]
    %v93 = vld [vmem:[%s1 + $0x24] sm:$0xf]
    %v94 = vld [vmem:[%s1 + $0x28] sm:$0xf]
    %v95 = vld [vmem:[%s1 + $0x2c] sm:$0xf]
    %v96 = vld [vmem:[%s1 + $0x30] sm:$0xf]
    %v97 = vld [vmem:[%s1 + $0x34] sm:$0xf]
    %v98 = vld [vmem:[%s1 + $0x38] sm:$0xf]
    %v99 = vld [vmem:[%s1 + $0x3c] sm:$0xf]
    %v100 = vld [vmem:[%s1 + $0x40] sm:$0xf]
    %v101 = vld [vmem:[%s1 + $0x44] sm:$0xf]
    %v102 = vld [vmem:[%s1 + $0x48] sm:$0xf]
    %v103 = vld [vmem:[%s1 + $0x4c] sm:$0xf]
    %v104 = vld [vmem:[%s1 + $0x50] sm:$0xf]
    %v105 = vld [vmem:[%s1 + $0x54] sm:$0xf]
    %v106 = vld [vmem:[%s1 + $0x58] sm:$0xf]
    %v107 = vld [vmem:[%s1 + $0x5c] sm:$0xf]
    %v108 = vld [vmem:[%s2] sm:$0xff]
    %v109 = vld [vmem:[%s2 + $0x8] sm:$0xff]
    %v110 = vld [vmem:[%s2 + $0x10] sm:$0xff]
    %v111 = vld [vmem:[%s2 + $0x18] sm:$0xff]
    %v112 = vld [vmem:[%s2 + $0x20] sm:$0xff]
    %v113 = vld [vmem:[%s2 + $0x28] sm:$0xff]
    %v114 = vld [vmem:[%s2 + $0x30] sm:$0xff]
    %v115 = vld [vmem:[%s2 + $0x38] sm:$0xff]
    %v124 = vunpack.c.l.b16 %v76
    %v125 = vunpack.c.h.b16 %v76
    %v126 = vunpack.c.l.b16 %v77
    %v127 = vunpack.c.h.b16 %v77
    %v128 = vunpack.c.l.b16 %v78
    %v129 = vunpack.c.h.b16 %v78
    %v130 = vunpack.c.l.b16 %v79
    %v131 = vunpack.c.h.b16 %v79
    %v132 = vunpack.c.l.b16 %v80
    %v133 = vunpack.c.h.b16 %v80
    %v134 = vunpack.c.l.b16 %v81
    %v135 = vunpack.c.h.b16 %v81
    %v136 = vunpack.c.l.b16 %v82
    %v137 = vunpack.c.h.b16 %v82
    %v138 = vunpack.c.l.b16 %v83
    %v139 = vunpack.c.h.b16 %v83
    %v140 = vpack.c.b16 %v126, %v124
    %v141 = vpack.c.b16 %v127, %v125
    %v142 = vpack.c.b16 %v130, %v128
    %v143 = vpack.c.b16 %v131, %v129
    %v144 = vpack.c.b16 %v134, %v132
    %v145 = vpack.c.b16 %v135, %v133
    %v146 = vpack.c.b16 %v138, %v136
    %v147 = vpack.c.b16 %v139, %v137
    %v176 = vunpack.c.l.b16 %v84
    %v177 = vunpack.c.l.b16 %v85
    %v178 = vunpack.c.l.b16 %v86
    %v179 = vunpack.c.l.b16 %v87
    %v180 = vunpack.c.l.b16 %v88
    %v181 = vunpack.c.l.b16 %v89
    %v182 = vunpack.c.l.b16 %v90
    %v183 = vunpack.c.l.b16 %v91
    %v184 = vunpack.c.l.b16 %v92
    %v185 = vunpack.c.l.b16 %v93
    %v186 = vunpack.c.l.b16 %v94
    %v187 = vunpack.c.l.b16 %v95
    %v188 = vunpack.c.l.b16 %v96
    %v189 = vunpack.c.l.b16 %v97
    %v190 = vunpack.c.l.b16 %v98
    %v191 = vunpack.c.l.b16 %v99
    %v192 = vunpack.c.l.b16 %v100
    %v193 = vunpack.c.l.b16 %v101
    %v194 = vunpack.c.l.b16 %v102
    %v195 = vunpack.c.l.b16 %v103
    %v196 = vunpack.c.l.b16 %v104
    %v197 = vunpack.c.l.b16 %v105
    %v198 = vunpack.c.l.b16 %v106
    %v199 = vunpack.c.l.b16 %v107
    %v200 = vpack.c.b16 %v177, %v176
    %v201 = vpack.c.b16 %v179, %v178
    %v202 = vpack.c.b16 %v181, %v180
    %v203 = vpack.c.b16 %v183, %v182
    %v204 = vpack.c.b16 %v185, %v184
    %v205 = vpack.c.b16 %v187, %v186
    %v206 = vpack.c.b16 %v189, %v188
    %v207 = vpack.c.b16 %v191, %v190
    %v208 = vpack.c.b16 %v193, %v192
    %v209 = vpack.c.b16 %v195, %v194
    %v210 = vpack.c.b16 %v197, %v196
    %v211 = vpack.c.b16 %v199, %v198
    %vm224 = vcmask 523264
    %v226 = vsel %vm224, %v141, 0
    %v229 = vsel %vm224, %v143, 0
    %v232 = vsel %vm224, %v145, 0
    %v235 = vsel %vm224, %v147, 0
    %237 = vmatprep.subr.bf16.mxu0 0
    %238 = vmatpush1.bf16.msra.mxu0 %v207
    %239 = vmatprep.subr.bf16.mxu0 0
    %240 = vmatpush1.bf16.msra.mxu0 %v206
    %241 = vmatprep.subr.bf16.mxu0 0
    %242 = vmatpush1.bf16.msra.mxu0 %v205
    %243 = vmatprep.subr.bf16.mxu0 0
    %244 = vmatpush1.bf16.msra.mxu0 %v204
    %245 = vmatprep.subr.bf16.mxu0 0
    %246 = vmatpush1.bf16.msra.mxu0 %v203
    %247 = vmatprep.subr.bf16.mxu0 0
    %248 = vmatpush1.bf16.msra.mxu0 %v202
    %249 = vmatprep.subr.bf16.mxu0 0
    %250 = vmatpush1.bf16.msra.mxu0 %v201
    %251 = vmatprep.subr.bf16.mxu0 0
    %252 = vmatpush1.bf16.msra.mxu0 %v200
    %253 = vmatprep.subr.bf16.mxu0 0
    %254 = vmatpush2.bf16.msra.mxu0 0
    %255 = vmatprep.subr.bf16.mxu0 0
    %256 = vmatpush2.bf16.msra.mxu0 0
    %257 = vmatprep.subr.bf16.mxu0 0
    %258 = vmatpush2.bf16.msra.mxu0 0
    %259 = vmatprep.subr.bf16.mxu0 0
    %260 = vmatpush2.bf16.msra.mxu0 0
    %261 = vmatprep.subr.bf16.mxu0 0
    %262 = vmatpush2.bf16.msra.mxu0 %v211
    %263 = vmatprep.subr.bf16.mxu0 0
    %264 = vmatpush2.bf16.msra.mxu0 %v210
    %265 = vmatprep.subr.bf16.mxu0 0
    %266 = vmatpush2.bf16.msra.mxu0 %v209
    %267 = vmatprep.subr.bf16.mxu0 0
    %268 = vmatpush2.bf16.msra.mxu0 %v208
    %269 = vmatprep.mubr.bf16.mxu0 %v226
    %270 = vmatmul.mubr.bf16.gmra.mxu0 %v140
    %v271 = vpop.f32.mrf.mxu0
    %v272 = vadd.f32 %v108, %v271
    %v273 = vpop.f32.mrf.mxu0
    %v274 = vpop.f32.mrf.mxu0
    %v275 = vadd.f32 %v109, %v274
    %v276 = vpop.f32.mrf.mxu0
    %277 = vmatprep.mubr.bf16.mxu0 %v229
    %278 = vmatmul.mubr.bf16.gmra.mxu0 %v142
    %v279 = vpop.f32.mrf.mxu0
    %v280 = vadd.f32 %v110, %v279
    %v281 = vpop.f32.mrf.mxu0
    %v282 = vpop.f32.mrf.mxu0
    %v283 = vadd.f32 %v111, %v282
    %v284 = vpop.f32.mrf.mxu0
    %285 = vmatprep.mubr.bf16.mxu0 %v232
    %286 = vmatmul.mubr.bf16.gmra.mxu0 %v144
    %v287 = vpop.f32.mrf.mxu0
    %v288 = vadd.f32 %v112, %v287
    %v289 = vpop.f32.mrf.mxu0
    %v290 = vpop.f32.mrf.mxu0
    %v291 = vadd.f32 %v113, %v290
    %v292 = vpop.f32.mrf.mxu0
    %293 = vmatprep.mubr.bf16.mxu0 %v235
    %294 = vmatmul.mubr.bf16.gmra.mxu0 %v146
    %v295 = vpop.f32.mrf.mxu0
    %v296 = vadd.f32 %v114, %v295
    %v297 = vpop.f32.mrf.mxu0
    %v298 = vpop.f32.mrf.mxu0
    %v299 = vadd.f32 %v115, %v298
    %v300 = vpop.f32.mrf.mxu0
    %301 = vdwg.mxu0
    %v302 = vld [vmem:[%s3] sm:$0x1]
    %v303 = vld [vmem:[%s4] sm:$0x1]
    %304 = vadd.xlane.f32.xlu0 %v272
    %v305 = vpop.xlane.xlu0 %304
    %306 = vadd.xlane.f32.xlu0 %v275
    %v307 = vpop.xlane.xlu0 %306
    %308 = vadd.xlane.f32.xlu0 %v280
    %v309 = vpop.xlane.xlu0 %308
    %310 = vadd.xlane.f32.xlu0 %v283
    %v311 = vpop.xlane.xlu0 %310
    %312 = vadd.xlane.f32.xlu0 %v288
    %v313 = vpop.xlane.xlu0 %312
    %314 = vadd.xlane.f32.xlu0 %v291
    %v315 = vpop.xlane.xlu0 %314
    %316 = vadd.xlane.f32.xlu0 %v296
    %v317 = vpop.xlane.xlu0 %316
    %318 = vadd.xlane.f32.xlu0 %v299
    %v319 = vpop.xlane.xlu0 %318
    %v320 = vrcp.pop 128.0
    %v321 = vmul.f32 %v305, %v320
    %v322 = vmul.f32 %v307, %v320
    %v323 = vmul.f32 %v309, %v320
    %v324 = vmul.f32 %v311, %v320
    %v325 = vmul.f32 %v313, %v320
    %v326 = vmul.f32 %v315, %v320
    %v327 = vmul.f32 %v317, %v320
    %v328 = vmul.f32 %v319, %v320
    %v329 = vsub.f32 %v272, %v321
    %v330 = vsub.f32 %v275, %v322
    %v331 = vsub.f32 %v280, %v323
    %v332 = vsub.f32 %v283, %v324
    %v333 = vsub.f32 %v288, %v325
    %v334 = vsub.f32 %v291, %v326
    %v335 = vsub.f32 %v296, %v327
    %v336 = vsub.f32 %v299, %v328
    %v337 = vmul.f32 %v329, %v329
    %v338 = vmul.f32 %v330, %v330
    %v339 = vmul.f32 %v331, %v331
    %v340 = vmul.f32 %v332, %v332
    %v341 = vmul.f32 %v333, %v333
    %v342 = vmul.f32 %v334, %v334
    %v343 = vmul.f32 %v335, %v335
    %v344 = vmul.f32 %v336, %v336
    %345 = vadd.xlane.f32.xlu0 %v337
    %v346 = vpop.xlane.xlu0 %345
    %347 = vadd.xlane.f32.xlu0 %v338
    %v348 = vpop.xlane.xlu0 %347
    %349 = vadd.xlane.f32.xlu0 %v339
    %v350 = vpop.xlane.xlu0 %349
    %351 = vadd.xlane.f32.xlu0 %v340
    %v352 = vpop.xlane.xlu0 %351
    %353 = vadd.xlane.f32.xlu0 %v341
    %v354 = vpop.xlane.xlu0 %353
    %355 = vadd.xlane.f32.xlu0 %v342
    %v356 = vpop.xlane.xlu0 %355
    %357 = vadd.xlane.f32.xlu0 %v343
    %v358 = vpop.xlane.xlu0 %357
    %359 = vadd.xlane.f32.xlu0 %v344
    %v360 = vpop.xlane.xlu0 %359
    %v361 = vmul.f32 %v346, %v320
    %v362 = vmul.f32 %v348, %v320
    %v363 = vmul.f32 %v350, %v320
    %v364 = vmul.f32 %v352, %v320
    %v365 = vmul.f32 %v354, %v320
    %v366 = vmul.f32 %v356, %v320
    %v367 = vmul.f32 %v358, %v320
    %v368 = vmul.f32 %v360, %v320
    %v369 = vadd.f32 %v361, 1e-05
    %v370 = vadd.f32 %v362, 1e-05
    %v371 = vadd.f32 %v363, 1e-05
    %v372 = vadd.f32 %v364, 1e-05
    %v373 = vadd.f32 %v365, 1e-05
    %v374 = vadd.f32 %v366, 1e-05
    %v375 = vadd.f32 %v367, 1e-05
    %v376 = vadd.f32 %v368, 1e-05
    %v377 = vrsqrt.pop %v369
    %v378 = vrsqrt.pop %v370
    %v379 = vrsqrt.pop %v371
    %v380 = vrsqrt.pop %v372
    %v381 = vrsqrt.pop %v373
    %v382 = vrsqrt.pop %v374
    %v383 = vrsqrt.pop %v375
    %v384 = vrsqrt.pop %v376
    %v385 = vmul.f32 %v329, %v377
    %v386 = vmul.f32 %v330, %v378
    %v387 = vmul.f32 %v331, %v379
    %v388 = vmul.f32 %v332, %v380
    %v389 = vmul.f32 %v333, %v381
    %v390 = vmul.f32 %v334, %v382
    %v391 = vmul.f32 %v335, %v383
    %v392 = vmul.f32 %v336, %v384
    %v394 = vlaneseq
    %v395 = vshrl.u32 %v394, 7
    %v396 = vsub.s32 0, %v395
    %v397 = vrot.slane %v302, %v396
    %v399 = vmul.f32 %v385, %v397
    %v400 = vmul.f32 %v386, %v397
    %v401 = vmul.f32 %v387, %v397
    %v402 = vmul.f32 %v388, %v397
    %v403 = vmul.f32 %v389, %v397
    %v404 = vmul.f32 %v390, %v397
    %v405 = vmul.f32 %v391, %v397
    %v406 = vmul.f32 %v392, %v397
    %v408 = vlaneseq
    %v409 = vshrl.u32 %v408, 7
    %v410 = vsub.s32 0, %v409
    %v411 = vrot.slane %v303, %v410
    %v413 = vadd.f32 %v399, %v411
    %v414 = vadd.f32 %v400, %v411
    %v415 = vadd.f32 %v401, %v411
    %v416 = vadd.f32 %v402, %v411
    %v417 = vadd.f32 %v403, %v411
    %v418 = vadd.f32 %v404, %v411
    %v419 = vadd.f32 %v405, %v411
    %v420 = vadd.f32 %v406, %v411
    %v421 = vld [vmem:[%s5] sm:$0xff]
    %v422 = vld [vmem:[%s5 + $0x8] sm:$0xff]
    %v423 = vld [vmem:[%s5 + $0x10] sm:$0xff]
    %v424 = vld [vmem:[%s5 + $0x18] sm:$0xff]
    %v425 = vld [vmem:[%s5 + $0x20] sm:$0xff]
    %v426 = vld [vmem:[%s5 + $0x28] sm:$0xff]
    %v427 = vld [vmem:[%s5 + $0x30] sm:$0xff]
    %v428 = vld [vmem:[%s5 + $0x38] sm:$0xff]
    %v429 = vld [vmem:[%s6] sm:$0x1]
    %v430 = vld [vmem:[%s6 + $0x1] sm:$0x1]
    %v431 = vld [vmem:[%s6 + $0x2] sm:$0x1]
    %v432 = vld [vmem:[%s6 + $0x3] sm:$0x1]
    %v433 = vld [vmem:[%s8] sm:$0x1]
    %v434 = vld [vmem:[%s9] sm:$0x1]
    %435 = vadd.xlane.f32.xlu0 %v413
    %v436 = vpop.xlane.xlu0 %435
    %437 = vadd.xlane.f32.xlu0 %v414
    %v438 = vpop.xlane.xlu0 %437
    %439 = vadd.xlane.f32.xlu0 %v415
    %v440 = vpop.xlane.xlu0 %439
    %441 = vadd.xlane.f32.xlu0 %v416
    %v442 = vpop.xlane.xlu0 %441
    %443 = vadd.xlane.f32.xlu0 %v417
    %v444 = vpop.xlane.xlu0 %443
    %445 = vadd.xlane.f32.xlu0 %v418
    %v446 = vpop.xlane.xlu0 %445
    %447 = vadd.xlane.f32.xlu0 %v419
    %v448 = vpop.xlane.xlu0 %447
    %449 = vadd.xlane.f32.xlu0 %v420
    %v450 = vpop.xlane.xlu0 %449
    %v451 = vmul.f32 %v436, %v320
    %v452 = vmul.f32 %v438, %v320
    %v453 = vmul.f32 %v440, %v320
    %v454 = vmul.f32 %v442, %v320
    %v455 = vmul.f32 %v444, %v320
    %v456 = vmul.f32 %v446, %v320
    %v457 = vmul.f32 %v448, %v320
    %v458 = vmul.f32 %v450, %v320
    %v459 = vsub.f32 %v413, %v451
    %v460 = vsub.f32 %v414, %v452
    %v461 = vsub.f32 %v415, %v453
    %v462 = vsub.f32 %v416, %v454
    %v463 = vsub.f32 %v417, %v455
    %v464 = vsub.f32 %v418, %v456
    %v465 = vsub.f32 %v419, %v457
    %v466 = vsub.f32 %v420, %v458
    %v467 = vmul.f32 %v459, %v459
    %v468 = vmul.f32 %v460, %v460
    %v469 = vmul.f32 %v461, %v461
    %v470 = vmul.f32 %v462, %v462
    %v471 = vmul.f32 %v463, %v463
    %v472 = vmul.f32 %v464, %v464
    %v473 = vmul.f32 %v465, %v465
    %v474 = vmul.f32 %v466, %v466
    %475 = vadd.xlane.f32.xlu0 %v467
    %v476 = vpop.xlane.xlu0 %475
    %477 = vadd.xlane.f32.xlu0 %v468
    %v478 = vpop.xlane.xlu0 %477
    %479 = vadd.xlane.f32.xlu0 %v469
    %v480 = vpop.xlane.xlu0 %479
    %481 = vadd.xlane.f32.xlu0 %v470
    %v482 = vpop.xlane.xlu0 %481
    %483 = vadd.xlane.f32.xlu0 %v471
    %v484 = vpop.xlane.xlu0 %483
    %485 = vadd.xlane.f32.xlu0 %v472
    %v486 = vpop.xlane.xlu0 %485
    %487 = vadd.xlane.f32.xlu0 %v473
    %v488 = vpop.xlane.xlu0 %487
    %489 = vadd.xlane.f32.xlu0 %v474
    %v490 = vpop.xlane.xlu0 %489
    %v491 = vmul.f32 %v476, %v320
    %v492 = vmul.f32 %v478, %v320
    %v493 = vmul.f32 %v480, %v320
    %v494 = vmul.f32 %v482, %v320
    %v495 = vmul.f32 %v484, %v320
    %v496 = vmul.f32 %v486, %v320
    %v497 = vmul.f32 %v488, %v320
    %v498 = vmul.f32 %v490, %v320
    %v499 = vadd.f32 %v491, 1e-05
    %v500 = vadd.f32 %v492, 1e-05
    %v501 = vadd.f32 %v493, 1e-05
    %v502 = vadd.f32 %v494, 1e-05
    %v503 = vadd.f32 %v495, 1e-05
    %v504 = vadd.f32 %v496, 1e-05
    %v505 = vadd.f32 %v497, 1e-05
    %v506 = vadd.f32 %v498, 1e-05
    %v507 = vrsqrt.pop %v499
    %v508 = vrsqrt.pop %v500
    %v509 = vrsqrt.pop %v501
    %v510 = vrsqrt.pop %v502
    %v511 = vrsqrt.pop %v503
    %v512 = vrsqrt.pop %v504
    %v513 = vrsqrt.pop %v505
    %v514 = vrsqrt.pop %v506
    %v515 = vmul.f32 %v459, %v507
    %v516 = vmul.f32 %v460, %v508
    %v517 = vmul.f32 %v461, %v509
    %v518 = vmul.f32 %v462, %v510
    %v519 = vmul.f32 %v463, %v511
    %v520 = vmul.f32 %v464, %v512
    %v521 = vmul.f32 %v465, %v513
    %v522 = vmul.f32 %v466, %v514
    %v524 = vlaneseq
    %v525 = vshrl.u32 %v524, 7
    %v526 = vsub.s32 0, %v525
    %v527 = vrot.slane %v433, %v526
    %v529 = vmul.f32 %v515, %v527
    %v530 = vmul.f32 %v516, %v527
    %v531 = vmul.f32 %v517, %v527
    %v532 = vmul.f32 %v518, %v527
    %v533 = vmul.f32 %v519, %v527
    %v534 = vmul.f32 %v520, %v527
    %v535 = vmul.f32 %v521, %v527
    %v536 = vmul.f32 %v522, %v527
    %v538 = vlaneseq
    %v539 = vshrl.u32 %v538, 7
    %v540 = vsub.s32 0, %v539
    %v541 = vrot.slane %v434, %v540
    %v543 = vadd.f32 %v529, %v541
    %v544 = vadd.f32 %v530, %v541
    %v545 = vadd.f32 %v531, %v541
    %v546 = vadd.f32 %v532, %v541
    %v547 = vadd.f32 %v533, %v541
    %v548 = vadd.f32 %v534, %v541
    %v549 = vadd.f32 %v535, %v541
    %v550 = vadd.f32 %v536, %v541
    %v551 = vld [vmem:[%s10] sm:$0xff]
    %v552 = vld [vmem:[%s10 + $0x8] sm:$0xf]
    %v553 = vld [vmem:[%s10 + $0xc] sm:$0xff]
    %v554 = vld [vmem:[%s10 + $0x14] sm:$0xf]
    %v555 = vld [vmem:[%s10 + $0x18] sm:$0xff]
    %v556 = vld [vmem:[%s10 + $0x20] sm:$0xf]
    %v557 = vld [vmem:[%s10 + $0x24] sm:$0xff]
    %v558 = vld [vmem:[%s10 + $0x2c] sm:$0xf]
    %v559 = vld [vmem:[%s10 + $0x30] sm:$0xff]
    %v560 = vld [vmem:[%s10 + $0x38] sm:$0xf]
    %v561 = vld [vmem:[%s10 + $0x3c] sm:$0xff]
    %v562 = vld [vmem:[%s10 + $0x44] sm:$0xf]
    %v563 = vld [vmem:[%s10 + $0x48] sm:$0xff]
    %v564 = vld [vmem:[%s10 + $0x50] sm:$0xf]
    %v565 = vld [vmem:[%s10 + $0x54] sm:$0xff]
    %v566 = vld [vmem:[%s10 + $0x5c] sm:$0xf]
    %v567 = vld [vmem:[%s10 + $0x60] sm:$0xff]
    %v568 = vld [vmem:[%s10 + $0x68] sm:$0xf]
    %v569 = vld [vmem:[%s10 + $0x6c] sm:$0xff]
    %v570 = vld [vmem:[%s10 + $0x74] sm:$0xf]
    %v571 = vld [vmem:[%s10 + $0x78] sm:$0xff]
    %v572 = vld [vmem:[%s10 + $0x80] sm:$0xf]
    %v573 = vld [vmem:[%s10 + $0x84] sm:$0xff]
    %v574 = vld [vmem:[%s10 + $0x8c] sm:$0xf]
    %v575 = vld [vmem:[%s10 + $0x90] sm:$0xff]
    %v576 = vld [vmem:[%s10 + $0x98] sm:$0xf]
    %v577 = vld [vmem:[%s10 + $0x9c] sm:$0xff]
    %v578 = vld [vmem:[%s10 + $0xa4] sm:$0xf]
    %v579 = vld [vmem:[%s10 + $0xa8] sm:$0xff]
    %v580 = vld [vmem:[%s10 + $0xb0] sm:$0xf]
    %v581 = vld [vmem:[%s10 + $0xb4] sm:$0xff]
    %v582 = vld [vmem:[%s10 + $0xbc] sm:$0xf]
    %v583 = vpack.c.bf16 %v544, %v543
    %v584 = vpack.c.bf16 %v546, %v545
    %v585 = vpack.c.bf16 %v548, %v547
    %v586 = vpack.c.bf16 %v550, %v549
    %v587 = vld [vmem:[%s11] sm:$0x7]
    %v589 = vlaneseq
    %v590 = vshrl.u32 %v589, 7
    %v591 = vsub.s32 0, %v590
    %v592 = vrot.slane %v587, %v591
    %v593 = vlaneseq
    %v594 = vshrl.u32 %v593, 7
    %v595 = vsub.s32 1, %v594
    %v596 = vrot.slane %v587, %v595
    %v597 = vlaneseq
    %v598 = vshrl.u32 %v597, 7
    %v599 = vsub.s32 2, %v598
    %v600 = vrot.slane %v587, %v599
    %v636 = vunpack.c.l.b16 %v551
    %v637 = vunpack.c.h.b16 %v551
    %v638 = vunpack.c.l.b16 %v552
    %v639 = vunpack.c.l.b16 %v553
    %v640 = vunpack.c.h.b16 %v553
    %v641 = vunpack.c.l.b16 %v554
    %v642 = vunpack.c.l.b16 %v555
    %v643 = vunpack.c.h.b16 %v555
    %v644 = vunpack.c.l.b16 %v556
    %v645 = vunpack.c.l.b16 %v557
    %v646 = vunpack.c.h.b16 %v557
    %v647 = vunpack.c.l.b16 %v558
    %v648 = vunpack.c.l.b16 %v559
    %v649 = vunpack.c.h.b16 %v559
    %v650 = vunpack.c.l.b16 %v560
    %v651 = vunpack.c.l.b16 %v561
    %v652 = vunpack.c.h.b16 %v561
    %v653 = vunpack.c.l.b16 %v562
    %v654 = vunpack.c.l.b16 %v563
    %v655 = vunpack.c.h.b16 %v563
    %v656 = vunpack.c.l.b16 %v564
    %v657 = vunpack.c.l.b16 %v565
    %v658 = vunpack.c.h.b16 %v565
    %v659 = vunpack.c.l.b16 %v566
    %v660 = vunpack.c.l.b16 %v567
    %v661 = vunpack.c.h.b16 %v567
    %v662 = vunpack.c.l.b16 %v568
    %v663 = vunpack.c.l.b16 %v569
    %v664 = vunpack.c.h.b16 %v569
    %v665 = vunpack.c.l.b16 %v570
    %v666 = vunpack.c.l.b16 %v571
    %v667 = vunpack.c.h.b16 %v571
    %v668 = vunpack.c.l.b16 %v572
    %v669 = vunpack.c.l.b16 %v573
    %v670 = vunpack.c.h.b16 %v573
    %v671 = vunpack.c.l.b16 %v574
    %v672 = vunpack.c.l.b16 %v575
    %v673 = vunpack.c.h.b16 %v575
    %v674 = vunpack.c.l.b16 %v576
    %v675 = vunpack.c.l.b16 %v577
    %v676 = vunpack.c.h.b16 %v577
    %v677 = vunpack.c.l.b16 %v578
    %v678 = vunpack.c.l.b16 %v579
    %v679 = vunpack.c.h.b16 %v579
    %v680 = vunpack.c.l.b16 %v580
    %v681 = vunpack.c.l.b16 %v581
    %v682 = vunpack.c.h.b16 %v581
    %v683 = vunpack.c.l.b16 %v582
    %v684 = vpack.c.b16 %v639, %v636
    %v685 = vpack.c.b16 %v640, %v637
    %v686 = vpack.c.b16 %v641, %v638
    %v687 = vpack.c.b16 %v645, %v642
    %v688 = vpack.c.b16 %v646, %v643
    %v689 = vpack.c.b16 %v647, %v644
    %v690 = vpack.c.b16 %v651, %v648
    %v691 = vpack.c.b16 %v652, %v649
    %v692 = vpack.c.b16 %v653, %v650
    %v693 = vpack.c.b16 %v657, %v654
    %v694 = vpack.c.b16 %v658, %v655
    %v695 = vpack.c.b16 %v659, %v656
    %v696 = vpack.c.b16 %v663, %v660
    %v697 = vpack.c.b16 %v664, %v661
    %v698 = vpack.c.b16 %v665, %v662
    %v699 = vpack.c.b16 %v669, %v666
    %v700 = vpack.c.b16 %v670, %v667
    %v701 = vpack.c.b16 %v671, %v668
    %v702 = vpack.c.b16 %v675, %v672
    %v703 = vpack.c.b16 %v676, %v673
    %v704 = vpack.c.b16 %v677, %v674
    %v705 = vpack.c.b16 %v681, %v678
    %v706 = vpack.c.b16 %v682, %v679
    %v707 = vpack.c.b16 %v683, %v680
    %732 = vmatprep.subr.bf16.mxu0 %v706
    %733 = vmatpush1.bf16.msra.mxu0 %v705
    %734 = vmatprep.subr.bf16.mxu0 %v703
    %735 = vmatpush1.bf16.msra.mxu0 %v702
    %736 = vmatprep.subr.bf16.mxu0 %v700
    %737 = vmatpush1.bf16.msra.mxu0 %v699
    %738 = vmatprep.subr.bf16.mxu0 %v697
    %739 = vmatpush1.bf16.msra.mxu0 %v696
    %740 = vmatprep.subr.bf16.mxu0 %v694
    %741 = vmatpush1.bf16.msra.mxu0 %v693
    %742 = vmatprep.subr.bf16.mxu0 %v691
    %743 = vmatpush1.bf16.msra.mxu0 %v690
    %744 = vmatprep.subr.bf16.mxu0 %v688
    %745 = vmatpush1.bf16.msra.mxu0 %v687
    %746 = vmatprep.subr.bf16.mxu0 %v685
    %747 = vmatpush1.bf16.msra.mxu0 %v684
    %748 = vmatprep.subr.bf16.mxu0 0
    %749 = vmatpush2.bf16.msra.mxu0 0
    %750 = vmatprep.subr.bf16.mxu0 0
    %751 = vmatpush2.bf16.msra.mxu0 0
    %752 = vmatprep.subr.bf16.mxu0 0
    %753 = vmatpush2.bf16.msra.mxu0 0
    %754 = vmatprep.subr.bf16.mxu0 0
    %755 = vmatpush2.bf16.msra.mxu0 0
    %756 = vmatprep.subr.bf16.mxu0 0
    %757 = vmatpush2.bf16.msra.mxu0 0
    %758 = vmatprep.subr.bf16.mxu0 0
    %759 = vmatpush2.bf16.msra.mxu0 0
    %760 = vmatprep.subr.bf16.mxu0 0
    %761 = vmatpush2.bf16.msra.mxu0 0
    %762 = vmatprep.subr.bf16.mxu0 0
    %763 = vmatpush2.bf16.msra.mxu0 0
    %764 = vmatprep.mubr.bf16.mxu0 0
    %765 = vmatmul.mubr.bf16.gmra.mxu0 %v583
    %v766 = vpop.f32.mrf.mxu0
    %v767 = vadd.f32 %v592, %v766
    %v768 = vpop.f32.mrf.mxu0
    %v769 = vadd.f32 %v596, %v768
    %v770 = vpop.f32.mrf.mxu0
    %v771 = vadd.f32 %v592, %v770
    %v772 = vpop.f32.mrf.mxu0
    %v773 = vadd.f32 %v596, %v772
    %774 = vmatprep.mubr.bf16.mxu0 0
    %775 = vmatmul.mubr.bf16.gmra.mxu0 %v584
    %v776 = vpop.f32.mrf.mxu0
    %v777 = vadd.f32 %v592, %v776
    %v778 = vpop.f32.mrf.mxu0
    %v779 = vadd.f32 %v596, %v778
    %v780 = vpop.f32.mrf.mxu0
    %v781 = vadd.f32 %v592, %v780
    %v782 = vpop.f32.mrf.mxu0
    %v783 = vadd.f32 %v596, %v782
    %784 = vmatprep.mubr.bf16.mxu0 0
    %785 = vmatmul.mubr.bf16.gmra.mxu0 %v585
    %v786 = vpop.f32.mrf.mxu0
    %v787 = vadd.f32 %v592, %v786
    %v788 = vpop.f32.mrf.mxu0
    %v789 = vadd.f32 %v596, %v788
    %v790 = vpop.f32.mrf.mxu0
    %v791 = vadd.f32 %v592, %v790
    %v792 = vpop.f32.mrf.mxu0
    %v793 = vadd.f32 %v596, %v792
    %794 = vmatprep.mubr.bf16.mxu0 0
    %795 = vmatmul.mubr.bf16.gmra.mxu0 %v586
    %v796 = vpop.f32.mrf.mxu0
    %v797 = vadd.f32 %v592, %v796
    %v798 = vpop.f32.mrf.mxu0
    %v799 = vadd.f32 %v596, %v798
    %v800 = vpop.f32.mrf.mxu0
    %v801 = vadd.f32 %v592, %v800
    %v802 = vpop.f32.mrf.mxu0
    %v803 = vadd.f32 %v596, %v802
    %804 = vdwg.mxu0
    %805 = vmatprep.subr.bf16.mxu0 0
    %806 = vmatpush1.bf16.msra.mxu0 %v707
    %807 = vmatprep.subr.bf16.mxu0 0
    %808 = vmatpush1.bf16.msra.mxu0 %v704
    %809 = vmatprep.subr.bf16.mxu0 0
    %810 = vmatpush1.bf16.msra.mxu0 %v701
    %811 = vmatprep.subr.bf16.mxu0 0
    %812 = vmatpush1.bf16.msra.mxu0 %v698
    %813 = vmatprep.subr.bf16.mxu0 0
    %814 = vmatpush1.bf16.msra.mxu0 %v695
    %815 = vmatprep.subr.bf16.mxu0 0
    %816 = vmatpush1.bf16.msra.mxu0 %v692
    %817 = vmatprep.subr.bf16.mxu0 0
    %818 = vmatpush1.bf16.msra.mxu0 %v689
    %819 = vmatprep.subr.bf16.mxu0 0
    %820 = vmatpush1.bf16.msra.mxu0 %v686
    %821 = vmatprep.subr.bf16.mxu0 0
    %822 = vmatpush2.bf16.msra.mxu0 0
    %823 = vmatprep.subr.bf16.mxu0 0
    %824 = vmatpush2.bf16.msra.mxu0 0
    %825 = vmatprep.subr.bf16.mxu0 0
    %826 = vmatpush2.bf16.msra.mxu0 0
    %827 = vmatprep.subr.bf16.mxu0 0
    %828 = vmatpush2.bf16.msra.mxu0 0
    %829 = vmatprep.subr.bf16.mxu0 0
    %830 = vmatpush2.bf16.msra.mxu0 0
    %831 = vmatprep.subr.bf16.mxu0 0
    %832 = vmatpush2.bf16.msra.mxu0 0
    %833 = vmatprep.subr.bf16.mxu0 0
    %834 = vmatpush2.bf16.msra.mxu0 0
    %835 = vmatprep.subr.bf16.mxu0 0
    %836 = vmatpush2.bf16.msra.mxu0 0
    %837 = vmatprep.mubr.bf16.mxu0 0
    %838 = vmatmul.mubr.bf16.gmra.mxu0 %v583
    %v839 = vpop.f32.mrf.mxu0
    %v840 = vadd.f32 %v600, %v839
    %v841 = vpop.f32.mrf.mxu0
    %v842 = vpop.f32.mrf.mxu0
    %v843 = vadd.f32 %v600, %v842
    %v844 = vpop.f32.mrf.mxu0
    %845 = vmatprep.mubr.bf16.mxu0 0
    %846 = vmatmul.mubr.bf16.gmra.mxu0 %v584
    %v847 = vpop.f32.mrf.mxu0
    %v848 = vadd.f32 %v600, %v847
    %v849 = vpop.f32.mrf.mxu0
    %v850 = vpop.f32.mrf.mxu0
    %v851 = vadd.f32 %v600, %v850
    %v852 = vpop.f32.mrf.mxu0
    %853 = vmatprep.mubr.bf16.mxu0 0
    %854 = vmatmul.mubr.bf16.gmra.mxu0 %v585
    %v855 = vpop.f32.mrf.mxu0
    %v856 = vadd.f32 %v600, %v855
    %v857 = vpop.f32.mrf.mxu0
    %v858 = vpop.f32.mrf.mxu0
    %v859 = vadd.f32 %v600, %v858
    %v860 = vpop.f32.mrf.mxu0
    %861 = vmatprep.mubr.bf16.mxu0 0
    %862 = vmatmul.mubr.bf16.gmra.mxu0 %v586
    %v863 = vpop.f32.mrf.mxu0
    %v864 = vadd.f32 %v600, %v863
    %v865 = vpop.f32.mrf.mxu0
    %v866 = vpop.f32.mrf.mxu0
    %v867 = vadd.f32 %v600, %v866
    %v868 = vpop.f32.mrf.mxu0
    %869 = vdwg.mxu0
    %v870 = vmul.f32 %v767, 0.17677669
    %v871 = vmul.f32 %v771, 0.17677669
    %v872 = vmul.f32 %v777, 0.17677669
    %v873 = vmul.f32 %v781, 0.17677669
    %v874 = vmul.f32 %v787, 0.17677669
    %v875 = vmul.f32 %v791, 0.17677669
    %v876 = vmul.f32 %v797, 0.17677669
    %v877 = vmul.f32 %v801, 0.17677669
    %v878 = vlaneseq
    %v879 = vshrl.u32 %v878, 7
    %v880 = vsub.s32 0, %v879
    %v881 = vrot.slane %v429, %v880
    %v882 = vmul.f32 %v870, %v881
    %v883 = vmul.f32 %v871, %v881
    %v884 = vmul.f32 %v872, %v881
    %v885 = vmul.f32 %v873, %v881
    %v886 = vmul.f32 %v874, %v881
    %v887 = vmul.f32 %v875, %v881
    %v888 = vmul.f32 %v876, %v881
    %v889 = vmul.f32 %v877, %v881
    %890 = vmatprep.subr.mxu0 0.0
    %891 = vmatpush1.xpose.msra.mxu0 0.0
    %892 = vmatprep.subr.mxu0 0.0
    %893 = vmatpush1.xpose.msra.mxu0 0.0
    %894 = vmatprep.subr.mxu0 0.0
    %895 = vmatpush1.xpose.msra.mxu0 0.0
    %896 = vmatprep.subr.mxu0 0.0
    %897 = vmatpush1.xpose.msra.mxu0 0.0
    %898 = vmatprep.subr.mxu0 0.0
    %899 = vmatpush1.xpose.msra.mxu0 0.0
    %900 = vmatprep.subr.mxu0 0.0
    %901 = vmatpush1.xpose.msra.mxu0 0.0
    %902 = vmatprep.subr.mxu0 0.0
    %903 = vmatpush1.xpose.msra.mxu0 0.0
    %904 = vmatprep.subr.mxu0 0.0
    %905 = vmatpush1.xpose.msra.mxu0 0.0
    %906 = vmatprep.subr.mxu0 0.0
    %907 = vmatpush1.xpose.msra.mxu0 %v803
    %908 = vmatprep.subr.mxu0 0.0
    %909 = vmatpush1.xpose.msra.mxu0 %v799
    %910 = vmatprep.subr.mxu0 0.0
    %911 = vmatpush1.xpose.msra.mxu0 %v793
    %912 = vmatprep.subr.mxu0 0.0
    %913 = vmatpush1.xpose.msra.mxu0 %v789
    %914 = vmatprep.subr.mxu0 0.0
    %915 = vmatpush1.xpose.msra.mxu0 %v783
    %916 = vmatprep.subr.mxu0 0.0
    %917 = vmatpush1.xpose.msra.mxu0 %v779
    %918 = vmatprep.subr.mxu0 0.0
    %919 = vmatpush1.xpose.msra.mxu0 %v773
    %920 = vmatprep.subr.mxu0 0.0
    %921 = vmatpush1.xpose.msra.mxu0 %v769
    %922 = vmatprep.subr.mxu0 0.0
    %923 = vmatpush2.xpose.msra.mxu0 0.0
    %924 = vmatprep.subr.mxu0 0.0
    %925 = vmatpush2.xpose.msra.mxu0 0.0
    %926 = vmatprep.subr.mxu0 0.0
    %927 = vmatpush2.xpose.msra.mxu0 0.0
    %928 = vmatprep.subr.mxu0 0.0
    %929 = vmatpush2.xpose.msra.mxu0 0.0
    %930 = vmatprep.subr.mxu0 0.0
    %931 = vmatpush2.xpose.msra.mxu0 0.0
    %932 = vmatprep.subr.mxu0 0.0
    %933 = vmatpush2.xpose.msra.mxu0 0.0
    %934 = vmatprep.subr.mxu0 0.0
    %935 = vmatpush2.xpose.msra.mxu0 0.0
    %936 = vmatprep.subr.mxu0 0.0
    %937 = vmatpush2.xpose.msra.mxu0 0.0
    %938 = vmatprep.subr.mxu0 0.0
    %939 = vmatpush2.xpose.msra.mxu0 0.0
    %940 = vmatprep.subr.mxu0 0.0
    %941 = vmatpush2.xpose.msra.mxu0 0.0
    %942 = vmatprep.subr.mxu0 0.0
    %943 = vmatpush2.xpose.msra.mxu0 0.0
    %944 = vmatprep.subr.mxu0 0.0
    %945 = vmatpush2.xpose.msra.mxu0 0.0
    %946 = vmatprep.subr.mxu0 0.0
    %947 = vmatpush2.xpose.msra.mxu0 0.0
    %948 = vmatprep.subr.mxu0 0.0
    %949 = vmatpush2.xpose.msra.mxu0 0.0
    %950 = vmatprep.subr.mxu0 0.0
    %951 = vmatpush2.xpose.msra.mxu0 0.0
    %952 = vmatprep.subr.mxu0 0.0
    %953 = vmatpush2.xpose.msra.mxu0 0.0
    %954 = vmatprep.mubr.f32.mxu0 0.0
    %955 = vmatmul.mubr.f32.gmra.mxu0 %v882
    %v956 = vpop.f32.mrf.mxu0
    %v957 = vadd.f32 %v421, %v956
    %v958 = vpop.f32.mrf.mxu0
    %959 = vmatprep.mubr.f32.mxu0 0.0
    %960 = vmatmul.mubr.f32.gmra.mxu0 %v883
    %v961 = vpop.f32.mrf.mxu0
    %v962 = vadd.f32 %v422, %v961
    %v963 = vpop.f32.mrf.mxu0
    %964 = vmatprep.mubr.f32.mxu0 0.0
    %965 = vmatmul.mubr.f32.gmra.mxu0 %v884
    %v966 = vpop.f32.mrf.mxu0
    %v967 = vadd.f32 %v423, %v966
    %v968 = vpop.f32.mrf.mxu0
    %969 = vmatprep.mubr.f32.mxu0 0.0
    %970 = vmatmul.mubr.f32.gmra.mxu0 %v885
    %v971 = vpop.f32.mrf.mxu0
    %v972 = vadd.f32 %v424, %v971
    %v973 = vpop.f32.mrf.mxu0
    %974 = vmatprep.mubr.f32.mxu0 0.0
    %975 = vmatmul.mubr.f32.gmra.mxu0 %v886
    %v976 = vpop.f32.mrf.mxu0
    %v977 = vadd.f32 %v425, %v976
    %v978 = vpop.f32.mrf.mxu0
    %979 = vmatprep.mubr.f32.mxu0 0.0
    %980 = vmatmul.mubr.f32.gmra.mxu0 %v887
    %v981 = vpop.f32.mrf.mxu0
    %v982 = vadd.f32 %v426, %v981
    %v983 = vpop.f32.mrf.mxu0
    %984 = vmatprep.mubr.f32.mxu0 0.0
    %985 = vmatmul.mubr.f32.gmra.mxu0 %v888
    %v986 = vpop.f32.mrf.mxu0
    %v987 = vadd.f32 %v427, %v986
    %v988 = vpop.f32.mrf.mxu0
    %989 = vmatprep.mubr.f32.mxu0 0.0
    %990 = vmatmul.mubr.f32.gmra.mxu0 %v889
    %v991 = vpop.f32.mrf.mxu0
    %v992 = vadd.f32 %v428, %v991
    %v993 = vpop.f32.mrf.mxu0
    %994 = vdwg.mxu0
    %v995 = vsel %vm224, %v957, -inf
    %996 = vmax.xlane.f32.xlu0 %v995
    %v997 = vpop.xlane.xlu0 %996
    %v998 = vsel %vm224, %v962, -inf
    %999 = vmax.xlane.f32.xlu0 %v998
    %v1000 = vpop.xlane.xlu0 %999
    %v1001 = vsel %vm224, %v967, -inf
    %1002 = vmax.xlane.f32.xlu0 %v1001
    %v1003 = vpop.xlane.xlu0 %1002
    %v1004 = vsel %vm224, %v972, -inf
    %1005 = vmax.xlane.f32.xlu0 %v1004
    %v1006 = vpop.xlane.xlu0 %1005
    %v1007 = vsel %vm224, %v977, -inf
    %1008 = vmax.xlane.f32.xlu0 %v1007
    %v1009 = vpop.xlane.xlu0 %1008
    %v1010 = vsel %vm224, %v982, -inf
    %1011 = vmax.xlane.f32.xlu0 %v1010
    %v1012 = vpop.xlane.xlu0 %1011
    %v1013 = vsel %vm224, %v987, -inf
    %1014 = vmax.xlane.f32.xlu0 %v1013
    %v1015 = vpop.xlane.xlu0 %1014
    %v1016 = vsel %vm224, %v992, -inf
    %1017 = vmax.xlane.f32.xlu0 %v1016
    %v1018 = vpop.xlane.xlu0 %1017
    %v1019 = vsub.f32 %v957, %v997
    %v1020 = vsub.f32 %v962, %v1000
    %v1021 = vsub.f32 %v967, %v1003
    %v1022 = vsub.f32 %v972, %v1006
    %v1023 = vsub.f32 %v977, %v1009
    %v1024 = vsub.f32 %v982, %v1012
    %v1025 = vsub.f32 %v987, %v1015
    %v1026 = vsub.f32 %v992, %v1018
    %v1027 = vmul.f32 %v1019, 1.442695
    %v1028 = vpow.pop %v1027
    %v1029 = vmul.f32 %v1020, 1.442695
    %v1030 = vpow.pop %v1029
    %v1031 = vmul.f32 %v1021, 1.442695
    %v1032 = vpow.pop %v1031
    %v1033 = vmul.f32 %v1022, 1.442695
    %v1034 = vpow.pop %v1033
    %v1035 = vmul.f32 %v1023, 1.442695
    %v1036 = vpow.pop %v1035
    %v1037 = vmul.f32 %v1024, 1.442695
    %v1038 = vpow.pop %v1037
    %v1039 = vmul.f32 %v1025, 1.442695
    %v1040 = vpow.pop %v1039
    %v1041 = vmul.f32 %v1026, 1.442695
    %v1042 = vpow.pop %v1041
    %v1043 = vsel %vm224, %v1028, 0.0
    %1044 = vadd.xlane.f32.xlu0 %v1043
    %v1045 = vpop.xlane.xlu0 %1044
    %v1046 = vsel %vm224, %v1030, 0.0
    %1047 = vadd.xlane.f32.xlu0 %v1046
    %v1048 = vpop.xlane.xlu0 %1047
    %v1049 = vsel %vm224, %v1032, 0.0
    %1050 = vadd.xlane.f32.xlu0 %v1049
    %v1051 = vpop.xlane.xlu0 %1050
    %v1052 = vsel %vm224, %v1034, 0.0
    %1053 = vadd.xlane.f32.xlu0 %v1052
    %v1054 = vpop.xlane.xlu0 %1053
    %v1055 = vsel %vm224, %v1036, 0.0
    %1056 = vadd.xlane.f32.xlu0 %v1055
    %v1057 = vpop.xlane.xlu0 %1056
    %v1058 = vsel %vm224, %v1038, 0.0
    %1059 = vadd.xlane.f32.xlu0 %v1058
    %v1060 = vpop.xlane.xlu0 %1059
    %v1061 = vsel %vm224, %v1040, 0.0
    %1062 = vadd.xlane.f32.xlu0 %v1061
    %v1063 = vpop.xlane.xlu0 %1062
    %v1064 = vsel %vm224, %v1042, 0.0
    %1065 = vadd.xlane.f32.xlu0 %v1064
    %v1066 = vpop.xlane.xlu0 %1065
    %v1067 = vrcp.pop %v1045
    %v1068 = vrcp.pop %v1048
    %v1069 = vrcp.pop %v1051
    %v1070 = vrcp.pop %v1054
    %v1071 = vrcp.pop %v1057
    %v1072 = vrcp.pop %v1060
    %v1073 = vrcp.pop %v1063
    %v1074 = vrcp.pop %v1066
    %v1075 = vmul.f32 %v1028, %v1067
    %v1076 = vmul.f32 %v1030, %v1068
    %v1077 = vmul.f32 %v1032, %v1069
    %v1078 = vmul.f32 %v1034, %v1070
    %v1079 = vmul.f32 %v1036, %v1071
    %v1080 = vmul.f32 %v1038, %v1072
    %v1081 = vmul.f32 %v1040, %v1073
    %v1082 = vmul.f32 %v1042, %v1074
    %v1083 = vmul.f32 %v840, %v881
    %v1084 = vmul.f32 %v843, %v881
    %v1085 = vmul.f32 %v848, %v881
    %v1086 = vmul.f32 %v851, %v881
    %v1087 = vmul.f32 %v856, %v881
    %v1088 = vmul.f32 %v859, %v881
    %v1089 = vmul.f32 %v864, %v881
    %v1090 = vmul.f32 %v867, %v881
    %v1091 = vlaneseq
    %v1092 = vshrl.u32 %v1091, 7
    %v1093 = vsub.s32 0, %v1092
    %v1094 = vrot.slane %v430, %v1093
    %v1095 = vmul.f32 %v870, %v1094
    %v1096 = vmul.f32 %v871, %v1094
    %v1097 = vmul.f32 %v872, %v1094
    %v1098 = vmul.f32 %v873, %v1094
    %v1099 = vmul.f32 %v874, %v1094
    %v1100 = vmul.f32 %v875, %v1094
    %v1101 = vmul.f32 %v876, %v1094
    %v1102 = vmul.f32 %v877, %v1094
    %1103 = vmatprep.subr.mxu0 0.0
    %1104 = vmatpush1.xpose.msra.mxu0 0.0
    %1105 = vmatprep.subr.mxu0 0.0
    %1106 = vmatpush1.xpose.msra.mxu0 0.0
    %1107 = vmatprep.subr.mxu0 0.0
    %1108 = vmatpush1.xpose.msra.mxu0 0.0
    %1109 = vmatprep.subr.mxu0 0.0
    %1110 = vmatpush1.xpose.msra.mxu0 0.0
    %1111 = vmatprep.subr.mxu0 0.0
    %1112 = vmatpush1.xpose.msra.mxu0 0.0
    %1113 = vmatprep.subr.mxu0 0.0
    %1114 = vmatpush1.xpose.msra.mxu0 0.0
    %1115 = vmatprep.subr.mxu0 0.0
    %1116 = vmatpush1.xpose.msra.mxu0 0.0
    %1117 = vmatprep.subr.mxu0 0.0
    %1118 = vmatpush1.xpose.msra.mxu0 0.0
    %1119 = vmatprep.subr.mxu0 0.0
    %1120 = vmatpush1.xpose.msra.mxu0 %v803
    %1121 = vmatprep.subr.mxu0 0.0
    %1122 = vmatpush1.xpose.msra.mxu0 %v799
    %1123 = vmatprep.subr.mxu0 0.0
    %1124 = vmatpush1.xpose.msra.mxu0 %v793
    %1125 = vmatprep.subr.mxu0 0.0
    %1126 = vmatpush1.xpose.msra.mxu0 %v789
    %1127 = vmatprep.subr.mxu0 0.0
    %1128 = vmatpush1.xpose.msra.mxu0 %v783
    %1129 = vmatprep.subr.mxu0 0.0
    %1130 = vmatpush1.xpose.msra.mxu0 %v779
    %1131 = vmatprep.subr.mxu0 0.0
    %1132 = vmatpush1.xpose.msra.mxu0 %v773
    %1133 = vmatprep.subr.mxu0 0.0
    %1134 = vmatpush1.xpose.msra.mxu0 %v769
    %1135 = vmatprep.subr.mxu0 0.0
    %1136 = vmatpush2.xpose.msra.mxu0 0.0
    %1137 = vmatprep.subr.mxu0 0.0
    %1138 = vmatpush2.xpose.msra.mxu0 0.0
    %1139 = vmatprep.subr.mxu0 0.0
    %1140 = vmatpush2.xpose.msra.mxu0 0.0
    %1141 = vmatprep.subr.mxu0 0.0
    %1142 = vmatpush2.xpose.msra.mxu0 0.0
    %1143 = vmatprep.subr.mxu0 0.0
    %1144 = vmatpush2.xpose.msra.mxu0 0.0
    %1145 = vmatprep.subr.mxu0 0.0
    %1146 = vmatpush2.xpose.msra.mxu0 0.0
    %1147 = vmatprep.subr.mxu0 0.0
    %1148 = vmatpush2.xpose.msra.mxu0 0.0
    %1149 = vmatprep.subr.mxu0 0.0
    %1150 = vmatpush2.xpose.msra.mxu0 0.0
    %1151 = vmatprep.subr.mxu0 0.0
    %1152 = vmatpush2.xpose.msra.mxu0 0.0
    %1153 = vmatprep.subr.mxu0 0.0
    %1154 = vmatpush2.xpose.msra.mxu0 0.0
    %1155 = vmatprep.subr.mxu0 0.0
    %1156 = vmatpush2.xpose.msra.mxu0 0.0
    %1157 = vmatprep.subr.mxu0 0.0
    %1158 = vmatpush2.xpose.msra.mxu0 0.0
    %1159 = vmatprep.subr.mxu0 0.0
    %1160 = vmatpush2.xpose.msra.mxu0 0.0
    %1161 = vmatprep.subr.mxu0 0.0
    %1162 = vmatpush2.xpose.msra.mxu0 0.0
    %1163 = vmatprep.subr.mxu0 0.0
    %1164 = vmatpush2.xpose.msra.mxu0 0.0
    %1165 = vmatprep.subr.mxu0 0.0
    %1166 = vmatpush2.xpose.msra.mxu0 0.0
    %1167 = vmatprep.mubr.f32.mxu0 0.0
    %1168 = vmatmul.mubr.f32.gmra.mxu0 %v1095
    %v1169 = vpop.f32.mrf.mxu0
    %v1170 = vadd.f32 %v421, %v1169
    %v1171 = vpop.f32.mrf.mxu0
    %1172 = vmatprep.mubr.f32.mxu0 0.0
    %1173 = vmatmul.mubr.f32.gmra.mxu0 %v1096
    %v1174 = vpop.f32.mrf.mxu0
    %v1175 = vadd.f32 %v422, %v1174
    %v1176 = vpop.f32.mrf.mxu0
    %1177 = vmatprep.mubr.f32.mxu0 0.0
    %1178 = vmatmul.mubr.f32.gmra.mxu0 %v1097
    %v1179 = vpop.f32.mrf.mxu0
    %v1180 = vadd.f32 %v423, %v1179
    %v1181 = vpop.f32.mrf.mxu0
    %1182 = vmatprep.mubr.f32.mxu0 0.0
    %1183 = vmatmul.mubr.f32.gmra.mxu0 %v1098
    %v1184 = vpop.f32.mrf.mxu0
    %v1185 = vadd.f32 %v424, %v1184
    %v1186 = vpop.f32.mrf.mxu0
    %1187 = vmatprep.mubr.f32.mxu0 0.0
    %1188 = vmatmul.mubr.f32.gmra.mxu0 %v1099
    %v1189 = vpop.f32.mrf.mxu0
    %v1190 = vadd.f32 %v425, %v1189
    %v1191 = vpop.f32.mrf.mxu0
    %1192 = vmatprep.mubr.f32.mxu0 0.0
    %1193 = vmatmul.mubr.f32.gmra.mxu0 %v1100
    %v1194 = vpop.f32.mrf.mxu0
    %v1195 = vadd.f32 %v426, %v1194
    %v1196 = vpop.f32.mrf.mxu0
    %1197 = vmatprep.mubr.f32.mxu0 0.0
    %1198 = vmatmul.mubr.f32.gmra.mxu0 %v1101
    %v1199 = vpop.f32.mrf.mxu0
    %v1200 = vadd.f32 %v427, %v1199
    %v1201 = vpop.f32.mrf.mxu0
    %1202 = vmatprep.mubr.f32.mxu0 0.0
    %1203 = vmatmul.mubr.f32.gmra.mxu0 %v1102
    %v1204 = vpop.f32.mrf.mxu0
    %v1205 = vadd.f32 %v428, %v1204
    %v1206 = vpop.f32.mrf.mxu0
    %1207 = vdwg.mxu0
    %v1208 = vsel %vm224, %v1170, -inf
    %1209 = vmax.xlane.f32.xlu0 %v1208
    %v1210 = vpop.xlane.xlu0 %1209
    %v1211 = vsel %vm224, %v1175, -inf
    %1212 = vmax.xlane.f32.xlu0 %v1211
    %v1213 = vpop.xlane.xlu0 %1212
    %v1214 = vsel %vm224, %v1180, -inf
    %1215 = vmax.xlane.f32.xlu0 %v1214
    %v1216 = vpop.xlane.xlu0 %1215
    %v1217 = vsel %vm224, %v1185, -inf
    %1218 = vmax.xlane.f32.xlu0 %v1217
    %v1219 = vpop.xlane.xlu0 %1218
    %v1220 = vsel %vm224, %v1190, -inf
    %1221 = vmax.xlane.f32.xlu0 %v1220
    %v1222 = vpop.xlane.xlu0 %1221
    %v1223 = vsel %vm224, %v1195, -inf
    %1224 = vmax.xlane.f32.xlu0 %v1223
    %v1225 = vpop.xlane.xlu0 %1224
    %v1226 = vsel %vm224, %v1200, -inf
    %1227 = vmax.xlane.f32.xlu0 %v1226
    %v1228 = vpop.xlane.xlu0 %1227
    %v1229 = vsel %vm224, %v1205, -inf
    %1230 = vmax.xlane.f32.xlu0 %v1229
    %v1231 = vpop.xlane.xlu0 %1230
    %v1232 = vsub.f32 %v1170, %v1210
    %v1233 = vsub.f32 %v1175, %v1213
    %v1234 = vsub.f32 %v1180, %v1216
    %v1235 = vsub.f32 %v1185, %v1219
    %v1236 = vsub.f32 %v1190, %v1222
    %v1237 = vsub.f32 %v1195, %v1225
    %v1238 = vsub.f32 %v1200, %v1228
    %v1239 = vsub.f32 %v1205, %v1231
    %v1240 = vmul.f32 %v1232, 1.442695
    %v1241 = vpow.pop %v1240
    %v1242 = vmul.f32 %v1233, 1.442695
    %v1243 = vpow.pop %v1242
    %v1244 = vmul.f32 %v1234, 1.442695
    %v1245 = vpow.pop %v1244
    %v1246 = vmul.f32 %v1235, 1.442695
    %v1247 = vpow.pop %v1246
    %v1248 = vmul.f32 %v1236, 1.442695
    %v1249 = vpow.pop %v1248
    %v1250 = vmul.f32 %v1237, 1.442695
    %v1251 = vpow.pop %v1250
    %v1252 = vmul.f32 %v1238, 1.442695
    %v1253 = vpow.pop %v1252
    %v1254 = vmul.f32 %v1239, 1.442695
    %v1255 = vpow.pop %v1254
    %v1256 = vsel %vm224, %v1241, 0.0
    %1257 = vadd.xlane.f32.xlu0 %v1256
    %v1258 = vpop.xlane.xlu0 %1257
    %v1259 = vsel %vm224, %v1243, 0.0
    %1260 = vadd.xlane.f32.xlu0 %v1259
    %v1261 = vpop.xlane.xlu0 %1260
    %v1262 = vsel %vm224, %v1245, 0.0
    %1263 = vadd.xlane.f32.xlu0 %v1262
    %v1264 = vpop.xlane.xlu0 %1263
    %v1265 = vsel %vm224, %v1247, 0.0
    %1266 = vadd.xlane.f32.xlu0 %v1265
    %v1267 = vpop.xlane.xlu0 %1266
    %v1268 = vsel %vm224, %v1249, 0.0
    %1269 = vadd.xlane.f32.xlu0 %v1268
    %v1270 = vpop.xlane.xlu0 %1269
    %v1271 = vsel %vm224, %v1251, 0.0
    %1272 = vadd.xlane.f32.xlu0 %v1271
    %v1273 = vpop.xlane.xlu0 %1272
    %v1274 = vsel %vm224, %v1253, 0.0
    %1275 = vadd.xlane.f32.xlu0 %v1274
    %v1276 = vpop.xlane.xlu0 %1275
    %v1277 = vsel %vm224, %v1255, 0.0
    %1278 = vadd.xlane.f32.xlu0 %v1277
    %v1279 = vpop.xlane.xlu0 %1278
    %v1280 = vrcp.pop %v1258
    %v1281 = vrcp.pop %v1261
    %v1282 = vrcp.pop %v1264
    %v1283 = vrcp.pop %v1267
    %v1284 = vrcp.pop %v1270
    %v1285 = vrcp.pop %v1273
    %v1286 = vrcp.pop %v1276
    %v1287 = vrcp.pop %v1279
    %v1288 = vmul.f32 %v1241, %v1280
    %v1289 = vmul.f32 %v1243, %v1281
    %v1290 = vmul.f32 %v1245, %v1282
    %v1291 = vmul.f32 %v1247, %v1283
    %v1292 = vmul.f32 %v1249, %v1284
    %v1293 = vmul.f32 %v1251, %v1285
    %v1294 = vmul.f32 %v1253, %v1286
    %v1295 = vmul.f32 %v1255, %v1287
    %v1296 = vmul.f32 %v840, %v1094
    %v1297 = vmul.f32 %v843, %v1094
    %v1298 = vmul.f32 %v848, %v1094
    %v1299 = vmul.f32 %v851, %v1094
    %v1300 = vmul.f32 %v856, %v1094
    %v1301 = vmul.f32 %v859, %v1094
    %v1302 = vmul.f32 %v864, %v1094
    %v1303 = vmul.f32 %v867, %v1094
    %v1305 = vsel %vm224, %v1288, 0
    %v1308 = vsel %vm224, %v1289, 0
    %v1311 = vsel %vm224, %v1290, 0
    %v1314 = vsel %vm224, %v1291, 0
    %v1317 = vsel %vm224, %v1292, 0
    %v1320 = vsel %vm224, %v1293, 0
    %v1323 = vsel %vm224, %v1294, 0
    %v1326 = vsel %vm224, %v1295, 0
    %1328 = vmatprep.subr.mxu0 0.0
    %1329 = vmatpush1.msra.mxu0 0.0
    %1330 = vmatprep.subr.mxu0 0.0
    %1331 = vmatpush1.msra.mxu0 0.0
    %1332 = vmatprep.subr.mxu0 0.0
    %1333 = vmatpush1.msra.mxu0 0.0
    %1334 = vmatprep.subr.mxu0 0.0
    %1335 = vmatpush1.msra.mxu0 0.0
    %1336 = vmatprep.subr.mxu0 0.0
    %1337 = vmatpush1.msra.mxu0 0.0
    %1338 = vmatprep.subr.mxu0 0.0
    %1339 = vmatpush1.msra.mxu0 0.0
    %1340 = vmatprep.subr.mxu0 0.0
    %1341 = vmatpush1.msra.mxu0 0.0
    %1342 = vmatprep.subr.mxu0 0.0
    %1343 = vmatpush1.msra.mxu0 0.0
    %1344 = vmatprep.subr.mxu0 0.0
    %1345 = vmatpush1.msra.mxu0 %v1303
    %1346 = vmatprep.subr.mxu0 0.0
    %1347 = vmatpush1.msra.mxu0 %v1302
    %1348 = vmatprep.subr.mxu0 0.0
    %1349 = vmatpush1.msra.mxu0 %v1301
    %1350 = vmatprep.subr.mxu0 0.0
    %1351 = vmatpush1.msra.mxu0 %v1300
    %1352 = vmatprep.subr.mxu0 0.0
    %1353 = vmatpush1.msra.mxu0 %v1299
    %1354 = vmatprep.subr.mxu0 0.0
    %1355 = vmatpush1.msra.mxu0 %v1298
    %1356 = vmatprep.subr.mxu0 0.0
    %1357 = vmatpush1.msra.mxu0 %v1297
    %1358 = vmatprep.subr.mxu0 0.0
    %1359 = vmatpush1.msra.mxu0 %v1296
    %1360 = vmatprep.subr.mxu0 0.0
    %1361 = vmatpush2.msra.mxu0 0.0
    %1362 = vmatprep.subr.mxu0 0.0
    %1363 = vmatpush2.msra.mxu0 0.0
    %1364 = vmatprep.subr.mxu0 0.0
    %1365 = vmatpush2.msra.mxu0 0.0
    %1366 = vmatprep.subr.mxu0 0.0
    %1367 = vmatpush2.msra.mxu0 0.0
    %1368 = vmatprep.subr.mxu0 0.0
    %1369 = vmatpush2.msra.mxu0 0.0
    %1370 = vmatprep.subr.mxu0 0.0
    %1371 = vmatpush2.msra.mxu0 0.0
    %1372 = vmatprep.subr.mxu0 0.0
    %1373 = vmatpush2.msra.mxu0 0.0
    %1374 = vmatprep.subr.mxu0 0.0
    %1375 = vmatpush2.msra.mxu0 0.0
    %1376 = vmatprep.subr.mxu0 0.0
    %1377 = vmatpush2.msra.mxu0 0.0
    %1378 = vmatprep.subr.mxu0 0.0
    %1379 = vmatpush2.msra.mxu0 0.0
    %1380 = vmatprep.subr.mxu0 0.0
    %1381 = vmatpush2.msra.mxu0 0.0
    %1382 = vmatprep.subr.mxu0 0.0
    %1383 = vmatpush2.msra.mxu0 0.0
    %1384 = vmatprep.subr.mxu0 0.0
    %1385 = vmatpush2.msra.mxu0 0.0
    %1386 = vmatprep.subr.mxu0 0.0
    %1387 = vmatpush2.msra.mxu0 0.0
    %1388 = vmatprep.subr.mxu0 0.0
    %1389 = vmatpush2.msra.mxu0 0.0
    %1390 = vmatprep.subr.mxu0 0.0
    %1391 = vmatpush2.msra.mxu0 0.0
    %1392 = vmatprep.mubr.f32.mxu0 0.0
    %1393 = vmatmul.mubr.f32.gmra.mxu0 %v1305
    %v1394 = vpop.f32.mrf.mxu0
    %v1395 = vadd.f32 0.0, %v1394
    %v1396 = vpop.f32.mrf.mxu0
    %1397 = vmatprep.mubr.f32.mxu0 0.0
    %1398 = vmatmul.mubr.f32.gmra.mxu0 %v1308
    %v1399 = vpop.f32.mrf.mxu0
    %v1400 = vadd.f32 0.0, %v1399
    %v1401 = vpop.f32.mrf.mxu0
    %1402 = vmatprep.mubr.f32.mxu0 0.0
    %1403 = vmatmul.mubr.f32.gmra.mxu0 %v1311
    %v1404 = vpop.f32.mrf.mxu0
    %v1405 = vadd.f32 0.0, %v1404
    %v1406 = vpop.f32.mrf.mxu0
    %1407 = vmatprep.mubr.f32.mxu0 0.0
    %1408 = vmatmul.mubr.f32.gmra.mxu0 %v1314
    %v1409 = vpop.f32.mrf.mxu0
    %v1410 = vadd.f32 0.0, %v1409
    %v1411 = vpop.f32.mrf.mxu0
    %1412 = vmatprep.mubr.f32.mxu0 0.0
    %1413 = vmatmul.mubr.f32.gmra.mxu0 %v1317
    %v1414 = vpop.f32.mrf.mxu0
    %v1415 = vadd.f32 0.0, %v1414
    %v1416 = vpop.f32.mrf.mxu0
    %1417 = vmatprep.mubr.f32.mxu0 0.0
    %1418 = vmatmul.mubr.f32.gmra.mxu0 %v1320
    %v1419 = vpop.f32.mrf.mxu0
    %v1420 = vadd.f32 0.0, %v1419
    %v1421 = vpop.f32.mrf.mxu0
    %1422 = vmatprep.mubr.f32.mxu0 0.0
    %1423 = vmatmul.mubr.f32.gmra.mxu0 %v1323
    %v1424 = vpop.f32.mrf.mxu0
    %v1425 = vadd.f32 0.0, %v1424
    %v1426 = vpop.f32.mrf.mxu0
    %1427 = vmatprep.mubr.f32.mxu0 0.0
    %1428 = vmatmul.mubr.f32.gmra.mxu0 %v1326
    %v1429 = vpop.f32.mrf.mxu0
    %v1430 = vadd.f32 0.0, %v1429
    %v1431 = vpop.f32.mrf.mxu0
    %1432 = vdwg.mxu0
    %v1434 = vsel %vm224, %v1075, 0
    %v1437 = vsel %vm224, %v1076, 0
    %v1440 = vsel %vm224, %v1077, 0
    %v1443 = vsel %vm224, %v1078, 0
    %v1446 = vsel %vm224, %v1079, 0
    %v1449 = vsel %vm224, %v1080, 0
    %v1452 = vsel %vm224, %v1081, 0
    %v1455 = vsel %vm224, %v1082, 0
    %1457 = vmatprep.subr.mxu0 0.0
    %1458 = vmatpush1.msra.mxu0 0.0
    %1459 = vmatprep.subr.mxu0 0.0
    %1460 = vmatpush1.msra.mxu0 0.0
    %1461 = vmatprep.subr.mxu0 0.0
    %1462 = vmatpush1.msra.mxu0 0.0
    %1463 = vmatprep.subr.mxu0 0.0
    %1464 = vmatpush1.msra.mxu0 0.0
    %1465 = vmatprep.subr.mxu0 0.0
    %1466 = vmatpush1.msra.mxu0 0.0
    %1467 = vmatprep.subr.mxu0 0.0
    %1468 = vmatpush1.msra.mxu0 0.0
    %1469 = vmatprep.subr.mxu0 0.0
    %1470 = vmatpush1.msra.mxu0 0.0
    %1471 = vmatprep.subr.mxu0 0.0
    %1472 = vmatpush1.msra.mxu0 0.0
    %1473 = vmatprep.subr.mxu0 0.0
    %1474 = vmatpush1.msra.mxu0 %v1090
    %1475 = vmatprep.subr.mxu0 0.0
    %1476 = vmatpush1.msra.mxu0 %v1089
    %1477 = vmatprep.subr.mxu0 0.0
    %1478 = vmatpush1.msra.mxu0 %v1088
    %1479 = vmatprep.subr.mxu0 0.0
    %1480 = vmatpush1.msra.mxu0 %v1087
    %1481 = vmatprep.subr.mxu0 0.0
    %1482 = vmatpush1.msra.mxu0 %v1086
    %1483 = vmatprep.subr.mxu0 0.0
    %1484 = vmatpush1.msra.mxu0 %v1085
    %1485 = vmatprep.subr.mxu0 0.0
    %1486 = vmatpush1.msra.mxu0 %v1084
    %1487 = vmatprep.subr.mxu0 0.0
    %1488 = vmatpush1.msra.mxu0 %v1083
    %1489 = vmatprep.subr.mxu0 0.0
    %1490 = vmatpush2.msra.mxu0 0.0
    %1491 = vmatprep.subr.mxu0 0.0
    %1492 = vmatpush2.msra.mxu0 0.0
    %1493 = vmatprep.subr.mxu0 0.0
    %1494 = vmatpush2.msra.mxu0 0.0
    %1495 = vmatprep.subr.mxu0 0.0
    %1496 = vmatpush2.msra.mxu0 0.0
    %1497 = vmatprep.subr.mxu0 0.0
    %1498 = vmatpush2.msra.mxu0 0.0
    %1499 = vmatprep.subr.mxu0 0.0
    %1500 = vmatpush2.msra.mxu0 0.0
    %1501 = vmatprep.subr.mxu0 0.0
    %1502 = vmatpush2.msra.mxu0 0.0
    %1503 = vmatprep.subr.mxu0 0.0
    %1504 = vmatpush2.msra.mxu0 0.0
    %1505 = vmatprep.subr.mxu0 0.0
    %1506 = vmatpush2.msra.mxu0 0.0
    %1507 = vmatprep.subr.mxu0 0.0
    %1508 = vmatpush2.msra.mxu0 0.0
    %1509 = vmatprep.subr.mxu0 0.0
    %1510 = vmatpush2.msra.mxu0 0.0
    %1511 = vmatprep.subr.mxu0 0.0
    %1512 = vmatpush2.msra.mxu0 0.0
    %1513 = vmatprep.subr.mxu0 0.0
    %1514 = vmatpush2.msra.mxu0 0.0
    %1515 = vmatprep.subr.mxu0 0.0
    %1516 = vmatpush2.msra.mxu0 0.0
    %1517 = vmatprep.subr.mxu0 0.0
    %1518 = vmatpush2.msra.mxu0 0.0
    %1519 = vmatprep.subr.mxu0 0.0
    %1520 = vmatpush2.msra.mxu0 0.0
    %1521 = vmatprep.mubr.f32.mxu0 0.0
    %1522 = vmatmul.mubr.f32.gmra.mxu0 %v1434
    %v1523 = vpop.f32.mrf.mxu0
    %v1524 = vadd.f32 %v1395, %v1523
    %v1525 = vpop.f32.mrf.mxu0
    %1526 = vmatprep.mubr.f32.mxu0 0.0
    %1527 = vmatmul.mubr.f32.gmra.mxu0 %v1437
    %v1528 = vpop.f32.mrf.mxu0
    %v1529 = vadd.f32 %v1400, %v1528
    %v1530 = vpop.f32.mrf.mxu0
    %1531 = vmatprep.mubr.f32.mxu0 0.0
    %1532 = vmatmul.mubr.f32.gmra.mxu0 %v1440
    %v1533 = vpop.f32.mrf.mxu0
    %v1534 = vadd.f32 %v1405, %v1533
    %v1535 = vpop.f32.mrf.mxu0
    %1536 = vmatprep.mubr.f32.mxu0 0.0
    %1537 = vmatmul.mubr.f32.gmra.mxu0 %v1443
    %v1538 = vpop.f32.mrf.mxu0
    %v1539 = vadd.f32 %v1410, %v1538
    %v1540 = vpop.f32.mrf.mxu0
    %1541 = vmatprep.mubr.f32.mxu0 0.0
    %1542 = vmatmul.mubr.f32.gmra.mxu0 %v1446
    %v1543 = vpop.f32.mrf.mxu0
    %v1544 = vadd.f32 %v1415, %v1543
    %v1545 = vpop.f32.mrf.mxu0
    %1546 = vmatprep.mubr.f32.mxu0 0.0
    %1547 = vmatmul.mubr.f32.gmra.mxu0 %v1449
    %v1548 = vpop.f32.mrf.mxu0
    %v1549 = vadd.f32 %v1420, %v1548
    %v1550 = vpop.f32.mrf.mxu0
    %1551 = vmatprep.mubr.f32.mxu0 0.0
    %1552 = vmatmul.mubr.f32.gmra.mxu0 %v1452
    %v1553 = vpop.f32.mrf.mxu0
    %v1554 = vadd.f32 %v1425, %v1553
    %v1555 = vpop.f32.mrf.mxu0
    %1556 = vmatprep.mubr.f32.mxu0 0.0
    %1557 = vmatmul.mubr.f32.gmra.mxu0 %v1455
    %v1558 = vpop.f32.mrf.mxu0
    %v1559 = vadd.f32 %v1430, %v1558
    %v1560 = vpop.f32.mrf.mxu0
    %1561 = vdwg.mxu0
    %v1562 = vlaneseq
    %v1563 = vshrl.u32 %v1562, 7
    %v1564 = vsub.s32 0, %v1563
    %v1565 = vrot.slane %v431, %v1564
    %v1566 = vmul.f32 %v870, %v1565
    %v1567 = vmul.f32 %v871, %v1565
    %v1568 = vmul.f32 %v872, %v1565
    %v1569 = vmul.f32 %v873, %v1565
    %v1570 = vmul.f32 %v874, %v1565
    %v1571 = vmul.f32 %v875, %v1565
    %v1572 = vmul.f32 %v876, %v1565
    %v1573 = vmul.f32 %v877, %v1565
    %1574 = vmatprep.subr.mxu0 0.0
    %1575 = vmatpush1.xpose.msra.mxu0 0.0
    %1576 = vmatprep.subr.mxu0 0.0
    %1577 = vmatpush1.xpose.msra.mxu0 0.0
    %1578 = vmatprep.subr.mxu0 0.0
    %1579 = vmatpush1.xpose.msra.mxu0 0.0
    %1580 = vmatprep.subr.mxu0 0.0
    %1581 = vmatpush1.xpose.msra.mxu0 0.0
    %1582 = vmatprep.subr.mxu0 0.0
    %1583 = vmatpush1.xpose.msra.mxu0 0.0
    %1584 = vmatprep.subr.mxu0 0.0
    %1585 = vmatpush1.xpose.msra.mxu0 0.0
    %1586 = vmatprep.subr.mxu0 0.0
    %1587 = vmatpush1.xpose.msra.mxu0 0.0
    %1588 = vmatprep.subr.mxu0 0.0
    %1589 = vmatpush1.xpose.msra.mxu0 0.0
    %1590 = vmatprep.subr.mxu0 0.0
    %1591 = vmatpush1.xpose.msra.mxu0 %v803
    %1592 = vmatprep.subr.mxu0 0.0
    %1593 = vmatpush1.xpose.msra.mxu0 %v799
    %1594 = vmatprep.subr.mxu0 0.0
    %1595 = vmatpush1.xpose.msra.mxu0 %v793
    %1596 = vmatprep.subr.mxu0 0.0
    %1597 = vmatpush1.xpose.msra.mxu0 %v789
    %1598 = vmatprep.subr.mxu0 0.0
    %1599 = vmatpush1.xpose.msra.mxu0 %v783
    %1600 = vmatprep.subr.mxu0 0.0
    %1601 = vmatpush1.xpose.msra.mxu0 %v779
    %1602 = vmatprep.subr.mxu0 0.0
    %1603 = vmatpush1.xpose.msra.mxu0 %v773
    %1604 = vmatprep.subr.mxu0 0.0
    %1605 = vmatpush1.xpose.msra.mxu0 %v769
    %1606 = vmatprep.subr.mxu0 0.0
    %1607 = vmatpush2.xpose.msra.mxu0 0.0
    %1608 = vmatprep.subr.mxu0 0.0
    %1609 = vmatpush2.xpose.msra.mxu0 0.0
    %1610 = vmatprep.subr.mxu0 0.0
    %1611 = vmatpush2.xpose.msra.mxu0 0.0
    %1612 = vmatprep.subr.mxu0 0.0
    %1613 = vmatpush2.xpose.msra.mxu0 0.0
    %1614 = vmatprep.subr.mxu0 0.0
    %1615 = vmatpush2.xpose.msra.mxu0 0.0
    %1616 = vmatprep.subr.mxu0 0.0
    %1617 = vmatpush2.xpose.msra.mxu0 0.0
    %1618 = vmatprep.subr.mxu0 0.0
    %1619 = vmatpush2.xpose.msra.mxu0 0.0
    %1620 = vmatprep.subr.mxu0 0.0
    %1621 = vmatpush2.xpose.msra.mxu0 0.0
    %1622 = vmatprep.subr.mxu0 0.0
    %1623 = vmatpush2.xpose.msra.mxu0 0.0
    %1624 = vmatprep.subr.mxu0 0.0
    %1625 = vmatpush2.xpose.msra.mxu0 0.0
    %1626 = vmatprep.subr.mxu0 0.0
    %1627 = vmatpush2.xpose.msra.mxu0 0.0
    %1628 = vmatprep.subr.mxu0 0.0
    %1629 = vmatpush2.xpose.msra.mxu0 0.0
    %1630 = vmatprep.subr.mxu0 0.0
    %1631 = vmatpush2.xpose.msra.mxu0 0.0
    %1632 = vmatprep.subr.mxu0 0.0
    %1633 = vmatpush2.xpose.msra.mxu0 0.0
    %1634 = vmatprep.subr.mxu0 0.0
    %1635 = vmatpush2.xpose.msra.mxu0 0.0
    %1636 = vmatprep.subr.mxu0 0.0
    %1637 = vmatpush2.xpose.msra.mxu0 0.0
    %1638 = vmatprep.mubr.f32.mxu0 0.0
    %1639 = vmatmul.mubr.f32.gmra.mxu0 %v1566
    %v1640 = vpop.f32.mrf.mxu0
    %v1641 = vadd.f32 %v421, %v1640
    %v1642 = vpop.f32.mrf.mxu0
    %1643 = vmatprep.mubr.f32.mxu0 0.0
    %1644 = vmatmul.mubr.f32.gmra.mxu0 %v1567
    %v1645 = vpop.f32.mrf.mxu0
    %v1646 = vadd.f32 %v422, %v1645
    %v1647 = vpop.f32.mrf.mxu0
    %1648 = vmatprep.mubr.f32.mxu0 0.0
    %1649 = vmatmul.mubr.f32.gmra.mxu0 %v1568
    %v1650 = vpop.f32.mrf.mxu0
    %v1651 = vadd.f32 %v423, %v1650
    %v1652 = vpop.f32.mrf.mxu0
    %1653 = vmatprep.mubr.f32.mxu0 0.0
    %1654 = vmatmul.mubr.f32.gmra.mxu0 %v1569
    %v1655 = vpop.f32.mrf.mxu0
    %v1656 = vadd.f32 %v424, %v1655
    %v1657 = vpop.f32.mrf.mxu0
    %1658 = vmatprep.mubr.f32.mxu0 0.0
    %1659 = vmatmul.mubr.f32.gmra.mxu0 %v1570
    %v1660 = vpop.f32.mrf.mxu0
    %v1661 = vadd.f32 %v425, %v1660
    %v1662 = vpop.f32.mrf.mxu0
    %1663 = vmatprep.mubr.f32.mxu0 0.0
    %1664 = vmatmul.mubr.f32.gmra.mxu0 %v1571
    %v1665 = vpop.f32.mrf.mxu0
    %v1666 = vadd.f32 %v426, %v1665
    %v1667 = vpop.f32.mrf.mxu0
    %1668 = vmatprep.mubr.f32.mxu0 0.0
    %1669 = vmatmul.mubr.f32.gmra.mxu0 %v1572
    %v1670 = vpop.f32.mrf.mxu0
    %v1671 = vadd.f32 %v427, %v1670
    %v1672 = vpop.f32.mrf.mxu0
    %1673 = vmatprep.mubr.f32.mxu0 0.0
    %1674 = vmatmul.mubr.f32.gmra.mxu0 %v1573
    %v1675 = vpop.f32.mrf.mxu0
    %v1676 = vadd.f32 %v428, %v1675
    %v1677 = vpop.f32.mrf.mxu0
    %1678 = vdwg.mxu0
    %v1679 = vsel %vm224, %v1641, -inf
    %1680 = vmax.xlane.f32.xlu0 %v1679
    %v1681 = vpop.xlane.xlu0 %1680
    %v1682 = vsel %vm224, %v1646, -inf
    %1683 = vmax.xlane.f32.xlu0 %v1682
    %v1684 = vpop.xlane.xlu0 %1683
    %v1685 = vsel %vm224, %v1651, -inf
    %1686 = vmax.xlane.f32.xlu0 %v1685
    %v1687 = vpop.xlane.xlu0 %1686
    %v1688 = vsel %vm224, %v1656, -inf
    %1689 = vmax.xlane.f32.xlu0 %v1688
    %v1690 = vpop.xlane.xlu0 %1689
    %v1691 = vsel %vm224, %v1661, -inf
    %1692 = vmax.xlane.f32.xlu0 %v1691
    %v1693 = vpop.xlane.xlu0 %1692
    %v1694 = vsel %vm224, %v1666, -inf
    %1695 = vmax.xlane.f32.xlu0 %v1694
    %v1696 = vpop.xlane.xlu0 %1695
    %v1697 = vsel %vm224, %v1671, -inf
    %1698 = vmax.xlane.f32.xlu0 %v1697
    %v1699 = vpop.xlane.xlu0 %1698
    %v1700 = vsel %vm224, %v1676, -inf
    %1701 = vmax.xlane.f32.xlu0 %v1700
    %v1702 = vpop.xlane.xlu0 %1701
    %v1703 = vsub.f32 %v1641, %v1681
    %v1704 = vsub.f32 %v1646, %v1684
    %v1705 = vsub.f32 %v1651, %v1687
    %v1706 = vsub.f32 %v1656, %v1690
    %v1707 = vsub.f32 %v1661, %v1693
    %v1708 = vsub.f32 %v1666, %v1696
    %v1709 = vsub.f32 %v1671, %v1699
    %v1710 = vsub.f32 %v1676, %v1702
    %v1711 = vmul.f32 %v1703, 1.442695
    %v1712 = vpow.pop %v1711
    %v1713 = vmul.f32 %v1704, 1.442695
    %v1714 = vpow.pop %v1713
    %v1715 = vmul.f32 %v1705, 1.442695
    %v1716 = vpow.pop %v1715
    %v1717 = vmul.f32 %v1706, 1.442695
    %v1718 = vpow.pop %v1717
    %v1719 = vmul.f32 %v1707, 1.442695
    %v1720 = vpow.pop %v1719
    %v1721 = vmul.f32 %v1708, 1.442695
    %v1722 = vpow.pop %v1721
    %v1723 = vmul.f32 %v1709, 1.442695
    %v1724 = vpow.pop %v1723
    %v1725 = vmul.f32 %v1710, 1.442695
    %v1726 = vpow.pop %v1725
    %v1727 = vsel %vm224, %v1712, 0.0
    %1728 = vadd.xlane.f32.xlu0 %v1727
    %v1729 = vpop.xlane.xlu0 %1728
    %v1730 = vsel %vm224, %v1714, 0.0
    %1731 = vadd.xlane.f32.xlu0 %v1730
    %v1732 = vpop.xlane.xlu0 %1731
    %v1733 = vsel %vm224, %v1716, 0.0
    %1734 = vadd.xlane.f32.xlu0 %v1733
    %v1735 = vpop.xlane.xlu0 %1734
    %v1736 = vsel %vm224, %v1718, 0.0
    %1737 = vadd.xlane.f32.xlu0 %v1736
    %v1738 = vpop.xlane.xlu0 %1737
    %v1739 = vsel %vm224, %v1720, 0.0
    %1740 = vadd.xlane.f32.xlu0 %v1739
    %v1741 = vpop.xlane.xlu0 %1740
    %v1742 = vsel %vm224, %v1722, 0.0
    %1743 = vadd.xlane.f32.xlu0 %v1742
    %v1744 = vpop.xlane.xlu0 %1743
    %v1745 = vsel %vm224, %v1724, 0.0
    %1746 = vadd.xlane.f32.xlu0 %v1745
    %v1747 = vpop.xlane.xlu0 %1746
    %v1748 = vsel %vm224, %v1726, 0.0
    %1749 = vadd.xlane.f32.xlu0 %v1748
    %v1750 = vpop.xlane.xlu0 %1749
    %v1751 = vrcp.pop %v1729
    %v1752 = vrcp.pop %v1732
    %v1753 = vrcp.pop %v1735
    %v1754 = vrcp.pop %v1738
    %v1755 = vrcp.pop %v1741
    %v1756 = vrcp.pop %v1744
    %v1757 = vrcp.pop %v1747
    %v1758 = vrcp.pop %v1750
    %v1759 = vmul.f32 %v1712, %v1751
    %v1760 = vmul.f32 %v1714, %v1752
    %v1761 = vmul.f32 %v1716, %v1753
    %v1762 = vmul.f32 %v1718, %v1754
    %v1763 = vmul.f32 %v1720, %v1755
    %v1764 = vmul.f32 %v1722, %v1756
    %v1765 = vmul.f32 %v1724, %v1757
    %v1766 = vmul.f32 %v1726, %v1758
    %v1767 = vmul.f32 %v840, %v1565
    %v1768 = vmul.f32 %v843, %v1565
    %v1769 = vmul.f32 %v848, %v1565
    %v1770 = vmul.f32 %v851, %v1565
    %v1771 = vmul.f32 %v856, %v1565
    %v1772 = vmul.f32 %v859, %v1565
    %v1773 = vmul.f32 %v864, %v1565
    %v1774 = vmul.f32 %v867, %v1565
    %v1776 = vsel %vm224, %v1759, 0
    %v1779 = vsel %vm224, %v1760, 0
    %v1782 = vsel %vm224, %v1761, 0
    %v1785 = vsel %vm224, %v1762, 0
    %v1788 = vsel %vm224, %v1763, 0
    %v1791 = vsel %vm224, %v1764, 0
    %v1794 = vsel %vm224, %v1765, 0
    %v1797 = vsel %vm224, %v1766, 0
    %1799 = vmatprep.subr.mxu0 0.0
    %1800 = vmatpush1.msra.mxu0 0.0
    %1801 = vmatprep.subr.mxu0 0.0
    %1802 = vmatpush1.msra.mxu0 0.0
    %1803 = vmatprep.subr.mxu0 0.0
    %1804 = vmatpush1.msra.mxu0 0.0
    %1805 = vmatprep.subr.mxu0 0.0
    %1806 = vmatpush1.msra.mxu0 0.0
    %1807 = vmatprep.subr.mxu0 0.0
    %1808 = vmatpush1.msra.mxu0 0.0
    %1809 = vmatprep.subr.mxu0 0.0
    %1810 = vmatpush1.msra.mxu0 0.0
    %1811 = vmatprep.subr.mxu0 0.0
    %1812 = vmatpush1.msra.mxu0 0.0
    %1813 = vmatprep.subr.mxu0 0.0
    %1814 = vmatpush1.msra.mxu0 0.0
    %1815 = vmatprep.subr.mxu0 0.0
    %1816 = vmatpush1.msra.mxu0 %v1774
    %1817 = vmatprep.subr.mxu0 0.0
    %1818 = vmatpush1.msra.mxu0 %v1773
    %1819 = vmatprep.subr.mxu0 0.0
    %1820 = vmatpush1.msra.mxu0 %v1772
    %1821 = vmatprep.subr.mxu0 0.0
    %1822 = vmatpush1.msra.mxu0 %v1771
    %1823 = vmatprep.subr.mxu0 0.0
    %1824 = vmatpush1.msra.mxu0 %v1770
    %1825 = vmatprep.subr.mxu0 0.0
    %1826 = vmatpush1.msra.mxu0 %v1769
    %1827 = vmatprep.subr.mxu0 0.0
    %1828 = vmatpush1.msra.mxu0 %v1768
    %1829 = vmatprep.subr.mxu0 0.0
    %1830 = vmatpush1.msra.mxu0 %v1767
    %1831 = vmatprep.subr.mxu0 0.0
    %1832 = vmatpush2.msra.mxu0 0.0
    %1833 = vmatprep.subr.mxu0 0.0
    %1834 = vmatpush2.msra.mxu0 0.0
    %1835 = vmatprep.subr.mxu0 0.0
    %1836 = vmatpush2.msra.mxu0 0.0
    %1837 = vmatprep.subr.mxu0 0.0
    %1838 = vmatpush2.msra.mxu0 0.0
    %1839 = vmatprep.subr.mxu0 0.0
    %1840 = vmatpush2.msra.mxu0 0.0
    %1841 = vmatprep.subr.mxu0 0.0
    %1842 = vmatpush2.msra.mxu0 0.0
    %1843 = vmatprep.subr.mxu0 0.0
    %1844 = vmatpush2.msra.mxu0 0.0
    %1845 = vmatprep.subr.mxu0 0.0
    %1846 = vmatpush2.msra.mxu0 0.0
    %1847 = vmatprep.subr.mxu0 0.0
    %1848 = vmatpush2.msra.mxu0 0.0
    %1849 = vmatprep.subr.mxu0 0.0
    %1850 = vmatpush2.msra.mxu0 0.0
    %1851 = vmatprep.subr.mxu0 0.0
    %1852 = vmatpush2.msra.mxu0 0.0
    %1853 = vmatprep.subr.mxu0 0.0
    %1854 = vmatpush2.msra.mxu0 0.0
    %1855 = vmatprep.subr.mxu0 0.0
    %1856 = vmatpush2.msra.mxu0 0.0
    %1857 = vmatprep.subr.mxu0 0.0
    %1858 = vmatpush2.msra.mxu0 0.0
    %1859 = vmatprep.subr.mxu0 0.0
    %1860 = vmatpush2.msra.mxu0 0.0
    %1861 = vmatprep.subr.mxu0 0.0
    %1862 = vmatpush2.msra.mxu0 0.0
    %1863 = vmatprep.mubr.f32.mxu0 0.0
    %1864 = vmatmul.mubr.f32.gmra.mxu0 %v1776
    %v1865 = vpop.f32.mrf.mxu0
    %v1866 = vadd.f32 0.0, %v1865
    %v1867 = vpop.f32.mrf.mxu0
    %1868 = vmatprep.mubr.f32.mxu0 0.0
    %1869 = vmatmul.mubr.f32.gmra.mxu0 %v1779
    %v1870 = vpop.f32.mrf.mxu0
    %v1871 = vadd.f32 0.0, %v1870
    %v1872 = vpop.f32.mrf.mxu0
    %1873 = vmatprep.mubr.f32.mxu0 0.0
    %1874 = vmatmul.mubr.f32.gmra.mxu0 %v1782
    %v1875 = vpop.f32.mrf.mxu0
    %v1876 = vadd.f32 0.0, %v1875
    %v1877 = vpop.f32.mrf.mxu0
    %1878 = vmatprep.mubr.f32.mxu0 0.0
    %1879 = vmatmul.mubr.f32.gmra.mxu0 %v1785
    %v1880 = vpop.f32.mrf.mxu0
    %v1881 = vadd.f32 0.0, %v1880
    %v1882 = vpop.f32.mrf.mxu0
    %1883 = vmatprep.mubr.f32.mxu0 0.0
    %1884 = vmatmul.mubr.f32.gmra.mxu0 %v1788
    %v1885 = vpop.f32.mrf.mxu0
    %v1886 = vadd.f32 0.0, %v1885
    %v1887 = vpop.f32.mrf.mxu0
    %1888 = vmatprep.mubr.f32.mxu0 0.0
    %1889 = vmatmul.mubr.f32.gmra.mxu0 %v1791
    %v1890 = vpop.f32.mrf.mxu0
    %v1891 = vadd.f32 0.0, %v1890
    %v1892 = vpop.f32.mrf.mxu0
    %1893 = vmatprep.mubr.f32.mxu0 0.0
    %1894 = vmatmul.mubr.f32.gmra.mxu0 %v1794
    %v1895 = vpop.f32.mrf.mxu0
    %v1896 = vadd.f32 0.0, %v1895
    %v1897 = vpop.f32.mrf.mxu0
    %1898 = vmatprep.mubr.f32.mxu0 0.0
    %1899 = vmatmul.mubr.f32.gmra.mxu0 %v1797
    %v1900 = vpop.f32.mrf.mxu0
    %v1901 = vadd.f32 0.0, %v1900
    %v1902 = vpop.f32.mrf.mxu0
    %1903 = vdwg.mxu0
    %v1904 = vadd.f32 %v1524, %v1866
    %v1905 = vadd.f32 %v1529, %v1871
    %v1906 = vadd.f32 %v1534, %v1876
    %v1907 = vadd.f32 %v1539, %v1881
    %v1908 = vadd.f32 %v1544, %v1886
    %v1909 = vadd.f32 %v1549, %v1891
    %v1910 = vadd.f32 %v1554, %v1896
    %v1911 = vadd.f32 %v1559, %v1901
    %v1912 = vlaneseq
    %v1913 = vshrl.u32 %v1912, 7
    %v1914 = vsub.s32 0, %v1913
    %v1915 = vrot.slane %v432, %v1914
    %v1916 = vmul.f32 %v870, %v1915
    %v1917 = vmul.f32 %v871, %v1915
    %v1918 = vmul.f32 %v872, %v1915
    %v1919 = vmul.f32 %v873, %v1915
    %v1920 = vmul.f32 %v874, %v1915
    %v1921 = vmul.f32 %v875, %v1915
    %v1922 = vmul.f32 %v876, %v1915
    %v1923 = vmul.f32 %v877, %v1915
    %1924 = vmatprep.subr.mxu0 0.0
    %1925 = vmatpush1.xpose.msra.mxu0 0.0
    %1926 = vmatprep.subr.mxu0 0.0
    %1927 = vmatpush1.xpose.msra.mxu0 0.0
    %1928 = vmatprep.subr.mxu0 0.0
    %1929 = vmatpush1.xpose.msra.mxu0 0.0
    %1930 = vmatprep.subr.mxu0 0.0
    %1931 = vmatpush1.xpose.msra.mxu0 0.0
    %1932 = vmatprep.subr.mxu0 0.0
    %1933 = vmatpush1.xpose.msra.mxu0 0.0
    %1934 = vmatprep.subr.mxu0 0.0
    %1935 = vmatpush1.xpose.msra.mxu0 0.0
    %1936 = vmatprep.subr.mxu0 0.0
    %1937 = vmatpush1.xpose.msra.mxu0 0.0
    %1938 = vmatprep.subr.mxu0 0.0
    %1939 = vmatpush1.xpose.msra.mxu0 0.0
    %1940 = vmatprep.subr.mxu0 0.0
    %1941 = vmatpush1.xpose.msra.mxu0 %v803
    %1942 = vmatprep.subr.mxu0 0.0
    %1943 = vmatpush1.xpose.msra.mxu0 %v799
    %1944 = vmatprep.subr.mxu0 0.0
    %1945 = vmatpush1.xpose.msra.mxu0 %v793
    %1946 = vmatprep.subr.mxu0 0.0
    %1947 = vmatpush1.xpose.msra.mxu0 %v789
    %1948 = vmatprep.subr.mxu0 0.0
    %1949 = vmatpush1.xpose.msra.mxu0 %v783
    %1950 = vmatprep.subr.mxu0 0.0
    %1951 = vmatpush1.xpose.msra.mxu0 %v779
    %1952 = vmatprep.subr.mxu0 0.0
    %1953 = vmatpush1.xpose.msra.mxu0 %v773
    %1954 = vmatprep.subr.mxu0 0.0
    %1955 = vmatpush1.xpose.msra.mxu0 %v769
    %1956 = vmatprep.subr.mxu0 0.0
    %1957 = vmatpush2.xpose.msra.mxu0 0.0
    %1958 = vmatprep.subr.mxu0 0.0
    %1959 = vmatpush2.xpose.msra.mxu0 0.0
    %1960 = vmatprep.subr.mxu0 0.0
    %1961 = vmatpush2.xpose.msra.mxu0 0.0
    %1962 = vmatprep.subr.mxu0 0.0
    %1963 = vmatpush2.xpose.msra.mxu0 0.0
    %1964 = vmatprep.subr.mxu0 0.0
    %1965 = vmatpush2.xpose.msra.mxu0 0.0
    %1966 = vmatprep.subr.mxu0 0.0
    %1967 = vmatpush2.xpose.msra.mxu0 0.0
    %1968 = vmatprep.subr.mxu0 0.0
    %1969 = vmatpush2.xpose.msra.mxu0 0.0
    %1970 = vmatprep.subr.mxu0 0.0
    %1971 = vmatpush2.xpose.msra.mxu0 0.0
    %1972 = vmatprep.subr.mxu0 0.0
    %1973 = vmatpush2.xpose.msra.mxu0 0.0
    %1974 = vmatprep.subr.mxu0 0.0
    %1975 = vmatpush2.xpose.msra.mxu0 0.0
    %1976 = vmatprep.subr.mxu0 0.0
    %1977 = vmatpush2.xpose.msra.mxu0 0.0
    %1978 = vmatprep.subr.mxu0 0.0
    %1979 = vmatpush2.xpose.msra.mxu0 0.0
    %1980 = vmatprep.subr.mxu0 0.0
    %1981 = vmatpush2.xpose.msra.mxu0 0.0
    %1982 = vmatprep.subr.mxu0 0.0
    %1983 = vmatpush2.xpose.msra.mxu0 0.0
    %1984 = vmatprep.subr.mxu0 0.0
    %1985 = vmatpush2.xpose.msra.mxu0 0.0
    %1986 = vmatprep.subr.mxu0 0.0
    %1987 = vmatpush2.xpose.msra.mxu0 0.0
    %1988 = vmatprep.mubr.f32.mxu0 0.0
    %1989 = vmatmul.mubr.f32.gmra.mxu0 %v1916
    %v1990 = vpop.f32.mrf.mxu0
    %v1991 = vadd.f32 %v421, %v1990
    %v1992 = vpop.f32.mrf.mxu0
    %1993 = vmatprep.mubr.f32.mxu0 0.0
    %1994 = vmatmul.mubr.f32.gmra.mxu0 %v1917
    %v1995 = vpop.f32.mrf.mxu0
    %v1996 = vadd.f32 %v422, %v1995
    %v1997 = vpop.f32.mrf.mxu0
    %1998 = vmatprep.mubr.f32.mxu0 0.0
    %1999 = vmatmul.mubr.f32.gmra.mxu0 %v1918
    %v2000 = vpop.f32.mrf.mxu0
    %v2001 = vadd.f32 %v423, %v2000
    %v2002 = vpop.f32.mrf.mxu0
    %2003 = vmatprep.mubr.f32.mxu0 0.0
    %2004 = vmatmul.mubr.f32.gmra.mxu0 %v1919
    %v2005 = vpop.f32.mrf.mxu0
    %v2006 = vadd.f32 %v424, %v2005
    %v2007 = vpop.f32.mrf.mxu0
    %2008 = vmatprep.mubr.f32.mxu0 0.0
    %2009 = vmatmul.mubr.f32.gmra.mxu0 %v1920
    %v2010 = vpop.f32.mrf.mxu0
    %v2011 = vadd.f32 %v425, %v2010
    %v2012 = vpop.f32.mrf.mxu0
    %2013 = vmatprep.mubr.f32.mxu0 0.0
    %2014 = vmatmul.mubr.f32.gmra.mxu0 %v1921
    %v2015 = vpop.f32.mrf.mxu0
    %v2016 = vadd.f32 %v426, %v2015
    %v2017 = vpop.f32.mrf.mxu0
    %2018 = vmatprep.mubr.f32.mxu0 0.0
    %2019 = vmatmul.mubr.f32.gmra.mxu0 %v1922
    %v2020 = vpop.f32.mrf.mxu0
    %v2021 = vadd.f32 %v427, %v2020
    %v2022 = vpop.f32.mrf.mxu0
    %2023 = vmatprep.mubr.f32.mxu0 0.0
    %2024 = vmatmul.mubr.f32.gmra.mxu0 %v1923
    %v2025 = vpop.f32.mrf.mxu0
    %v2026 = vadd.f32 %v428, %v2025
    %v2027 = vpop.f32.mrf.mxu0
    %2028 = vdwg.mxu0
    %v2029 = vsel %vm224, %v1991, -inf
    %2030 = vmax.xlane.f32.xlu0 %v2029
    %v2031 = vpop.xlane.xlu0 %2030
    %v2032 = vsel %vm224, %v1996, -inf
    %2033 = vmax.xlane.f32.xlu0 %v2032
    %v2034 = vpop.xlane.xlu0 %2033
    %v2035 = vsel %vm224, %v2001, -inf
    %2036 = vmax.xlane.f32.xlu0 %v2035
    %v2037 = vpop.xlane.xlu0 %2036
    %v2038 = vsel %vm224, %v2006, -inf
    %2039 = vmax.xlane.f32.xlu0 %v2038
    %v2040 = vpop.xlane.xlu0 %2039
    %v2041 = vsel %vm224, %v2011, -inf
    %2042 = vmax.xlane.f32.xlu0 %v2041
    %v2043 = vpop.xlane.xlu0 %2042
    %v2044 = vsel %vm224, %v2016, -inf
    %2045 = vmax.xlane.f32.xlu0 %v2044
    %v2046 = vpop.xlane.xlu0 %2045
    %v2047 = vsel %vm224, %v2021, -inf
    %2048 = vmax.xlane.f32.xlu0 %v2047
    %v2049 = vpop.xlane.xlu0 %2048
    %v2050 = vsel %vm224, %v2026, -inf
    %2051 = vmax.xlane.f32.xlu0 %v2050
    %v2052 = vpop.xlane.xlu0 %2051
    %v2053 = vsub.f32 %v1991, %v2031
    %v2054 = vsub.f32 %v1996, %v2034
    %v2055 = vsub.f32 %v2001, %v2037
    %v2056 = vsub.f32 %v2006, %v2040
    %v2057 = vsub.f32 %v2011, %v2043
    %v2058 = vsub.f32 %v2016, %v2046
    %v2059 = vsub.f32 %v2021, %v2049
    %v2060 = vsub.f32 %v2026, %v2052
    %v2061 = vmul.f32 %v2053, 1.442695
    %v2062 = vpow.pop %v2061
    %v2063 = vmul.f32 %v2054, 1.442695
    %v2064 = vpow.pop %v2063
    %v2065 = vmul.f32 %v2055, 1.442695
    %v2066 = vpow.pop %v2065
    %v2067 = vmul.f32 %v2056, 1.442695
    %v2068 = vpow.pop %v2067
    %v2069 = vmul.f32 %v2057, 1.442695
    %v2070 = vpow.pop %v2069
    %v2071 = vmul.f32 %v2058, 1.442695
    %v2072 = vpow.pop %v2071
    %v2073 = vmul.f32 %v2059, 1.442695
    %v2074 = vpow.pop %v2073
    %v2075 = vmul.f32 %v2060, 1.442695
    %v2076 = vpow.pop %v2075
    %v2077 = vsel %vm224, %v2062, 0.0
    %2078 = vadd.xlane.f32.xlu0 %v2077
    %v2079 = vpop.xlane.xlu0 %2078
    %v2080 = vsel %vm224, %v2064, 0.0
    %2081 = vadd.xlane.f32.xlu0 %v2080
    %v2082 = vpop.xlane.xlu0 %2081
    %v2083 = vsel %vm224, %v2066, 0.0
    %2084 = vadd.xlane.f32.xlu0 %v2083
    %v2085 = vpop.xlane.xlu0 %2084
    %v2086 = vsel %vm224, %v2068, 0.0
    %2087 = vadd.xlane.f32.xlu0 %v2086
    %v2088 = vpop.xlane.xlu0 %2087
    %v2089 = vsel %vm224, %v2070, 0.0
    %2090 = vadd.xlane.f32.xlu0 %v2089
    %v2091 = vpop.xlane.xlu0 %2090
    %v2092 = vsel %vm224, %v2072, 0.0
    %2093 = vadd.xlane.f32.xlu0 %v2092
    %v2094 = vpop.xlane.xlu0 %2093
    %v2095 = vsel %vm224, %v2074, 0.0
    %2096 = vadd.xlane.f32.xlu0 %v2095
    %v2097 = vpop.xlane.xlu0 %2096
    %v2098 = vsel %vm224, %v2076, 0.0
    %2099 = vadd.xlane.f32.xlu0 %v2098
    %v2100 = vpop.xlane.xlu0 %2099
    %v2101 = vrcp.pop %v2079
    %v2102 = vrcp.pop %v2082
    %v2103 = vrcp.pop %v2085
    %v2104 = vrcp.pop %v2088
    %v2105 = vrcp.pop %v2091
    %v2106 = vrcp.pop %v2094
    %v2107 = vrcp.pop %v2097
    %v2108 = vrcp.pop %v2100
    %v2109 = vmul.f32 %v2062, %v2101
    %v2110 = vmul.f32 %v2064, %v2102
    %v2111 = vmul.f32 %v2066, %v2103
    %v2112 = vmul.f32 %v2068, %v2104
    %v2113 = vmul.f32 %v2070, %v2105
    %v2114 = vmul.f32 %v2072, %v2106
    %v2115 = vmul.f32 %v2074, %v2107
    %v2116 = vmul.f32 %v2076, %v2108
    %v2117 = vmul.f32 %v840, %v1915
    %v2118 = vmul.f32 %v843, %v1915
    %v2119 = vmul.f32 %v848, %v1915
    %v2120 = vmul.f32 %v851, %v1915
    %v2121 = vmul.f32 %v856, %v1915
    %v2122 = vmul.f32 %v859, %v1915
    %v2123 = vmul.f32 %v864, %v1915
    %v2124 = vmul.f32 %v867, %v1915
    %v2126 = vsel %vm224, %v2109, 0
    %v2129 = vsel %vm224, %v2110, 0
    %v2132 = vsel %vm224, %v2111, 0
    %v2135 = vsel %vm224, %v2112, 0
    %v2138 = vsel %vm224, %v2113, 0
    %v2141 = vsel %vm224, %v2114, 0
    %v2144 = vsel %vm224, %v2115, 0
    %v2147 = vsel %vm224, %v2116, 0
    %2149 = vmatprep.subr.mxu0 0.0
    %2150 = vmatpush1.msra.mxu0 0.0
    %2151 = vmatprep.subr.mxu0 0.0
    %2152 = vmatpush1.msra.mxu0 0.0
    %2153 = vmatprep.subr.mxu0 0.0
    %2154 = vmatpush1.msra.mxu0 0.0
    %2155 = vmatprep.subr.mxu0 0.0
    %2156 = vmatpush1.msra.mxu0 0.0
    %2157 = vmatprep.subr.mxu0 0.0
    %2158 = vmatpush1.msra.mxu0 0.0
    %2159 = vmatprep.subr.mxu0 0.0
    %2160 = vmatpush1.msra.mxu0 0.0
    %2161 = vmatprep.subr.mxu0 0.0
    %2162 = vmatpush1.msra.mxu0 0.0
    %2163 = vmatprep.subr.mxu0 0.0
    %2164 = vmatpush1.msra.mxu0 0.0
    %2165 = vmatprep.subr.mxu0 0.0
    %2166 = vmatpush1.msra.mxu0 %v2124
    %2167 = vmatprep.subr.mxu0 0.0
    %2168 = vmatpush1.msra.mxu0 %v2123
    %2169 = vmatprep.subr.mxu0 0.0
    %2170 = vmatpush1.msra.mxu0 %v2122
    %2171 = vmatprep.subr.mxu0 0.0
    %2172 = vmatpush1.msra.mxu0 %v2121
    %2173 = vmatprep.subr.mxu0 0.0
    %2174 = vmatpush1.msra.mxu0 %v2120
    %2175 = vmatprep.subr.mxu0 0.0
    %2176 = vmatpush1.msra.mxu0 %v2119
    %2177 = vmatprep.subr.mxu0 0.0
    %2178 = vmatpush1.msra.mxu0 %v2118
    %2179 = vmatprep.subr.mxu0 0.0
    %2180 = vmatpush1.msra.mxu0 %v2117
    %2181 = vmatprep.subr.mxu0 0.0
    %2182 = vmatpush2.msra.mxu0 0.0
    %2183 = vmatprep.subr.mxu0 0.0
    %2184 = vmatpush2.msra.mxu0 0.0
    %2185 = vmatprep.subr.mxu0 0.0
    %2186 = vmatpush2.msra.mxu0 0.0
    %2187 = vmatprep.subr.mxu0 0.0
    %2188 = vmatpush2.msra.mxu0 0.0
    %2189 = vmatprep.subr.mxu0 0.0
    %2190 = vmatpush2.msra.mxu0 0.0
    %2191 = vmatprep.subr.mxu0 0.0
    %2192 = vmatpush2.msra.mxu0 0.0
    %2193 = vmatprep.subr.mxu0 0.0
    %2194 = vmatpush2.msra.mxu0 0.0
    %2195 = vmatprep.subr.mxu0 0.0
    %2196 = vmatpush2.msra.mxu0 0.0
    %2197 = vmatprep.subr.mxu0 0.0
    %2198 = vmatpush2.msra.mxu0 0.0
    %2199 = vmatprep.subr.mxu0 0.0
    %2200 = vmatpush2.msra.mxu0 0.0
    %2201 = vmatprep.subr.mxu0 0.0
    %2202 = vmatpush2.msra.mxu0 0.0
    %2203 = vmatprep.subr.mxu0 0.0
    %2204 = vmatpush2.msra.mxu0 0.0
    %2205 = vmatprep.subr.mxu0 0.0
    %2206 = vmatpush2.msra.mxu0 0.0
    %2207 = vmatprep.subr.mxu0 0.0
    %2208 = vmatpush2.msra.mxu0 0.0
    %2209 = vmatprep.subr.mxu0 0.0
    %2210 = vmatpush2.msra.mxu0 0.0
    %2211 = vmatprep.subr.mxu0 0.0
    %2212 = vmatpush2.msra.mxu0 0.0
    %2213 = vmatprep.mubr.f32.mxu0 0.0
    %2214 = vmatmul.mubr.f32.gmra.mxu0 %v2126
    %v2215 = vpop.f32.mrf.mxu0
    %v2216 = vadd.f32 0.0, %v2215
    %v2217 = vpop.f32.mrf.mxu0
    %2218 = vmatprep.mubr.f32.mxu0 0.0
    %2219 = vmatmul.mubr.f32.gmra.mxu0 %v2129
    %v2220 = vpop.f32.mrf.mxu0
    %v2221 = vadd.f32 0.0, %v2220
    %v2222 = vpop.f32.mrf.mxu0
    %2223 = vmatprep.mubr.f32.mxu0 0.0
    %2224 = vmatmul.mubr.f32.gmra.mxu0 %v2132
    %v2225 = vpop.f32.mrf.mxu0
    %v2226 = vadd.f32 0.0, %v2225
    %v2227 = vpop.f32.mrf.mxu0
    %2228 = vmatprep.mubr.f32.mxu0 0.0
    %2229 = vmatmul.mubr.f32.gmra.mxu0 %v2135
    %v2230 = vpop.f32.mrf.mxu0
    %v2231 = vadd.f32 0.0, %v2230
    %v2232 = vpop.f32.mrf.mxu0
    %2233 = vmatprep.mubr.f32.mxu0 0.0
    %2234 = vmatmul.mubr.f32.gmra.mxu0 %v2138
    %v2235 = vpop.f32.mrf.mxu0
    %v2236 = vadd.f32 0.0, %v2235
    %v2237 = vpop.f32.mrf.mxu0
    %2238 = vmatprep.mubr.f32.mxu0 0.0
    %2239 = vmatmul.mubr.f32.gmra.mxu0 %v2141
    %v2240 = vpop.f32.mrf.mxu0
    %v2241 = vadd.f32 0.0, %v2240
    %v2242 = vpop.f32.mrf.mxu0
    %2243 = vmatprep.mubr.f32.mxu0 0.0
    %2244 = vmatmul.mubr.f32.gmra.mxu0 %v2144
    %v2245 = vpop.f32.mrf.mxu0
    %v2246 = vadd.f32 0.0, %v2245
    %v2247 = vpop.f32.mrf.mxu0
    %2248 = vmatprep.mubr.f32.mxu0 0.0
    %2249 = vmatmul.mubr.f32.gmra.mxu0 %v2147
    %v2250 = vpop.f32.mrf.mxu0
    %v2251 = vadd.f32 0.0, %v2250
    %v2252 = vpop.f32.mrf.mxu0
    %2253 = vdwg.mxu0
    %v2254 = vadd.f32 %v1904, %v2216
    %v2255 = vadd.f32 %v1905, %v2221
    %v2256 = vadd.f32 %v1906, %v2226
    %v2257 = vadd.f32 %v1907, %v2231
    %v2258 = vadd.f32 %v1908, %v2236
    %v2259 = vadd.f32 %v1909, %v2241
    %v2260 = vadd.f32 %v1910, %v2246
    %v2261 = vadd.f32 %v1911, %v2251
    %v2262 = vld [vmem:[%s12] sm:$0xf]
    %v2263 = vld [vmem:[%s12 + $0x4] sm:$0xf]
    %v2264 = vld [vmem:[%s12 + $0x8] sm:$0xf]
    %v2265 = vld [vmem:[%s12 + $0xc] sm:$0xf]
    %v2266 = vld [vmem:[%s12 + $0x10] sm:$0xf]
    %v2267 = vld [vmem:[%s12 + $0x14] sm:$0xf]
    %v2268 = vld [vmem:[%s12 + $0x18] sm:$0xf]
    %v2269 = vld [vmem:[%s12 + $0x1c] sm:$0xf]
    %v2270 = vld [vmem:[%s12 + $0x20] sm:$0xf]
    %v2271 = vld [vmem:[%s12 + $0x24] sm:$0xf]
    %v2272 = vld [vmem:[%s12 + $0x28] sm:$0xf]
    %v2273 = vld [vmem:[%s12 + $0x2c] sm:$0xf]
    %v2274 = vld [vmem:[%s12 + $0x30] sm:$0xf]
    %v2275 = vld [vmem:[%s12 + $0x34] sm:$0xf]
    %v2276 = vld [vmem:[%s12 + $0x38] sm:$0xf]
    %v2277 = vld [vmem:[%s12 + $0x3c] sm:$0xf]
    %v2278 = vpack.c.bf16 %v2255, %v2254
    %v2279 = vpack.c.bf16 %v2257, %v2256
    %v2280 = vpack.c.bf16 %v2259, %v2258
    %v2281 = vpack.c.bf16 %v2261, %v2260
    %v2282 = vld [vmem:[%s13] sm:$0x1]
    %v2284 = vlaneseq
    %v2285 = vshrl.u32 %v2284, 7
    %v2286 = vsub.s32 0, %v2285
    %v2287 = vrot.slane %v2282, %v2286
    %v2305 = vunpack.c.l.b16 %v2262
    %v2306 = vunpack.c.l.b16 %v2263
    %v2307 = vunpack.c.l.b16 %v2264
    %v2308 = vunpack.c.l.b16 %v2265
    %v2309 = vunpack.c.l.b16 %v2266
    %v2310 = vunpack.c.l.b16 %v2267
    %v2311 = vunpack.c.l.b16 %v2268
    %v2312 = vunpack.c.l.b16 %v2269
    %v2313 = vunpack.c.l.b16 %v2270
    %v2314 = vunpack.c.l.b16 %v2271
    %v2315 = vunpack.c.l.b16 %v2272
    %v2316 = vunpack.c.l.b16 %v2273
    %v2317 = vunpack.c.l.b16 %v2274
    %v2318 = vunpack.c.l.b16 %v2275
    %v2319 = vunpack.c.l.b16 %v2276
    %v2320 = vunpack.c.l.b16 %v2277
    %v2321 = vpack.c.b16 %v2306, %v2305
    %v2322 = vpack.c.b16 %v2308, %v2307
    %v2323 = vpack.c.b16 %v2310, %v2309
    %v2324 = vpack.c.b16 %v2312, %v2311
    %v2325 = vpack.c.b16 %v2314, %v2313
    %v2326 = vpack.c.b16 %v2316, %v2315
    %v2327 = vpack.c.b16 %v2318, %v2317
    %v2328 = vpack.c.b16 %v2320, %v2319
    %2337 = vmatprep.subr.bf16.mxu0 0
    %2338 = vmatpush1.bf16.msra.mxu0 %v2328
    %2339 = vmatprep.subr.bf16.mxu0 0
    %2340 = vmatpush1.bf16.msra.mxu0 %v2327
    %2341 = vmatprep.subr.bf16.mxu0 0
    %2342 = vmatpush1.bf16.msra.mxu0 %v2326
    %2343 = vmatprep.subr.bf16.mxu0 0
    %2344 = vmatpush1.bf16.msra.mxu0 %v2325
    %2345 = vmatprep.subr.bf16.mxu0 0
    %2346 = vmatpush1.bf16.msra.mxu0 %v2324
    %2347 = vmatprep.subr.bf16.mxu0 0
    %2348 = vmatpush1.bf16.msra.mxu0 %v2323
    %2349 = vmatprep.subr.bf16.mxu0 0
    %2350 = vmatpush1.bf16.msra.mxu0 %v2322
    %2351 = vmatprep.subr.bf16.mxu0 0
    %2352 = vmatpush1.bf16.msra.mxu0 %v2321
    %2353 = vmatprep.subr.bf16.mxu0 0
    %2354 = vmatpush2.bf16.msra.mxu0 0
    %2355 = vmatprep.subr.bf16.mxu0 0
    %2356 = vmatpush2.bf16.msra.mxu0 0
    %2357 = vmatprep.subr.bf16.mxu0 0
    %2358 = vmatpush2.bf16.msra.mxu0 0
    %2359 = vmatprep.subr.bf16.mxu0 0
    %2360 = vmatpush2.bf16.msra.mxu0 0
    %2361 = vmatprep.subr.bf16.mxu0 0
    %2362 = vmatpush2.bf16.msra.mxu0 0
    %2363 = vmatprep.subr.bf16.mxu0 0
    %2364 = vmatpush2.bf16.msra.mxu0 0
    %2365 = vmatprep.subr.bf16.mxu0 0
    %2366 = vmatpush2.bf16.msra.mxu0 0
    %2367 = vmatprep.subr.bf16.mxu0 0
    %2368 = vmatpush2.bf16.msra.mxu0 0
    %2369 = vmatprep.mubr.bf16.mxu0 0
    %2370 = vmatmul.mubr.bf16.gmra.mxu0 %v2278
    %v2371 = vpop.f32.mrf.mxu0
    %v2372 = vadd.f32 %v2287, %v2371
    %v2373 = vpop.f32.mrf.mxu0
    %v2374 = vpop.f32.mrf.mxu0
    %v2375 = vadd.f32 %v2287, %v2374
    %v2376 = vpop.f32.mrf.mxu0
    %2377 = vmatprep.mubr.bf16.mxu0 0
    %2378 = vmatmul.mubr.bf16.gmra.mxu0 %v2279
    %v2379 = vpop.f32.mrf.mxu0
    %v2380 = vadd.f32 %v2287, %v2379
    %v2381 = vpop.f32.mrf.mxu0
    %v2382 = vpop.f32.mrf.mxu0
    %v2383 = vadd.f32 %v2287, %v2382
    %v2384 = vpop.f32.mrf.mxu0
    %2385 = vmatprep.mubr.bf16.mxu0 0
    %2386 = vmatmul.mubr.bf16.gmra.mxu0 %v2280
    %v2387 = vpop.f32.mrf.mxu0
    %v2388 = vadd.f32 %v2287, %v2387
    %v2389 = vpop.f32.mrf.mxu0
    %v2390 = vpop.f32.mrf.mxu0
    %v2391 = vadd.f32 %v2287, %v2390
    %v2392 = vpop.f32.mrf.mxu0
    %2393 = vmatprep.mubr.bf16.mxu0 0
    %2394 = vmatmul.mubr.bf16.gmra.mxu0 %v2281
    %v2395 = vpop.f32.mrf.mxu0
    %v2396 = vadd.f32 %v2287, %v2395
    %v2397 = vpop.f32.mrf.mxu0
    %v2398 = vpop.f32.mrf.mxu0
    %v2399 = vadd.f32 %v2287, %v2398
    %v2400 = vpop.f32.mrf.mxu0
    %2401 = vdwg.mxu0
    %v2402 = vadd.f32 %v413, %v2372
    %v2403 = vadd.f32 %v414, %v2375
    %v2404 = vadd.f32 %v415, %v2380
    %v2405 = vadd.f32 %v416, %v2383
    %v2406 = vadd.f32 %v417, %v2388
    %v2407 = vadd.f32 %v418, %v2391
    %v2408 = vadd.f32 %v419, %v2396
    %v2409 = vadd.f32 %v420, %v2399
    %v2410 = vld [vmem:[%s14] sm:$0x1]
    %v2411 = vld [vmem:[%s15] sm:$0x1]
    %2412 = vadd.xlane.f32.xlu0 %v2402
    %v2413 = vpop.xlane.xlu0 %2412
    %2414 = vadd.xlane.f32.xlu0 %v2403
    %v2415 = vpop.xlane.xlu0 %2414
    %2416 = vadd.xlane.f32.xlu0 %v2404
    %v2417 = vpop.xlane.xlu0 %2416
    %2418 = vadd.xlane.f32.xlu0 %v2405
    %v2419 = vpop.xlane.xlu0 %2418
    %2420 = vadd.xlane.f32.xlu0 %v2406
    %v2421 = vpop.xlane.xlu0 %2420
    %2422 = vadd.xlane.f32.xlu0 %v2407
    %v2423 = vpop.xlane.xlu0 %2422
    %2424 = vadd.xlane.f32.xlu0 %v2408
    %v2425 = vpop.xlane.xlu0 %2424
    %2426 = vadd.xlane.f32.xlu0 %v2409
    %v2427 = vpop.xlane.xlu0 %2426
    %v2428 = vmul.f32 %v2413, %v320
    %v2429 = vmul.f32 %v2415, %v320
    %v2430 = vmul.f32 %v2417, %v320
    %v2431 = vmul.f32 %v2419, %v320
    %v2432 = vmul.f32 %v2421, %v320
    %v2433 = vmul.f32 %v2423, %v320
    %v2434 = vmul.f32 %v2425, %v320
    %v2435 = vmul.f32 %v2427, %v320
    %v2436 = vsub.f32 %v2402, %v2428
    %v2437 = vsub.f32 %v2403, %v2429
    %v2438 = vsub.f32 %v2404, %v2430
    %v2439 = vsub.f32 %v2405, %v2431
    %v2440 = vsub.f32 %v2406, %v2432
    %v2441 = vsub.f32 %v2407, %v2433
    %v2442 = vsub.f32 %v2408, %v2434
    %v2443 = vsub.f32 %v2409, %v2435
    %v2444 = vmul.f32 %v2436, %v2436
    %v2445 = vmul.f32 %v2437, %v2437
    %v2446 = vmul.f32 %v2438, %v2438
    %v2447 = vmul.f32 %v2439, %v2439
    %v2448 = vmul.f32 %v2440, %v2440
    %v2449 = vmul.f32 %v2441, %v2441
    %v2450 = vmul.f32 %v2442, %v2442
    %v2451 = vmul.f32 %v2443, %v2443
    %2452 = vadd.xlane.f32.xlu0 %v2444
    %v2453 = vpop.xlane.xlu0 %2452
    %2454 = vadd.xlane.f32.xlu0 %v2445
    %v2455 = vpop.xlane.xlu0 %2454
    %2456 = vadd.xlane.f32.xlu0 %v2446
    %v2457 = vpop.xlane.xlu0 %2456
    %2458 = vadd.xlane.f32.xlu0 %v2447
    %v2459 = vpop.xlane.xlu0 %2458
    %2460 = vadd.xlane.f32.xlu0 %v2448
    %v2461 = vpop.xlane.xlu0 %2460
    %2462 = vadd.xlane.f32.xlu0 %v2449
    %v2463 = vpop.xlane.xlu0 %2462
    %2464 = vadd.xlane.f32.xlu0 %v2450
    %v2465 = vpop.xlane.xlu0 %2464
    %2466 = vadd.xlane.f32.xlu0 %v2451
    %v2467 = vpop.xlane.xlu0 %2466
    %v2468 = vmul.f32 %v2453, %v320
    %v2469 = vmul.f32 %v2455, %v320
    %v2470 = vmul.f32 %v2457, %v320
    %v2471 = vmul.f32 %v2459, %v320
    %v2472 = vmul.f32 %v2461, %v320
    %v2473 = vmul.f32 %v2463, %v320
    %v2474 = vmul.f32 %v2465, %v320
    %v2475 = vmul.f32 %v2467, %v320
    %v2476 = vadd.f32 %v2468, 1e-05
    %v2477 = vadd.f32 %v2469, 1e-05
    %v2478 = vadd.f32 %v2470, 1e-05
    %v2479 = vadd.f32 %v2471, 1e-05
    %v2480 = vadd.f32 %v2472, 1e-05
    %v2481 = vadd.f32 %v2473, 1e-05
    %v2482 = vadd.f32 %v2474, 1e-05
    %v2483 = vadd.f32 %v2475, 1e-05
    %v2484 = vrsqrt.pop %v2476
    %v2485 = vrsqrt.pop %v2477
    %v2486 = vrsqrt.pop %v2478
    %v2487 = vrsqrt.pop %v2479
    %v2488 = vrsqrt.pop %v2480
    %v2489 = vrsqrt.pop %v2481
    %v2490 = vrsqrt.pop %v2482
    %v2491 = vrsqrt.pop %v2483
    %v2492 = vmul.f32 %v2436, %v2484
    %v2493 = vmul.f32 %v2437, %v2485
    %v2494 = vmul.f32 %v2438, %v2486
    %v2495 = vmul.f32 %v2439, %v2487
    %v2496 = vmul.f32 %v2440, %v2488
    %v2497 = vmul.f32 %v2441, %v2489
    %v2498 = vmul.f32 %v2442, %v2490
    %v2499 = vmul.f32 %v2443, %v2491
    %v2501 = vlaneseq
    %v2502 = vshrl.u32 %v2501, 7
    %v2503 = vsub.s32 0, %v2502
    %v2504 = vrot.slane %v2410, %v2503
    %v2506 = vmul.f32 %v2492, %v2504
    %v2507 = vmul.f32 %v2493, %v2504
    %v2508 = vmul.f32 %v2494, %v2504
    %v2509 = vmul.f32 %v2495, %v2504
    %v2510 = vmul.f32 %v2496, %v2504
    %v2511 = vmul.f32 %v2497, %v2504
    %v2512 = vmul.f32 %v2498, %v2504
    %v2513 = vmul.f32 %v2499, %v2504
    %v2515 = vlaneseq
    %v2516 = vshrl.u32 %v2515, 7
    %v2517 = vsub.s32 0, %v2516
    %v2518 = vrot.slane %v2411, %v2517
    %v2520 = vadd.f32 %v2506, %v2518
    %v2521 = vadd.f32 %v2507, %v2518
    %v2522 = vadd.f32 %v2508, %v2518
    %v2523 = vadd.f32 %v2509, %v2518
    %v2524 = vadd.f32 %v2510, %v2518
    %v2525 = vadd.f32 %v2511, %v2518
    %v2526 = vadd.f32 %v2512, %v2518
    %v2527 = vadd.f32 %v2513, %v2518
    %v2528 = vld [vmem:[%s16] sm:$0xff]
    %v2529 = vld [vmem:[%s16 + $0x8] sm:$0xff]
    %v2530 = vld [vmem:[%s16 + $0x10] sm:$0xff]
    %v2531 = vld [vmem:[%s16 + $0x18] sm:$0xff]
    %v2532 = vld [vmem:[%s16 + $0x20] sm:$0xff]
    %v2533 = vld [vmem:[%s16 + $0x28] sm:$0xff]
    %v2534 = vld [vmem:[%s16 + $0x30] sm:$0xff]
    %v2535 = vld [vmem:[%s16 + $0x38] sm:$0xff]
    %v2536 = vld [vmem:[%s16 + $0x40] sm:$0xff]
    %v2537 = vld [vmem:[%s16 + $0x48] sm:$0xff]
    %v2538 = vld [vmem:[%s16 + $0x50] sm:$0xff]
    %v2539 = vld [vmem:[%s16 + $0x58] sm:$0xff]
    %v2540 = vld [vmem:[%s16 + $0x60] sm:$0xff]
    %v2541 = vld [vmem:[%s16 + $0x68] sm:$0xff]
    %v2542 = vld [vmem:[%s16 + $0x70] sm:$0xff]
    %v2543 = vld [vmem:[%s16 + $0x78] sm:$0xff]
    %v2544 = vld [vmem:[%s16 + $0x80] sm:$0xff]
    %v2545 = vld [vmem:[%s16 + $0x88] sm:$0xff]
    %v2546 = vld [vmem:[%s16 + $0x90] sm:$0xff]
    %v2547 = vld [vmem:[%s16 + $0x98] sm:$0xff]
    %v2548 = vld [vmem:[%s16 + $0xa0] sm:$0xff]
    %v2549 = vld [vmem:[%s16 + $0xa8] sm:$0xff]
    %v2550 = vld [vmem:[%s16 + $0xb0] sm:$0xff]
    %v2551 = vld [vmem:[%s16 + $0xb8] sm:$0xff]
    %v2552 = vld [vmem:[%s16 + $0xc0] sm:$0xff]
    %v2553 = vld [vmem:[%s16 + $0xc8] sm:$0xff]
    %v2554 = vld [vmem:[%s16 + $0xd0] sm:$0xff]
    %v2555 = vld [vmem:[%s16 + $0xd8] sm:$0xff]
    %v2556 = vld [vmem:[%s16 + $0xe0] sm:$0xff]
    %v2557 = vld [vmem:[%s16 + $0xe8] sm:$0xff]
    %v2558 = vld [vmem:[%s16 + $0xf0] sm:$0xff]
    %v2559 = vld [vmem:[%s16 + $0xf8] sm:$0xff]
    %v2560 = vpack.c.bf16 %v2521, %v2520
    %v2561 = vpack.c.bf16 %v2523, %v2522
    %v2562 = vpack.c.bf16 %v2525, %v2524
    %v2563 = vpack.c.bf16 %v2527, %v2526
    %v2564 = vld [vmem:[%s17] sm:$0xf]
    %v2566 = vlaneseq
    %v2567 = vshrl.u32 %v2566, 7
    %v2568 = vsub.s32 0, %v2567
    %v2569 = vrot.slane %v2564, %v2568
    %v2570 = vlaneseq
    %v2571 = vshrl.u32 %v2570, 7
    %v2572 = vsub.s32 1, %v2571
    %v2573 = vrot.slane %v2564, %v2572
    %v2574 = vlaneseq
    %v2575 = vshrl.u32 %v2574, 7
    %v2576 = vsub.s32 2, %v2575
    %v2577 = vrot.slane %v2564, %v2576
    %v2578 = vlaneseq
    %v2579 = vshrl.u32 %v2578, 7
    %v2580 = vsub.s32 3, %v2579
    %v2581 = vrot.slane %v2564, %v2580
    %v2618 = vunpack.c.l.b16 %v2528
    %v2619 = vunpack.c.h.b16 %v2528
    %v2620 = vunpack.c.l.b16 %v2529
    %v2621 = vunpack.c.h.b16 %v2529
    %v2622 = vunpack.c.l.b16 %v2530
    %v2623 = vunpack.c.h.b16 %v2530
    %v2624 = vunpack.c.l.b16 %v2531
    %v2625 = vunpack.c.h.b16 %v2531
    %v2626 = vunpack.c.l.b16 %v2532
    %v2627 = vunpack.c.h.b16 %v2532
    %v2628 = vunpack.c.l.b16 %v2533
    %v2629 = vunpack.c.h.b16 %v2533
    %v2630 = vunpack.c.l.b16 %v2534
    %v2631 = vunpack.c.h.b16 %v2534
    %v2632 = vunpack.c.l.b16 %v2535
    %v2633 = vunpack.c.h.b16 %v2535
    %v2634 = vunpack.c.l.b16 %v2536
    %v2635 = vunpack.c.h.b16 %v2536
    %v2636 = vunpack.c.l.b16 %v2537
    %v2637 = vunpack.c.h.b16 %v2537
    %v2638 = vunpack.c.l.b16 %v2538
    %v2639 = vunpack.c.h.b16 %v2538
    %v2640 = vunpack.c.l.b16 %v2539
    %v2641 = vunpack.c.h.b16 %v2539
    %v2642 = vunpack.c.l.b16 %v2540
    %v2643 = vunpack.c.h.b16 %v2540
    %v2644 = vunpack.c.l.b16 %v2541
    %v2645 = vunpack.c.h.b16 %v2541
    %v2646 = vunpack.c.l.b16 %v2542
    %v2647 = vunpack.c.h.b16 %v2542
    %v2648 = vunpack.c.l.b16 %v2543
    %v2649 = vunpack.c.h.b16 %v2543
    %v2650 = vunpack.c.l.b16 %v2544
    %v2651 = vunpack.c.h.b16 %v2544
    %v2652 = vunpack.c.l.b16 %v2545
    %v2653 = vunpack.c.h.b16 %v2545
    %v2654 = vunpack.c.l.b16 %v2546
    %v2655 = vunpack.c.h.b16 %v2546
    %v2656 = vunpack.c.l.b16 %v2547
    %v2657 = vunpack.c.h.b16 %v2547
    %v2658 = vunpack.c.l.b16 %v2548
    %v2659 = vunpack.c.h.b16 %v2548
    %v2660 = vunpack.c.l.b16 %v2549
    %v2661 = vunpack.c.h.b16 %v2549
    %v2662 = vunpack.c.l.b16 %v2550
    %v2663 = vunpack.c.h.b16 %v2550
    %v2664 = vunpack.c.l.b16 %v2551
    %v2665 = vunpack.c.h.b16 %v2551
    %v2666 = vunpack.c.l.b16 %v2552
    %v2667 = vunpack.c.h.b16 %v2552
    %v2668 = vunpack.c.l.b16 %v2553
    %v2669 = vunpack.c.h.b16 %v2553
    %v2670 = vunpack.c.l.b16 %v2554
    %v2671 = vunpack.c.h.b16 %v2554
    %v2672 = vunpack.c.l.b16 %v2555
    %v2673 = vunpack.c.h.b16 %v2555
    %v2674 = vunpack.c.l.b16 %v2556
    %v2675 = vunpack.c.h.b16 %v2556
    %v2676 = vunpack.c.l.b16 %v2557
    %v2677 = vunpack.c.h.b16 %v2557
    %v2678 = vunpack.c.l.b16 %v2558
    %v2679 = vunpack.c.h.b16 %v2558
    %v2680 = vunpack.c.l.b16 %v2559
    %v2681 = vunpack.c.h.b16 %v2559
    %v2682 = vpack.c.b16 %v2622, %v2618
    %v2683 = vpack.c.b16 %v2623, %v2619
    %v2684 = vpack.c.b16 %v2624, %v2620
    %v2685 = vpack.c.b16 %v2625, %v2621
    %v2686 = vpack.c.b16 %v2630, %v2626
    %v2687 = vpack.c.b16 %v2631, %v2627
    %v2688 = vpack.c.b16 %v2632, %v2628
    %v2689 = vpack.c.b16 %v2633, %v2629
    %v2690 = vpack.c.b16 %v2638, %v2634
    %v2691 = vpack.c.b16 %v2639, %v2635
    %v2692 = vpack.c.b16 %v2640, %v2636
    %v2693 = vpack.c.b16 %v2641, %v2637
    %v2694 = vpack.c.b16 %v2646, %v2642
    %v2695 = vpack.c.b16 %v2647, %v2643
    %v2696 = vpack.c.b16 %v2648, %v2644
    %v2697 = vpack.c.b16 %v2649, %v2645
    %v2698 = vpack.c.b16 %v2654, %v2650
    %v2699 = vpack.c.b16 %v2655, %v2651
    %v2700 = vpack.c.b16 %v2656, %v2652
    %v2701 = vpack.c.b16 %v2657, %v2653
    %v2702 = vpack.c.b16 %v2662, %v2658
    %v2703 = vpack.c.b16 %v2663, %v2659
    %v2704 = vpack.c.b16 %v2664, %v2660
    %v2705 = vpack.c.b16 %v2665, %v2661
    %v2706 = vpack.c.b16 %v2670, %v2666
    %v2707 = vpack.c.b16 %v2671, %v2667
    %v2708 = vpack.c.b16 %v2672, %v2668
    %v2709 = vpack.c.b16 %v2673, %v2669
    %v2710 = vpack.c.b16 %v2678, %v2674
    %v2711 = vpack.c.b16 %v2679, %v2675
    %v2712 = vpack.c.b16 %v2680, %v2676
    %v2713 = vpack.c.b16 %v2681, %v2677
    %2746 = vmatprep.subr.bf16.mxu0 %v2711
    %2747 = vmatpush1.bf16.msra.mxu0 %v2710
    %2748 = vmatprep.subr.bf16.mxu0 %v2707
    %2749 = vmatpush1.bf16.msra.mxu0 %v2706
    %2750 = vmatprep.subr.bf16.mxu0 %v2703
    %2751 = vmatpush1.bf16.msra.mxu0 %v2702
    %2752 = vmatprep.subr.bf16.mxu0 %v2699
    %2753 = vmatpush1.bf16.msra.mxu0 %v2698
    %2754 = vmatprep.subr.bf16.mxu0 %v2695
    %2755 = vmatpush1.bf16.msra.mxu0 %v2694
    %2756 = vmatprep.subr.bf16.mxu0 %v2691
    %2757 = vmatpush1.bf16.msra.mxu0 %v2690
    %2758 = vmatprep.subr.bf16.mxu0 %v2687
    %2759 = vmatpush1.bf16.msra.mxu0 %v2686
    %2760 = vmatprep.subr.bf16.mxu0 %v2683
    %2761 = vmatpush1.bf16.msra.mxu0 %v2682
    %2762 = vmatprep.subr.bf16.mxu0 0
    %2763 = vmatpush2.bf16.msra.mxu0 0
    %2764 = vmatprep.subr.bf16.mxu0 0
    %2765 = vmatpush2.bf16.msra.mxu0 0
    %2766 = vmatprep.subr.bf16.mxu0 0
    %2767 = vmatpush2.bf16.msra.mxu0 0
    %2768 = vmatprep.subr.bf16.mxu0 0
    %2769 = vmatpush2.bf16.msra.mxu0 0
    %2770 = vmatprep.subr.bf16.mxu0 0
    %2771 = vmatpush2.bf16.msra.mxu0 0
    %2772 = vmatprep.subr.bf16.mxu0 0
    %2773 = vmatpush2.bf16.msra.mxu0 0
    %2774 = vmatprep.subr.bf16.mxu0 0
    %2775 = vmatpush2.bf16.msra.mxu0 0
    %2776 = vmatprep.subr.bf16.mxu0 0
    %2777 = vmatpush2.bf16.msra.mxu0 0
    %2778 = vmatprep.mubr.bf16.mxu0 0
    %2779 = vmatmul.mubr.bf16.gmra.mxu0 %v2560
    %v2780 = vpop.f32.mrf.mxu0
    %v2781 = vadd.f32 %v2569, %v2780
    %v2782 = vpop.f32.mrf.mxu0
    %v2783 = vadd.f32 %v2573, %v2782
    %v2784 = vpop.f32.mrf.mxu0
    %v2785 = vadd.f32 %v2569, %v2784
    %v2786 = vpop.f32.mrf.mxu0
    %v2787 = vadd.f32 %v2573, %v2786
    %2788 = vmatprep.mubr.bf16.mxu0 0
    %2789 = vmatmul.mubr.bf16.gmra.mxu0 %v2561
    %v2790 = vpop.f32.mrf.mxu0
    %v2791 = vadd.f32 %v2569, %v2790
    %v2792 = vpop.f32.mrf.mxu0
    %v2793 = vadd.f32 %v2573, %v2792
    %v2794 = vpop.f32.mrf.mxu0
    %v2795 = vadd.f32 %v2569, %v2794
    %v2796 = vpop.f32.mrf.mxu0
    %v2797 = vadd.f32 %v2573, %v2796
    %2798 = vmatprep.mubr.bf16.mxu0 0
    %2799 = vmatmul.mubr.bf16.gmra.mxu0 %v2562
    %v2800 = vpop.f32.mrf.mxu0
    %v2801 = vadd.f32 %v2569, %v2800
    %v2802 = vpop.f32.mrf.mxu0
    %v2803 = vadd.f32 %v2573, %v2802
    %v2804 = vpop.f32.mrf.mxu0
    %v2805 = vadd.f32 %v2569, %v2804
    %v2806 = vpop.f32.mrf.mxu0
    %v2807 = vadd.f32 %v2573, %v2806
    %2808 = vmatprep.mubr.bf16.mxu0 0
    %2809 = vmatmul.mubr.bf16.gmra.mxu0 %v2563
    %v2810 = vpop.f32.mrf.mxu0
    %v2811 = vadd.f32 %v2569, %v2810
    %v2812 = vpop.f32.mrf.mxu0
    %v2813 = vadd.f32 %v2573, %v2812
    %v2814 = vpop.f32.mrf.mxu0
    %v2815 = vadd.f32 %v2569, %v2814
    %v2816 = vpop.f32.mrf.mxu0
    %v2817 = vadd.f32 %v2573, %v2816
    %2818 = vdwg.mxu0
    %2819 = vmatprep.subr.bf16.mxu0 %v2713
    %2820 = vmatpush1.bf16.msra.mxu0 %v2712
    %2821 = vmatprep.subr.bf16.mxu0 %v2709
    %2822 = vmatpush1.bf16.msra.mxu0 %v2708
    %2823 = vmatprep.subr.bf16.mxu0 %v2705
    %2824 = vmatpush1.bf16.msra.mxu0 %v2704
    %2825 = vmatprep.subr.bf16.mxu0 %v2701
    %2826 = vmatpush1.bf16.msra.mxu0 %v2700
    %2827 = vmatprep.subr.bf16.mxu0 %v2697
    %2828 = vmatpush1.bf16.msra.mxu0 %v2696
    %2829 = vmatprep.subr.bf16.mxu0 %v2693
    %2830 = vmatpush1.bf16.msra.mxu0 %v2692
    %2831 = vmatprep.subr.bf16.mxu0 %v2689
    %2832 = vmatpush1.bf16.msra.mxu0 %v2688
    %2833 = vmatprep.subr.bf16.mxu0 %v2685
    %2834 = vmatpush1.bf16.msra.mxu0 %v2684
    %2835 = vmatprep.subr.bf16.mxu0 0
    %2836 = vmatpush2.bf16.msra.mxu0 0
    %2837 = vmatprep.subr.bf16.mxu0 0
    %2838 = vmatpush2.bf16.msra.mxu0 0
    %2839 = vmatprep.subr.bf16.mxu0 0
    %2840 = vmatpush2.bf16.msra.mxu0 0
    %2841 = vmatprep.subr.bf16.mxu0 0
    %2842 = vmatpush2.bf16.msra.mxu0 0
    %2843 = vmatprep.subr.bf16.mxu0 0
    %2844 = vmatpush2.bf16.msra.mxu0 0
    %2845 = vmatprep.subr.bf16.mxu0 0
    %2846 = vmatpush2.bf16.msra.mxu0 0
    %2847 = vmatprep.subr.bf16.mxu0 0
    %2848 = vmatpush2.bf16.msra.mxu0 0
    %2849 = vmatprep.subr.bf16.mxu0 0
    %2850 = vmatpush2.bf16.msra.mxu0 0
    %2851 = vmatprep.mubr.bf16.mxu0 0
    %2852 = vmatmul.mubr.bf16.gmra.mxu0 %v2560
    %v2853 = vpop.f32.mrf.mxu0
    %v2854 = vadd.f32 %v2577, %v2853
    %v2855 = vpop.f32.mrf.mxu0
    %v2856 = vadd.f32 %v2581, %v2855
    %v2857 = vpop.f32.mrf.mxu0
    %v2858 = vadd.f32 %v2577, %v2857
    %v2859 = vpop.f32.mrf.mxu0
    %v2860 = vadd.f32 %v2581, %v2859
    %2861 = vmatprep.mubr.bf16.mxu0 0
    %2862 = vmatmul.mubr.bf16.gmra.mxu0 %v2561
    %v2863 = vpop.f32.mrf.mxu0
    %v2864 = vadd.f32 %v2577, %v2863
    %v2865 = vpop.f32.mrf.mxu0
    %v2866 = vadd.f32 %v2581, %v2865
    %v2867 = vpop.f32.mrf.mxu0
    %v2868 = vadd.f32 %v2577, %v2867
    %v2869 = vpop.f32.mrf.mxu0
    %v2870 = vadd.f32 %v2581, %v2869
    %2871 = vmatprep.mubr.bf16.mxu0 0
    %2872 = vmatmul.mubr.bf16.gmra.mxu0 %v2562
    %v2873 = vpop.f32.mrf.mxu0
    %v2874 = vadd.f32 %v2577, %v2873
    %v2875 = vpop.f32.mrf.mxu0
    %v2876 = vadd.f32 %v2581, %v2875
    %v2877 = vpop.f32.mrf.mxu0
    %v2878 = vadd.f32 %v2577, %v2877
    %v2879 = vpop.f32.mrf.mxu0
    %v2880 = vadd.f32 %v2581, %v2879
    %2881 = vmatprep.mubr.bf16.mxu0 0
    %2882 = vmatmul.mubr.bf16.gmra.mxu0 %v2563
    %v2883 = vpop.f32.mrf.mxu0
    %v2884 = vadd.f32 %v2577, %v2883
    %v2885 = vpop.f32.mrf.mxu0
    %v2886 = vadd.f32 %v2581, %v2885
    %v2887 = vpop.f32.mrf.mxu0
    %v2888 = vadd.f32 %v2577, %v2887
    %v2889 = vpop.f32.mrf.mxu0
    %v2890 = vadd.f32 %v2581, %v2889
    %2891 = vdwg.mxu0
    %v2892 = vmul.f32 %v2781, 1.702
    %v2893 = vmul.f32 %v2783, 1.702
    %v2894 = vmul.f32 %v2854, 1.702
    %v2895 = vmul.f32 %v2856, 1.702
    %v2896 = vmul.f32 %v2785, 1.702
    %v2897 = vmul.f32 %v2787, 1.702
    %v2898 = vmul.f32 %v2858, 1.702
    %v2899 = vmul.f32 %v2860, 1.702
    %v2900 = vmul.f32 %v2791, 1.702
    %v2901 = vmul.f32 %v2793, 1.702
    %v2902 = vmul.f32 %v2864, 1.702
    %v2903 = vmul.f32 %v2866, 1.702
    %v2904 = vmul.f32 %v2795, 1.702
    %v2905 = vmul.f32 %v2797, 1.702
    %v2906 = vmul.f32 %v2868, 1.702
    %v2907 = vmul.f32 %v2870, 1.702
    %v2908 = vmul.f32 %v2801, 1.702
    %v2909 = vmul.f32 %v2803, 1.702
    %v2910 = vmul.f32 %v2874, 1.702
    %v2911 = vmul.f32 %v2876, 1.702
    %v2912 = vmul.f32 %v2805, 1.702
    %v2913 = vmul.f32 %v2807, 1.702
    %v2914 = vmul.f32 %v2878, 1.702
    %v2915 = vmul.f32 %v2880, 1.702
    %v2916 = vmul.f32 %v2811, 1.702
    %v2917 = vmul.f32 %v2813, 1.702
    %v2918 = vmul.f32 %v2884, 1.702
    %v2919 = vmul.f32 %v2886, 1.702
    %v2920 = vmul.f32 %v2815, 1.702
    %v2921 = vmul.f32 %v2817, 1.702
    %v2922 = vmul.f32 %v2888, 1.702
    %v2923 = vmul.f32 %v2890, 1.702
    %v2924 = vxor.u32 %v2892, 2147483648
    %v2925 = vxor.u32 %v2893, 2147483648
    %v2926 = vxor.u32 %v2894, 2147483648
    %v2927 = vxor.u32 %v2895, 2147483648
    %v2928 = vxor.u32 %v2896, 2147483648
    %v2929 = vxor.u32 %v2897, 2147483648
    %v2930 = vxor.u32 %v2898, 2147483648
    %v2931 = vxor.u32 %v2899, 2147483648
    %v2932 = vxor.u32 %v2900, 2147483648
    %v2933 = vxor.u32 %v2901, 2147483648
    %v2934 = vxor.u32 %v2902, 2147483648
    %v2935 = vxor.u32 %v2903, 2147483648
    %v2936 = vxor.u32 %v2904, 2147483648
    %v2937 = vxor.u32 %v2905, 2147483648
    %v2938 = vxor.u32 %v2906, 2147483648
    %v2939 = vxor.u32 %v2907, 2147483648
    %v2940 = vxor.u32 %v2908, 2147483648
    %v2941 = vxor.u32 %v2909, 2147483648
    %v2942 = vxor.u32 %v2910, 2147483648
    %v2943 = vxor.u32 %v2911, 2147483648
    %v2944 = vxor.u32 %v2912, 2147483648
    %v2945 = vxor.u32 %v2913, 2147483648
    %v2946 = vxor.u32 %v2914, 2147483648
    %v2947 = vxor.u32 %v2915, 2147483648
    %v2948 = vxor.u32 %v2916, 2147483648
    %v2949 = vxor.u32 %v2917, 2147483648
    %v2950 = vxor.u32 %v2918, 2147483648
    %v2951 = vxor.u32 %v2919, 2147483648
    %v2952 = vxor.u32 %v2920, 2147483648
    %v2953 = vxor.u32 %v2921, 2147483648
    %v2954 = vxor.u32 %v2922, 2147483648
    %v2955 = vxor.u32 %v2923, 2147483648
    %v2956 = vmul.f32 %v2924, 1.442695
    %v2957 = vpow.pop %v2956
    %v2958 = vmul.f32 %v2925, 1.442695
    %v2959 = vpow.pop %v2958
    %v2960 = vmul.f32 %v2926, 1.442695
    %v2961 = vpow.pop %v2960
    %v2962 = vmul.f32 %v2927, 1.442695
    %v2963 = vpow.pop %v2962
    %v2964 = vmul.f32 %v2928, 1.442695
    %v2965 = vpow.pop %v2964
    %v2966 = vmul.f32 %v2929, 1.442695
    %v2967 = vpow.pop %v2966
    %v2968 = vmul.f32 %v2930, 1.442695
    %v2969 = vpow.pop %v2968
    %v2970 = vmul.f32 %v2931, 1.442695
    %v2971 = vpow.pop %v2970
    %v2972 = vmul.f32 %v2932, 1.442695
    %v2973 = vpow.pop %v2972
    %v2974 = vmul.f32 %v2933, 1.442695
    %v2975 = vpow.pop %v2974
    %v2976 = vmul.f32 %v2934, 1.442695
    %v2977 = vpow.pop %v2976
    %v2978 = vmul.f32 %v2935, 1.442695
    %v2979 = vpow.pop %v2978
    %v2980 = vmul.f32 %v2936, 1.442695
    %v2981 = vpow.pop %v2980
    %v2982 = vmul.f32 %v2937, 1.442695
    %v2983 = vpow.pop %v2982
    %v2984 = vmul.f32 %v2938, 1.442695
    %v2985 = vpow.pop %v2984
    %v2986 = vmul.f32 %v2939, 1.442695
    %v2987 = vpow.pop %v2986
    %v2988 = vmul.f32 %v2940, 1.442695
    %v2989 = vpow.pop %v2988
    %v2990 = vmul.f32 %v2941, 1.442695
    %v2991 = vpow.pop %v2990
    %v2992 = vmul.f32 %v2942, 1.442695
    %v2993 = vpow.pop %v2992
    %v2994 = vmul.f32 %v2943, 1.442695
    %v2995 = vpow.pop %v2994
    %v2996 = vmul.f32 %v2944, 1.442695
    %v2997 = vpow.pop %v2996
    %v2998 = vmul.f32 %v2945, 1.442695
    %v2999 = vpow.pop %v2998
    %v3000 = vmul.f32 %v2946, 1.442695
    %v3001 = vpow.pop %v3000
    %v3002 = vmul.f32 %v2947, 1.442695
    %v3003 = vpow.pop %v3002
    %v3004 = vmul.f32 %v2948, 1.442695
    %v3005 = vpow.pop %v3004
    %v3006 = vmul.f32 %v2949, 1.442695
    %v3007 = vpow.pop %v3006
    %v3008 = vmul.f32 %v2950, 1.442695
    %v3009 = vpow.pop %v3008
    %v3010 = vmul.f32 %v2951, 1.442695
    %v3011 = vpow.pop %v3010
    %v3012 = vmul.f32 %v2952, 1.442695
    %v3013 = vpow.pop %v3012
    %v3014 = vmul.f32 %v2953, 1.442695
    %v3015 = vpow.pop %v3014
    %v3016 = vmul.f32 %v2954, 1.442695
    %v3017 = vpow.pop %v3016
    %v3018 = vmul.f32 %v2955, 1.442695
    %v3019 = vpow.pop %v3018
    %v3020 = vadd.f32 %v2957, 1.0
    %v3021 = vadd.f32 %v2959, 1.0
    %v3022 = vadd.f32 %v2961, 1.0
    %v3023 = vadd.f32 %v2963, 1.0
    %v3024 = vadd.f32 %v2965, 1.0
    %v3025 = vadd.f32 %v2967, 1.0
    %v3026 = vadd.f32 %v2969, 1.0
    %v3027 = vadd.f32 %v2971, 1.0
    %v3028 = vadd.f32 %v2973, 1.0
    %v3029 = vadd.f32 %v2975, 1.0
    %v3030 = vadd.f32 %v2977, 1.0
    %v3031 = vadd.f32 %v2979, 1.0
    %v3032 = vadd.f32 %v2981, 1.0
    %v3033 = vadd.f32 %v2983, 1.0
    %v3034 = vadd.f32 %v2985, 1.0
    %v3035 = vadd.f32 %v2987, 1.0
    %v3036 = vadd.f32 %v2989, 1.0
    %v3037 = vadd.f32 %v2991, 1.0
    %v3038 = vadd.f32 %v2993, 1.0
    %v3039 = vadd.f32 %v2995, 1.0
    %v3040 = vadd.f32 %v2997, 1.0
    %v3041 = vadd.f32 %v2999, 1.0
    %v3042 = vadd.f32 %v3001, 1.0
    %v3043 = vadd.f32 %v3003, 1.0
    %v3044 = vadd.f32 %v3005, 1.0
    %v3045 = vadd.f32 %v3007, 1.0
    %v3046 = vadd.f32 %v3009, 1.0
    %v3047 = vadd.f32 %v3011, 1.0
    %v3048 = vadd.f32 %v3013, 1.0
    %v3049 = vadd.f32 %v3015, 1.0
    %v3050 = vadd.f32 %v3017, 1.0
    %v3051 = vadd.f32 %v3019, 1.0
    %v3052 = vrcp.pop %v3020
    %v3053 = vmul.f32 1.0, %v3052
    %v3054 = vrcp.pop %v3021
    %v3055 = vmul.f32 1.0, %v3054
    %v3056 = vrcp.pop %v3022
    %v3057 = vmul.f32 1.0, %v3056
    %v3058 = vrcp.pop %v3023
    %v3059 = vmul.f32 1.0, %v3058
    %v3060 = vrcp.pop %v3024
    %v3061 = vmul.f32 1.0, %v3060
    %v3062 = vrcp.pop %v3025
    %v3063 = vmul.f32 1.0, %v3062
    %v3064 = vrcp.pop %v3026
    %v3065 = vmul.f32 1.0, %v3064
    %v3066 = vrcp.pop %v3027
    %v3067 = vmul.f32 1.0, %v3066
    %v3068 = vrcp.pop %v3028
    %v3069 = vmul.f32 1.0, %v3068
    %v3070 = vrcp.pop %v3029
    %v3071 = vmul.f32 1.0, %v3070
    %v3072 = vrcp.pop %v3030
    %v3073 = vmul.f32 1.0, %v3072
    %v3074 = vrcp.pop %v3031
    %v3075 = vmul.f32 1.0, %v3074
    %v3076 = vrcp.pop %v3032
    %v3077 = vmul.f32 1.0, %v3076
    %v3078 = vrcp.pop %v3033
    %v3079 = vmul.f32 1.0, %v3078
    %v3080 = vrcp.pop %v3034
    %v3081 = vmul.f32 1.0, %v3080
    %v3082 = vrcp.pop %v3035
    %v3083 = vmul.f32 1.0, %v3082
    %v3084 = vrcp.pop %v3036
    %v3085 = vmul.f32 1.0, %v3084
    %v3086 = vrcp.pop %v3037
    %v3087 = vmul.f32 1.0, %v3086
    %v3088 = vrcp.pop %v3038
    %v3089 = vmul.f32 1.0, %v3088
    %v3090 = vrcp.pop %v3039
    %v3091 = vmul.f32 1.0, %v3090
    %v3092 = vrcp.pop %v3040
    %v3093 = vmul.f32 1.0, %v3092
    %v3094 = vrcp.pop %v3041
    %v3095 = vmul.f32 1.0, %v3094
    %v3096 = vrcp.pop %v3042
    %v3097 = vmul.f32 1.0, %v3096
    %v3098 = vrcp.pop %v3043
    %v3099 = vmul.f32 1.0, %v3098
    %v3100 = vrcp.pop %v3044
    %v3101 = vmul.f32 1.0, %v3100
    %v3102 = vrcp.pop %v3045
    %v3103 = vmul.f32 1.0, %v3102
    %v3104 = vrcp.pop %v3046
    %v3105 = vmul.f32 1.0, %v3104
    %v3106 = vrcp.pop %v3047
    %v3107 = vmul.f32 1.0, %v3106
    %v3108 = vrcp.pop %v3048
    %v3109 = vmul.f32 1.0, %v3108
    %v3110 = vrcp.pop %v3049
    %v3111 = vmul.f32 1.0, %v3110
    %v3112 = vrcp.pop %v3050
    %v3113 = vmul.f32 1.0, %v3112
    %v3114 = vrcp.pop %v3051
    %v3115 = vmul.f32 1.0, %v3114
    %v3116 = vmul.f32 %v2781, %v3053
    %v3117 = vmul.f32 %v2783, %v3055
    %v3118 = vmul.f32 %v2854, %v3057
    %v3119 = vmul.f32 %v2856, %v3059
    %v3120 = vmul.f32 %v2785, %v3061
    %v3121 = vmul.f32 %v2787, %v3063
    %v3122 = vmul.f32 %v2858, %v3065
    %v3123 = vmul.f32 %v2860, %v3067
    %v3124 = vmul.f32 %v2791, %v3069
    %v3125 = vmul.f32 %v2793, %v3071
    %v3126 = vmul.f32 %v2864, %v3073
    %v3127 = vmul.f32 %v2866, %v3075
    %v3128 = vmul.f32 %v2795, %v3077
    %v3129 = vmul.f32 %v2797, %v3079
    %v3130 = vmul.f32 %v2868, %v3081
    %v3131 = vmul.f32 %v2870, %v3083
    %v3132 = vmul.f32 %v2801, %v3085
    %v3133 = vmul.f32 %v2803, %v3087
    %v3134 = vmul.f32 %v2874, %v3089
    %v3135 = vmul.f32 %v2876, %v3091
    %v3136 = vmul.f32 %v2805, %v3093
    %v3137 = vmul.f32 %v2807, %v3095
    %v3138 = vmul.f32 %v2878, %v3097
    %v3139 = vmul.f32 %v2880, %v3099
    %v3140 = vmul.f32 %v2811, %v3101
    %v3141 = vmul.f32 %v2813, %v3103
    %v3142 = vmul.f32 %v2884, %v3105
    %v3143 = vmul.f32 %v2886, %v3107
    %v3144 = vmul.f32 %v2815, %v3109
    %v3145 = vmul.f32 %v2817, %v3111
    %v3146 = vmul.f32 %v2888, %v3113
    %v3147 = vmul.f32 %v2890, %v3115
    %v3148 = vld [vmem:[%s18] sm:$0xf]
    %v3149 = vld [vmem:[%s18 + $0x4] sm:$0xf]
    %v3150 = vld [vmem:[%s18 + $0x8] sm:$0xf]
    %v3151 = vld [vmem:[%s18 + $0xc] sm:$0xf]
    %v3152 = vld [vmem:[%s18 + $0x10] sm:$0xf]
    %v3153 = vld [vmem:[%s18 + $0x14] sm:$0xf]
    %v3154 = vld [vmem:[%s18 + $0x18] sm:$0xf]
    %v3155 = vld [vmem:[%s18 + $0x1c] sm:$0xf]
    %v3156 = vld [vmem:[%s18 + $0x20] sm:$0xf]
    %v3157 = vld [vmem:[%s18 + $0x24] sm:$0xf]
    %v3158 = vld [vmem:[%s18 + $0x28] sm:$0xf]
    %v3159 = vld [vmem:[%s18 + $0x2c] sm:$0xf]
    %v3160 = vld [vmem:[%s18 + $0x30] sm:$0xf]
    %v3161 = vld [vmem:[%s18 + $0x34] sm:$0xf]
    %v3162 = vld [vmem:[%s18 + $0x38] sm:$0xf]
    %v3163 = vld [vmem:[%s18 + $0x3c] sm:$0xf]
    %v3164 = vld [vmem:[%s18 + $0x40] sm:$0xf]
    %v3165 = vld [vmem:[%s18 + $0x44] sm:$0xf]
    %v3166 = vld [vmem:[%s18 + $0x48] sm:$0xf]
    %v3167 = vld [vmem:[%s18 + $0x4c] sm:$0xf]
    %v3168 = vld [vmem:[%s18 + $0x50] sm:$0xf]
    %v3169 = vld [vmem:[%s18 + $0x54] sm:$0xf]
    %v3170 = vld [vmem:[%s18 + $0x58] sm:$0xf]
    %v3171 = vld [vmem:[%s18 + $0x5c] sm:$0xf]
    %v3172 = vld [vmem:[%s18 + $0x60] sm:$0xf]
    %v3173 = vld [vmem:[%s18 + $0x64] sm:$0xf]
    %v3174 = vld [vmem:[%s18 + $0x68] sm:$0xf]
    %v3175 = vld [vmem:[%s18 + $0x6c] sm:$0xf]
    %v3176 = vld [vmem:[%s18 + $0x70] sm:$0xf]
    %v3177 = vld [vmem:[%s18 + $0x74] sm:$0xf]
    %v3178 = vld [vmem:[%s18 + $0x78] sm:$0xf]
    %v3179 = vld [vmem:[%s18 + $0x7c] sm:$0xf]
    %v3180 = vld [vmem:[%s18 + $0x80] sm:$0xf]
    %v3181 = vld [vmem:[%s18 + $0x84] sm:$0xf]
    %v3182 = vld [vmem:[%s18 + $0x88] sm:$0xf]
    %v3183 = vld [vmem:[%s18 + $0x8c] sm:$0xf]
    %v3184 = vld [vmem:[%s18 + $0x90] sm:$0xf]
    %v3185 = vld [vmem:[%s18 + $0x94] sm:$0xf]
    %v3186 = vld [vmem:[%s18 + $0x98] sm:$0xf]
    %v3187 = vld [vmem:[%s18 + $0x9c] sm:$0xf]
    %v3188 = vld [vmem:[%s18 + $0xa0] sm:$0xf]
    %v3189 = vld [vmem:[%s18 + $0xa4] sm:$0xf]
    %v3190 = vld [vmem:[%s18 + $0xa8] sm:$0xf]
    %v3191 = vld [vmem:[%s18 + $0xac] sm:$0xf]
    %v3192 = vld [vmem:[%s18 + $0xb0] sm:$0xf]
    %v3193 = vld [vmem:[%s18 + $0xb4] sm:$0xf]
    %v3194 = vld [vmem:[%s18 + $0xb8] sm:$0xf]
    %v3195 = vld [vmem:[%s18 + $0xbc] sm:$0xf]
    %v3196 = vld [vmem:[%s18 + $0xc0] sm:$0xf]
    %v3197 = vld [vmem:[%s18 + $0xc4] sm:$0xf]
    %v3198 = vld [vmem:[%s18 + $0xc8] sm:$0xf]
    %v3199 = vld [vmem:[%s18 + $0xcc] sm:$0xf]
    %v3200 = vld [vmem:[%s18 + $0xd0] sm:$0xf]
    %v3201 = vld [vmem:[%s18 + $0xd4] sm:$0xf]
    %v3202 = vld [vmem:[%s18 + $0xd8] sm:$0xf]
    %v3203 = vld [vmem:[%s18 + $0xdc] sm:$0xf]
    %v3204 = vld [vmem:[%s18 + $0xe0] sm:$0xf]
    %v3205 = vld [vmem:[%s18 + $0xe4] sm:$0xf]
    %v3206 = vld [vmem:[%s18 + $0xe8] sm:$0xf]
    %v3207 = vld [vmem:[%s18 + $0xec] sm:$0xf]
    %v3208 = vld [vmem:[%s18 + $0xf0] sm:$0xf]
    %v3209 = vld [vmem:[%s18 + $0xf4] sm:$0xf]
    %v3210 = vld [vmem:[%s18 + $0xf8] sm:$0xf]
    %v3211 = vld [vmem:[%s18 + $0xfc] sm:$0xf]
    %v3212 = vpack.c.bf16 %v3120, %v3116
    %v3213 = vpack.c.bf16 %v3121, %v3117
    %v3214 = vpack.c.bf16 %v3122, %v3118
    %v3215 = vpack.c.bf16 %v3123, %v3119
    %v3216 = vpack.c.bf16 %v3128, %v3124
    %v3217 = vpack.c.bf16 %v3129, %v3125
    %v3218 = vpack.c.bf16 %v3130, %v3126
    %v3219 = vpack.c.bf16 %v3131, %v3127
    %v3220 = vpack.c.bf16 %v3136, %v3132
    %v3221 = vpack.c.bf16 %v3137, %v3133
    %v3222 = vpack.c.bf16 %v3138, %v3134
    %v3223 = vpack.c.bf16 %v3139, %v3135
    %v3224 = vpack.c.bf16 %v3144, %v3140
    %v3225 = vpack.c.bf16 %v3145, %v3141
    %v3226 = vpack.c.bf16 %v3146, %v3142
    %v3227 = vpack.c.bf16 %v3147, %v3143
    %v3228 = vld [vmem:[%s19] sm:$0x1]
    %v3230 = vlaneseq
    %v3231 = vshrl.u32 %v3230, 7
    %v3232 = vsub.s32 0, %v3231
    %v3233 = vrot.slane %v3228, %v3232
    %v3299 = vunpack.c.l.b16 %v3148
    %v3300 = vunpack.c.l.b16 %v3149
    %v3301 = vunpack.c.l.b16 %v3150
    %v3302 = vunpack.c.l.b16 %v3151
    %v3303 = vunpack.c.l.b16 %v3152
    %v3304 = vunpack.c.l.b16 %v3153
    %v3305 = vunpack.c.l.b16 %v3154
    %v3306 = vunpack.c.l.b16 %v3155
    %v3307 = vunpack.c.l.b16 %v3156
    %v3308 = vunpack.c.l.b16 %v3157
    %v3309 = vunpack.c.l.b16 %v3158
    %v3310 = vunpack.c.l.b16 %v3159
    %v3311 = vunpack.c.l.b16 %v3160
    %v3312 = vunpack.c.l.b16 %v3161
    %v3313 = vunpack.c.l.b16 %v3162
    %v3314 = vunpack.c.l.b16 %v3163
    %v3315 = vunpack.c.l.b16 %v3164
    %v3316 = vunpack.c.l.b16 %v3165
    %v3317 = vunpack.c.l.b16 %v3166
    %v3318 = vunpack.c.l.b16 %v3167
    %v3319 = vunpack.c.l.b16 %v3168
    %v3320 = vunpack.c.l.b16 %v3169
    %v3321 = vunpack.c.l.b16 %v3170
    %v3322 = vunpack.c.l.b16 %v3171
    %v3323 = vunpack.c.l.b16 %v3172
    %v3324 = vunpack.c.l.b16 %v3173
    %v3325 = vunpack.c.l.b16 %v3174
    %v3326 = vunpack.c.l.b16 %v3175
    %v3327 = vunpack.c.l.b16 %v3176
    %v3328 = vunpack.c.l.b16 %v3177
    %v3329 = vunpack.c.l.b16 %v3178
    %v3330 = vunpack.c.l.b16 %v3179
    %v3331 = vunpack.c.l.b16 %v3180
    %v3332 = vunpack.c.l.b16 %v3181
    %v3333 = vunpack.c.l.b16 %v3182
    %v3334 = vunpack.c.l.b16 %v3183
    %v3335 = vunpack.c.l.b16 %v3184
    %v3336 = vunpack.c.l.b16 %v3185
    %v3337 = vunpack.c.l.b16 %v3186
    %v3338 = vunpack.c.l.b16 %v3187
    %v3339 = vunpack.c.l.b16 %v3188
    %v3340 = vunpack.c.l.b16 %v3189
    %v3341 = vunpack.c.l.b16 %v3190
    %v3342 = vunpack.c.l.b16 %v3191
    %v3343 = vunpack.c.l.b16 %v3192
    %v3344 = vunpack.c.l.b16 %v3193
    %v3345 = vunpack.c.l.b16 %v3194
    %v3346 = vunpack.c.l.b16 %v3195
    %v3347 = vunpack.c.l.b16 %v3196
    %v3348 = vunpack.c.l.b16 %v3197
    %v3349 = vunpack.c.l.b16 %v3198
    %v3350 = vunpack.c.l.b16 %v3199
    %v3351 = vunpack.c.l.b16 %v3200
    %v3352 = vunpack.c.l.b16 %v3201
    %v3353 = vunpack.c.l.b16 %v3202
    %v3354 = vunpack.c.l.b16 %v3203
    %v3355 = vunpack.c.l.b16 %v3204
    %v3356 = vunpack.c.l.b16 %v3205
    %v3357 = vunpack.c.l.b16 %v3206
    %v3358 = vunpack.c.l.b16 %v3207
    %v3359 = vunpack.c.l.b16 %v3208
    %v3360 = vunpack.c.l.b16 %v3209
    %v3361 = vunpack.c.l.b16 %v3210
    %v3362 = vunpack.c.l.b16 %v3211
    %v3363 = vpack.c.b16 %v3300, %v3299
    %v3364 = vpack.c.b16 %v3302, %v3301
    %v3365 = vpack.c.b16 %v3304, %v3303
    %v3366 = vpack.c.b16 %v3306, %v3305
    %v3367 = vpack.c.b16 %v3308, %v3307
    %v3368 = vpack.c.b16 %v3310, %v3309
    %v3369 = vpack.c.b16 %v3312, %v3311
    %v3370 = vpack.c.b16 %v3314, %v3313
    %v3371 = vpack.c.b16 %v3316, %v3315
    %v3372 = vpack.c.b16 %v3318, %v3317
    %v3373 = vpack.c.b16 %v3320, %v3319
    %v3374 = vpack.c.b16 %v3322, %v3321
    %v3375 = vpack.c.b16 %v3324, %v3323
    %v3376 = vpack.c.b16 %v3326, %v3325
    %v3377 = vpack.c.b16 %v3328, %v3327
    %v3378 = vpack.c.b16 %v3330, %v3329
    %v3379 = vpack.c.b16 %v3332, %v3331
    %v3380 = vpack.c.b16 %v3334, %v3333
    %v3381 = vpack.c.b16 %v3336, %v3335
    %v3382 = vpack.c.b16 %v3338, %v3337
    %v3383 = vpack.c.b16 %v3340, %v3339
    %v3384 = vpack.c.b16 %v3342, %v3341
    %v3385 = vpack.c.b16 %v3344, %v3343
    %v3386 = vpack.c.b16 %v3346, %v3345
    %v3387 = vpack.c.b16 %v3348, %v3347
    %v3388 = vpack.c.b16 %v3350, %v3349
    %v3389 = vpack.c.b16 %v3352, %v3351
    %v3390 = vpack.c.b16 %v3354, %v3353
    %v3391 = vpack.c.b16 %v3356, %v3355
    %v3392 = vpack.c.b16 %v3358, %v3357
    %v3393 = vpack.c.b16 %v3360, %v3359
    %v3394 = vpack.c.b16 %v3362, %v3361
    %3427 = vmatprep.subr.bf16.mxu0 0
    %3428 = vmatpush1.bf16.msra.mxu0 %v3370
    %3429 = vmatprep.subr.bf16.mxu0 0
    %3430 = vmatpush1.bf16.msra.mxu0 %v3369
    %3431 = vmatprep.subr.bf16.mxu0 0
    %3432 = vmatpush1.bf16.msra.mxu0 %v3368
    %3433 = vmatprep.subr.bf16.mxu0 0
    %3434 = vmatpush1.bf16.msra.mxu0 %v3367
    %3435 = vmatprep.subr.bf16.mxu0 0
    %3436 = vmatpush1.bf16.msra.mxu0 %v3366
    %3437 = vmatprep.subr.bf16.mxu0 0
    %3438 = vmatpush1.bf16.msra.mxu0 %v3365
    %3439 = vmatprep.subr.bf16.mxu0 0
    %3440 = vmatpush1.bf16.msra.mxu0 %v3364
    %3441 = vmatprep.subr.bf16.mxu0 0
    %3442 = vmatpush1.bf16.msra.mxu0 %v3363
    %3443 = vmatprep.subr.bf16.mxu0 0
    %3444 = vmatpush2.bf16.msra.mxu0 %v3378
    %3445 = vmatprep.subr.bf16.mxu0 0
    %3446 = vmatpush2.bf16.msra.mxu0 %v3377
    %3447 = vmatprep.subr.bf16.mxu0 0
    %3448 = vmatpush2.bf16.msra.mxu0 %v3376
    %3449 = vmatprep.subr.bf16.mxu0 0
    %3450 = vmatpush2.bf16.msra.mxu0 %v3375
    %3451 = vmatprep.subr.bf16.mxu0 0
    %3452 = vmatpush2.bf16.msra.mxu0 %v3374
    %3453 = vmatprep.subr.bf16.mxu0 0
    %3454 = vmatpush2.bf16.msra.mxu0 %v3373
    %3455 = vmatprep.subr.bf16.mxu0 0
    %3456 = vmatpush2.bf16.msra.mxu0 %v3372
    %3457 = vmatprep.subr.bf16.mxu0 0
    %3458 = vmatpush2.bf16.msra.mxu0 %v3371
    %3459 = vmatprep.mubr.bf16.mxu0 %v3213
    %3460 = vmatmul.mubr.bf16.gmra.mxu0 %v3212
    %v3461 = vpop.f32.mrf.mxu0
    %v3462 = vadd.f32 %v3233, %v3461
    %v3463 = vpop.f32.mrf.mxu0
    %v3464 = vpop.f32.mrf.mxu0
    %v3465 = vadd.f32 %v3233, %v3464
    %v3466 = vpop.f32.mrf.mxu0
    %3467 = vmatprep.mubr.bf16.mxu0 %v3217
    %3468 = vmatmul.mubr.bf16.gmra.mxu0 %v3216
    %v3469 = vpop.f32.mrf.mxu0
    %v3470 = vadd.f32 %v3233, %v3469
    %v3471 = vpop.f32.mrf.mxu0
    %v3472 = vpop.f32.mrf.mxu0
    %v3473 = vadd.f32 %v3233, %v3472
    %v3474 = vpop.f32.mrf.mxu0
    %3475 = vmatprep.mubr.bf16.mxu0 %v3221
    %3476 = vmatmul.mubr.bf16.gmra.mxu0 %v3220
    %v3477 = vpop.f32.mrf.mxu0
    %v3478 = vadd.f32 %v3233, %v3477
    %v3479 = vpop.f32.mrf.mxu0
    %v3480 = vpop.f32.mrf.mxu0
    %v3481 = vadd.f32 %v3233, %v3480
    %v3482 = vpop.f32.mrf.mxu0
    %3483 = vmatprep.mubr.bf16.mxu0 %v3225
    %3484 = vmatmul.mubr.bf16.gmra.mxu0 %v3224
    %v3485 = vpop.f32.mrf.mxu0
    %v3486 = vadd.f32 %v3233, %v3485
    %v3487 = vpop.f32.mrf.mxu0
    %v3488 = vpop.f32.mrf.mxu0
    %v3489 = vadd.f32 %v3233, %v3488
    %v3490 = vpop.f32.mrf.mxu0
    %3491 = vdwg.mxu0
    %3492 = vmatprep.subr.bf16.mxu0 0
    %3493 = vmatpush1.bf16.msra.mxu0 %v3386
    %3494 = vmatprep.subr.bf16.mxu0 0
    %3495 = vmatpush1.bf16.msra.mxu0 %v3385
    %3496 = vmatprep.subr.bf16.mxu0 0
    %3497 = vmatpush1.bf16.msra.mxu0 %v3384
    %3498 = vmatprep.subr.bf16.mxu0 0
    %3499 = vmatpush1.bf16.msra.mxu0 %v3383
    %3500 = vmatprep.subr.bf16.mxu0 0
    %3501 = vmatpush1.bf16.msra.mxu0 %v3382
    %3502 = vmatprep.subr.bf16.mxu0 0
    %3503 = vmatpush1.bf16.msra.mxu0 %v3381
    %3504 = vmatprep.subr.bf16.mxu0 0
    %3505 = vmatpush1.bf16.msra.mxu0 %v3380
    %3506 = vmatprep.subr.bf16.mxu0 0
    %3507 = vmatpush1.bf16.msra.mxu0 %v3379
    %3508 = vmatprep.subr.bf16.mxu0 0
    %3509 = vmatpush2.bf16.msra.mxu0 %v3394
    %3510 = vmatprep.subr.bf16.mxu0 0
    %3511 = vmatpush2.bf16.msra.mxu0 %v3393
    %3512 = vmatprep.subr.bf16.mxu0 0
    %3513 = vmatpush2.bf16.msra.mxu0 %v3392
    %3514 = vmatprep.subr.bf16.mxu0 0
    %3515 = vmatpush2.bf16.msra.mxu0 %v3391
    %3516 = vmatprep.subr.bf16.mxu0 0
    %3517 = vmatpush2.bf16.msra.mxu0 %v3390
    %3518 = vmatprep.subr.bf16.mxu0 0
    %3519 = vmatpush2.bf16.msra.mxu0 %v3389
    %3520 = vmatprep.subr.bf16.mxu0 0
    %3521 = vmatpush2.bf16.msra.mxu0 %v3388
    %3522 = vmatprep.subr.bf16.mxu0 0
    %3523 = vmatpush2.bf16.msra.mxu0 %v3387
    %3524 = vmatprep.mubr.bf16.mxu0 %v3215
    %3525 = vmatmul.mubr.bf16.gmra.mxu0 %v3214
    %v3526 = vpop.f32.mrf.mxu0
    %v3527 = vadd.f32 %v3462, %v3526
    %v3528 = vpop.f32.mrf.mxu0
    %v3529 = vpop.f32.mrf.mxu0
    %v3530 = vadd.f32 %v3465, %v3529
    %v3531 = vpop.f32.mrf.mxu0
    %3532 = vmatprep.mubr.bf16.mxu0 %v3219
    %3533 = vmatmul.mubr.bf16.gmra.mxu0 %v3218
    %v3534 = vpop.f32.mrf.mxu0
    %v3535 = vadd.f32 %v3470, %v3534
    %v3536 = vpop.f32.mrf.mxu0
    %v3537 = vpop.f32.mrf.mxu0
    %v3538 = vadd.f32 %v3473, %v3537
    %v3539 = vpop.f32.mrf.mxu0
    %3540 = vmatprep.mubr.bf16.mxu0 %v3223
    %3541 = vmatmul.mubr.bf16.gmra.mxu0 %v3222
    %v3542 = vpop.f32.mrf.mxu0
    %v3543 = vadd.f32 %v3478, %v3542
    %v3544 = vpop.f32.mrf.mxu0
    %v3545 = vpop.f32.mrf.mxu0
    %v3546 = vadd.f32 %v3481, %v3545
    %v3547 = vpop.f32.mrf.mxu0
    %3548 = vmatprep.mubr.bf16.mxu0 %v3227
    %3549 = vmatmul.mubr.bf16.gmra.mxu0 %v3226
    %v3550 = vpop.f32.mrf.mxu0
    %v3551 = vadd.f32 %v3486, %v3550
    %v3552 = vpop.f32.mrf.mxu0
    %v3553 = vpop.f32.mrf.mxu0
    %v3554 = vadd.f32 %v3489, %v3553
    %v3555 = vpop.f32.mrf.mxu0
    %3556 = vdwg.mxu0
    %v3557 = vadd.f32 %v2402, %v3527
    %v3558 = vadd.f32 %v2403, %v3530
    %v3559 = vadd.f32 %v2404, %v3535
    %v3560 = vadd.f32 %v2405, %v3538
    %v3561 = vadd.f32 %v2406, %v3543
    %v3562 = vadd.f32 %v2407, %v3546
    %v3563 = vadd.f32 %v2408, %v3551
    %v3564 = vadd.f32 %v2409, %v3554
    %s3565 = scalar_lea.vmem %s8, 1
    %v3566 = vld [vmem:[%s3565] sm:$0x1]
    %s3567 = scalar_lea.vmem %s9, 1
    %v3568 = vld [vmem:[%s3567] sm:$0x1]
    %3569 = vadd.xlane.f32.xlu0 %v3557
    %v3570 = vpop.xlane.xlu0 %3569
    %3571 = vadd.xlane.f32.xlu0 %v3558
    %v3572 = vpop.xlane.xlu0 %3571
    %3573 = vadd.xlane.f32.xlu0 %v3559
    %v3574 = vpop.xlane.xlu0 %3573
    %3575 = vadd.xlane.f32.xlu0 %v3560
    %v3576 = vpop.xlane.xlu0 %3575
    %3577 = vadd.xlane.f32.xlu0 %v3561
    %v3578 = vpop.xlane.xlu0 %3577
    %3579 = vadd.xlane.f32.xlu0 %v3562
    %v3580 = vpop.xlane.xlu0 %3579
    %3581 = vadd.xlane.f32.xlu0 %v3563
    %v3582 = vpop.xlane.xlu0 %3581
    %3583 = vadd.xlane.f32.xlu0 %v3564
    %v3584 = vpop.xlane.xlu0 %3583
    %v3585 = vmul.f32 %v3570, %v320
    %v3586 = vmul.f32 %v3572, %v320
    %v3587 = vmul.f32 %v3574, %v320
    %v3588 = vmul.f32 %v3576, %v320
    %v3589 = vmul.f32 %v3578, %v320
    %v3590 = vmul.f32 %v3580, %v320
    %v3591 = vmul.f32 %v3582, %v320
    %v3592 = vmul.f32 %v3584, %v320
    %v3593 = vsub.f32 %v3557, %v3585
    %v3594 = vsub.f32 %v3558, %v3586
    %v3595 = vsub.f32 %v3559, %v3587
    %v3596 = vsub.f32 %v3560, %v3588
    %v3597 = vsub.f32 %v3561, %v3589
    %v3598 = vsub.f32 %v3562, %v3590
    %v3599 = vsub.f32 %v3563, %v3591
    %v3600 = vsub.f32 %v3564, %v3592
    %v3601 = vmul.f32 %v3593, %v3593
    %v3602 = vmul.f32 %v3594, %v3594
    %v3603 = vmul.f32 %v3595, %v3595
    %v3604 = vmul.f32 %v3596, %v3596
    %v3605 = vmul.f32 %v3597, %v3597
    %v3606 = vmul.f32 %v3598, %v3598
    %v3607 = vmul.f32 %v3599, %v3599
    %v3608 = vmul.f32 %v3600, %v3600
    %3609 = vadd.xlane.f32.xlu0 %v3601
    %v3610 = vpop.xlane.xlu0 %3609
    %3611 = vadd.xlane.f32.xlu0 %v3602
    %v3612 = vpop.xlane.xlu0 %3611
    %3613 = vadd.xlane.f32.xlu0 %v3603
    %v3614 = vpop.xlane.xlu0 %3613
    %3615 = vadd.xlane.f32.xlu0 %v3604
    %v3616 = vpop.xlane.xlu0 %3615
    %3617 = vadd.xlane.f32.xlu0 %v3605
    %v3618 = vpop.xlane.xlu0 %3617
    %3619 = vadd.xlane.f32.xlu0 %v3606
    %v3620 = vpop.xlane.xlu0 %3619
    %3621 = vadd.xlane.f32.xlu0 %v3607
    %v3622 = vpop.xlane.xlu0 %3621
    %3623 = vadd.xlane.f32.xlu0 %v3608
    %v3624 = vpop.xlane.xlu0 %3623
    %v3625 = vmul.f32 %v3610, %v320
    %v3626 = vmul.f32 %v3612, %v320
    %v3627 = vmul.f32 %v3614, %v320
    %v3628 = vmul.f32 %v3616, %v320
    %v3629 = vmul.f32 %v3618, %v320
    %v3630 = vmul.f32 %v3620, %v320
    %v3631 = vmul.f32 %v3622, %v320
    %v3632 = vmul.f32 %v3624, %v320
    %v3633 = vadd.f32 %v3625, 1e-05
    %v3634 = vadd.f32 %v3626, 1e-05
    %v3635 = vadd.f32 %v3627, 1e-05
    %v3636 = vadd.f32 %v3628, 1e-05
    %v3637 = vadd.f32 %v3629, 1e-05
    %v3638 = vadd.f32 %v3630, 1e-05
    %v3639 = vadd.f32 %v3631, 1e-05
    %v3640 = vadd.f32 %v3632, 1e-05
    %v3641 = vrsqrt.pop %v3633
    %v3642 = vrsqrt.pop %v3634
    %v3643 = vrsqrt.pop %v3635
    %v3644 = vrsqrt.pop %v3636
    %v3645 = vrsqrt.pop %v3637
    %v3646 = vrsqrt.pop %v3638
    %v3647 = vrsqrt.pop %v3639
    %v3648 = vrsqrt.pop %v3640
    %v3649 = vmul.f32 %v3593, %v3641
    %v3650 = vmul.f32 %v3594, %v3642
    %v3651 = vmul.f32 %v3595, %v3643
    %v3652 = vmul.f32 %v3596, %v3644
    %v3653 = vmul.f32 %v3597, %v3645
    %v3654 = vmul.f32 %v3598, %v3646
    %v3655 = vmul.f32 %v3599, %v3647
    %v3656 = vmul.f32 %v3600, %v3648
    %v3658 = vlaneseq
    %v3659 = vshrl.u32 %v3658, 7
    %v3660 = vsub.s32 0, %v3659
    %v3661 = vrot.slane %v3566, %v3660
    %v3663 = vmul.f32 %v3649, %v3661
    %v3664 = vmul.f32 %v3650, %v3661
    %v3665 = vmul.f32 %v3651, %v3661
    %v3666 = vmul.f32 %v3652, %v3661
    %v3667 = vmul.f32 %v3653, %v3661
    %v3668 = vmul.f32 %v3654, %v3661
    %v3669 = vmul.f32 %v3655, %v3661
    %v3670 = vmul.f32 %v3656, %v3661
    %v3672 = vlaneseq
    %v3673 = vshrl.u32 %v3672, 7
    %v3674 = vsub.s32 0, %v3673
    %v3675 = vrot.slane %v3568, %v3674
    %v3677 = vadd.f32 %v3663, %v3675
    %v3678 = vadd.f32 %v3664, %v3675
    %v3679 = vadd.f32 %v3665, %v3675
    %v3680 = vadd.f32 %v3666, %v3675
    %v3681 = vadd.f32 %v3667, %v3675
    %v3682 = vadd.f32 %v3668, %v3675
    %v3683 = vadd.f32 %v3669, %v3675
    %v3684 = vadd.f32 %v3670, %v3675
    %s3685 = scalar_lea.vmem %s10, 192
    %v3686 = vld [vmem:[%s3685] sm:$0xff]
    %v3687 = vld [vmem:[%s3685 + $0x8] sm:$0xf]
    %v3688 = vld [vmem:[%s3685 + $0xc] sm:$0xff]
    %v3689 = vld [vmem:[%s3685 + $0x14] sm:$0xf]
    %v3690 = vld [vmem:[%s3685 + $0x18] sm:$0xff]
    %v3691 = vld [vmem:[%s3685 + $0x20] sm:$0xf]
    %v3692 = vld [vmem:[%s3685 + $0x24] sm:$0xff]
    %v3693 = vld [vmem:[%s3685 + $0x2c] sm:$0xf]
    %v3694 = vld [vmem:[%s3685 + $0x30] sm:$0xff]
    %v3695 = vld [vmem:[%s3685 + $0x38] sm:$0xf]
    %v3696 = vld [vmem:[%s3685 + $0x3c] sm:$0xff]
    %v3697 = vld [vmem:[%s3685 + $0x44] sm:$0xf]
    %v3698 = vld [vmem:[%s3685 + $0x48] sm:$0xff]
    %v3699 = vld [vmem:[%s3685 + $0x50] sm:$0xf]
    %v3700 = vld [vmem:[%s3685 + $0x54] sm:$0xff]
    %v3701 = vld [vmem:[%s3685 + $0x5c] sm:$0xf]
    %v3702 = vld [vmem:[%s3685 + $0x60] sm:$0xff]
    %v3703 = vld [vmem:[%s3685 + $0x68] sm:$0xf]
    %v3704 = vld [vmem:[%s3685 + $0x6c] sm:$0xff]
    %v3705 = vld [vmem:[%s3685 + $0x74] sm:$0xf]
    %v3706 = vld [vmem:[%s3685 + $0x78] sm:$0xff]
    %v3707 = vld [vmem:[%s3685 + $0x80] sm:$0xf]
    %v3708 = vld [vmem:[%s3685 + $0x84] sm:$0xff]
    %v3709 = vld [vmem:[%s3685 + $0x8c] sm:$0xf]
    %v3710 = vld [vmem:[%s3685 + $0x90] sm:$0xff]
    %v3711 = vld [vmem:[%s3685 + $0x98] sm:$0xf]
    %v3712 = vld [vmem:[%s3685 + $0x9c] sm:$0xff]
    %v3713 = vld [vmem:[%s3685 + $0xa4] sm:$0xf]
    %v3714 = vld [vmem:[%s3685 + $0xa8] sm:$0xff]
    %v3715 = vld [vmem:[%s3685 + $0xb0] sm:$0xf]
    %v3716 = vld [vmem:[%s3685 + $0xb4] sm:$0xff]
    %v3717 = vld [vmem:[%s3685 + $0xbc] sm:$0xf]
    %v3718 = vpack.c.bf16 %v3678, %v3677
    %v3719 = vpack.c.bf16 %v3680, %v3679
    %v3720 = vpack.c.bf16 %v3682, %v3681
    %v3721 = vpack.c.bf16 %v3684, %v3683
    %s3722 = scalar_lea.vmem %s11, 3
    %v3723 = vld [vmem:[%s3722] sm:$0x7]
    %v3725 = vlaneseq
    %v3726 = vshrl.u32 %v3725, 7
    %v3727 = vsub.s32 0, %v3726
    %v3728 = vrot.slane %v3723, %v3727
    %v3729 = vlaneseq
    %v3730 = vshrl.u32 %v3729, 7
    %v3731 = vsub.s32 1, %v3730
    %v3732 = vrot.slane %v3723, %v3731
    %v3733 = vlaneseq
    %v3734 = vshrl.u32 %v3733, 7
    %v3735 = vsub.s32 2, %v3734
    %v3736 = vrot.slane %v3723, %v3735
    %v3772 = vunpack.c.l.b16 %v3686
    %v3773 = vunpack.c.h.b16 %v3686
    %v3774 = vunpack.c.l.b16 %v3687
    %v3775 = vunpack.c.l.b16 %v3688
    %v3776 = vunpack.c.h.b16 %v3688
    %v3777 = vunpack.c.l.b16 %v3689
    %v3778 = vunpack.c.l.b16 %v3690
    %v3779 = vunpack.c.h.b16 %v3690
    %v3780 = vunpack.c.l.b16 %v3691
    %v3781 = vunpack.c.l.b16 %v3692
    %v3782 = vunpack.c.h.b16 %v3692
    %v3783 = vunpack.c.l.b16 %v3693
    %v3784 = vunpack.c.l.b16 %v3694
    %v3785 = vunpack.c.h.b16 %v3694
    %v3786 = vunpack.c.l.b16 %v3695
    %v3787 = vunpack.c.l.b16 %v3696
    %v3788 = vunpack.c.h.b16 %v3696
    %v3789 = vunpack.c.l.b16 %v3697
    %v3790 = vunpack.c.l.b16 %v3698
    %v3791 = vunpack.c.h.b16 %v3698
    %v3792 = vunpack.c.l.b16 %v3699
    %v3793 = vunpack.c.l.b16 %v3700
    %v3794 = vunpack.c.h.b16 %v3700
    %v3795 = vunpack.c.l.b16 %v3701
    %v3796 = vunpack.c.l.b16 %v3702
    %v3797 = vunpack.c.h.b16 %v3702
    %v3798 = vunpack.c.l.b16 %v3703
    %v3799 = vunpack.c.l.b16 %v3704
    %v3800 = vunpack.c.h.b16 %v3704
    %v3801 = vunpack.c.l.b16 %v3705
    %v3802 = vunpack.c.l.b16 %v3706
    %v3803 = vunpack.c.h.b16 %v3706
    %v3804 = vunpack.c.l.b16 %v3707
    %v3805 = vunpack.c.l.b16 %v3708
    %v3806 = vunpack.c.h.b16 %v3708
    %v3807 = vunpack.c.l.b16 %v3709
    %v3808 = vunpack.c.l.b16 %v3710
    %v3809 = vunpack.c.h.b16 %v3710
    %v3810 = vunpack.c.l.b16 %v3711
    %v3811 = vunpack.c.l.b16 %v3712
    %v3812 = vunpack.c.h.b16 %v3712
    %v3813 = vunpack.c.l.b16 %v3713
    %v3814 = vunpack.c.l.b16 %v3714
    %v3815 = vunpack.c.h.b16 %v3714
    %v3816 = vunpack.c.l.b16 %v3715
    %v3817 = vunpack.c.l.b16 %v3716
    %v3818 = vunpack.c.h.b16 %v3716
    %v3819 = vunpack.c.l.b16 %v3717
    %v3820 = vpack.c.b16 %v3775, %v3772
    %v3821 = vpack.c.b16 %v3776, %v3773
    %v3822 = vpack.c.b16 %v3777, %v3774
    %v3823 = vpack.c.b16 %v3781, %v3778
    %v3824 = vpack.c.b16 %v3782, %v3779
    %v3825 = vpack.c.b16 %v3783, %v3780
    %v3826 = vpack.c.b16 %v3787, %v3784
    %v3827 = vpack.c.b16 %v3788, %v3785
    %v3828 = vpack.c.b16 %v3789, %v3786
    %v3829 = vpack.c.b16 %v3793, %v3790
    %v3830 = vpack.c.b16 %v3794, %v3791
    %v3831 = vpack.c.b16 %v3795, %v3792
    %v3832 = vpack.c.b16 %v3799, %v3796
    %v3833 = vpack.c.b16 %v3800, %v3797
    %v3834 = vpack.c.b16 %v3801, %v3798
    %v3835 = vpack.c.b16 %v3805, %v3802
    %v3836 = vpack.c.b16 %v3806, %v3803
    %v3837 = vpack.c.b16 %v3807, %v3804
    %v3838 = vpack.c.b16 %v3811, %v3808
    %v3839 = vpack.c.b16 %v3812, %v3809
    %v3840 = vpack.c.b16 %v3813, %v3810
    %v3841 = vpack.c.b16 %v3817, %v3814
    %v3842 = vpack.c.b16 %v3818, %v3815
    %v3843 = vpack.c.b16 %v3819, %v3816
    %3868 = vmatprep.subr.bf16.mxu0 %v3842
    %3869 = vmatpush1.bf16.msra.mxu0 %v3841
    %3870 = vmatprep.subr.bf16.mxu0 %v3839
    %3871 = vmatpush1.bf16.msra.mxu0 %v3838
    %3872 = vmatprep.subr.bf16.mxu0 %v3836
    %3873 = vmatpush1.bf16.msra.mxu0 %v3835
    %3874 = vmatprep.subr.bf16.mxu0 %v3833
    %3875 = vmatpush1.bf16.msra.mxu0 %v3832
    %3876 = vmatprep.subr.bf16.mxu0 %v3830
    %3877 = vmatpush1.bf16.msra.mxu0 %v3829
    %3878 = vmatprep.subr.bf16.mxu0 %v3827
    %3879 = vmatpush1.bf16.msra.mxu0 %v3826
    %3880 = vmatprep.subr.bf16.mxu0 %v3824
    %3881 = vmatpush1.bf16.msra.mxu0 %v3823
    %3882 = vmatprep.subr.bf16.mxu0 %v3821
    %3883 = vmatpush1.bf16.msra.mxu0 %v3820
    %3884 = vmatprep.subr.bf16.mxu0 0
    %3885 = vmatpush2.bf16.msra.mxu0 0
    %3886 = vmatprep.subr.bf16.mxu0 0
    %3887 = vmatpush2.bf16.msra.mxu0 0
    %3888 = vmatprep.subr.bf16.mxu0 0
    %3889 = vmatpush2.bf16.msra.mxu0 0
    %3890 = vmatprep.subr.bf16.mxu0 0
    %3891 = vmatpush2.bf16.msra.mxu0 0
    %3892 = vmatprep.subr.bf16.mxu0 0
    %3893 = vmatpush2.bf16.msra.mxu0 0
    %3894 = vmatprep.subr.bf16.mxu0 0
    %3895 = vmatpush2.bf16.msra.mxu0 0
    %3896 = vmatprep.subr.bf16.mxu0 0
    %3897 = vmatpush2.bf16.msra.mxu0 0
    %3898 = vmatprep.subr.bf16.mxu0 0
    %3899 = vmatpush2.bf16.msra.mxu0 0
    %3900 = vmatprep.mubr.bf16.mxu0 0
    %3901 = vmatmul.mubr.bf16.gmra.mxu0 %v3718
    %v3902 = vpop.f32.mrf.mxu0
    %v3903 = vadd.f32 %v3728, %v3902
    %v3904 = vpop.f32.mrf.mxu0
    %v3905 = vadd.f32 %v3732, %v3904
    %v3906 = vpop.f32.mrf.mxu0
    %v3907 = vadd.f32 %v3728, %v3906
    %v3908 = vpop.f32.mrf.mxu0
    %v3909 = vadd.f32 %v3732, %v3908
    %3910 = vmatprep.mubr.bf16.mxu0 0
    %3911 = vmatmul.mubr.bf16.gmra.mxu0 %v3719
    %v3912 = vpop.f32.mrf.mxu0
    %v3913 = vadd.f32 %v3728, %v3912
    %v3914 = vpop.f32.mrf.mxu0
    %v3915 = vadd.f32 %v3732, %v3914
    %v3916 = vpop.f32.mrf.mxu0
    %v3917 = vadd.f32 %v3728, %v3916
    %v3918 = vpop.f32.mrf.mxu0
    %v3919 = vadd.f32 %v3732, %v3918
    %3920 = vmatprep.mubr.bf16.mxu0 0
    %3921 = vmatmul.mubr.bf16.gmra.mxu0 %v3720
    %v3922 = vpop.f32.mrf.mxu0
    %v3923 = vadd.f32 %v3728, %v3922
    %v3924 = vpop.f32.mrf.mxu0
    %v3925 = vadd.f32 %v3732, %v3924
    %v3926 = vpop.f32.mrf.mxu0
    %v3927 = vadd.f32 %v3728, %v3926
    %v3928 = vpop.f32.mrf.mxu0
    %v3929 = vadd.f32 %v3732, %v3928
    %3930 = vmatprep.mubr.bf16.mxu0 0
    %3931 = vmatmul.mubr.bf16.gmra.mxu0 %v3721
    %v3932 = vpop.f32.mrf.mxu0
    %v3933 = vadd.f32 %v3728, %v3932
    %v3934 = vpop.f32.mrf.mxu0
    %v3935 = vadd.f32 %v3732, %v3934
    %v3936 = vpop.f32.mrf.mxu0
    %v3937 = vadd.f32 %v3728, %v3936
    %v3938 = vpop.f32.mrf.mxu0
    %v3939 = vadd.f32 %v3732, %v3938
    %3940 = vdwg.mxu0
    %3941 = vmatprep.subr.bf16.mxu0 0
    %3942 = vmatpush1.bf16.msra.mxu0 %v3843
    %3943 = vmatprep.subr.bf16.mxu0 0
    %3944 = vmatpush1.bf16.msra.mxu0 %v3840
    %3945 = vmatprep.subr.bf16.mxu0 0
    %3946 = vmatpush1.bf16.msra.mxu0 %v3837
    %3947 = vmatprep.subr.bf16.mxu0 0
    %3948 = vmatpush1.bf16.msra.mxu0 %v3834
    %3949 = vmatprep.subr.bf16.mxu0 0
    %3950 = vmatpush1.bf16.msra.mxu0 %v3831
    %3951 = vmatprep.subr.bf16.mxu0 0
    %3952 = vmatpush1.bf16.msra.mxu0 %v3828
    %3953 = vmatprep.subr.bf16.mxu0 0
    %3954 = vmatpush1.bf16.msra.mxu0 %v3825
    %3955 = vmatprep.subr.bf16.mxu0 0
    %3956 = vmatpush1.bf16.msra.mxu0 %v3822
    %3957 = vmatprep.subr.bf16.mxu0 0
    %3958 = vmatpush2.bf16.msra.mxu0 0
    %3959 = vmatprep.subr.bf16.mxu0 0
    %3960 = vmatpush2.bf16.msra.mxu0 0
    %3961 = vmatprep.subr.bf16.mxu0 0
    %3962 = vmatpush2.bf16.msra.mxu0 0
    %3963 = vmatprep.subr.bf16.mxu0 0
    %3964 = vmatpush2.bf16.msra.mxu0 0
    %3965 = vmatprep.subr.bf16.mxu0 0
    %3966 = vmatpush2.bf16.msra.mxu0 0
    %3967 = vmatprep.subr.bf16.mxu0 0
    %3968 = vmatpush2.bf16.msra.mxu0 0
    %3969 = vmatprep.subr.bf16.mxu0 0
    %3970 = vmatpush2.bf16.msra.mxu0 0
    %3971 = vmatprep.subr.bf16.mxu0 0
    %3972 = vmatpush2.bf16.msra.mxu0 0
    %3973 = vmatprep.mubr.bf16.mxu0 0
    %3974 = vmatmul.mubr.bf16.gmra.mxu0 %v3718
    %v3975 = vpop.f32.mrf.mxu0
    %v3976 = vadd.f32 %v3736, %v3975
    %v3977 = vpop.f32.mrf.mxu0
    %v3978 = vpop.f32.mrf.mxu0
    %v3979 = vadd.f32 %v3736, %v3978
    %v3980 = vpop.f32.mrf.mxu0
    %3981 = vmatprep.mubr.bf16.mxu0 0
    %3982 = vmatmul.mubr.bf16.gmra.mxu0 %v3719
    %v3983 = vpop.f32.mrf.mxu0
    %v3984 = vadd.f32 %v3736, %v3983
    %v3985 = vpop.f32.mrf.mxu0
    %v3986 = vpop.f32.mrf.mxu0
    %v3987 = vadd.f32 %v3736, %v3986
    %v3988 = vpop.f32.mrf.mxu0
    %3989 = vmatprep.mubr.bf16.mxu0 0
    %3990 = vmatmul.mubr.bf16.gmra.mxu0 %v3720
    %v3991 = vpop.f32.mrf.mxu0
    %v3992 = vadd.f32 %v3736, %v3991
    %v3993 = vpop.f32.mrf.mxu0
    %v3994 = vpop.f32.mrf.mxu0
    %v3995 = vadd.f32 %v3736, %v3994
    %v3996 = vpop.f32.mrf.mxu0
    %3997 = vmatprep.mubr.bf16.mxu0 0
    %3998 = vmatmul.mubr.bf16.gmra.mxu0 %v3721
    %v3999 = vpop.f32.mrf.mxu0
    %v4000 = vadd.f32 %v3736, %v3999
    %v4001 = vpop.f32.mrf.mxu0
    %v4002 = vpop.f32.mrf.mxu0
    %v4003 = vadd.f32 %v3736, %v4002
    %v4004 = vpop.f32.mrf.mxu0
    %4005 = vdwg.mxu0
    %v4006 = vmul.f32 %v3903, 0.17677669
    %v4007 = vmul.f32 %v3907, 0.17677669
    %v4008 = vmul.f32 %v3913, 0.17677669
    %v4009 = vmul.f32 %v3917, 0.17677669
    %v4010 = vmul.f32 %v3923, 0.17677669
    %v4011 = vmul.f32 %v3927, 0.17677669
    %v4012 = vmul.f32 %v3933, 0.17677669
    %v4013 = vmul.f32 %v3937, 0.17677669
    %v4014 = vmul.f32 %v4006, %v881
    %v4015 = vmul.f32 %v4007, %v881
    %v4016 = vmul.f32 %v4008, %v881
    %v4017 = vmul.f32 %v4009, %v881
    %v4018 = vmul.f32 %v4010, %v881
    %v4019 = vmul.f32 %v4011, %v881
    %v4020 = vmul.f32 %v4012, %v881
    %v4021 = vmul.f32 %v4013, %v881
    %4022 = vmatprep.subr.mxu0 0.0
    %4023 = vmatpush1.xpose.msra.mxu0 0.0
    %4024 = vmatprep.subr.mxu0 0.0
    %4025 = vmatpush1.xpose.msra.mxu0 0.0
    %4026 = vmatprep.subr.mxu0 0.0
    %4027 = vmatpush1.xpose.msra.mxu0 0.0
    %4028 = vmatprep.subr.mxu0 0.0
    %4029 = vmatpush1.xpose.msra.mxu0 0.0
    %4030 = vmatprep.subr.mxu0 0.0
    %4031 = vmatpush1.xpose.msra.mxu0 0.0
    %4032 = vmatprep.subr.mxu0 0.0
    %4033 = vmatpush1.xpose.msra.mxu0 0.0
    %4034 = vmatprep.subr.mxu0 0.0
    %4035 = vmatpush1.xpose.msra.mxu0 0.0
    %4036 = vmatprep.subr.mxu0 0.0
    %4037 = vmatpush1.xpose.msra.mxu0 0.0
    %4038 = vmatprep.subr.mxu0 0.0
    %4039 = vmatpush1.xpose.msra.mxu0 %v3939
    %4040 = vmatprep.subr.mxu0 0.0
    %4041 = vmatpush1.xpose.msra.mxu0 %v3935
    %4042 = vmatprep.subr.mxu0 0.0
    %4043 = vmatpush1.xpose.msra.mxu0 %v3929
    %4044 = vmatprep.subr.mxu0 0.0
    %4045 = vmatpush1.xpose.msra.mxu0 %v3925
    %4046 = vmatprep.subr.mxu0 0.0
    %4047 = vmatpush1.xpose.msra.mxu0 %v3919
    %4048 = vmatprep.subr.mxu0 0.0
    %4049 = vmatpush1.xpose.msra.mxu0 %v3915
    %4050 = vmatprep.subr.mxu0 0.0
    %4051 = vmatpush1.xpose.msra.mxu0 %v3909
    %4052 = vmatprep.subr.mxu0 0.0
    %4053 = vmatpush1.xpose.msra.mxu0 %v3905
    %4054 = vmatprep.subr.mxu0 0.0
    %4055 = vmatpush2.xpose.msra.mxu0 0.0
    %4056 = vmatprep.subr.mxu0 0.0
    %4057 = vmatpush2.xpose.msra.mxu0 0.0
    %4058 = vmatprep.subr.mxu0 0.0
    %4059 = vmatpush2.xpose.msra.mxu0 0.0
    %4060 = vmatprep.subr.mxu0 0.0
    %4061 = vmatpush2.xpose.msra.mxu0 0.0
    %4062 = vmatprep.subr.mxu0 0.0
    %4063 = vmatpush2.xpose.msra.mxu0 0.0
    %4064 = vmatprep.subr.mxu0 0.0
    %4065 = vmatpush2.xpose.msra.mxu0 0.0
    %4066 = vmatprep.subr.mxu0 0.0
    %4067 = vmatpush2.xpose.msra.mxu0 0.0
    %4068 = vmatprep.subr.mxu0 0.0
    %4069 = vmatpush2.xpose.msra.mxu0 0.0
    %4070 = vmatprep.subr.mxu0 0.0
    %4071 = vmatpush2.xpose.msra.mxu0 0.0
    %4072 = vmatprep.subr.mxu0 0.0
    %4073 = vmatpush2.xpose.msra.mxu0 0.0
    %4074 = vmatprep.subr.mxu0 0.0
    %4075 = vmatpush2.xpose.msra.mxu0 0.0
    %4076 = vmatprep.subr.mxu0 0.0
    %4077 = vmatpush2.xpose.msra.mxu0 0.0
    %4078 = vmatprep.subr.mxu0 0.0
    %4079 = vmatpush2.xpose.msra.mxu0 0.0
    %4080 = vmatprep.subr.mxu0 0.0
    %4081 = vmatpush2.xpose.msra.mxu0 0.0
    %4082 = vmatprep.subr.mxu0 0.0
    %4083 = vmatpush2.xpose.msra.mxu0 0.0
    %4084 = vmatprep.subr.mxu0 0.0
    %4085 = vmatpush2.xpose.msra.mxu0 0.0
    %4086 = vmatprep.mubr.f32.mxu0 0.0
    %4087 = vmatmul.mubr.f32.gmra.mxu0 %v4014
    %v4088 = vpop.f32.mrf.mxu0
    %v4089 = vadd.f32 %v421, %v4088
    %v4090 = vpop.f32.mrf.mxu0
    %4091 = vmatprep.mubr.f32.mxu0 0.0
    %4092 = vmatmul.mubr.f32.gmra.mxu0 %v4015
    %v4093 = vpop.f32.mrf.mxu0
    %v4094 = vadd.f32 %v422, %v4093
    %v4095 = vpop.f32.mrf.mxu0
    %4096 = vmatprep.mubr.f32.mxu0 0.0
    %4097 = vmatmul.mubr.f32.gmra.mxu0 %v4016
    %v4098 = vpop.f32.mrf.mxu0
    %v4099 = vadd.f32 %v423, %v4098
    %v4100 = vpop.f32.mrf.mxu0
    %4101 = vmatprep.mubr.f32.mxu0 0.0
    %4102 = vmatmul.mubr.f32.gmra.mxu0 %v4017
    %v4103 = vpop.f32.mrf.mxu0
    %v4104 = vadd.f32 %v424, %v4103
    %v4105 = vpop.f32.mrf.mxu0
    %4106 = vmatprep.mubr.f32.mxu0 0.0
    %4107 = vmatmul.mubr.f32.gmra.mxu0 %v4018
    %v4108 = vpop.f32.mrf.mxu0
    %v4109 = vadd.f32 %v425, %v4108
    %v4110 = vpop.f32.mrf.mxu0
    %4111 = vmatprep.mubr.f32.mxu0 0.0
    %4112 = vmatmul.mubr.f32.gmra.mxu0 %v4019
    %v4113 = vpop.f32.mrf.mxu0
    %v4114 = vadd.f32 %v426, %v4113
    %v4115 = vpop.f32.mrf.mxu0
    %4116 = vmatprep.mubr.f32.mxu0 0.0
    %4117 = vmatmul.mubr.f32.gmra.mxu0 %v4020
    %v4118 = vpop.f32.mrf.mxu0
    %v4119 = vadd.f32 %v427, %v4118
    %v4120 = vpop.f32.mrf.mxu0
    %4121 = vmatprep.mubr.f32.mxu0 0.0
    %4122 = vmatmul.mubr.f32.gmra.mxu0 %v4021
    %v4123 = vpop.f32.mrf.mxu0
    %v4124 = vadd.f32 %v428, %v4123
    %v4125 = vpop.f32.mrf.mxu0
    %4126 = vdwg.mxu0
    %v4127 = vsel %vm224, %v4089, -inf
    %4128 = vmax.xlane.f32.xlu0 %v4127
    %v4129 = vpop.xlane.xlu0 %4128
    %v4130 = vsel %vm224, %v4094, -inf
    %4131 = vmax.xlane.f32.xlu0 %v4130
    %v4132 = vpop.xlane.xlu0 %4131
    %v4133 = vsel %vm224, %v4099, -inf
    %4134 = vmax.xlane.f32.xlu0 %v4133
    %v4135 = vpop.xlane.xlu0 %4134
    %v4136 = vsel %vm224, %v4104, -inf
    %4137 = vmax.xlane.f32.xlu0 %v4136
    %v4138 = vpop.xlane.xlu0 %4137
    %v4139 = vsel %vm224, %v4109, -inf
    %4140 = vmax.xlane.f32.xlu0 %v4139
    %v4141 = vpop.xlane.xlu0 %4140
    %v4142 = vsel %vm224, %v4114, -inf
    %4143 = vmax.xlane.f32.xlu0 %v4142
    %v4144 = vpop.xlane.xlu0 %4143
    %v4145 = vsel %vm224, %v4119, -inf
    %4146 = vmax.xlane.f32.xlu0 %v4145
    %v4147 = vpop.xlane.xlu0 %4146
    %v4148 = vsel %vm224, %v4124, -inf
    %4149 = vmax.xlane.f32.xlu0 %v4148
    %v4150 = vpop.xlane.xlu0 %4149
    %v4151 = vsub.f32 %v4089, %v4129
    %v4152 = vsub.f32 %v4094, %v4132
    %v4153 = vsub.f32 %v4099, %v4135
    %v4154 = vsub.f32 %v4104, %v4138
    %v4155 = vsub.f32 %v4109, %v4141
    %v4156 = vsub.f32 %v4114, %v4144
    %v4157 = vsub.f32 %v4119, %v4147
    %v4158 = vsub.f32 %v4124, %v4150
    %v4159 = vmul.f32 %v4151, 1.442695
    %v4160 = vpow.pop %v4159
    %v4161 = vmul.f32 %v4152, 1.442695
    %v4162 = vpow.pop %v4161
    %v4163 = vmul.f32 %v4153, 1.442695
    %v4164 = vpow.pop %v4163
    %v4165 = vmul.f32 %v4154, 1.442695
    %v4166 = vpow.pop %v4165
    %v4167 = vmul.f32 %v4155, 1.442695
    %v4168 = vpow.pop %v4167
    %v4169 = vmul.f32 %v4156, 1.442695
    %v4170 = vpow.pop %v4169
    %v4171 = vmul.f32 %v4157, 1.442695
    %v4172 = vpow.pop %v4171
    %v4173 = vmul.f32 %v4158, 1.442695
    %v4174 = vpow.pop %v4173
    %v4175 = vsel %vm224, %v4160, 0.0
    %4176 = vadd.xlane.f32.xlu0 %v4175
    %v4177 = vpop.xlane.xlu0 %4176
    %v4178 = vsel %vm224, %v4162, 0.0
    %4179 = vadd.xlane.f32.xlu0 %v4178
    %v4180 = vpop.xlane.xlu0 %4179
    %v4181 = vsel %vm224, %v4164, 0.0
    %4182 = vadd.xlane.f32.xlu0 %v4181
    %v4183 = vpop.xlane.xlu0 %4182
    %v4184 = vsel %vm224, %v4166, 0.0
    %4185 = vadd.xlane.f32.xlu0 %v4184
    %v4186 = vpop.xlane.xlu0 %4185
    %v4187 = vsel %vm224, %v4168, 0.0
    %4188 = vadd.xlane.f32.xlu0 %v4187
    %v4189 = vpop.xlane.xlu0 %4188
    %v4190 = vsel %vm224, %v4170, 0.0
    %4191 = vadd.xlane.f32.xlu0 %v4190
    %v4192 = vpop.xlane.xlu0 %4191
    %v4193 = vsel %vm224, %v4172, 0.0
    %4194 = vadd.xlane.f32.xlu0 %v4193
    %v4195 = vpop.xlane.xlu0 %4194
    %v4196 = vsel %vm224, %v4174, 0.0
    %4197 = vadd.xlane.f32.xlu0 %v4196
    %v4198 = vpop.xlane.xlu0 %4197
    %v4199 = vrcp.pop %v4177
    %v4200 = vrcp.pop %v4180
    %v4201 = vrcp.pop %v4183
    %v4202 = vrcp.pop %v4186
    %v4203 = vrcp.pop %v4189
    %v4204 = vrcp.pop %v4192
    %v4205 = vrcp.pop %v4195
    %v4206 = vrcp.pop %v4198
    %v4207 = vmul.f32 %v4160, %v4199
    %v4208 = vmul.f32 %v4162, %v4200
    %v4209 = vmul.f32 %v4164, %v4201
    %v4210 = vmul.f32 %v4166, %v4202
    %v4211 = vmul.f32 %v4168, %v4203
    %v4212 = vmul.f32 %v4170, %v4204
    %v4213 = vmul.f32 %v4172, %v4205
    %v4214 = vmul.f32 %v4174, %v4206
    %v4215 = vmul.f32 %v3976, %v881
    %v4216 = vmul.f32 %v3979, %v881
    %v4217 = vmul.f32 %v3984, %v881
    %v4218 = vmul.f32 %v3987, %v881
    %v4219 = vmul.f32 %v3992, %v881
    %v4220 = vmul.f32 %v3995, %v881
    %v4221 = vmul.f32 %v4000, %v881
    %v4222 = vmul.f32 %v4003, %v881
    %v4223 = vmul.f32 %v4006, %v1094
    %v4224 = vmul.f32 %v4007, %v1094
    %v4225 = vmul.f32 %v4008, %v1094
    %v4226 = vmul.f32 %v4009, %v1094
    %v4227 = vmul.f32 %v4010, %v1094
    %v4228 = vmul.f32 %v4011, %v1094
    %v4229 = vmul.f32 %v4012, %v1094
    %v4230 = vmul.f32 %v4013, %v1094
    %4231 = vmatprep.subr.mxu0 0.0
    %4232 = vmatpush1.xpose.msra.mxu0 0.0
    %4233 = vmatprep.subr.mxu0 0.0
    %4234 = vmatpush1.xpose.msra.mxu0 0.0
    %4235 = vmatprep.subr.mxu0 0.0
    %4236 = vmatpush1.xpose.msra.mxu0 0.0
    %4237 = vmatprep.subr.mxu0 0.0
    %4238 = vmatpush1.xpose.msra.mxu0 0.0
    %4239 = vmatprep.subr.mxu0 0.0
    %4240 = vmatpush1.xpose.msra.mxu0 0.0
    %4241 = vmatprep.subr.mxu0 0.0
    %4242 = vmatpush1.xpose.msra.mxu0 0.0
    %4243 = vmatprep.subr.mxu0 0.0
    %4244 = vmatpush1.xpose.msra.mxu0 0.0
    %4245 = vmatprep.subr.mxu0 0.0
    %4246 = vmatpush1.xpose.msra.mxu0 0.0
    %4247 = vmatprep.subr.mxu0 0.0
    %4248 = vmatpush1.xpose.msra.mxu0 %v3939
    %4249 = vmatprep.subr.mxu0 0.0
    %4250 = vmatpush1.xpose.msra.mxu0 %v3935
    %4251 = vmatprep.subr.mxu0 0.0
    %4252 = vmatpush1.xpose.msra.mxu0 %v3929
    %4253 = vmatprep.subr.mxu0 0.0
    %4254 = vmatpush1.xpose.msra.mxu0 %v3925
    %4255 = vmatprep.subr.mxu0 0.0
    %4256 = vmatpush1.xpose.msra.mxu0 %v3919
    %4257 = vmatprep.subr.mxu0 0.0
    %4258 = vmatpush1.xpose.msra.mxu0 %v3915
    %4259 = vmatprep.subr.mxu0 0.0
    %4260 = vmatpush1.xpose.msra.mxu0 %v3909
    %4261 = vmatprep.subr.mxu0 0.0
    %4262 = vmatpush1.xpose.msra.mxu0 %v3905
    %4263 = vmatprep.subr.mxu0 0.0
    %4264 = vmatpush2.xpose.msra.mxu0 0.0
    %4265 = vmatprep.subr.mxu0 0.0
    %4266 = vmatpush2.xpose.msra.mxu0 0.0
    %4267 = vmatprep.subr.mxu0 0.0
    %4268 = vmatpush2.xpose.msra.mxu0 0.0
    %4269 = vmatprep.subr.mxu0 0.0
    %4270 = vmatpush2.xpose.msra.mxu0 0.0
    %4271 = vmatprep.subr.mxu0 0.0
    %4272 = vmatpush2.xpose.msra.mxu0 0.0
    %4273 = vmatprep.subr.mxu0 0.0
    %4274 = vmatpush2.xpose.msra.mxu0 0.0
    %4275 = vmatprep.subr.mxu0 0.0
    %4276 = vmatpush2.xpose.msra.mxu0 0.0
    %4277 = vmatprep.subr.mxu0 0.0
    %4278 = vmatpush2.xpose.msra.mxu0 0.0
    %4279 = vmatprep.subr.mxu0 0.0
    %4280 = vmatpush2.xpose.msra.mxu0 0.0
    %4281 = vmatprep.subr.mxu0 0.0
    %4282 = vmatpush2.xpose.msra.mxu0 0.0
    %4283 = vmatprep.subr.mxu0 0.0
    %4284 = vmatpush2.xpose.msra.mxu0 0.0
    %4285 = vmatprep.subr.mxu0 0.0
    %4286 = vmatpush2.xpose.msra.mxu0 0.0
    %4287 = vmatprep.subr.mxu0 0.0
    %4288 = vmatpush2.xpose.msra.mxu0 0.0
    %4289 = vmatprep.subr.mxu0 0.0
    %4290 = vmatpush2.xpose.msra.mxu0 0.0
    %4291 = vmatprep.subr.mxu0 0.0
    %4292 = vmatpush2.xpose.msra.mxu0 0.0
    %4293 = vmatprep.subr.mxu0 0.0
    %4294 = vmatpush2.xpose.msra.mxu0 0.0
    %4295 = vmatprep.mubr.f32.mxu0 0.0
    %4296 = vmatmul.mubr.f32.gmra.mxu0 %v4223
    %v4297 = vpop.f32.mrf.mxu0
    %v4298 = vadd.f32 %v421, %v4297
    %v4299 = vpop.f32.mrf.mxu0
    %4300 = vmatprep.mubr.f32.mxu0 0.0
    %4301 = vmatmul.mubr.f32.gmra.mxu0 %v4224
    %v4302 = vpop.f32.mrf.mxu0
    %v4303 = vadd.f32 %v422, %v4302
    %v4304 = vpop.f32.mrf.mxu0
    %4305 = vmatprep.mubr.f32.mxu0 0.0
    %4306 = vmatmul.mubr.f32.gmra.mxu0 %v4225
    %v4307 = vpop.f32.mrf.mxu0
    %v4308 = vadd.f32 %v423, %v4307
    %v4309 = vpop.f32.mrf.mxu0
    %4310 = vmatprep.mubr.f32.mxu0 0.0
    %4311 = vmatmul.mubr.f32.gmra.mxu0 %v4226
    %v4312 = vpop.f32.mrf.mxu0
    %v4313 = vadd.f32 %v424, %v4312
    %v4314 = vpop.f32.mrf.mxu0
    %4315 = vmatprep.mubr.f32.mxu0 0.0
    %4316 = vmatmul.mubr.f32.gmra.mxu0 %v4227
    %v4317 = vpop.f32.mrf.mxu0
    %v4318 = vadd.f32 %v425, %v4317
    %v4319 = vpop.f32.mrf.mxu0
    %4320 = vmatprep.mubr.f32.mxu0 0.0
    %4321 = vmatmul.mubr.f32.gmra.mxu0 %v4228
    %v4322 = vpop.f32.mrf.mxu0
    %v4323 = vadd.f32 %v426, %v4322
    %v4324 = vpop.f32.mrf.mxu0
    %4325 = vmatprep.mubr.f32.mxu0 0.0
    %4326 = vmatmul.mubr.f32.gmra.mxu0 %v4229
    %v4327 = vpop.f32.mrf.mxu0
    %v4328 = vadd.f32 %v427, %v4327
    %v4329 = vpop.f32.mrf.mxu0
    %4330 = vmatprep.mubr.f32.mxu0 0.0
    %4331 = vmatmul.mubr.f32.gmra.mxu0 %v4230
    %v4332 = vpop.f32.mrf.mxu0
    %v4333 = vadd.f32 %v428, %v4332
    %v4334 = vpop.f32.mrf.mxu0
    %4335 = vdwg.mxu0
    %v4336 = vsel %vm224, %v4298, -inf
    %4337 = vmax.xlane.f32.xlu0 %v4336
    %v4338 = vpop.xlane.xlu0 %4337
    %v4339 = vsel %vm224, %v4303, -inf
    %4340 = vmax.xlane.f32.xlu0 %v4339
    %v4341 = vpop.xlane.xlu0 %4340
    %v4342 = vsel %vm224, %v4308, -inf
    %4343 = vmax.xlane.f32.xlu0 %v4342
    %v4344 = vpop.xlane.xlu0 %4343
    %v4345 = vsel %vm224, %v4313, -inf
    %4346 = vmax.xlane.f32.xlu0 %v4345
    %v4347 = vpop.xlane.xlu0 %4346
    %v4348 = vsel %vm224, %v4318, -inf
    %4349 = vmax.xlane.f32.xlu0 %v4348
    %v4350 = vpop.xlane.xlu0 %4349
    %v4351 = vsel %vm224, %v4323, -inf
    %4352 = vmax.xlane.f32.xlu0 %v4351
    %v4353 = vpop.xlane.xlu0 %4352
    %v4354 = vsel %vm224, %v4328, -inf
    %4355 = vmax.xlane.f32.xlu0 %v4354
    %v4356 = vpop.xlane.xlu0 %4355
    %v4357 = vsel %vm224, %v4333, -inf
    %4358 = vmax.xlane.f32.xlu0 %v4357
    %v4359 = vpop.xlane.xlu0 %4358
    %v4360 = vsub.f32 %v4298, %v4338
    %v4361 = vsub.f32 %v4303, %v4341
    %v4362 = vsub.f32 %v4308, %v4344
    %v4363 = vsub.f32 %v4313, %v4347
    %v4364 = vsub.f32 %v4318, %v4350
    %v4365 = vsub.f32 %v4323, %v4353
    %v4366 = vsub.f32 %v4328, %v4356
    %v4367 = vsub.f32 %v4333, %v4359
    %v4368 = vmul.f32 %v4360, 1.442695
    %v4369 = vpow.pop %v4368
    %v4370 = vmul.f32 %v4361, 1.442695
    %v4371 = vpow.pop %v4370
    %v4372 = vmul.f32 %v4362, 1.442695
    %v4373 = vpow.pop %v4372
    %v4374 = vmul.f32 %v4363, 1.442695
    %v4375 = vpow.pop %v4374
    %v4376 = vmul.f32 %v4364, 1.442695
    %v4377 = vpow.pop %v4376
    %v4378 = vmul.f32 %v4365, 1.442695
    %v4379 = vpow.pop %v4378
    %v4380 = vmul.f32 %v4366, 1.442695
    %v4381 = vpow.pop %v4380
    %v4382 = vmul.f32 %v4367, 1.442695
    %v4383 = vpow.pop %v4382
    %v4384 = vsel %vm224, %v4369, 0.0
    %4385 = vadd.xlane.f32.xlu0 %v4384
    %v4386 = vpop.xlane.xlu0 %4385
    %v4387 = vsel %vm224, %v4371, 0.0
    %4388 = vadd.xlane.f32.xlu0 %v4387
    %v4389 = vpop.xlane.xlu0 %4388
    %v4390 = vsel %vm224, %v4373, 0.0
    %4391 = vadd.xlane.f32.xlu0 %v4390
    %v4392 = vpop.xlane.xlu0 %4391
    %v4393 = vsel %vm224, %v4375, 0.0
    %4394 = vadd.xlane.f32.xlu0 %v4393
    %v4395 = vpop.xlane.xlu0 %4394
    %v4396 = vsel %vm224, %v4377, 0.0
    %4397 = vadd.xlane.f32.xlu0 %v4396
    %v4398 = vpop.xlane.xlu0 %4397
    %v4399 = vsel %vm224, %v4379, 0.0
    %4400 = vadd.xlane.f32.xlu0 %v4399
    %v4401 = vpop.xlane.xlu0 %4400
    %v4402 = vsel %vm224, %v4381, 0.0
    %4403 = vadd.xlane.f32.xlu0 %v4402
    %v4404 = vpop.xlane.xlu0 %4403
    %v4405 = vsel %vm224, %v4383, 0.0
    %4406 = vadd.xlane.f32.xlu0 %v4405
    %v4407 = vpop.xlane.xlu0 %4406
    %v4408 = vrcp.pop %v4386
    %v4409 = vrcp.pop %v4389
    %v4410 = vrcp.pop %v4392
    %v4411 = vrcp.pop %v4395
    %v4412 = vrcp.pop %v4398
    %v4413 = vrcp.pop %v4401
    %v4414 = vrcp.pop %v4404
    %v4415 = vrcp.pop %v4407
    %v4416 = vmul.f32 %v4369, %v4408
    %v4417 = vmul.f32 %v4371, %v4409
    %v4418 = vmul.f32 %v4373, %v4410
    %v4419 = vmul.f32 %v4375, %v4411
    %v4420 = vmul.f32 %v4377, %v4412
    %v4421 = vmul.f32 %v4379, %v4413
    %v4422 = vmul.f32 %v4381, %v4414
    %v4423 = vmul.f32 %v4383, %v4415
    %v4424 = vmul.f32 %v3976, %v1094
    %v4425 = vmul.f32 %v3979, %v1094
    %v4426 = vmul.f32 %v3984, %v1094
    %v4427 = vmul.f32 %v3987, %v1094
    %v4428 = vmul.f32 %v3992, %v1094
    %v4429 = vmul.f32 %v3995, %v1094
    %v4430 = vmul.f32 %v4000, %v1094
    %v4431 = vmul.f32 %v4003, %v1094
    %v4433 = vsel %vm224, %v4416, 0
    %v4436 = vsel %vm224, %v4417, 0
    %v4439 = vsel %vm224, %v4418, 0
    %v4442 = vsel %vm224, %v4419, 0
    %v4445 = vsel %vm224, %v4420, 0
    %v4448 = vsel %vm224, %v4421, 0
    %v4451 = vsel %vm224, %v4422, 0
    %v4454 = vsel %vm224, %v4423, 0
    %4456 = vmatprep.subr.mxu0 0.0
    %4457 = vmatpush1.msra.mxu0 0.0
    %4458 = vmatprep.subr.mxu0 0.0
    %4459 = vmatpush1.msra.mxu0 0.0
    %4460 = vmatprep.subr.mxu0 0.0
    %4461 = vmatpush1.msra.mxu0 0.0
    %4462 = vmatprep.subr.mxu0 0.0
    %4463 = vmatpush1.msra.mxu0 0.0
    %4464 = vmatprep.subr.mxu0 0.0
    %4465 = vmatpush1.msra.mxu0 0.0
    %4466 = vmatprep.subr.mxu0 0.0
    %4467 = vmatpush1.msra.mxu0 0.0
    %4468 = vmatprep.subr.mxu0 0.0
    %4469 = vmatpush1.msra.mxu0 0.0
    %4470 = vmatprep.subr.mxu0 0.0
    %4471 = vmatpush1.msra.mxu0 0.0
    %4472 = vmatprep.subr.mxu0 0.0
    %4473 = vmatpush1.msra.mxu0 %v4431
    %4474 = vmatprep.subr.mxu0 0.0
    %4475 = vmatpush1.msra.mxu0 %v4430
    %4476 = vmatprep.subr.mxu0 0.0
    %4477 = vmatpush1.msra.mxu0 %v4429
    %4478 = vmatprep.subr.mxu0 0.0
    %4479 = vmatpush1.msra.mxu0 %v4428
    %4480 = vmatprep.subr.mxu0 0.0
    %4481 = vmatpush1.msra.mxu0 %v4427
    %4482 = vmatprep.subr.mxu0 0.0
    %4483 = vmatpush1.msra.mxu0 %v4426
    %4484 = vmatprep.subr.mxu0 0.0
    %4485 = vmatpush1.msra.mxu0 %v4425
    %4486 = vmatprep.subr.mxu0 0.0
    %4487 = vmatpush1.msra.mxu0 %v4424
    %4488 = vmatprep.subr.mxu0 0.0
    %4489 = vmatpush2.msra.mxu0 0.0
    %4490 = vmatprep.subr.mxu0 0.0
    %4491 = vmatpush2.msra.mxu0 0.0
    %4492 = vmatprep.subr.mxu0 0.0
    %4493 = vmatpush2.msra.mxu0 0.0
    %4494 = vmatprep.subr.mxu0 0.0
    %4495 = vmatpush2.msra.mxu0 0.0
    %4496 = vmatprep.subr.mxu0 0.0
    %4497 = vmatpush2.msra.mxu0 0.0
    %4498 = vmatprep.subr.mxu0 0.0
    %4499 = vmatpush2.msra.mxu0 0.0
    %4500 = vmatprep.subr.mxu0 0.0
    %4501 = vmatpush2.msra.mxu0 0.0
    %4502 = vmatprep.subr.mxu0 0.0
    %4503 = vmatpush2.msra.mxu0 0.0
    %4504 = vmatprep.subr.mxu0 0.0
    %4505 = vmatpush2.msra.mxu0 0.0
    %4506 = vmatprep.subr.mxu0 0.0
    %4507 = vmatpush2.msra.mxu0 0.0
    %4508 = vmatprep.subr.mxu0 0.0
    %4509 = vmatpush2.msra.mxu0 0.0
    %4510 = vmatprep.subr.mxu0 0.0
    %4511 = vmatpush2.msra.mxu0 0.0
    %4512 = vmatprep.subr.mxu0 0.0
    %4513 = vmatpush2.msra.mxu0 0.0
    %4514 = vmatprep.subr.mxu0 0.0
    %4515 = vmatpush2.msra.mxu0 0.0
    %4516 = vmatprep.subr.mxu0 0.0
    %4517 = vmatpush2.msra.mxu0 0.0
    %4518 = vmatprep.subr.mxu0 0.0
    %4519 = vmatpush2.msra.mxu0 0.0
    %4520 = vmatprep.mubr.f32.mxu0 0.0
    %4521 = vmatmul.mubr.f32.gmra.mxu0 %v4433
    %v4522 = vpop.f32.mrf.mxu0
    %v4523 = vadd.f32 0.0, %v4522
    %v4524 = vpop.f32.mrf.mxu0
    %4525 = vmatprep.mubr.f32.mxu0 0.0
    %4526 = vmatmul.mubr.f32.gmra.mxu0 %v4436
    %v4527 = vpop.f32.mrf.mxu0
    %v4528 = vadd.f32 0.0, %v4527
    %v4529 = vpop.f32.mrf.mxu0
    %4530 = vmatprep.mubr.f32.mxu0 0.0
    %4531 = vmatmul.mubr.f32.gmra.mxu0 %v4439
    %v4532 = vpop.f32.mrf.mxu0
    %v4533 = vadd.f32 0.0, %v4532
    %v4534 = vpop.f32.mrf.mxu0
    %4535 = vmatprep.mubr.f32.mxu0 0.0
    %4536 = vmatmul.mubr.f32.gmra.mxu0 %v4442
    %v4537 = vpop.f32.mrf.mxu0
    %v4538 = vadd.f32 0.0, %v4537
    %v4539 = vpop.f32.mrf.mxu0
    %4540 = vmatprep.mubr.f32.mxu0 0.0
    %4541 = vmatmul.mubr.f32.gmra.mxu0 %v4445
    %v4542 = vpop.f32.mrf.mxu0
    %v4543 = vadd.f32 0.0, %v4542
    %v4544 = vpop.f32.mrf.mxu0
    %4545 = vmatprep.mubr.f32.mxu0 0.0
    %4546 = vmatmul.mubr.f32.gmra.mxu0 %v4448
    %v4547 = vpop.f32.mrf.mxu0
    %v4548 = vadd.f32 0.0, %v4547
    %v4549 = vpop.f32.mrf.mxu0
    %4550 = vmatprep.mubr.f32.mxu0 0.0
    %4551 = vmatmul.mubr.f32.gmra.mxu0 %v4451
    %v4552 = vpop.f32.mrf.mxu0
    %v4553 = vadd.f32 0.0, %v4552
    %v4554 = vpop.f32.mrf.mxu0
    %4555 = vmatprep.mubr.f32.mxu0 0.0
    %4556 = vmatmul.mubr.f32.gmra.mxu0 %v4454
    %v4557 = vpop.f32.mrf.mxu0
    %v4558 = vadd.f32 0.0, %v4557
    %v4559 = vpop.f32.mrf.mxu0
    %4560 = vdwg.mxu0
    %v4562 = vsel %vm224, %v4207, 0
    %v4565 = vsel %vm224, %v4208, 0
    %v4568 = vsel %vm224, %v4209, 0
    %v4571 = vsel %vm224, %v4210, 0
    %v4574 = vsel %vm224, %v4211, 0
    %v4577 = vsel %vm224, %v4212, 0
    %v4580 = vsel %vm224, %v4213, 0
    %v4583 = vsel %vm224, %v4214, 0
    %4585 = vmatprep.subr.mxu0 0.0
    %4586 = vmatpush1.msra.mxu0 0.0
    %4587 = vmatprep.subr.mxu0 0.0
    %4588 = vmatpush1.msra.mxu0 0.0
    %4589 = vmatprep.subr.mxu0 0.0
    %4590 = vmatpush1.msra.mxu0 0.0
    %4591 = vmatprep.subr.mxu0 0.0
    %4592 = vmatpush1.msra.mxu0 0.0
    %4593 = vmatprep.subr.mxu0 0.0
    %4594 = vmatpush1.msra.mxu0 0.0
    %4595 = vmatprep.subr.mxu0 0.0
    %4596 = vmatpush1.msra.mxu0 0.0
    %4597 = vmatprep.subr.mxu0 0.0
    %4598 = vmatpush1.msra.mxu0 0.0
    %4599 = vmatprep.subr.mxu0 0.0
    %4600 = vmatpush1.msra.mxu0 0.0
    %4601 = vmatprep.subr.mxu0 0.0
    %4602 = vmatpush1.msra.mxu0 %v4222
    %4603 = vmatprep.subr.mxu0 0.0
    %4604 = vmatpush1.msra.mxu0 %v4221
    %4605 = vmatprep.subr.mxu0 0.0
    %4606 = vmatpush1.msra.mxu0 %v4220
    %4607 = vmatprep.subr.mxu0 0.0
    %4608 = vmatpush1.msra.mxu0 %v4219
    %4609 = vmatprep.subr.mxu0 0.0
    %4610 = vmatpush1.msra.mxu0 %v4218
    %4611 = vmatprep.subr.mxu0 0.0
    %4612 = vmatpush1.msra.mxu0 %v4217
    %4613 = vmatprep.subr.mxu0 0.0
    %4614 = vmatpush1.msra.mxu0 %v4216
    %4615 = vmatprep.subr.mxu0 0.0
    %4616 = vmatpush1.msra.mxu0 %v4215
    %4617 = vmatprep.subr.mxu0 0.0
    %4618 = vmatpush2.msra.mxu0 0.0
    %4619 = vmatprep.subr.mxu0 0.0
    %4620 = vmatpush2.msra.mxu0 0.0
    %4621 = vmatprep.subr.mxu0 0.0
    %4622 = vmatpush2.msra.mxu0 0.0
    %4623 = vmatprep.subr.mxu0 0.0
    %4624 = vmatpush2.msra.mxu0 0.0
    %4625 = vmatprep.subr.mxu0 0.0
    %4626 = vmatpush2.msra.mxu0 0.0
    %4627 = vmatprep.subr.mxu0 0.0
    %4628 = vmatpush2.msra.mxu0 0.0
    %4629 = vmatprep.subr.mxu0 0.0
    %4630 = vmatpush2.msra.mxu0 0.0
    %4631 = vmatprep.subr.mxu0 0.0
    %4632 = vmatpush2.msra.mxu0 0.0
    %4633 = vmatprep.subr.mxu0 0.0
    %4634 = vmatpush2.msra.mxu0 0.0
    %4635 = vmatprep.subr.mxu0 0.0
    %4636 = vmatpush2.msra.mxu0 0.0
    %4637 = vmatprep.subr.mxu0 0.0
    %4638 = vmatpush2.msra.mxu0 0.0
    %4639 = vmatprep.subr.mxu0 0.0
    %4640 = vmatpush2.msra.mxu0 0.0
    %4641 = vmatprep.subr.mxu0 0.0
    %4642 = vmatpush2.msra.mxu0 0.0
    %4643 = vmatprep.subr.mxu0 0.0
    %4644 = vmatpush2.msra.mxu0 0.0
    %4645 = vmatprep.subr.mxu0 0.0
    %4646 = vmatpush2.msra.mxu0 0.0
    %4647 = vmatprep.subr.mxu0 0.0
    %4648 = vmatpush2.msra.mxu0 0.0
    %4649 = vmatprep.mubr.f32.mxu0 0.0
    %4650 = vmatmul.mubr.f32.gmra.mxu0 %v4562
    %v4651 = vpop.f32.mrf.mxu0
    %v4652 = vadd.f32 %v4523, %v4651
    %v4653 = vpop.f32.mrf.mxu0
    %4654 = vmatprep.mubr.f32.mxu0 0.0
    %4655 = vmatmul.mubr.f32.gmra.mxu0 %v4565
    %v4656 = vpop.f32.mrf.mxu0
    %v4657 = vadd.f32 %v4528, %v4656
    %v4658 = vpop.f32.mrf.mxu0
    %4659 = vmatprep.mubr.f32.mxu0 0.0
    %4660 = vmatmul.mubr.f32.gmra.mxu0 %v4568
    %v4661 = vpop.f32.mrf.mxu0
    %v4662 = vadd.f32 %v4533, %v4661
    %v4663 = vpop.f32.mrf.mxu0
    %4664 = vmatprep.mubr.f32.mxu0 0.0
    %4665 = vmatmul.mubr.f32.gmra.mxu0 %v4571
    %v4666 = vpop.f32.mrf.mxu0
    %v4667 = vadd.f32 %v4538, %v4666
    %v4668 = vpop.f32.mrf.mxu0
    %4669 = vmatprep.mubr.f32.mxu0 0.0
    %4670 = vmatmul.mubr.f32.gmra.mxu0 %v4574
    %v4671 = vpop.f32.mrf.mxu0
    %v4672 = vadd.f32 %v4543, %v4671
    %v4673 = vpop.f32.mrf.mxu0
    %4674 = vmatprep.mubr.f32.mxu0 0.0
    %4675 = vmatmul.mubr.f32.gmra.mxu0 %v4577
    %v4676 = vpop.f32.mrf.mxu0
    %v4677 = vadd.f32 %v4548, %v4676
    %v4678 = vpop.f32.mrf.mxu0
    %4679 = vmatprep.mubr.f32.mxu0 0.0
    %4680 = vmatmul.mubr.f32.gmra.mxu0 %v4580
    %v4681 = vpop.f32.mrf.mxu0
    %v4682 = vadd.f32 %v4553, %v4681
    %v4683 = vpop.f32.mrf.mxu0
    %4684 = vmatprep.mubr.f32.mxu0 0.0
    %4685 = vmatmul.mubr.f32.gmra.mxu0 %v4583
    %v4686 = vpop.f32.mrf.mxu0
    %v4687 = vadd.f32 %v4558, %v4686
    %v4688 = vpop.f32.mrf.mxu0
    %4689 = vdwg.mxu0
    %v4690 = vmul.f32 %v4006, %v1565
    %v4691 = vmul.f32 %v4007, %v1565
    %v4692 = vmul.f32 %v4008, %v1565
    %v4693 = vmul.f32 %v4009, %v1565
    %v4694 = vmul.f32 %v4010, %v1565
    %v4695 = vmul.f32 %v4011, %v1565
    %v4696 = vmul.f32 %v4012, %v1565
    %v4697 = vmul.f32 %v4013, %v1565
    %4698 = vmatprep.subr.mxu0 0.0
    %4699 = vmatpush1.xpose.msra.mxu0 0.0
    %4700 = vmatprep.subr.mxu0 0.0
    %4701 = vmatpush1.xpose.msra.mxu0 0.0
    %4702 = vmatprep.subr.mxu0 0.0
    %4703 = vmatpush1.xpose.msra.mxu0 0.0
    %4704 = vmatprep.subr.mxu0 0.0
    %4705 = vmatpush1.xpose.msra.mxu0 0.0
    %4706 = vmatprep.subr.mxu0 0.0
    %4707 = vmatpush1.xpose.msra.mxu0 0.0
    %4708 = vmatprep.subr.mxu0 0.0
    %4709 = vmatpush1.xpose.msra.mxu0 0.0
    %4710 = vmatprep.subr.mxu0 0.0
    %4711 = vmatpush1.xpose.msra.mxu0 0.0
    %4712 = vmatprep.subr.mxu0 0.0
    %4713 = vmatpush1.xpose.msra.mxu0 0.0
    %4714 = vmatprep.subr.mxu0 0.0
    %4715 = vmatpush1.xpose.msra.mxu0 %v3939
    %4716 = vmatprep.subr.mxu0 0.0
    %4717 = vmatpush1.xpose.msra.mxu0 %v3935
    %4718 = vmatprep.subr.mxu0 0.0
    %4719 = vmatpush1.xpose.msra.mxu0 %v3929
    %4720 = vmatprep.subr.mxu0 0.0
    %4721 = vmatpush1.xpose.msra.mxu0 %v3925
    %4722 = vmatprep.subr.mxu0 0.0
    %4723 = vmatpush1.xpose.msra.mxu0 %v3919
    %4724 = vmatprep.subr.mxu0 0.0
    %4725 = vmatpush1.xpose.msra.mxu0 %v3915
    %4726 = vmatprep.subr.mxu0 0.0
    %4727 = vmatpush1.xpose.msra.mxu0 %v3909
    %4728 = vmatprep.subr.mxu0 0.0
    %4729 = vmatpush1.xpose.msra.mxu0 %v3905
    %4730 = vmatprep.subr.mxu0 0.0
    %4731 = vmatpush2.xpose.msra.mxu0 0.0
    %4732 = vmatprep.subr.mxu0 0.0
    %4733 = vmatpush2.xpose.msra.mxu0 0.0
    %4734 = vmatprep.subr.mxu0 0.0
    %4735 = vmatpush2.xpose.msra.mxu0 0.0
    %4736 = vmatprep.subr.mxu0 0.0
    %4737 = vmatpush2.xpose.msra.mxu0 0.0
    %4738 = vmatprep.subr.mxu0 0.0
    %4739 = vmatpush2.xpose.msra.mxu0 0.0
    %4740 = vmatprep.subr.mxu0 0.0
    %4741 = vmatpush2.xpose.msra.mxu0 0.0
    %4742 = vmatprep.subr.mxu0 0.0
    %4743 = vmatpush2.xpose.msra.mxu0 0.0
    %4744 = vmatprep.subr.mxu0 0.0
    %4745 = vmatpush2.xpose.msra.mxu0 0.0
    %4746 = vmatprep.subr.mxu0 0.0
    %4747 = vmatpush2.xpose.msra.mxu0 0.0
    %4748 = vmatprep.subr.mxu0 0.0
    %4749 = vmatpush2.xpose.msra.mxu0 0.0
    %4750 = vmatprep.subr.mxu0 0.0
    %4751 = vmatpush2.xpose.msra.mxu0 0.0
    %4752 = vmatprep.subr.mxu0 0.0
    %4753 = vmatpush2.xpose.msra.mxu0 0.0
    %4754 = vmatprep.subr.mxu0 0.0
    %4755 = vmatpush2.xpose.msra.mxu0 0.0
    %4756 = vmatprep.subr.mxu0 0.0
    %4757 = vmatpush2.xpose.msra.mxu0 0.0
    %4758 = vmatprep.subr.mxu0 0.0
    %4759 = vmatpush2.xpose.msra.mxu0 0.0
    %4760 = vmatprep.subr.mxu0 0.0
    %4761 = vmatpush2.xpose.msra.mxu0 0.0
    %4762 = vmatprep.mubr.f32.mxu0 0.0
    %4763 = vmatmul.mubr.f32.gmra.mxu0 %v4690
    %v4764 = vpop.f32.mrf.mxu0
    %v4765 = vadd.f32 %v421, %v4764
    %v4766 = vpop.f32.mrf.mxu0
    %4767 = vmatprep.mubr.f32.mxu0 0.0
    %4768 = vmatmul.mubr.f32.gmra.mxu0 %v4691
    %v4769 = vpop.f32.mrf.mxu0
    %v4770 = vadd.f32 %v422, %v4769
    %v4771 = vpop.f32.mrf.mxu0
    %4772 = vmatprep.mubr.f32.mxu0 0.0
    %4773 = vmatmul.mubr.f32.gmra.mxu0 %v4692
    %v4774 = vpop.f32.mrf.mxu0
    %v4775 = vadd.f32 %v423, %v4774
    %v4776 = vpop.f32.mrf.mxu0
    %4777 = vmatprep.mubr.f32.mxu0 0.0
    %4778 = vmatmul.mubr.f32.gmra.mxu0 %v4693
    %v4779 = vpop.f32.mrf.mxu0
    %v4780 = vadd.f32 %v424, %v4779
    %v4781 = vpop.f32.mrf.mxu0
    %4782 = vmatprep.mubr.f32.mxu0 0.0
    %4783 = vmatmul.mubr.f32.gmra.mxu0 %v4694
    %v4784 = vpop.f32.mrf.mxu0
    %v4785 = vadd.f32 %v425, %v4784
    %v4786 = vpop.f32.mrf.mxu0
    %4787 = vmatprep.mubr.f32.mxu0 0.0
    %4788 = vmatmul.mubr.f32.gmra.mxu0 %v4695
    %v4789 = vpop.f32.mrf.mxu0
    %v4790 = vadd.f32 %v426, %v4789
    %v4791 = vpop.f32.mrf.mxu0
    %4792 = vmatprep.mubr.f32.mxu0 0.0
    %4793 = vmatmul.mubr.f32.gmra.mxu0 %v4696
    %v4794 = vpop.f32.mrf.mxu0
    %v4795 = vadd.f32 %v427, %v4794
    %v4796 = vpop.f32.mrf.mxu0
    %4797 = vmatprep.mubr.f32.mxu0 0.0
    %4798 = vmatmul.mubr.f32.gmra.mxu0 %v4697
    %v4799 = vpop.f32.mrf.mxu0
    %v4800 = vadd.f32 %v428, %v4799
    %v4801 = vpop.f32.mrf.mxu0
    %4802 = vdwg.mxu0
    %v4803 = vsel %vm224, %v4765, -inf
    %4804 = vmax.xlane.f32.xlu0 %v4803
    %v4805 = vpop.xlane.xlu0 %4804
    %v4806 = vsel %vm224, %v4770, -inf
    %4807 = vmax.xlane.f32.xlu0 %v4806
    %v4808 = vpop.xlane.xlu0 %4807
    %v4809 = vsel %vm224, %v4775, -inf
    %4810 = vmax.xlane.f32.xlu0 %v4809
    %v4811 = vpop.xlane.xlu0 %4810
    %v4812 = vsel %vm224, %v4780, -inf
    %4813 = vmax.xlane.f32.xlu0 %v4812
    %v4814 = vpop.xlane.xlu0 %4813
    %v4815 = vsel %vm224, %v4785, -inf
    %4816 = vmax.xlane.f32.xlu0 %v4815
    %v4817 = vpop.xlane.xlu0 %4816
    %v4818 = vsel %vm224, %v4790, -inf
    %4819 = vmax.xlane.f32.xlu0 %v4818
    %v4820 = vpop.xlane.xlu0 %4819
    %v4821 = vsel %vm224, %v4795, -inf
    %4822 = vmax.xlane.f32.xlu0 %v4821
    %v4823 = vpop.xlane.xlu0 %4822
    %v4824 = vsel %vm224, %v4800, -inf
    %4825 = vmax.xlane.f32.xlu0 %v4824
    %v4826 = vpop.xlane.xlu0 %4825
    %v4827 = vsub.f32 %v4765, %v4805
    %v4828 = vsub.f32 %v4770, %v4808
    %v4829 = vsub.f32 %v4775, %v4811
    %v4830 = vsub.f32 %v4780, %v4814
    %v4831 = vsub.f32 %v4785, %v4817
    %v4832 = vsub.f32 %v4790, %v4820
    %v4833 = vsub.f32 %v4795, %v4823
    %v4834 = vsub.f32 %v4800, %v4826
    %v4835 = vmul.f32 %v4827, 1.442695
    %v4836 = vpow.pop %v4835
    %v4837 = vmul.f32 %v4828, 1.442695
    %v4838 = vpow.pop %v4837
    %v4839 = vmul.f32 %v4829, 1.442695
    %v4840 = vpow.pop %v4839
    %v4841 = vmul.f32 %v4830, 1.442695
    %v4842 = vpow.pop %v4841
    %v4843 = vmul.f32 %v4831, 1.442695
    %v4844 = vpow.pop %v4843
    %v4845 = vmul.f32 %v4832, 1.442695
    %v4846 = vpow.pop %v4845
    %v4847 = vmul.f32 %v4833, 1.442695
    %v4848 = vpow.pop %v4847
    %v4849 = vmul.f32 %v4834, 1.442695
    %v4850 = vpow.pop %v4849
    %v4851 = vsel %vm224, %v4836, 0.0
    %4852 = vadd.xlane.f32.xlu0 %v4851
    %v4853 = vpop.xlane.xlu0 %4852
    %v4854 = vsel %vm224, %v4838, 0.0
    %4855 = vadd.xlane.f32.xlu0 %v4854
    %v4856 = vpop.xlane.xlu0 %4855
    %v4857 = vsel %vm224, %v4840, 0.0
    %4858 = vadd.xlane.f32.xlu0 %v4857
    %v4859 = vpop.xlane.xlu0 %4858
    %v4860 = vsel %vm224, %v4842, 0.0
    %4861 = vadd.xlane.f32.xlu0 %v4860
    %v4862 = vpop.xlane.xlu0 %4861
    %v4863 = vsel %vm224, %v4844, 0.0
    %4864 = vadd.xlane.f32.xlu0 %v4863
    %v4865 = vpop.xlane.xlu0 %4864
    %v4866 = vsel %vm224, %v4846, 0.0
    %4867 = vadd.xlane.f32.xlu0 %v4866
    %v4868 = vpop.xlane.xlu0 %4867
    %v4869 = vsel %vm224, %v4848, 0.0
    %4870 = vadd.xlane.f32.xlu0 %v4869
    %v4871 = vpop.xlane.xlu0 %4870
    %v4872 = vsel %vm224, %v4850, 0.0
    %4873 = vadd.xlane.f32.xlu0 %v4872
    %v4874 = vpop.xlane.xlu0 %4873
    %v4875 = vrcp.pop %v4853
    %v4876 = vrcp.pop %v4856
    %v4877 = vrcp.pop %v4859
    %v4878 = vrcp.pop %v4862
    %v4879 = vrcp.pop %v4865
    %v4880 = vrcp.pop %v4868
    %v4881 = vrcp.pop %v4871
    %v4882 = vrcp.pop %v4874
    %v4883 = vmul.f32 %v4836, %v4875
    %v4884 = vmul.f32 %v4838, %v4876
    %v4885 = vmul.f32 %v4840, %v4877
    %v4886 = vmul.f32 %v4842, %v4878
    %v4887 = vmul.f32 %v4844, %v4879
    %v4888 = vmul.f32 %v4846, %v4880
    %v4889 = vmul.f32 %v4848, %v4881
    %v4890 = vmul.f32 %v4850, %v4882
    %v4891 = vmul.f32 %v3976, %v1565
    %v4892 = vmul.f32 %v3979, %v1565
    %v4893 = vmul.f32 %v3984, %v1565
    %v4894 = vmul.f32 %v3987, %v1565
    %v4895 = vmul.f32 %v3992, %v1565
    %v4896 = vmul.f32 %v3995, %v1565
    %v4897 = vmul.f32 %v4000, %v1565
    %v4898 = vmul.f32 %v4003, %v1565
    %v4900 = vsel %vm224, %v4883, 0
    %v4903 = vsel %vm224, %v4884, 0
    %v4906 = vsel %vm224, %v4885, 0
    %v4909 = vsel %vm224, %v4886, 0
    %v4912 = vsel %vm224, %v4887, 0
    %v4915 = vsel %vm224, %v4888, 0
    %v4918 = vsel %vm224, %v4889, 0
    %v4921 = vsel %vm224, %v4890, 0
    %4923 = vmatprep.subr.mxu0 0.0
    %4924 = vmatpush1.msra.mxu0 0.0
    %4925 = vmatprep.subr.mxu0 0.0
    %4926 = vmatpush1.msra.mxu0 0.0
    %4927 = vmatprep.subr.mxu0 0.0
    %4928 = vmatpush1.msra.mxu0 0.0
    %4929 = vmatprep.subr.mxu0 0.0
    %4930 = vmatpush1.msra.mxu0 0.0
    %4931 = vmatprep.subr.mxu0 0.0
    %4932 = vmatpush1.msra.mxu0 0.0
    %4933 = vmatprep.subr.mxu0 0.0
    %4934 = vmatpush1.msra.mxu0 0.0
    %4935 = vmatprep.subr.mxu0 0.0
    %4936 = vmatpush1.msra.mxu0 0.0
    %4937 = vmatprep.subr.mxu0 0.0
    %4938 = vmatpush1.msra.mxu0 0.0
    %4939 = vmatprep.subr.mxu0 0.0
    %4940 = vmatpush1.msra.mxu0 %v4898
    %4941 = vmatprep.subr.mxu0 0.0
    %4942 = vmatpush1.msra.mxu0 %v4897
    %4943 = vmatprep.subr.mxu0 0.0
    %4944 = vmatpush1.msra.mxu0 %v4896
    %4945 = vmatprep.subr.mxu0 0.0
    %4946 = vmatpush1.msra.mxu0 %v4895
    %4947 = vmatprep.subr.mxu0 0.0
    %4948 = vmatpush1.msra.mxu0 %v4894
    %4949 = vmatprep.subr.mxu0 0.0
    %4950 = vmatpush1.msra.mxu0 %v4893
    %4951 = vmatprep.subr.mxu0 0.0
    %4952 = vmatpush1.msra.mxu0 %v4892
    %4953 = vmatprep.subr.mxu0 0.0
    %4954 = vmatpush1.msra.mxu0 %v4891
    %4955 = vmatprep.subr.mxu0 0.0
    %4956 = vmatpush2.msra.mxu0 0.0
    %4957 = vmatprep.subr.mxu0 0.0
    %4958 = vmatpush2.msra.mxu0 0.0
    %4959 = vmatprep.subr.mxu0 0.0
    %4960 = vmatpush2.msra.mxu0 0.0
    %4961 = vmatprep.subr.mxu0 0.0
    %4962 = vmatpush2.msra.mxu0 0.0
    %4963 = vmatprep.subr.mxu0 0.0
    %4964 = vmatpush2.msra.mxu0 0.0
    %4965 = vmatprep.subr.mxu0 0.0
    %4966 = vmatpush2.msra.mxu0 0.0
    %4967 = vmatprep.subr.mxu0 0.0
    %4968 = vmatpush2.msra.mxu0 0.0
    %4969 = vmatprep.subr.mxu0 0.0
    %4970 = vmatpush2.msra.mxu0 0.0
    %4971 = vmatprep.subr.mxu0 0.0
    %4972 = vmatpush2.msra.mxu0 0.0
    %4973 = vmatprep.subr.mxu0 0.0
    %4974 = vmatpush2.msra.mxu0 0.0
    %4975 = vmatprep.subr.mxu0 0.0
    %4976 = vmatpush2.msra.mxu0 0.0
    %4977 = vmatprep.subr.mxu0 0.0
    %4978 = vmatpush2.msra.mxu0 0.0
    %4979 = vmatprep.subr.mxu0 0.0
    %4980 = vmatpush2.msra.mxu0 0.0
    %4981 = vmatprep.subr.mxu0 0.0
    %4982 = vmatpush2.msra.mxu0 0.0
    %4983 = vmatprep.subr.mxu0 0.0
    %4984 = vmatpush2.msra.mxu0 0.0
    %4985 = vmatprep.subr.mxu0 0.0
    %4986 = vmatpush2.msra.mxu0 0.0
    %4987 = vmatprep.mubr.f32.mxu0 0.0
    %4988 = vmatmul.mubr.f32.gmra.mxu0 %v4900
    %v4989 = vpop.f32.mrf.mxu0
    %v4990 = vadd.f32 0.0, %v4989
    %v4991 = vpop.f32.mrf.mxu0
    %4992 = vmatprep.mubr.f32.mxu0 0.0
    %4993 = vmatmul.mubr.f32.gmra.mxu0 %v4903
    %v4994 = vpop.f32.mrf.mxu0
    %v4995 = vadd.f32 0.0, %v4994
    %v4996 = vpop.f32.mrf.mxu0
    %4997 = vmatprep.mubr.f32.mxu0 0.0
    %4998 = vmatmul.mubr.f32.gmra.mxu0 %v4906
    %v4999 = vpop.f32.mrf.mxu0
    %v5000 = vadd.f32 0.0, %v4999
    %v5001 = vpop.f32.mrf.mxu0
    %5002 = vmatprep.mubr.f32.mxu0 0.0
    %5003 = vmatmul.mubr.f32.gmra.mxu0 %v4909
    %v5004 = vpop.f32.mrf.mxu0
    %v5005 = vadd.f32 0.0, %v5004
    %v5006 = vpop.f32.mrf.mxu0
    %5007 = vmatprep.mubr.f32.mxu0 0.0
    %5008 = vmatmul.mubr.f32.gmra.mxu0 %v4912
    %v5009 = vpop.f32.mrf.mxu0
    %v5010 = vadd.f32 0.0, %v5009
    %v5011 = vpop.f32.mrf.mxu0
    %5012 = vmatprep.mubr.f32.mxu0 0.0
    %5013 = vmatmul.mubr.f32.gmra.mxu0 %v4915
    %v5014 = vpop.f32.mrf.mxu0
    %v5015 = vadd.f32 0.0, %v5014
    %v5016 = vpop.f32.mrf.mxu0
    %5017 = vmatprep.mubr.f32.mxu0 0.0
    %5018 = vmatmul.mubr.f32.gmra.mxu0 %v4918
    %v5019 = vpop.f32.mrf.mxu0
    %v5020 = vadd.f32 0.0, %v5019
    %v5021 = vpop.f32.mrf.mxu0
    %5022 = vmatprep.mubr.f32.mxu0 0.0
    %5023 = vmatmul.mubr.f32.gmra.mxu0 %v4921
    %v5024 = vpop.f32.mrf.mxu0
    %v5025 = vadd.f32 0.0, %v5024
    %v5026 = vpop.f32.mrf.mxu0
    %5027 = vdwg.mxu0
    %v5028 = vadd.f32 %v4652, %v4990
    %v5029 = vadd.f32 %v4657, %v4995
    %v5030 = vadd.f32 %v4662, %v5000
    %v5031 = vadd.f32 %v4667, %v5005
    %v5032 = vadd.f32 %v4672, %v5010
    %v5033 = vadd.f32 %v4677, %v5015
    %v5034 = vadd.f32 %v4682, %v5020
    %v5035 = vadd.f32 %v4687, %v5025
    %v5036 = vmul.f32 %v4006, %v1915
    %v5037 = vmul.f32 %v4007, %v1915
    %v5038 = vmul.f32 %v4008, %v1915
    %v5039 = vmul.f32 %v4009, %v1915
    %v5040 = vmul.f32 %v4010, %v1915
    %v5041 = vmul.f32 %v4011, %v1915
    %v5042 = vmul.f32 %v4012, %v1915
    %v5043 = vmul.f32 %v4013, %v1915
    %5044 = vmatprep.subr.mxu0 0.0
    %5045 = vmatpush1.xpose.msra.mxu0 0.0
    %5046 = vmatprep.subr.mxu0 0.0
    %5047 = vmatpush1.xpose.msra.mxu0 0.0
    %5048 = vmatprep.subr.mxu0 0.0
    %5049 = vmatpush1.xpose.msra.mxu0 0.0
    %5050 = vmatprep.subr.mxu0 0.0
    %5051 = vmatpush1.xpose.msra.mxu0 0.0
    %5052 = vmatprep.subr.mxu0 0.0
    %5053 = vmatpush1.xpose.msra.mxu0 0.0
    %5054 = vmatprep.subr.mxu0 0.0
    %5055 = vmatpush1.xpose.msra.mxu0 0.0
    %5056 = vmatprep.subr.mxu0 0.0
    %5057 = vmatpush1.xpose.msra.mxu0 0.0
    %5058 = vmatprep.subr.mxu0 0.0
    %5059 = vmatpush1.xpose.msra.mxu0 0.0
    %5060 = vmatprep.subr.mxu0 0.0
    %5061 = vmatpush1.xpose.msra.mxu0 %v3939
    %5062 = vmatprep.subr.mxu0 0.0
    %5063 = vmatpush1.xpose.msra.mxu0 %v3935
    %5064 = vmatprep.subr.mxu0 0.0
    %5065 = vmatpush1.xpose.msra.mxu0 %v3929
    %5066 = vmatprep.subr.mxu0 0.0
    %5067 = vmatpush1.xpose.msra.mxu0 %v3925
    %5068 = vmatprep.subr.mxu0 0.0
    %5069 = vmatpush1.xpose.msra.mxu0 %v3919
    %5070 = vmatprep.subr.mxu0 0.0
    %5071 = vmatpush1.xpose.msra.mxu0 %v3915
    %5072 = vmatprep.subr.mxu0 0.0
    %5073 = vmatpush1.xpose.msra.mxu0 %v3909
    %5074 = vmatprep.subr.mxu0 0.0
    %5075 = vmatpush1.xpose.msra.mxu0 %v3905
    %5076 = vmatprep.subr.mxu0 0.0
    %5077 = vmatpush2.xpose.msra.mxu0 0.0
    %5078 = vmatprep.subr.mxu0 0.0
    %5079 = vmatpush2.xpose.msra.mxu0 0.0
    %5080 = vmatprep.subr.mxu0 0.0
    %5081 = vmatpush2.xpose.msra.mxu0 0.0
    %5082 = vmatprep.subr.mxu0 0.0
    %5083 = vmatpush2.xpose.msra.mxu0 0.0
    %5084 = vmatprep.subr.mxu0 0.0
    %5085 = vmatpush2.xpose.msra.mxu0 0.0
    %5086 = vmatprep.subr.mxu0 0.0
    %5087 = vmatpush2.xpose.msra.mxu0 0.0
    %5088 = vmatprep.subr.mxu0 0.0
    %5089 = vmatpush2.xpose.msra.mxu0 0.0
    %5090 = vmatprep.subr.mxu0 0.0
    %5091 = vmatpush2.xpose.msra.mxu0 0.0
    %5092 = vmatprep.subr.mxu0 0.0
    %5093 = vmatpush2.xpose.msra.mxu0 0.0
    %5094 = vmatprep.subr.mxu0 0.0
    %5095 = vmatpush2.xpose.msra.mxu0 0.0
    %5096 = vmatprep.subr.mxu0 0.0
    %5097 = vmatpush2.xpose.msra.mxu0 0.0
    %5098 = vmatprep.subr.mxu0 0.0
    %5099 = vmatpush2.xpose.msra.mxu0 0.0
    %5100 = vmatprep.subr.mxu0 0.0
    %5101 = vmatpush2.xpose.msra.mxu0 0.0
    %5102 = vmatprep.subr.mxu0 0.0
    %5103 = vmatpush2.xpose.msra.mxu0 0.0
    %5104 = vmatprep.subr.mxu0 0.0
    %5105 = vmatpush2.xpose.msra.mxu0 0.0
    %5106 = vmatprep.subr.mxu0 0.0
    %5107 = vmatpush2.xpose.msra.mxu0 0.0
    %5108 = vmatprep.mubr.f32.mxu0 0.0
    %5109 = vmatmul.mubr.f32.gmra.mxu0 %v5036
    %v5110 = vpop.f32.mrf.mxu0
    %v5111 = vadd.f32 %v421, %v5110
    %v5112 = vpop.f32.mrf.mxu0
    %5113 = vmatprep.mubr.f32.mxu0 0.0
    %5114 = vmatmul.mubr.f32.gmra.mxu0 %v5037
    %v5115 = vpop.f32.mrf.mxu0
    %v5116 = vadd.f32 %v422, %v5115
    %v5117 = vpop.f32.mrf.mxu0
    %5118 = vmatprep.mubr.f32.mxu0 0.0
    %5119 = vmatmul.mubr.f32.gmra.mxu0 %v5038
    %v5120 = vpop.f32.mrf.mxu0
    %v5121 = vadd.f32 %v423, %v5120
    %v5122 = vpop.f32.mrf.mxu0
    %5123 = vmatprep.mubr.f32.mxu0 0.0
    %5124 = vmatmul.mubr.f32.gmra.mxu0 %v5039
    %v5125 = vpop.f32.mrf.mxu0
    %v5126 = vadd.f32 %v424, %v5125
    %v5127 = vpop.f32.mrf.mxu0
    %5128 = vmatprep.mubr.f32.mxu0 0.0
    %5129 = vmatmul.mubr.f32.gmra.mxu0 %v5040
    %v5130 = vpop.f32.mrf.mxu0
    %v5131 = vadd.f32 %v425, %v5130
    %v5132 = vpop.f32.mrf.mxu0
    %5133 = vmatprep.mubr.f32.mxu0 0.0
    %5134 = vmatmul.mubr.f32.gmra.mxu0 %v5041
    %v5135 = vpop.f32.mrf.mxu0
    %v5136 = vadd.f32 %v426, %v5135
    %v5137 = vpop.f32.mrf.mxu0
    %5138 = vmatprep.mubr.f32.mxu0 0.0
    %5139 = vmatmul.mubr.f32.gmra.mxu0 %v5042
    %v5140 = vpop.f32.mrf.mxu0
    %v5141 = vadd.f32 %v427, %v5140
    %v5142 = vpop.f32.mrf.mxu0
    %5143 = vmatprep.mubr.f32.mxu0 0.0
    %5144 = vmatmul.mubr.f32.gmra.mxu0 %v5043
    %v5145 = vpop.f32.mrf.mxu0
    %v5146 = vadd.f32 %v428, %v5145
    %v5147 = vpop.f32.mrf.mxu0
    %5148 = vdwg.mxu0
    %v5149 = vsel %vm224, %v5111, -inf
    %5150 = vmax.xlane.f32.xlu0 %v5149
    %v5151 = vpop.xlane.xlu0 %5150
    %v5152 = vsel %vm224, %v5116, -inf
    %5153 = vmax.xlane.f32.xlu0 %v5152
    %v5154 = vpop.xlane.xlu0 %5153
    %v5155 = vsel %vm224, %v5121, -inf
    %5156 = vmax.xlane.f32.xlu0 %v5155
    %v5157 = vpop.xlane.xlu0 %5156
    %v5158 = vsel %vm224, %v5126, -inf
    %5159 = vmax.xlane.f32.xlu0 %v5158
    %v5160 = vpop.xlane.xlu0 %5159
    %v5161 = vsel %vm224, %v5131, -inf
    %5162 = vmax.xlane.f32.xlu0 %v5161
    %v5163 = vpop.xlane.xlu0 %5162
    %v5164 = vsel %vm224, %v5136, -inf
    %5165 = vmax.xlane.f32.xlu0 %v5164
    %v5166 = vpop.xlane.xlu0 %5165
    %v5167 = vsel %vm224, %v5141, -inf
    %5168 = vmax.xlane.f32.xlu0 %v5167
    %v5169 = vpop.xlane.xlu0 %5168
    %v5170 = vsel %vm224, %v5146, -inf
    %5171 = vmax.xlane.f32.xlu0 %v5170
    %v5172 = vpop.xlane.xlu0 %5171
    %v5173 = vsub.f32 %v5111, %v5151
    %v5174 = vsub.f32 %v5116, %v5154
    %v5175 = vsub.f32 %v5121, %v5157
    %v5176 = vsub.f32 %v5126, %v5160
    %v5177 = vsub.f32 %v5131, %v5163
    %v5178 = vsub.f32 %v5136, %v5166
    %v5179 = vsub.f32 %v5141, %v5169
    %v5180 = vsub.f32 %v5146, %v5172
    %v5181 = vmul.f32 %v5173, 1.442695
    %v5182 = vpow.pop %v5181
    %v5183 = vmul.f32 %v5174, 1.442695
    %v5184 = vpow.pop %v5183
    %v5185 = vmul.f32 %v5175, 1.442695
    %v5186 = vpow.pop %v5185
    %v5187 = vmul.f32 %v5176, 1.442695
    %v5188 = vpow.pop %v5187
    %v5189 = vmul.f32 %v5177, 1.442695
    %v5190 = vpow.pop %v5189
    %v5191 = vmul.f32 %v5178, 1.442695
    %v5192 = vpow.pop %v5191
    %v5193 = vmul.f32 %v5179, 1.442695
    %v5194 = vpow.pop %v5193
    %v5195 = vmul.f32 %v5180, 1.442695
    %v5196 = vpow.pop %v5195
    %v5197 = vsel %vm224, %v5182, 0.0
    %5198 = vadd.xlane.f32.xlu0 %v5197
    %v5199 = vpop.xlane.xlu0 %5198
    %v5200 = vsel %vm224, %v5184, 0.0
    %5201 = vadd.xlane.f32.xlu0 %v5200
    %v5202 = vpop.xlane.xlu0 %5201
    %v5203 = vsel %vm224, %v5186, 0.0
    %5204 = vadd.xlane.f32.xlu0 %v5203
    %v5205 = vpop.xlane.xlu0 %5204
    %v5206 = vsel %vm224, %v5188, 0.0
    %5207 = vadd.xlane.f32.xlu0 %v5206
    %v5208 = vpop.xlane.xlu0 %5207
    %v5209 = vsel %vm224, %v5190, 0.0
    %5210 = vadd.xlane.f32.xlu0 %v5209
    %v5211 = vpop.xlane.xlu0 %5210
    %v5212 = vsel %vm224, %v5192, 0.0
    %5213 = vadd.xlane.f32.xlu0 %v5212
    %v5214 = vpop.xlane.xlu0 %5213
    %v5215 = vsel %vm224, %v5194, 0.0
    %5216 = vadd.xlane.f32.xlu0 %v5215
    %v5217 = vpop.xlane.xlu0 %5216
    %v5218 = vsel %vm224, %v5196, 0.0
    %5219 = vadd.xlane.f32.xlu0 %v5218
    %v5220 = vpop.xlane.xlu0 %5219
    %v5221 = vrcp.pop %v5199
    %v5222 = vrcp.pop %v5202
    %v5223 = vrcp.pop %v5205
    %v5224 = vrcp.pop %v5208
    %v5225 = vrcp.pop %v5211
    %v5226 = vrcp.pop %v5214
    %v5227 = vrcp.pop %v5217
    %v5228 = vrcp.pop %v5220
    %v5229 = vmul.f32 %v5182, %v5221
    %v5230 = vmul.f32 %v5184, %v5222
    %v5231 = vmul.f32 %v5186, %v5223
    %v5232 = vmul.f32 %v5188, %v5224
    %v5233 = vmul.f32 %v5190, %v5225
    %v5234 = vmul.f32 %v5192, %v5226
    %v5235 = vmul.f32 %v5194, %v5227
    %v5236 = vmul.f32 %v5196, %v5228
    %v5237 = vmul.f32 %v3976, %v1915
    %v5238 = vmul.f32 %v3979, %v1915
    %v5239 = vmul.f32 %v3984, %v1915
    %v5240 = vmul.f32 %v3987, %v1915
    %v5241 = vmul.f32 %v3992, %v1915
    %v5242 = vmul.f32 %v3995, %v1915
    %v5243 = vmul.f32 %v4000, %v1915
    %v5244 = vmul.f32 %v4003, %v1915
    %v5246 = vsel %vm224, %v5229, 0
    %v5249 = vsel %vm224, %v5230, 0
    %v5252 = vsel %vm224, %v5231, 0
    %v5255 = vsel %vm224, %v5232, 0
    %v5258 = vsel %vm224, %v5233, 0
    %v5261 = vsel %vm224, %v5234, 0
    %v5264 = vsel %vm224, %v5235, 0
    %v5267 = vsel %vm224, %v5236, 0
    %5269 = vmatprep.subr.mxu0 0.0
    %5270 = vmatpush1.msra.mxu0 0.0
    %5271 = vmatprep.subr.mxu0 0.0
    %5272 = vmatpush1.msra.mxu0 0.0
    %5273 = vmatprep.subr.mxu0 0.0
    %5274 = vmatpush1.msra.mxu0 0.0
    %5275 = vmatprep.subr.mxu0 0.0
    %5276 = vmatpush1.msra.mxu0 0.0
    %5277 = vmatprep.subr.mxu0 0.0
    %5278 = vmatpush1.msra.mxu0 0.0
    %5279 = vmatprep.subr.mxu0 0.0
    %5280 = vmatpush1.msra.mxu0 0.0
    %5281 = vmatprep.subr.mxu0 0.0
    %5282 = vmatpush1.msra.mxu0 0.0
    %5283 = vmatprep.subr.mxu0 0.0
    %5284 = vmatpush1.msra.mxu0 0.0
    %5285 = vmatprep.subr.mxu0 0.0
    %5286 = vmatpush1.msra.mxu0 %v5244
    %5287 = vmatprep.subr.mxu0 0.0
    %5288 = vmatpush1.msra.mxu0 %v5243
    %5289 = vmatprep.subr.mxu0 0.0
    %5290 = vmatpush1.msra.mxu0 %v5242
    %5291 = vmatprep.subr.mxu0 0.0
    %5292 = vmatpush1.msra.mxu0 %v5241
    %5293 = vmatprep.subr.mxu0 0.0
    %5294 = vmatpush1.msra.mxu0 %v5240
    %5295 = vmatprep.subr.mxu0 0.0
    %5296 = vmatpush1.msra.mxu0 %v5239
    %5297 = vmatprep.subr.mxu0 0.0
    %5298 = vmatpush1.msra.mxu0 %v5238
    %5299 = vmatprep.subr.mxu0 0.0
    %5300 = vmatpush1.msra.mxu0 %v5237
    %5301 = vmatprep.subr.mxu0 0.0
    %5302 = vmatpush2.msra.mxu0 0.0
    %5303 = vmatprep.subr.mxu0 0.0
    %5304 = vmatpush2.msra.mxu0 0.0
    %5305 = vmatprep.subr.mxu0 0.0
    %5306 = vmatpush2.msra.mxu0 0.0
    %5307 = vmatprep.subr.mxu0 0.0
    %5308 = vmatpush2.msra.mxu0 0.0
    %5309 = vmatprep.subr.mxu0 0.0
    %5310 = vmatpush2.msra.mxu0 0.0
    %5311 = vmatprep.subr.mxu0 0.0
    %5312 = vmatpush2.msra.mxu0 0.0
    %5313 = vmatprep.subr.mxu0 0.0
    %5314 = vmatpush2.msra.mxu0 0.0
    %5315 = vmatprep.subr.mxu0 0.0
    %5316 = vmatpush2.msra.mxu0 0.0
    %5317 = vmatprep.subr.mxu0 0.0
    %5318 = vmatpush2.msra.mxu0 0.0
    %5319 = vmatprep.subr.mxu0 0.0
    %5320 = vmatpush2.msra.mxu0 0.0
    %5321 = vmatprep.subr.mxu0 0.0
    %5322 = vmatpush2.msra.mxu0 0.0
    %5323 = vmatprep.subr.mxu0 0.0
    %5324 = vmatpush2.msra.mxu0 0.0
    %5325 = vmatprep.subr.mxu0 0.0
    %5326 = vmatpush2.msra.mxu0 0.0
    %5327 = vmatprep.subr.mxu0 0.0
    %5328 = vmatpush2.msra.mxu0 0.0
    %5329 = vmatprep.subr.mxu0 0.0
    %5330 = vmatpush2.msra.mxu0 0.0
    %5331 = vmatprep.subr.mxu0 0.0
    %5332 = vmatpush2.msra.mxu0 0.0
    %5333 = vmatprep.mubr.f32.mxu0 0.0
    %5334 = vmatmul.mubr.f32.gmra.mxu0 %v5246
    %v5335 = vpop.f32.mrf.mxu0
    %v5336 = vadd.f32 0.0, %v5335
    %v5337 = vpop.f32.mrf.mxu0
    %5338 = vmatprep.mubr.f32.mxu0 0.0
    %5339 = vmatmul.mubr.f32.gmra.mxu0 %v5249
    %v5340 = vpop.f32.mrf.mxu0
    %v5341 = vadd.f32 0.0, %v5340
    %v5342 = vpop.f32.mrf.mxu0
    %5343 = vmatprep.mubr.f32.mxu0 0.0
    %5344 = vmatmul.mubr.f32.gmra.mxu0 %v5252
    %v5345 = vpop.f32.mrf.mxu0
    %v5346 = vadd.f32 0.0, %v5345
    %v5347 = vpop.f32.mrf.mxu0
    %5348 = vmatprep.mubr.f32.mxu0 0.0
    %5349 = vmatmul.mubr.f32.gmra.mxu0 %v5255
    %v5350 = vpop.f32.mrf.mxu0
    %v5351 = vadd.f32 0.0, %v5350
    %v5352 = vpop.f32.mrf.mxu0
    %5353 = vmatprep.mubr.f32.mxu0 0.0
    %5354 = vmatmul.mubr.f32.gmra.mxu0 %v5258
    %v5355 = vpop.f32.mrf.mxu0
    %v5356 = vadd.f32 0.0, %v5355
    %v5357 = vpop.f32.mrf.mxu0
    %5358 = vmatprep.mubr.f32.mxu0 0.0
    %5359 = vmatmul.mubr.f32.gmra.mxu0 %v5261
    %v5360 = vpop.f32.mrf.mxu0
    %v5361 = vadd.f32 0.0, %v5360
    %v5362 = vpop.f32.mrf.mxu0
    %5363 = vmatprep.mubr.f32.mxu0 0.0
    %5364 = vmatmul.mubr.f32.gmra.mxu0 %v5264
    %v5365 = vpop.f32.mrf.mxu0
    %v5366 = vadd.f32 0.0, %v5365
    %v5367 = vpop.f32.mrf.mxu0
    %5368 = vmatprep.mubr.f32.mxu0 0.0
    %5369 = vmatmul.mubr.f32.gmra.mxu0 %v5267
    %v5370 = vpop.f32.mrf.mxu0
    %v5371 = vadd.f32 0.0, %v5370
    %v5372 = vpop.f32.mrf.mxu0
    %5373 = vdwg.mxu0
    %v5374 = vadd.f32 %v5028, %v5336
    %v5375 = vadd.f32 %v5029, %v5341
    %v5376 = vadd.f32 %v5030, %v5346
    %v5377 = vadd.f32 %v5031, %v5351
    %v5378 = vadd.f32 %v5032, %v5356
    %v5379 = vadd.f32 %v5033, %v5361
    %v5380 = vadd.f32 %v5034, %v5366
    %v5381 = vadd.f32 %v5035, %v5371
    %s5382 = scalar_lea.vmem %s12, 64
    %v5383 = vld [vmem:[%s5382] sm:$0xf]
    %v5384 = vld [vmem:[%s5382 + $0x4] sm:$0xf]
    %v5385 = vld [vmem:[%s5382 + $0x8] sm:$0xf]
    %v5386 = vld [vmem:[%s5382 + $0xc] sm:$0xf]
    %v5387 = vld [vmem:[%s5382 + $0x10] sm:$0xf]
    %v5388 = vld [vmem:[%s5382 + $0x14] sm:$0xf]
    %v5389 = vld [vmem:[%s5382 + $0x18] sm:$0xf]
    %v5390 = vld [vmem:[%s5382 + $0x1c] sm:$0xf]
    %v5391 = vld [vmem:[%s5382 + $0x20] sm:$0xf]
    %v5392 = vld [vmem:[%s5382 + $0x24] sm:$0xf]
    %v5393 = vld [vmem:[%s5382 + $0x28] sm:$0xf]
    %v5394 = vld [vmem:[%s5382 + $0x2c] sm:$0xf]
    %v5395 = vld [vmem:[%s5382 + $0x30] sm:$0xf]
    %v5396 = vld [vmem:[%s5382 + $0x34] sm:$0xf]
    %v5397 = vld [vmem:[%s5382 + $0x38] sm:$0xf]
    %v5398 = vld [vmem:[%s5382 + $0x3c] sm:$0xf]
    %v5399 = vpack.c.bf16 %v5375, %v5374
    %v5400 = vpack.c.bf16 %v5377, %v5376
    %v5401 = vpack.c.bf16 %v5379, %v5378
    %v5402 = vpack.c.bf16 %v5381, %v5380
    %s5403 = scalar_lea.vmem %s13, 1
    %v5404 = vld [vmem:[%s5403] sm:$0x1]
    %v5406 = vlaneseq
    %v5407 = vshrl.u32 %v5406, 7
    %v5408 = vsub.s32 0, %v5407
    %v5409 = vrot.slane %v5404, %v5408
    %v5427 = vunpack.c.l.b16 %v5383
    %v5428 = vunpack.c.l.b16 %v5384
    %v5429 = vunpack.c.l.b16 %v5385
    %v5430 = vunpack.c.l.b16 %v5386
    %v5431 = vunpack.c.l.b16 %v5387
    %v5432 = vunpack.c.l.b16 %v5388
    %v5433 = vunpack.c.l.b16 %v5389
    %v5434 = vunpack.c.l.b16 %v5390
    %v5435 = vunpack.c.l.b16 %v5391
    %v5436 = vunpack.c.l.b16 %v5392
    %v5437 = vunpack.c.l.b16 %v5393
    %v5438 = vunpack.c.l.b16 %v5394
    %v5439 = vunpack.c.l.b16 %v5395
    %v5440 = vunpack.c.l.b16 %v5396
    %v5441 = vunpack.c.l.b16 %v5397
    %v5442 = vunpack.c.l.b16 %v5398
    %v5443 = vpack.c.b16 %v5428, %v5427
    %v5444 = vpack.c.b16 %v5430, %v5429
    %v5445 = vpack.c.b16 %v5432, %v5431
    %v5446 = vpack.c.b16 %v5434, %v5433
    %v5447 = vpack.c.b16 %v5436, %v5435
    %v5448 = vpack.c.b16 %v5438, %v5437
    %v5449 = vpack.c.b16 %v5440, %v5439
    %v5450 = vpack.c.b16 %v5442, %v5441
    %5459 = vmatprep.subr.bf16.mxu0 0
    %5460 = vmatpush1.bf16.msra.mxu0 %v5450
    %5461 = vmatprep.subr.bf16.mxu0 0
    %5462 = vmatpush1.bf16.msra.mxu0 %v5449
    %5463 = vmatprep.subr.bf16.mxu0 0
    %5464 = vmatpush1.bf16.msra.mxu0 %v5448
    %5465 = vmatprep.subr.bf16.mxu0 0
    %5466 = vmatpush1.bf16.msra.mxu0 %v5447
    %5467 = vmatprep.subr.bf16.mxu0 0
    %5468 = vmatpush1.bf16.msra.mxu0 %v5446
    %5469 = vmatprep.subr.bf16.mxu0 0
    %5470 = vmatpush1.bf16.msra.mxu0 %v5445
    %5471 = vmatprep.subr.bf16.mxu0 0
    %5472 = vmatpush1.bf16.msra.mxu0 %v5444
    %5473 = vmatprep.subr.bf16.mxu0 0
    %5474 = vmatpush1.bf16.msra.mxu0 %v5443
    %5475 = vmatprep.subr.bf16.mxu0 0
    %5476 = vmatpush2.bf16.msra.mxu0 0
    %5477 = vmatprep.subr.bf16.mxu0 0
    %5478 = vmatpush2.bf16.msra.mxu0 0
    %5479 = vmatprep.subr.bf16.mxu0 0
    %5480 = vmatpush2.bf16.msra.mxu0 0
    %5481 = vmatprep.subr.bf16.mxu0 0
    %5482 = vmatpush2.bf16.msra.mxu0 0
    %5483 = vmatprep.subr.bf16.mxu0 0
    %5484 = vmatpush2.bf16.msra.mxu0 0
    %5485 = vmatprep.subr.bf16.mxu0 0
    %5486 = vmatpush2.bf16.msra.mxu0 0
    %5487 = vmatprep.subr.bf16.mxu0 0
    %5488 = vmatpush2.bf16.msra.mxu0 0
    %5489 = vmatprep.subr.bf16.mxu0 0
    %5490 = vmatpush2.bf16.msra.mxu0 0
    %5491 = vmatprep.mubr.bf16.mxu0 0
    %5492 = vmatmul.mubr.bf16.gmra.mxu0 %v5399
    %v5493 = vpop.f32.mrf.mxu0
    %v5494 = vadd.f32 %v5409, %v5493
    %v5495 = vpop.f32.mrf.mxu0
    %v5496 = vpop.f32.mrf.mxu0
    %v5497 = vadd.f32 %v5409, %v5496
    %v5498 = vpop.f32.mrf.mxu0
    %5499 = vmatprep.mubr.bf16.mxu0 0
    %5500 = vmatmul.mubr.bf16.gmra.mxu0 %v5400
    %v5501 = vpop.f32.mrf.mxu0
    %v5502 = vadd.f32 %v5409, %v5501
    %v5503 = vpop.f32.mrf.mxu0
    %v5504 = vpop.f32.mrf.mxu0
    %v5505 = vadd.f32 %v5409, %v5504
    %v5506 = vpop.f32.mrf.mxu0
    %5507 = vmatprep.mubr.bf16.mxu0 0
    %5508 = vmatmul.mubr.bf16.gmra.mxu0 %v5401
    %v5509 = vpop.f32.mrf.mxu0
    %v5510 = vadd.f32 %v5409, %v5509
    %v5511 = vpop.f32.mrf.mxu0
    %v5512 = vpop.f32.mrf.mxu0
    %v5513 = vadd.f32 %v5409, %v5512
    %v5514 = vpop.f32.mrf.mxu0
    %5515 = vmatprep.mubr.bf16.mxu0 0
    %5516 = vmatmul.mubr.bf16.gmra.mxu0 %v5402
    %v5517 = vpop.f32.mrf.mxu0
    %v5518 = vadd.f32 %v5409, %v5517
    %v5519 = vpop.f32.mrf.mxu0
    %v5520 = vpop.f32.mrf.mxu0
    %v5521 = vadd.f32 %v5409, %v5520
    %v5522 = vpop.f32.mrf.mxu0
    %5523 = vdwg.mxu0
    %v5524 = vadd.f32 %v3557, %v5494
    %v5525 = vadd.f32 %v3558, %v5497
    %v5526 = vadd.f32 %v3559, %v5502
    %v5527 = vadd.f32 %v3560, %v5505
    %v5528 = vadd.f32 %v3561, %v5510
    %v5529 = vadd.f32 %v3562, %v5513
    %v5530 = vadd.f32 %v3563, %v5518
    %v5531 = vadd.f32 %v3564, %v5521
    %s5532 = scalar_lea.vmem %s14, 1
    %v5533 = vld [vmem:[%s5532] sm:$0x1]
    %s5534 = scalar_lea.vmem %s15, 1
    %v5535 = vld [vmem:[%s5534] sm:$0x1]
    %5536 = vadd.xlane.f32.xlu0 %v5524
    %v5537 = vpop.xlane.xlu0 %5536
    %5538 = vadd.xlane.f32.xlu0 %v5525
    %v5539 = vpop.xlane.xlu0 %5538
    %5540 = vadd.xlane.f32.xlu0 %v5526
    %v5541 = vpop.xlane.xlu0 %5540
    %5542 = vadd.xlane.f32.xlu0 %v5527
    %v5543 = vpop.xlane.xlu0 %5542
    %5544 = vadd.xlane.f32.xlu0 %v5528
    %v5545 = vpop.xlane.xlu0 %5544
    %5546 = vadd.xlane.f32.xlu0 %v5529
    %v5547 = vpop.xlane.xlu0 %5546
    %5548 = vadd.xlane.f32.xlu0 %v5530
    %v5549 = vpop.xlane.xlu0 %5548
    %5550 = vadd.xlane.f32.xlu0 %v5531
    %v5551 = vpop.xlane.xlu0 %5550
    %v5552 = vmul.f32 %v5537, %v320
    %v5553 = vmul.f32 %v5539, %v320
    %v5554 = vmul.f32 %v5541, %v320
    %v5555 = vmul.f32 %v5543, %v320
    %v5556 = vmul.f32 %v5545, %v320
    %v5557 = vmul.f32 %v5547, %v320
    %v5558 = vmul.f32 %v5549, %v320
    %v5559 = vmul.f32 %v5551, %v320
    %v5560 = vsub.f32 %v5524, %v5552
    %v5561 = vsub.f32 %v5525, %v5553
    %v5562 = vsub.f32 %v5526, %v5554
    %v5563 = vsub.f32 %v5527, %v5555
    %v5564 = vsub.f32 %v5528, %v5556
    %v5565 = vsub.f32 %v5529, %v5557
    %v5566 = vsub.f32 %v5530, %v5558
    %v5567 = vsub.f32 %v5531, %v5559
    %v5568 = vmul.f32 %v5560, %v5560
    %v5569 = vmul.f32 %v5561, %v5561
    %v5570 = vmul.f32 %v5562, %v5562
    %v5571 = vmul.f32 %v5563, %v5563
    %v5572 = vmul.f32 %v5564, %v5564
    %v5573 = vmul.f32 %v5565, %v5565
    %v5574 = vmul.f32 %v5566, %v5566
    %v5575 = vmul.f32 %v5567, %v5567
    %5576 = vadd.xlane.f32.xlu0 %v5568
    %v5577 = vpop.xlane.xlu0 %5576
    %5578 = vadd.xlane.f32.xlu0 %v5569
    %v5579 = vpop.xlane.xlu0 %5578
    %5580 = vadd.xlane.f32.xlu0 %v5570
    %v5581 = vpop.xlane.xlu0 %5580
    %5582 = vadd.xlane.f32.xlu0 %v5571
    %v5583 = vpop.xlane.xlu0 %5582
    %5584 = vadd.xlane.f32.xlu0 %v5572
    %v5585 = vpop.xlane.xlu0 %5584
    %5586 = vadd.xlane.f32.xlu0 %v5573
    %v5587 = vpop.xlane.xlu0 %5586
    %5588 = vadd.xlane.f32.xlu0 %v5574
    %v5589 = vpop.xlane.xlu0 %5588
    %5590 = vadd.xlane.f32.xlu0 %v5575
    %v5591 = vpop.xlane.xlu0 %5590
    %v5592 = vmul.f32 %v5577, %v320
    %v5593 = vmul.f32 %v5579, %v320
    %v5594 = vmul.f32 %v5581, %v320
    %v5595 = vmul.f32 %v5583, %v320
    %v5596 = vmul.f32 %v5585, %v320
    %v5597 = vmul.f32 %v5587, %v320
    %v5598 = vmul.f32 %v5589, %v320
    %v5599 = vmul.f32 %v5591, %v320
    %v5600 = vadd.f32 %v5592, 1e-05
    %v5601 = vadd.f32 %v5593, 1e-05
    %v5602 = vadd.f32 %v5594, 1e-05
    %v5603 = vadd.f32 %v5595, 1e-05
    %v5604 = vadd.f32 %v5596, 1e-05
    %v5605 = vadd.f32 %v5597, 1e-05
    %v5606 = vadd.f32 %v5598, 1e-05
    %v5607 = vadd.f32 %v5599, 1e-05
    %v5608 = vrsqrt.pop %v5600
    %v5609 = vrsqrt.pop %v5601
    %v5610 = vrsqrt.pop %v5602
    %v5611 = vrsqrt.pop %v5603
    %v5612 = vrsqrt.pop %v5604
    %v5613 = vrsqrt.pop %v5605
    %v5614 = vrsqrt.pop %v5606
    %v5615 = vrsqrt.pop %v5607
    %v5616 = vmul.f32 %v5560, %v5608
    %v5617 = vmul.f32 %v5561, %v5609
    %v5618 = vmul.f32 %v5562, %v5610
    %v5619 = vmul.f32 %v5563, %v5611
    %v5620 = vmul.f32 %v5564, %v5612
    %v5621 = vmul.f32 %v5565, %v5613
    %v5622 = vmul.f32 %v5566, %v5614
    %v5623 = vmul.f32 %v5567, %v5615
    %v5625 = vlaneseq
    %v5626 = vshrl.u32 %v5625, 7
    %v5627 = vsub.s32 0, %v5626
    %v5628 = vrot.slane %v5533, %v5627
    %v5630 = vmul.f32 %v5616, %v5628
    %v5631 = vmul.f32 %v5617, %v5628
    %v5632 = vmul.f32 %v5618, %v5628
    %v5633 = vmul.f32 %v5619, %v5628
    %v5634 = vmul.f32 %v5620, %v5628
    %v5635 = vmul.f32 %v5621, %v5628
    %v5636 = vmul.f32 %v5622, %v5628
    %v5637 = vmul.f32 %v5623, %v5628
    %v5639 = vlaneseq
    %v5640 = vshrl.u32 %v5639, 7
    %v5641 = vsub.s32 0, %v5640
    %v5642 = vrot.slane %v5535, %v5641
    %v5644 = vadd.f32 %v5630, %v5642
    %v5645 = vadd.f32 %v5631, %v5642
    %v5646 = vadd.f32 %v5632, %v5642
    %v5647 = vadd.f32 %v5633, %v5642
    %v5648 = vadd.f32 %v5634, %v5642
    %v5649 = vadd.f32 %v5635, %v5642
    %v5650 = vadd.f32 %v5636, %v5642
    %v5651 = vadd.f32 %v5637, %v5642
    %s5652 = scalar_lea.vmem %s16, 256
    %v5653 = vld [vmem:[%s5652] sm:$0xff]
    %v5654 = vld [vmem:[%s5652 + $0x8] sm:$0xff]
    %v5655 = vld [vmem:[%s5652 + $0x10] sm:$0xff]
    %v5656 = vld [vmem:[%s5652 + $0x18] sm:$0xff]
    %v5657 = vld [vmem:[%s5652 + $0x20] sm:$0xff]
    %v5658 = vld [vmem:[%s5652 + $0x28] sm:$0xff]
    %v5659 = vld [vmem:[%s5652 + $0x30] sm:$0xff]
    %v5660 = vld [vmem:[%s5652 + $0x38] sm:$0xff]
    %v5661 = vld [vmem:[%s5652 + $0x40] sm:$0xff]
    %v5662 = vld [vmem:[%s5652 + $0x48] sm:$0xff]
    %v5663 = vld [vmem:[%s5652 + $0x50] sm:$0xff]
    %v5664 = vld [vmem:[%s5652 + $0x58] sm:$0xff]
    %v5665 = vld [vmem:[%s5652 + $0x60] sm:$0xff]
    %v5666 = vld [vmem:[%s5652 + $0x68] sm:$0xff]
    %v5667 = vld [vmem:[%s5652 + $0x70] sm:$0xff]
    %v5668 = vld [vmem:[%s5652 + $0x78] sm:$0xff]
    %v5669 = vld [vmem:[%s5652 + $0x80] sm:$0xff]
    %v5670 = vld [vmem:[%s5652 + $0x88] sm:$0xff]
    %v5671 = vld [vmem:[%s5652 + $0x90] sm:$0xff]
    %v5672 = vld [vmem:[%s5652 + $0x98] sm:$0xff]
    %v5673 = vld [vmem:[%s5652 + $0xa0] sm:$0xff]
    %v5674 = vld [vmem:[%s5652 + $0xa8] sm:$0xff]
    %v5675 = vld [vmem:[%s5652 + $0xb0] sm:$0xff]
    %v5676 = vld [vmem:[%s5652 + $0xb8] sm:$0xff]
    %v5677 = vld [vmem:[%s5652 + $0xc0] sm:$0xff]
    %v5678 = vld [vmem:[%s5652 + $0xc8] sm:$0xff]
    %v5679 = vld [vmem:[%s5652 + $0xd0] sm:$0xff]
    %v5680 = vld [vmem:[%s5652 + $0xd8] sm:$0xff]
    %v5681 = vld [vmem:[%s5652 + $0xe0] sm:$0xff]
    %v5682 = vld [vmem:[%s5652 + $0xe8] sm:$0xff]
    %v5683 = vld [vmem:[%s5652 + $0xf0] sm:$0xff]
    %v5684 = vld [vmem:[%s5652 + $0xf8] sm:$0xff]
    %v5685 = vpack.c.bf16 %v5645, %v5644
    %v5686 = vpack.c.bf16 %v5647, %v5646
    %v5687 = vpack.c.bf16 %v5649, %v5648
    %v5688 = vpack.c.bf16 %v5651, %v5650
    %s5689 = scalar_lea.vmem %s17, 4
    %v5690 = vld [vmem:[%s5689] sm:$0xf]
    %v5692 = vlaneseq
    %v5693 = vshrl.u32 %v5692, 7
    %v5694 = vsub.s32 0, %v5693
    %v5695 = vrot.slane %v5690, %v5694
    %v5696 = vlaneseq
    %v5697 = vshrl.u32 %v5696, 7
    %v5698 = vsub.s32 1, %v5697
    %v5699 = vrot.slane %v5690, %v5698
    %v5700 = vlaneseq
    %v5701 = vshrl.u32 %v5700, 7
    %v5702 = vsub.s32 2, %v5701
    %v5703 = vrot.slane %v5690, %v5702
    %v5704 = vlaneseq
    %v5705 = vshrl.u32 %v5704, 7
    %v5706 = vsub.s32 3, %v5705
    %v5707 = vrot.slane %v5690, %v5706
    %v5744 = vunpack.c.l.b16 %v5653
    %v5745 = vunpack.c.h.b16 %v5653
    %v5746 = vunpack.c.l.b16 %v5654
    %v5747 = vunpack.c.h.b16 %v5654
    %v5748 = vunpack.c.l.b16 %v5655
    %v5749 = vunpack.c.h.b16 %v5655
    %v5750 = vunpack.c.l.b16 %v5656
    %v5751 = vunpack.c.h.b16 %v5656
    %v5752 = vunpack.c.l.b16 %v5657
    %v5753 = vunpack.c.h.b16 %v5657
    %v5754 = vunpack.c.l.b16 %v5658
    %v5755 = vunpack.c.h.b16 %v5658
    %v5756 = vunpack.c.l.b16 %v5659
    %v5757 = vunpack.c.h.b16 %v5659
    %v5758 = vunpack.c.l.b16 %v5660
    %v5759 = vunpack.c.h.b16 %v5660
    %v5760 = vunpack.c.l.b16 %v5661
    %v5761 = vunpack.c.h.b16 %v5661
    %v5762 = vunpack.c.l.b16 %v5662
    %v5763 = vunpack.c.h.b16 %v5662
    %v5764 = vunpack.c.l.b16 %v5663
    %v5765 = vunpack.c.h.b16 %v5663
    %v5766 = vunpack.c.l.b16 %v5664
    %v5767 = vunpack.c.h.b16 %v5664
    %v5768 = vunpack.c.l.b16 %v5665
    %v5769 = vunpack.c.h.b16 %v5665
    %v5770 = vunpack.c.l.b16 %v5666
    %v5771 = vunpack.c.h.b16 %v5666
    %v5772 = vunpack.c.l.b16 %v5667
    %v5773 = vunpack.c.h.b16 %v5667
    %v5774 = vunpack.c.l.b16 %v5668
    %v5775 = vunpack.c.h.b16 %v5668
    %v5776 = vunpack.c.l.b16 %v5669
    %v5777 = vunpack.c.h.b16 %v5669
    %v5778 = vunpack.c.l.b16 %v5670
    %v5779 = vunpack.c.h.b16 %v5670
    %v5780 = vunpack.c.l.b16 %v5671
    %v5781 = vunpack.c.h.b16 %v5671
    %v5782 = vunpack.c.l.b16 %v5672
    %v5783 = vunpack.c.h.b16 %v5672
    %v5784 = vunpack.c.l.b16 %v5673
    %v5785 = vunpack.c.h.b16 %v5673
    %v5786 = vunpack.c.l.b16 %v5674
    %v5787 = vunpack.c.h.b16 %v5674
    %v5788 = vunpack.c.l.b16 %v5675
    %v5789 = vunpack.c.h.b16 %v5675
    %v5790 = vunpack.c.l.b16 %v5676
    %v5791 = vunpack.c.h.b16 %v5676
    %v5792 = vunpack.c.l.b16 %v5677
    %v5793 = vunpack.c.h.b16 %v5677
    %v5794 = vunpack.c.l.b16 %v5678
    %v5795 = vunpack.c.h.b16 %v5678
    %v5796 = vunpack.c.l.b16 %v5679
    %v5797 = vunpack.c.h.b16 %v5679
    %v5798 = vunpack.c.l.b16 %v5680
    %v5799 = vunpack.c.h.b16 %v5680
    %v5800 = vunpack.c.l.b16 %v5681
    %v5801 = vunpack.c.h.b16 %v5681
    %v5802 = vunpack.c.l.b16 %v5682
    %v5803 = vunpack.c.h.b16 %v5682
    %v5804 = vunpack.c.l.b16 %v5683
    %v5805 = vunpack.c.h.b16 %v5683
    %v5806 = vunpack.c.l.b16 %v5684
    %v5807 = vunpack.c.h.b16 %v5684
    %v5808 = vpack.c.b16 %v5748, %v5744
    %v5809 = vpack.c.b16 %v5749, %v5745
    %v5810 = vpack.c.b16 %v5750, %v5746
    %v5811 = vpack.c.b16 %v5751, %v5747
    %v5812 = vpack.c.b16 %v5756, %v5752
    %v5813 = vpack.c.b16 %v5757, %v5753
    %v5814 = vpack.c.b16 %v5758, %v5754
    %v5815 = vpack.c.b16 %v5759, %v5755
    %v5816 = vpack.c.b16 %v5764, %v5760
    %v5817 = vpack.c.b16 %v5765, %v5761
    %v5818 = vpack.c.b16 %v5766, %v5762
    %v5819 = vpack.c.b16 %v5767, %v5763
    %v5820 = vpack.c.b16 %v5772, %v5768
    %v5821 = vpack.c.b16 %v5773, %v5769
    %v5822 = vpack.c.b16 %v5774, %v5770
    %v5823 = vpack.c.b16 %v5775, %v5771
    %v5824 = vpack.c.b16 %v5780, %v5776
    %v5825 = vpack.c.b16 %v5781, %v5777
    %v5826 = vpack.c.b16 %v5782, %v5778
    %v5827 = vpack.c.b16 %v5783, %v5779
    %v5828 = vpack.c.b16 %v5788, %v5784
    %v5829 = vpack.c.b16 %v5789, %v5785
    %v5830 = vpack.c.b16 %v5790, %v5786
    %v5831 = vpack.c.b16 %v5791, %v5787
    %v5832 = vpack.c.b16 %v5796, %v5792
    %v5833 = vpack.c.b16 %v5797, %v5793
    %v5834 = vpack.c.b16 %v5798, %v5794
    %v5835 = vpack.c.b16 %v5799, %v5795
    %v5836 = vpack.c.b16 %v5804, %v5800
    %v5837 = vpack.c.b16 %v5805, %v5801
    %v5838 = vpack.c.b16 %v5806, %v5802
    %v5839 = vpack.c.b16 %v5807, %v5803
    %5872 = vmatprep.subr.bf16.mxu0 %v5837
    %5873 = vmatpush1.bf16.msra.mxu0 %v5836
    %5874 = vmatprep.subr.bf16.mxu0 %v5833
    %5875 = vmatpush1.bf16.msra.mxu0 %v5832
    %5876 = vmatprep.subr.bf16.mxu0 %v5829
    %5877 = vmatpush1.bf16.msra.mxu0 %v5828
    %5878 = vmatprep.subr.bf16.mxu0 %v5825
    %5879 = vmatpush1.bf16.msra.mxu0 %v5824
    %5880 = vmatprep.subr.bf16.mxu0 %v5821
    %5881 = vmatpush1.bf16.msra.mxu0 %v5820
    %5882 = vmatprep.subr.bf16.mxu0 %v5817
    %5883 = vmatpush1.bf16.msra.mxu0 %v5816
    %5884 = vmatprep.subr.bf16.mxu0 %v5813
    %5885 = vmatpush1.bf16.msra.mxu0 %v5812
    %5886 = vmatprep.subr.bf16.mxu0 %v5809
    %5887 = vmatpush1.bf16.msra.mxu0 %v5808
    %5888 = vmatprep.subr.bf16.mxu0 0
    %5889 = vmatpush2.bf16.msra.mxu0 0
    %5890 = vmatprep.subr.bf16.mxu0 0
    %5891 = vmatpush2.bf16.msra.mxu0 0
    %5892 = vmatprep.subr.bf16.mxu0 0
    %5893 = vmatpush2.bf16.msra.mxu0 0
    %5894 = vmatprep.subr.bf16.mxu0 0
    %5895 = vmatpush2.bf16.msra.mxu0 0
    %5896 = vmatprep.subr.bf16.mxu0 0
    %5897 = vmatpush2.bf16.msra.mxu0 0
    %5898 = vmatprep.subr.bf16.mxu0 0
    %5899 = vmatpush2.bf16.msra.mxu0 0
    %5900 = vmatprep.subr.bf16.mxu0 0
    %5901 = vmatpush2.bf16.msra.mxu0 0
    %5902 = vmatprep.subr.bf16.mxu0 0
    %5903 = vmatpush2.bf16.msra.mxu0 0
    %5904 = vmatprep.mubr.bf16.mxu0 0
    %5905 = vmatmul.mubr.bf16.gmra.mxu0 %v5685
    %v5906 = vpop.f32.mrf.mxu0
    %v5907 = vadd.f32 %v5695, %v5906
    %v5908 = vpop.f32.mrf.mxu0
    %v5909 = vadd.f32 %v5699, %v5908
    %v5910 = vpop.f32.mrf.mxu0
    %v5911 = vadd.f32 %v5695, %v5910
    %v5912 = vpop.f32.mrf.mxu0
    %v5913 = vadd.f32 %v5699, %v5912
    %5914 = vmatprep.mubr.bf16.mxu0 0
    %5915 = vmatmul.mubr.bf16.gmra.mxu0 %v5686
    %v5916 = vpop.f32.mrf.mxu0
    %v5917 = vadd.f32 %v5695, %v5916
    %v5918 = vpop.f32.mrf.mxu0
    %v5919 = vadd.f32 %v5699, %v5918
    %v5920 = vpop.f32.mrf.mxu0
    %v5921 = vadd.f32 %v5695, %v5920
    %v5922 = vpop.f32.mrf.mxu0
    %v5923 = vadd.f32 %v5699, %v5922
    %5924 = vmatprep.mubr.bf16.mxu0 0
    %5925 = vmatmul.mubr.bf16.gmra.mxu0 %v5687
    %v5926 = vpop.f32.mrf.mxu0
    %v5927 = vadd.f32 %v5695, %v5926
    %v5928 = vpop.f32.mrf.mxu0
    %v5929 = vadd.f32 %v5699, %v5928
    %v5930 = vpop.f32.mrf.mxu0
    %v5931 = vadd.f32 %v5695, %v5930
    %v5932 = vpop.f32.mrf.mxu0
    %v5933 = vadd.f32 %v5699, %v5932
    %5934 = vmatprep.mubr.bf16.mxu0 0
    %5935 = vmatmul.mubr.bf16.gmra.mxu0 %v5688
    %v5936 = vpop.f32.mrf.mxu0
    %v5937 = vadd.f32 %v5695, %v5936
    %v5938 = vpop.f32.mrf.mxu0
    %v5939 = vadd.f32 %v5699, %v5938
    %v5940 = vpop.f32.mrf.mxu0
    %v5941 = vadd.f32 %v5695, %v5940
    %v5942 = vpop.f32.mrf.mxu0
    %v5943 = vadd.f32 %v5699, %v5942
    %5944 = vdwg.mxu0
    %5945 = vmatprep.subr.bf16.mxu0 %v5839
    %5946 = vmatpush1.bf16.msra.mxu0 %v5838
    %5947 = vmatprep.subr.bf16.mxu0 %v5835
    %5948 = vmatpush1.bf16.msra.mxu0 %v5834
    %5949 = vmatprep.subr.bf16.mxu0 %v5831
    %5950 = vmatpush1.bf16.msra.mxu0 %v5830
    %5951 = vmatprep.subr.bf16.mxu0 %v5827
    %5952 = vmatpush1.bf16.msra.mxu0 %v5826
    %5953 = vmatprep.subr.bf16.mxu0 %v5823
    %5954 = vmatpush1.bf16.msra.mxu0 %v5822
    %5955 = vmatprep.subr.bf16.mxu0 %v5819
    %5956 = vmatpush1.bf16.msra.mxu0 %v5818
    %5957 = vmatprep.subr.bf16.mxu0 %v5815
    %5958 = vmatpush1.bf16.msra.mxu0 %v5814
    %5959 = vmatprep.subr.bf16.mxu0 %v5811
    %5960 = vmatpush1.bf16.msra.mxu0 %v5810
    %5961 = vmatprep.subr.bf16.mxu0 0
    %5962 = vmatpush2.bf16.msra.mxu0 0
    %5963 = vmatprep.subr.bf16.mxu0 0
    %5964 = vmatpush2.bf16.msra.mxu0 0
    %5965 = vmatprep.subr.bf16.mxu0 0
    %5966 = vmatpush2.bf16.msra.mxu0 0
    %5967 = vmatprep.subr.bf16.mxu0 0
    %5968 = vmatpush2.bf16.msra.mxu0 0
    %5969 = vmatprep.subr.bf16.mxu0 0
    %5970 = vmatpush2.bf16.msra.mxu0 0
    %5971 = vmatprep.subr.bf16.mxu0 0
    %5972 = vmatpush2.bf16.msra.mxu0 0
    %5973 = vmatprep.subr.bf16.mxu0 0
    %5974 = vmatpush2.bf16.msra.mxu0 0
    %5975 = vmatprep.subr.bf16.mxu0 0
    %5976 = vmatpush2.bf16.msra.mxu0 0
    %5977 = vmatprep.mubr.bf16.mxu0 0
    %5978 = vmatmul.mubr.bf16.gmra.mxu0 %v5685
    %v5979 = vpop.f32.mrf.mxu0
    %v5980 = vadd.f32 %v5703, %v5979
    %v5981 = vpop.f32.mrf.mxu0
    %v5982 = vadd.f32 %v5707, %v5981
    %v5983 = vpop.f32.mrf.mxu0
    %v5984 = vadd.f32 %v5703, %v5983
    %v5985 = vpop.f32.mrf.mxu0
    %v5986 = vadd.f32 %v5707, %v5985
    %5987 = vmatprep.mubr.bf16.mxu0 0
    %5988 = vmatmul.mubr.bf16.gmra.mxu0 %v5686
    %v5989 = vpop.f32.mrf.mxu0
    %v5990 = vadd.f32 %v5703, %v5989
    %v5991 = vpop.f32.mrf.mxu0
    %v5992 = vadd.f32 %v5707, %v5991
    %v5993 = vpop.f32.mrf.mxu0
    %v5994 = vadd.f32 %v5703, %v5993
    %v5995 = vpop.f32.mrf.mxu0
    %v5996 = vadd.f32 %v5707, %v5995
    %5997 = vmatprep.mubr.bf16.mxu0 0
    %5998 = vmatmul.mubr.bf16.gmra.mxu0 %v5687
    %v5999 = vpop.f32.mrf.mxu0
    %v6000 = vadd.f32 %v5703, %v5999
    %v6001 = vpop.f32.mrf.mxu0
    %v6002 = vadd.f32 %v5707, %v6001
    %v6003 = vpop.f32.mrf.mxu0
    %v6004 = vadd.f32 %v5703, %v6003
    %v6005 = vpop.f32.mrf.mxu0
    %v6006 = vadd.f32 %v5707, %v6005
    %6007 = vmatprep.mubr.bf16.mxu0 0
    %6008 = vmatmul.mubr.bf16.gmra.mxu0 %v5688
    %v6009 = vpop.f32.mrf.mxu0
    %v6010 = vadd.f32 %v5703, %v6009
    %v6011 = vpop.f32.mrf.mxu0
    %v6012 = vadd.f32 %v5707, %v6011
    %v6013 = vpop.f32.mrf.mxu0
    %v6014 = vadd.f32 %v5703, %v6013
    %v6015 = vpop.f32.mrf.mxu0
    %v6016 = vadd.f32 %v5707, %v6015
    %6017 = vdwg.mxu0
    %v6018 = vmul.f32 %v5907, 1.702
    %v6019 = vmul.f32 %v5909, 1.702
    %v6020 = vmul.f32 %v5980, 1.702
    %v6021 = vmul.f32 %v5982, 1.702
    %v6022 = vmul.f32 %v5911, 1.702
    %v6023 = vmul.f32 %v5913, 1.702
    %v6024 = vmul.f32 %v5984, 1.702
    %v6025 = vmul.f32 %v5986, 1.702
    %v6026 = vmul.f32 %v5917, 1.702
    %v6027 = vmul.f32 %v5919, 1.702
    %v6028 = vmul.f32 %v5990, 1.702
    %v6029 = vmul.f32 %v5992, 1.702
    %v6030 = vmul.f32 %v5921, 1.702
    %v6031 = vmul.f32 %v5923, 1.702
    %v6032 = vmul.f32 %v5994, 1.702
    %v6033 = vmul.f32 %v5996, 1.702
    %v6034 = vmul.f32 %v5927, 1.702
    %v6035 = vmul.f32 %v5929, 1.702
    %v6036 = vmul.f32 %v6000, 1.702
    %v6037 = vmul.f32 %v6002, 1.702
    %v6038 = vmul.f32 %v5931, 1.702
    %v6039 = vmul.f32 %v5933, 1.702
    %v6040 = vmul.f32 %v6004, 1.702
    %v6041 = vmul.f32 %v6006, 1.702
    %v6042 = vmul.f32 %v5937, 1.702
    %v6043 = vmul.f32 %v5939, 1.702
    %v6044 = vmul.f32 %v6010, 1.702
    %v6045 = vmul.f32 %v6012, 1.702
    %v6046 = vmul.f32 %v5941, 1.702
    %v6047 = vmul.f32 %v5943, 1.702
    %v6048 = vmul.f32 %v6014, 1.702
    %v6049 = vmul.f32 %v6016, 1.702
    %v6050 = vxor.u32 %v6018, 2147483648
    %v6051 = vxor.u32 %v6019, 2147483648
    %v6052 = vxor.u32 %v6020, 2147483648
    %v6053 = vxor.u32 %v6021, 2147483648
    %v6054 = vxor.u32 %v6022, 2147483648
    %v6055 = vxor.u32 %v6023, 2147483648
    %v6056 = vxor.u32 %v6024, 2147483648
    %v6057 = vxor.u32 %v6025, 2147483648
    %v6058 = vxor.u32 %v6026, 2147483648
    %v6059 = vxor.u32 %v6027, 2147483648
    %v6060 = vxor.u32 %v6028, 2147483648
    %v6061 = vxor.u32 %v6029, 2147483648
    %v6062 = vxor.u32 %v6030, 2147483648
    %v6063 = vxor.u32 %v6031, 2147483648
    %v6064 = vxor.u32 %v6032, 2147483648
    %v6065 = vxor.u32 %v6033, 2147483648
    %v6066 = vxor.u32 %v6034, 2147483648
    %v6067 = vxor.u32 %v6035, 2147483648
    %v6068 = vxor.u32 %v6036, 2147483648
    %v6069 = vxor.u32 %v6037, 2147483648
    %v6070 = vxor.u32 %v6038, 2147483648
    %v6071 = vxor.u32 %v6039, 2147483648
    %v6072 = vxor.u32 %v6040, 2147483648
    %v6073 = vxor.u32 %v6041, 2147483648
    %v6074 = vxor.u32 %v6042, 2147483648
    %v6075 = vxor.u32 %v6043, 2147483648
    %v6076 = vxor.u32 %v6044, 2147483648
    %v6077 = vxor.u32 %v6045, 2147483648
    %v6078 = vxor.u32 %v6046, 2147483648
    %v6079 = vxor.u32 %v6047, 2147483648
    %v6080 = vxor.u32 %v6048, 2147483648
    %v6081 = vxor.u32 %v6049, 2147483648
    %v6082 = vmul.f32 %v6050, 1.442695
    %v6083 = vpow.pop %v6082
    %v6084 = vmul.f32 %v6051, 1.442695
    %v6085 = vpow.pop %v6084
    %v6086 = vmul.f32 %v6052, 1.442695
    %v6087 = vpow.pop %v6086
    %v6088 = vmul.f32 %v6053, 1.442695
    %v6089 = vpow.pop %v6088
    %v6090 = vmul.f32 %v6054, 1.442695
    %v6091 = vpow.pop %v6090
    %v6092 = vmul.f32 %v6055, 1.442695
    %v6093 = vpow.pop %v6092
    %v6094 = vmul.f32 %v6056, 1.442695
    %v6095 = vpow.pop %v6094
    %v6096 = vmul.f32 %v6057, 1.442695
    %v6097 = vpow.pop %v6096
    %v6098 = vmul.f32 %v6058, 1.442695
    %v6099 = vpow.pop %v6098
    %v6100 = vmul.f32 %v6059, 1.442695
    %v6101 = vpow.pop %v6100
    %v6102 = vmul.f32 %v6060, 1.442695
    %v6103 = vpow.pop %v6102
    %v6104 = vmul.f32 %v6061, 1.442695
    %v6105 = vpow.pop %v6104
    %v6106 = vmul.f32 %v6062, 1.442695
    %v6107 = vpow.pop %v6106
    %v6108 = vmul.f32 %v6063, 1.442695
    %v6109 = vpow.pop %v6108
    %v6110 = vmul.f32 %v6064, 1.442695
    %v6111 = vpow.pop %v6110
    %v6112 = vmul.f32 %v6065, 1.442695
    %v6113 = vpow.pop %v6112
    %v6114 = vmul.f32 %v6066, 1.442695
    %v6115 = vpow.pop %v6114
    %v6116 = vmul.f32 %v6067, 1.442695
    %v6117 = vpow.pop %v6116
    %v6118 = vmul.f32 %v6068, 1.442695
    %v6119 = vpow.pop %v6118
    %v6120 = vmul.f32 %v6069, 1.442695
    %v6121 = vpow.pop %v6120
    %v6122 = vmul.f32 %v6070, 1.442695
    %v6123 = vpow.pop %v6122
    %v6124 = vmul.f32 %v6071, 1.442695
    %v6125 = vpow.pop %v6124
    %v6126 = vmul.f32 %v6072, 1.442695
    %v6127 = vpow.pop %v6126
    %v6128 = vmul.f32 %v6073, 1.442695
    %v6129 = vpow.pop %v6128
    %v6130 = vmul.f32 %v6074, 1.442695
    %v6131 = vpow.pop %v6130
    %v6132 = vmul.f32 %v6075, 1.442695
    %v6133 = vpow.pop %v6132
    %v6134 = vmul.f32 %v6076, 1.442695
    %v6135 = vpow.pop %v6134
    %v6136 = vmul.f32 %v6077, 1.442695
    %v6137 = vpow.pop %v6136
    %v6138 = vmul.f32 %v6078, 1.442695
    %v6139 = vpow.pop %v6138
    %v6140 = vmul.f32 %v6079, 1.442695
    %v6141 = vpow.pop %v6140
    %v6142 = vmul.f32 %v6080, 1.442695
    %v6143 = vpow.pop %v6142
    %v6144 = vmul.f32 %v6081, 1.442695
    %v6145 = vpow.pop %v6144
    %v6146 = vadd.f32 %v6083, 1.0
    %v6147 = vadd.f32 %v6085, 1.0
    %v6148 = vadd.f32 %v6087, 1.0
    %v6149 = vadd.f32 %v6089, 1.0
    %v6150 = vadd.f32 %v6091, 1.0
    %v6151 = vadd.f32 %v6093, 1.0
    %v6152 = vadd.f32 %v6095, 1.0
    %v6153 = vadd.f32 %v6097, 1.0
    %v6154 = vadd.f32 %v6099, 1.0
    %v6155 = vadd.f32 %v6101, 1.0
    %v6156 = vadd.f32 %v6103, 1.0
    %v6157 = vadd.f32 %v6105, 1.0
    %v6158 = vadd.f32 %v6107, 1.0
    %v6159 = vadd.f32 %v6109, 1.0
    %v6160 = vadd.f32 %v6111, 1.0
    %v6161 = vadd.f32 %v6113, 1.0
    %v6162 = vadd.f32 %v6115, 1.0
    %v6163 = vadd.f32 %v6117, 1.0
    %v6164 = vadd.f32 %v6119, 1.0
    %v6165 = vadd.f32 %v6121, 1.0
    %v6166 = vadd.f32 %v6123, 1.0
    %v6167 = vadd.f32 %v6125, 1.0
    %v6168 = vadd.f32 %v6127, 1.0
    %v6169 = vadd.f32 %v6129, 1.0
    %v6170 = vadd.f32 %v6131, 1.0
    %v6171 = vadd.f32 %v6133, 1.0
    %v6172 = vadd.f32 %v6135, 1.0
    %v6173 = vadd.f32 %v6137, 1.0
    %v6174 = vadd.f32 %v6139, 1.0
    %v6175 = vadd.f32 %v6141, 1.0
    %v6176 = vadd.f32 %v6143, 1.0
    %v6177 = vadd.f32 %v6145, 1.0
    %v6178 = vrcp.pop %v6146
    %v6179 = vmul.f32 1.0, %v6178
    %v6180 = vrcp.pop %v6147
    %v6181 = vmul.f32 1.0, %v6180
    %v6182 = vrcp.pop %v6148
    %v6183 = vmul.f32 1.0, %v6182
    %v6184 = vrcp.pop %v6149
    %v6185 = vmul.f32 1.0, %v6184
    %v6186 = vrcp.pop %v6150
    %v6187 = vmul.f32 1.0, %v6186
    %v6188 = vrcp.pop %v6151
    %v6189 = vmul.f32 1.0, %v6188
    %v6190 = vrcp.pop %v6152
    %v6191 = vmul.f32 1.0, %v6190
    %v6192 = vrcp.pop %v6153
    %v6193 = vmul.f32 1.0, %v6192
    %v6194 = vrcp.pop %v6154
    %v6195 = vmul.f32 1.0, %v6194
    %v6196 = vrcp.pop %v6155
    %v6197 = vmul.f32 1.0, %v6196
    %v6198 = vrcp.pop %v6156
    %v6199 = vmul.f32 1.0, %v6198
    %v6200 = vrcp.pop %v6157
    %v6201 = vmul.f32 1.0, %v6200
    %v6202 = vrcp.pop %v6158
    %v6203 = vmul.f32 1.0, %v6202
    %v6204 = vrcp.pop %v6159
    %v6205 = vmul.f32 1.0, %v6204
    %v6206 = vrcp.pop %v6160
    %v6207 = vmul.f32 1.0, %v6206
    %v6208 = vrcp.pop %v6161
    %v6209 = vmul.f32 1.0, %v6208
    %v6210 = vrcp.pop %v6162
    %v6211 = vmul.f32 1.0, %v6210
    %v6212 = vrcp.pop %v6163
    %v6213 = vmul.f32 1.0, %v6212
    %v6214 = vrcp.pop %v6164
    %v6215 = vmul.f32 1.0, %v6214
    %v6216 = vrcp.pop %v6165
    %v6217 = vmul.f32 1.0, %v6216
    %v6218 = vrcp.pop %v6166
    %v6219 = vmul.f32 1.0, %v6218
    %v6220 = vrcp.pop %v6167
    %v6221 = vmul.f32 1.0, %v6220
    %v6222 = vrcp.pop %v6168
    %v6223 = vmul.f32 1.0, %v6222
    %v6224 = vrcp.pop %v6169
    %v6225 = vmul.f32 1.0, %v6224
    %v6226 = vrcp.pop %v6170
    %v6227 = vmul.f32 1.0, %v6226
    %v6228 = vrcp.pop %v6171
    %v6229 = vmul.f32 1.0, %v6228
    %v6230 = vrcp.pop %v6172
    %v6231 = vmul.f32 1.0, %v6230
    %v6232 = vrcp.pop %v6173
    %v6233 = vmul.f32 1.0, %v6232
    %v6234 = vrcp.pop %v6174
    %v6235 = vmul.f32 1.0, %v6234
    %v6236 = vrcp.pop %v6175
    %v6237 = vmul.f32 1.0, %v6236
    %v6238 = vrcp.pop %v6176
    %v6239 = vmul.f32 1.0, %v6238
    %v6240 = vrcp.pop %v6177
    %v6241 = vmul.f32 1.0, %v6240
    %v6242 = vmul.f32 %v5907, %v6179
    %v6243 = vmul.f32 %v5909, %v6181
    %v6244 = vmul.f32 %v5980, %v6183
    %v6245 = vmul.f32 %v5982, %v6185
    %v6246 = vmul.f32 %v5911, %v6187
    %v6247 = vmul.f32 %v5913, %v6189
    %v6248 = vmul.f32 %v5984, %v6191
    %v6249 = vmul.f32 %v5986, %v6193
    %v6250 = vmul.f32 %v5917, %v6195
    %v6251 = vmul.f32 %v5919, %v6197
    %v6252 = vmul.f32 %v5990, %v6199
    %v6253 = vmul.f32 %v5992, %v6201
    %v6254 = vmul.f32 %v5921, %v6203
    %v6255 = vmul.f32 %v5923, %v6205
    %v6256 = vmul.f32 %v5994, %v6207
    %v6257 = vmul.f32 %v5996, %v6209
    %v6258 = vmul.f32 %v5927, %v6211
    %v6259 = vmul.f32 %v5929, %v6213
    %v6260 = vmul.f32 %v6000, %v6215
    %v6261 = vmul.f32 %v6002, %v6217
    %v6262 = vmul.f32 %v5931, %v6219
    %v6263 = vmul.f32 %v5933, %v6221
    %v6264 = vmul.f32 %v6004, %v6223
    %v6265 = vmul.f32 %v6006, %v6225
    %v6266 = vmul.f32 %v5937, %v6227
    %v6267 = vmul.f32 %v5939, %v6229
    %v6268 = vmul.f32 %v6010, %v6231
    %v6269 = vmul.f32 %v6012, %v6233
    %v6270 = vmul.f32 %v5941, %v6235
    %v6271 = vmul.f32 %v5943, %v6237
    %v6272 = vmul.f32 %v6014, %v6239
    %v6273 = vmul.f32 %v6016, %v6241
    %s6274 = scalar_lea.vmem %s18, 256
    %v6275 = vld [vmem:[%s6274] sm:$0xf]
    %v6276 = vld [vmem:[%s6274 + $0x4] sm:$0xf]
    %v6277 = vld [vmem:[%s6274 + $0x8] sm:$0xf]
    %v6278 = vld [vmem:[%s6274 + $0xc] sm:$0xf]
    %v6279 = vld [vmem:[%s6274 + $0x10] sm:$0xf]
    %v6280 = vld [vmem:[%s6274 + $0x14] sm:$0xf]
    %v6281 = vld [vmem:[%s6274 + $0x18] sm:$0xf]
    %v6282 = vld [vmem:[%s6274 + $0x1c] sm:$0xf]
    %v6283 = vld [vmem:[%s6274 + $0x20] sm:$0xf]
    %v6284 = vld [vmem:[%s6274 + $0x24] sm:$0xf]
    %v6285 = vld [vmem:[%s6274 + $0x28] sm:$0xf]
    %v6286 = vld [vmem:[%s6274 + $0x2c] sm:$0xf]
    %v6287 = vld [vmem:[%s6274 + $0x30] sm:$0xf]
    %v6288 = vld [vmem:[%s6274 + $0x34] sm:$0xf]
    %v6289 = vld [vmem:[%s6274 + $0x38] sm:$0xf]
    %v6290 = vld [vmem:[%s6274 + $0x3c] sm:$0xf]
    %v6291 = vld [vmem:[%s6274 + $0x40] sm:$0xf]
    %v6292 = vld [vmem:[%s6274 + $0x44] sm:$0xf]
    %v6293 = vld [vmem:[%s6274 + $0x48] sm:$0xf]
    %v6294 = vld [vmem:[%s6274 + $0x4c] sm:$0xf]
    %v6295 = vld [vmem:[%s6274 + $0x50] sm:$0xf]
    %v6296 = vld [vmem:[%s6274 + $0x54] sm:$0xf]
    %v6297 = vld [vmem:[%s6274 + $0x58] sm:$0xf]
    %v6298 = vld [vmem:[%s6274 + $0x5c] sm:$0xf]
    %v6299 = vld [vmem:[%s6274 + $0x60] sm:$0xf]
    %v6300 = vld [vmem:[%s6274 + $0x64] sm:$0xf]
    %v6301 = vld [vmem:[%s6274 + $0x68] sm:$0xf]
    %v6302 = vld [vmem:[%s6274 + $0x6c] sm:$0xf]
    %v6303 = vld [vmem:[%s6274 + $0x70] sm:$0xf]
    %v6304 = vld [vmem:[%s6274 + $0x74] sm:$0xf]
    %v6305 = vld [vmem:[%s6274 + $0x78] sm:$0xf]
    %v6306 = vld [vmem:[%s6274 + $0x7c] sm:$0xf]
    %v6307 = vld [vmem:[%s6274 + $0x80] sm:$0xf]
    %v6308 = vld [vmem:[%s6274 + $0x84] sm:$0xf]
    %v6309 = vld [vmem:[%s6274 + $0x88] sm:$0xf]
    %v6310 = vld [vmem:[%s6274 + $0x8c] sm:$0xf]
    %v6311 = vld [vmem:[%s6274 + $0x90] sm:$0xf]
    %v6312 = vld [vmem:[%s6274 + $0x94] sm:$0xf]
    %v6313 = vld [vmem:[%s6274 + $0x98] sm:$0xf]
    %v6314 = vld [vmem:[%s6274 + $0x9c] sm:$0xf]
    %v6315 = vld [vmem:[%s6274 + $0xa0] sm:$0xf]
    %v6316 = vld [vmem:[%s6274 + $0xa4] sm:$0xf]
    %v6317 = vld [vmem:[%s6274 + $0xa8] sm:$0xf]
    %v6318 = vld [vmem:[%s6274 + $0xac] sm:$0xf]
    %v6319 = vld [vmem:[%s6274 + $0xb0] sm:$0xf]
    %v6320 = vld [vmem:[%s6274 + $0xb4] sm:$0xf]
    %v6321 = vld [vmem:[%s6274 + $0xb8] sm:$0xf]
    %v6322 = vld [vmem:[%s6274 + $0xbc] sm:$0xf]
    %v6323 = vld [vmem:[%s6274 + $0xc0] sm:$0xf]
    %v6324 = vld [vmem:[%s6274 + $0xc4] sm:$0xf]
    %v6325 = vld [vmem:[%s6274 + $0xc8] sm:$0xf]
    %v6326 = vld [vmem:[%s6274 + $0xcc] sm:$0xf]
    %v6327 = vld [vmem:[%s6274 + $0xd0] sm:$0xf]
    %v6328 = vld [vmem:[%s6274 + $0xd4] sm:$0xf]
    %v6329 = vld [vmem:[%s6274 + $0xd8] sm:$0xf]
    %v6330 = vld [vmem:[%s6274 + $0xdc] sm:$0xf]
    %v6331 = vld [vmem:[%s6274 + $0xe0] sm:$0xf]
    %v6332 = vld [vmem:[%s6274 + $0xe4] sm:$0xf]
    %v6333 = vld [vmem:[%s6274 + $0xe8] sm:$0xf]
    %v6334 = vld [vmem:[%s6274 + $0xec] sm:$0xf]
    %v6335 = vld [vmem:[%s6274 + $0xf0] sm:$0xf]
    %v6336 = vld [vmem:[%s6274 + $0xf4] sm:$0xf]
    %v6337 = vld [vmem:[%s6274 + $0xf8] sm:$0xf]
    %v6338 = vld [vmem:[%s6274 + $0xfc] sm:$0xf]
    %v6339 = vpack.c.bf16 %v6246, %v6242
    %v6340 = vpack.c.bf16 %v6247, %v6243
    %v6341 = vpack.c.bf16 %v6248, %v6244
    %v6342 = vpack.c.bf16 %v6249, %v6245
    %v6343 = vpack.c.bf16 %v6254, %v6250
    %v6344 = vpack.c.bf16 %v6255, %v6251
    %v6345 = vpack.c.bf16 %v6256, %v6252
    %v6346 = vpack.c.bf16 %v6257, %v6253
    %v6347 = vpack.c.bf16 %v6262, %v6258
    %v6348 = vpack.c.bf16 %v6263, %v6259
    %v6349 = vpack.c.bf16 %v6264, %v6260
    %v6350 = vpack.c.bf16 %v6265, %v6261
    %v6351 = vpack.c.bf16 %v6270, %v6266
    %v6352 = vpack.c.bf16 %v6271, %v6267
    %v6353 = vpack.c.bf16 %v6272, %v6268
    %v6354 = vpack.c.bf16 %v6273, %v6269
    %s6355 = scalar_lea.vmem %s19, 1
    %v6356 = vld [vmem:[%s6355] sm:$0x1]
    %v6358 = vlaneseq
    %v6359 = vshrl.u32 %v6358, 7
    %v6360 = vsub.s32 0, %v6359
    %v6361 = vrot.slane %v6356, %v6360
    %v6427 = vunpack.c.l.b16 %v6275
    %v6428 = vunpack.c.l.b16 %v6276
    %v6429 = vunpack.c.l.b16 %v6277
    %v6430 = vunpack.c.l.b16 %v6278
    %v6431 = vunpack.c.l.b16 %v6279
    %v6432 = vunpack.c.l.b16 %v6280
    %v6433 = vunpack.c.l.b16 %v6281
    %v6434 = vunpack.c.l.b16 %v6282
    %v6435 = vunpack.c.l.b16 %v6283
    %v6436 = vunpack.c.l.b16 %v6284
    %v6437 = vunpack.c.l.b16 %v6285
    %v6438 = vunpack.c.l.b16 %v6286
    %v6439 = vunpack.c.l.b16 %v6287
    %v6440 = vunpack.c.l.b16 %v6288
    %v6441 = vunpack.c.l.b16 %v6289
    %v6442 = vunpack.c.l.b16 %v6290
    %v6443 = vunpack.c.l.b16 %v6291
    %v6444 = vunpack.c.l.b16 %v6292
    %v6445 = vunpack.c.l.b16 %v6293
    %v6446 = vunpack.c.l.b16 %v6294
    %v6447 = vunpack.c.l.b16 %v6295
    %v6448 = vunpack.c.l.b16 %v6296
    %v6449 = vunpack.c.l.b16 %v6297
    %v6450 = vunpack.c.l.b16 %v6298
    %v6451 = vunpack.c.l.b16 %v6299
    %v6452 = vunpack.c.l.b16 %v6300
    %v6453 = vunpack.c.l.b16 %v6301
    %v6454 = vunpack.c.l.b16 %v6302
    %v6455 = vunpack.c.l.b16 %v6303
    %v6456 = vunpack.c.l.b16 %v6304
    %v6457 = vunpack.c.l.b16 %v6305
    %v6458 = vunpack.c.l.b16 %v6306
    %v6459 = vunpack.c.l.b16 %v6307
    %v6460 = vunpack.c.l.b16 %v6308
    %v6461 = vunpack.c.l.b16 %v6309
    %v6462 = vunpack.c.l.b16 %v6310
    %v6463 = vunpack.c.l.b16 %v6311
    %v6464 = vunpack.c.l.b16 %v6312
    %v6465 = vunpack.c.l.b16 %v6313
    %v6466 = vunpack.c.l.b16 %v6314
    %v6467 = vunpack.c.l.b16 %v6315
    %v6468 = vunpack.c.l.b16 %v6316
    %v6469 = vunpack.c.l.b16 %v6317
    %v6470 = vunpack.c.l.b16 %v6318
    %v6471 = vunpack.c.l.b16 %v6319
    %v6472 = vunpack.c.l.b16 %v6320
    %v6473 = vunpack.c.l.b16 %v6321
    %v6474 = vunpack.c.l.b16 %v6322
    %v6475 = vunpack.c.l.b16 %v6323
    %v6476 = vunpack.c.l.b16 %v6324
    %v6477 = vunpack.c.l.b16 %v6325
    %v6478 = vunpack.c.l.b16 %v6326
    %v6479 = vunpack.c.l.b16 %v6327
    %v6480 = vunpack.c.l.b16 %v6328
    %v6481 = vunpack.c.l.b16 %v6329
    %v6482 = vunpack.c.l.b16 %v6330
    %v6483 = vunpack.c.l.b16 %v6331
    %v6484 = vunpack.c.l.b16 %v6332
    %v6485 = vunpack.c.l.b16 %v6333
    %v6486 = vunpack.c.l.b16 %v6334
    %v6487 = vunpack.c.l.b16 %v6335
    %v6488 = vunpack.c.l.b16 %v6336
    %v6489 = vunpack.c.l.b16 %v6337
    %v6490 = vunpack.c.l.b16 %v6338
    %v6491 = vpack.c.b16 %v6428, %v6427
    %v6492 = vpack.c.b16 %v6430, %v6429
    %v6493 = vpack.c.b16 %v6432, %v6431
    %v6494 = vpack.c.b16 %v6434, %v6433
    %v6495 = vpack.c.b16 %v6436, %v6435
    %v6496 = vpack.c.b16 %v6438, %v6437
    %v6497 = vpack.c.b16 %v6440, %v6439
    %v6498 = vpack.c.b16 %v6442, %v6441
    %v6499 = vpack.c.b16 %v6444, %v6443
    %v6500 = vpack.c.b16 %v6446, %v6445
    %v6501 = vpack.c.b16 %v6448, %v6447
    %v6502 = vpack.c.b16 %v6450, %v6449
    %v6503 = vpack.c.b16 %v6452, %v6451
    %v6504 = vpack.c.b16 %v6454, %v6453
    %v6505 = vpack.c.b16 %v6456, %v6455
    %v6506 = vpack.c.b16 %v6458, %v6457
    %v6507 = vpack.c.b16 %v6460, %v6459
    %v6508 = vpack.c.b16 %v6462, %v6461
    %v6509 = vpack.c.b16 %v6464, %v6463
    %v6510 = vpack.c.b16 %v6466, %v6465
    %v6511 = vpack.c.b16 %v6468, %v6467
    %v6512 = vpack.c.b16 %v6470, %v6469
    %v6513 = vpack.c.b16 %v6472, %v6471
    %v6514 = vpack.c.b16 %v6474, %v6473
    %v6515 = vpack.c.b16 %v6476, %v6475
    %v6516 = vpack.c.b16 %v6478, %v6477
    %v6517 = vpack.c.b16 %v6480, %v6479
    %v6518 = vpack.c.b16 %v6482, %v6481
    %v6519 = vpack.c.b16 %v6484, %v6483
    %v6520 = vpack.c.b16 %v6486, %v6485
    %v6521 = vpack.c.b16 %v6488, %v6487
    %v6522 = vpack.c.b16 %v6490, %v6489
    %6555 = vmatprep.subr.bf16.mxu0 0
    %6556 = vmatpush1.bf16.msra.mxu0 %v6498
    %6557 = vmatprep.subr.bf16.mxu0 0
    %6558 = vmatpush1.bf16.msra.mxu0 %v6497
    %6559 = vmatprep.subr.bf16.mxu0 0
    %6560 = vmatpush1.bf16.msra.mxu0 %v6496
    %6561 = vmatprep.subr.bf16.mxu0 0
    %6562 = vmatpush1.bf16.msra.mxu0 %v6495
    %6563 = vmatprep.subr.bf16.mxu0 0
    %6564 = vmatpush1.bf16.msra.mxu0 %v6494
    %6565 = vmatprep.subr.bf16.mxu0 0
    %6566 = vmatpush1.bf16.msra.mxu0 %v6493
    %6567 = vmatprep.subr.bf16.mxu0 0
    %6568 = vmatpush1.bf16.msra.mxu0 %v6492
    %6569 = vmatprep.subr.bf16.mxu0 0
    %6570 = vmatpush1.bf16.msra.mxu0 %v6491
    %6571 = vmatprep.subr.bf16.mxu0 0
    %6572 = vmatpush2.bf16.msra.mxu0 %v6506
    %6573 = vmatprep.subr.bf16.mxu0 0
    %6574 = vmatpush2.bf16.msra.mxu0 %v6505
    %6575 = vmatprep.subr.bf16.mxu0 0
    %6576 = vmatpush2.bf16.msra.mxu0 %v6504
    %6577 = vmatprep.subr.bf16.mxu0 0
    %6578 = vmatpush2.bf16.msra.mxu0 %v6503
    %6579 = vmatprep.subr.bf16.mxu0 0
    %6580 = vmatpush2.bf16.msra.mxu0 %v6502
    %6581 = vmatprep.subr.bf16.mxu0 0
    %6582 = vmatpush2.bf16.msra.mxu0 %v6501
    %6583 = vmatprep.subr.bf16.mxu0 0
    %6584 = vmatpush2.bf16.msra.mxu0 %v6500
    %6585 = vmatprep.subr.bf16.mxu0 0
    %6586 = vmatpush2.bf16.msra.mxu0 %v6499
    %6587 = vmatprep.mubr.bf16.mxu0 %v6340
    %6588 = vmatmul.mubr.bf16.gmra.mxu0 %v6339
    %v6589 = vpop.f32.mrf.mxu0
    %v6590 = vadd.f32 %v6361, %v6589
    %v6591 = vpop.f32.mrf.mxu0
    %v6592 = vpop.f32.mrf.mxu0
    %v6593 = vadd.f32 %v6361, %v6592
    %v6594 = vpop.f32.mrf.mxu0
    %6595 = vmatprep.mubr.bf16.mxu0 %v6344
    %6596 = vmatmul.mubr.bf16.gmra.mxu0 %v6343
    %v6597 = vpop.f32.mrf.mxu0
    %v6598 = vadd.f32 %v6361, %v6597
    %v6599 = vpop.f32.mrf.mxu0
    %v6600 = vpop.f32.mrf.mxu0
    %v6601 = vadd.f32 %v6361, %v6600
    %v6602 = vpop.f32.mrf.mxu0
    %6603 = vmatprep.mubr.bf16.mxu0 %v6348
    %6604 = vmatmul.mubr.bf16.gmra.mxu0 %v6347
    %v6605 = vpop.f32.mrf.mxu0
    %v6606 = vadd.f32 %v6361, %v6605
    %v6607 = vpop.f32.mrf.mxu0
    %v6608 = vpop.f32.mrf.mxu0
    %v6609 = vadd.f32 %v6361, %v6608
    %v6610 = vpop.f32.mrf.mxu0
    %6611 = vmatprep.mubr.bf16.mxu0 %v6352
    %6612 = vmatmul.mubr.bf16.gmra.mxu0 %v6351
    %v6613 = vpop.f32.mrf.mxu0
    %v6614 = vadd.f32 %v6361, %v6613
    %v6615 = vpop.f32.mrf.mxu0
    %v6616 = vpop.f32.mrf.mxu0
    %v6617 = vadd.f32 %v6361, %v6616
    %v6618 = vpop.f32.mrf.mxu0
    %6619 = vdwg.mxu0
    %6620 = vmatprep.subr.bf16.mxu0 0
    %6621 = vmatpush1.bf16.msra.mxu0 %v6514
    %6622 = vmatprep.subr.bf16.mxu0 0
    %6623 = vmatpush1.bf16.msra.mxu0 %v6513
    %6624 = vmatprep.subr.bf16.mxu0 0
    %6625 = vmatpush1.bf16.msra.mxu0 %v6512
    %6626 = vmatprep.subr.bf16.mxu0 0
    %6627 = vmatpush1.bf16.msra.mxu0 %v6511
    %6628 = vmatprep.subr.bf16.mxu0 0
    %6629 = vmatpush1.bf16.msra.mxu0 %v6510
    %6630 = vmatprep.subr.bf16.mxu0 0
    %6631 = vmatpush1.bf16.msra.mxu0 %v6509
    %6632 = vmatprep.subr.bf16.mxu0 0
    %6633 = vmatpush1.bf16.msra.mxu0 %v6508
    %6634 = vmatprep.subr.bf16.mxu0 0
    %6635 = vmatpush1.bf16.msra.mxu0 %v6507
    %6636 = vmatprep.subr.bf16.mxu0 0
    %6637 = vmatpush2.bf16.msra.mxu0 %v6522
    %6638 = vmatprep.subr.bf16.mxu0 0
    %6639 = vmatpush2.bf16.msra.mxu0 %v6521
    %6640 = vmatprep.subr.bf16.mxu0 0
    %6641 = vmatpush2.bf16.msra.mxu0 %v6520
    %6642 = vmatprep.subr.bf16.mxu0 0
    %6643 = vmatpush2.bf16.msra.mxu0 %v6519
    %6644 = vmatprep.subr.bf16.mxu0 0
    %6645 = vmatpush2.bf16.msra.mxu0 %v6518
    %6646 = vmatprep.subr.bf16.mxu0 0
    %6647 = vmatpush2.bf16.msra.mxu0 %v6517
    %6648 = vmatprep.subr.bf16.mxu0 0
    %6649 = vmatpush2.bf16.msra.mxu0 %v6516
    %6650 = vmatprep.subr.bf16.mxu0 0
    %6651 = vmatpush2.bf16.msra.mxu0 %v6515
    %6652 = vmatprep.mubr.bf16.mxu0 %v6342
    %6653 = vmatmul.mubr.bf16.gmra.mxu0 %v6341
    %v6654 = vpop.f32.mrf.mxu0
    %v6655 = vadd.f32 %v6590, %v6654
    %v6656 = vpop.f32.mrf.mxu0
    %v6657 = vpop.f32.mrf.mxu0
    %v6658 = vadd.f32 %v6593, %v6657
    %v6659 = vpop.f32.mrf.mxu0
    %6660 = vmatprep.mubr.bf16.mxu0 %v6346
    %6661 = vmatmul.mubr.bf16.gmra.mxu0 %v6345
    %v6662 = vpop.f32.mrf.mxu0
    %v6663 = vadd.f32 %v6598, %v6662
    %v6664 = vpop.f32.mrf.mxu0
    %v6665 = vpop.f32.mrf.mxu0
    %v6666 = vadd.f32 %v6601, %v6665
    %v6667 = vpop.f32.mrf.mxu0
    %6668 = vmatprep.mubr.bf16.mxu0 %v6350
    %6669 = vmatmul.mubr.bf16.gmra.mxu0 %v6349
    %v6670 = vpop.f32.mrf.mxu0
    %v6671 = vadd.f32 %v6606, %v6670
    %v6672 = vpop.f32.mrf.mxu0
    %v6673 = vpop.f32.mrf.mxu0
    %v6674 = vadd.f32 %v6609, %v6673
    %v6675 = vpop.f32.mrf.mxu0
    %6676 = vmatprep.mubr.bf16.mxu0 %v6354
    %6677 = vmatmul.mubr.bf16.gmra.mxu0 %v6353
    %v6678 = vpop.f32.mrf.mxu0
    %v6679 = vadd.f32 %v6614, %v6678
    %v6680 = vpop.f32.mrf.mxu0
    %v6681 = vpop.f32.mrf.mxu0
    %v6682 = vadd.f32 %v6617, %v6681
    %v6683 = vpop.f32.mrf.mxu0
    %6684 = vdwg.mxu0
    %v6685 = vadd.f32 %v5524, %v6655
    %v6686 = vadd.f32 %v5525, %v6658
    %v6687 = vadd.f32 %v5526, %v6663
    %v6688 = vadd.f32 %v5527, %v6666
    %v6689 = vadd.f32 %v5528, %v6671
    %v6690 = vadd.f32 %v5529, %v6674
    %v6691 = vadd.f32 %v5530, %v6679
    %v6692 = vadd.f32 %v5531, %v6682
    %v6693 = vld [vmem:[%s7] sm:$0xff]
    %v6695 = vsel %vm224, %v6693, 0
    %6697 = vmatprep.subr.mxu0 0.0
    %6698 = vmatpush1.msra.mxu0 0.0
    %6699 = vmatprep.subr.mxu0 0.0
    %6700 = vmatpush1.msra.mxu0 0.0
    %6701 = vmatprep.subr.mxu0 0.0
    %6702 = vmatpush1.msra.mxu0 0.0
    %6703 = vmatprep.subr.mxu0 0.0
    %6704 = vmatpush1.msra.mxu0 0.0
    %6705 = vmatprep.subr.mxu0 0.0
    %6706 = vmatpush1.msra.mxu0 0.0
    %6707 = vmatprep.subr.mxu0 0.0
    %6708 = vmatpush1.msra.mxu0 0.0
    %6709 = vmatprep.subr.mxu0 0.0
    %6710 = vmatpush1.msra.mxu0 0.0
    %6711 = vmatprep.subr.mxu0 0.0
    %6712 = vmatpush1.msra.mxu0 0.0
    %6713 = vmatprep.subr.mxu0 0.0
    %6714 = vmatpush1.msra.mxu0 %v6692
    %6715 = vmatprep.subr.mxu0 0.0
    %6716 = vmatpush1.msra.mxu0 %v6691
    %6717 = vmatprep.subr.mxu0 0.0
    %6718 = vmatpush1.msra.mxu0 %v6690
    %6719 = vmatprep.subr.mxu0 0.0
    %6720 = vmatpush1.msra.mxu0 %v6689
    %6721 = vmatprep.subr.mxu0 0.0
    %6722 = vmatpush1.msra.mxu0 %v6688
    %6723 = vmatprep.subr.mxu0 0.0
    %6724 = vmatpush1.msra.mxu0 %v6687
    %6725 = vmatprep.subr.mxu0 0.0
    %6726 = vmatpush1.msra.mxu0 %v6686
    %6727 = vmatprep.subr.mxu0 0.0
    %6728 = vmatpush1.msra.mxu0 %v6685
    %6729 = vmatprep.subr.mxu0 0.0
    %6730 = vmatpush2.msra.mxu0 0.0
    %6731 = vmatprep.subr.mxu0 0.0
    %6732 = vmatpush2.msra.mxu0 0.0
    %6733 = vmatprep.subr.mxu0 0.0
    %6734 = vmatpush2.msra.mxu0 0.0
    %6735 = vmatprep.subr.mxu0 0.0
    %6736 = vmatpush2.msra.mxu0 0.0
    %6737 = vmatprep.subr.mxu0 0.0
    %6738 = vmatpush2.msra.mxu0 0.0
    %6739 = vmatprep.subr.mxu0 0.0
    %6740 = vmatpush2.msra.mxu0 0.0
    %6741 = vmatprep.subr.mxu0 0.0
    %6742 = vmatpush2.msra.mxu0 0.0
    %6743 = vmatprep.subr.mxu0 0.0
    %6744 = vmatpush2.msra.mxu0 0.0
    %6745 = vmatprep.subr.mxu0 0.0
    %6746 = vmatpush2.msra.mxu0 0.0
    %6747 = vmatprep.subr.mxu0 0.0
    %6748 = vmatpush2.msra.mxu0 0.0
    %6749 = vmatprep.subr.mxu0 0.0
    %6750 = vmatpush2.msra.mxu0 0.0
    %6751 = vmatprep.subr.mxu0 0.0
    %6752 = vmatpush2.msra.mxu0 0.0
    %6753 = vmatprep.subr.mxu0 0.0
    %6754 = vmatpush2.msra.mxu0 0.0
    %6755 = vmatprep.subr.mxu0 0.0
    %6756 = vmatpush2.msra.mxu0 0.0
    %6757 = vmatprep.subr.mxu0 0.0
    %6758 = vmatpush2.msra.mxu0 0.0
    %6759 = vmatprep.subr.mxu0 0.0
    %6760 = vmatpush2.msra.mxu0 0.0
    %6761 = vmatprep.mubr.f32.mxu0 0.0
    %6762 = vmatmul.mubr.f32.gmra.mxu0 %v6695
    %v6763 = vpop.f32.mrf.mxu0
    %v6764 = vadd.f32 0.0, %v6763
    %v6765 = vpop.f32.mrf.mxu0
    %6766 = vdwg.mxu0
    %v6767 = vld [vmem:[%s20] sm:$0x1]
    %v6768 = vld [vmem:[%s21] sm:$0x1]
    %6769 = vadd.xlane.f32.xlu0 %v6764
    %v6770 = vpop.xlane.xlu0 %6769
    %v6771 = vmul.f32 %v6770, %v320
    %v6772 = vsub.f32 %v6764, %v6771
    %v6773 = vmul.f32 %v6772, %v6772
    %6774 = vadd.xlane.f32.xlu0 %v6773
    %v6775 = vpop.xlane.xlu0 %6774
    %v6776 = vmul.f32 %v6775, %v320
    %v6777 = vadd.f32 %v6776, 1e-05
    %v6778 = vrsqrt.pop %v6777
    %v6779 = vmul.f32 %v6772, %v6778
    %v6781 = vlaneseq
    %v6782 = vshrl.u32 %v6781, 7
    %v6783 = vsub.s32 0, %v6782
    %v6784 = vrot.slane %v6767, %v6783
    %v6786 = vmul.f32 %v6779, %v6784
    %v6788 = vlaneseq
    %v6789 = vshrl.u32 %v6788, 7
    %v6790 = vsub.s32 0, %v6789
    %v6791 = vrot.slane %v6768, %v6790
    %v6793 = vadd.f32 %v6786, %v6791
    %v6794 = vld [vmem:[%s22] sm:$0xf]
    %v6795 = vld [vmem:[%s22 + $0x4] sm:$0xf]
    %v6796 = vld [vmem:[%s22 + $0x8] sm:$0xf]
    %v6797 = vld [vmem:[%s22 + $0xc] sm:$0xf]
    %v6798 = vld [vmem:[%s22 + $0x10] sm:$0xf]
    %v6799 = vld [vmem:[%s22 + $0x14] sm:$0xf]
    %v6800 = vld [vmem:[%s22 + $0x18] sm:$0xf]
    %v6801 = vld [vmem:[%s22 + $0x1c] sm:$0xf]
    %v6802 = vld [vmem:[%s22 + $0x20] sm:$0xf]
    %v6803 = vld [vmem:[%s22 + $0x24] sm:$0xf]
    %v6804 = vld [vmem:[%s22 + $0x28] sm:$0xf]
    %v6805 = vld [vmem:[%s22 + $0x2c] sm:$0xf]
    %v6806 = vld [vmem:[%s22 + $0x30] sm:$0xf]
    %v6807 = vld [vmem:[%s22 + $0x34] sm:$0xf]
    %v6808 = vld [vmem:[%s22 + $0x38] sm:$0xf]
    %v6809 = vld [vmem:[%s22 + $0x3c] sm:$0xf]
    %v6810 = vpack.c.bf16 %v6793, %v6793
    %v6827 = vunpack.c.l.b16 %v6794
    %v6828 = vunpack.c.l.b16 %v6795
    %v6829 = vunpack.c.l.b16 %v6796
    %v6830 = vunpack.c.l.b16 %v6797
    %v6831 = vunpack.c.l.b16 %v6798
    %v6832 = vunpack.c.l.b16 %v6799
    %v6833 = vunpack.c.l.b16 %v6800
    %v6834 = vunpack.c.l.b16 %v6801
    %v6835 = vunpack.c.l.b16 %v6802
    %v6836 = vunpack.c.l.b16 %v6803
    %v6837 = vunpack.c.l.b16 %v6804
    %v6838 = vunpack.c.l.b16 %v6805
    %v6839 = vunpack.c.l.b16 %v6806
    %v6840 = vunpack.c.l.b16 %v6807
    %v6841 = vunpack.c.l.b16 %v6808
    %v6842 = vunpack.c.l.b16 %v6809
    %v6843 = vpack.c.b16 %v6828, %v6827
    %v6844 = vpack.c.b16 %v6830, %v6829
    %v6845 = vpack.c.b16 %v6832, %v6831
    %v6846 = vpack.c.b16 %v6834, %v6833
    %v6847 = vpack.c.b16 %v6836, %v6835
    %v6848 = vpack.c.b16 %v6838, %v6837
    %v6849 = vpack.c.b16 %v6840, %v6839
    %v6850 = vpack.c.b16 %v6842, %v6841
    %6859 = vmatprep.subr.bf16.mxu0 0
    %6860 = vmatpush1.bf16.msra.mxu0 %v6850
    %6861 = vmatprep.subr.bf16.mxu0 0
    %6862 = vmatpush1.bf16.msra.mxu0 %v6849
    %6863 = vmatprep.subr.bf16.mxu0 0
    %6864 = vmatpush1.bf16.msra.mxu0 %v6848
    %6865 = vmatprep.subr.bf16.mxu0 0
    %6866 = vmatpush1.bf16.msra.mxu0 %v6847
    %6867 = vmatprep.subr.bf16.mxu0 0
    %6868 = vmatpush1.bf16.msra.mxu0 %v6846
    %6869 = vmatprep.subr.bf16.mxu0 0
    %6870 = vmatpush1.bf16.msra.mxu0 %v6845
    %6871 = vmatprep.subr.bf16.mxu0 0
    %6872 = vmatpush1.bf16.msra.mxu0 %v6844
    %6873 = vmatprep.subr.bf16.mxu0 0
    %6874 = vmatpush1.bf16.msra.mxu0 %v6843
    %6875 = vmatprep.subr.bf16.mxu0 0
    %6876 = vmatpush2.bf16.msra.mxu0 0
    %6877 = vmatprep.subr.bf16.mxu0 0
    %6878 = vmatpush2.bf16.msra.mxu0 0
    %6879 = vmatprep.subr.bf16.mxu0 0
    %6880 = vmatpush2.bf16.msra.mxu0 0
    %6881 = vmatprep.subr.bf16.mxu0 0
    %6882 = vmatpush2.bf16.msra.mxu0 0
    %6883 = vmatprep.subr.bf16.mxu0 0
    %6884 = vmatpush2.bf16.msra.mxu0 0
    %6885 = vmatprep.subr.bf16.mxu0 0
    %6886 = vmatpush2.bf16.msra.mxu0 0
    %6887 = vmatprep.subr.bf16.mxu0 0
    %6888 = vmatpush2.bf16.msra.mxu0 0
    %6889 = vmatprep.subr.bf16.mxu0 0
    %6890 = vmatpush2.bf16.msra.mxu0 0
    %6891 = vmatprep.mubr.bf16.mxu0 0
    %6892 = vmatmul.mubr.bf16.gmra.mxu0 %v6810
    %v6893 = vpop.f32.mrf.mxu0
    %v6894 = vadd.f32 0.0, %v6893
    %v6895 = vpop.f32.mrf.mxu0
    %v6896 = vpop.f32.mrf.mxu0
    %v6897 = vpop.f32.mrf.mxu0
    %6898 = vdwg.mxu0
    %6899 = vst [vmem:[#allocation2] sm:$0xff] %v6894
    // Predicated region
    $region94: #{encode_image_pallas.1} parent=1 // pred_check
      _
    $region95: #{encode_image_pallas.1} parent=1 // pred_check_branch
      %6901 = sbr.rel (0) target = $region97
    $region96: #{encode_image_pallas.1} parent=1 // pred_region
      %s6903 = ssub.s32 128, 128
      %6904 = vsyncadd [#allocation3], %s6903
      %s6906 = sshll.u32 [#allocation2], 4
      %s6907 = int_to_ptr.vmem [resolvable:$true] %s6906
      %6909 = dma.vmem_to_hbm [thread:$0]  %s6907, 128, %s23, [#allocation3]
    $region97: #{encode_image_pallas.1} parent=1 // pred_fallthru
      _
    // Predicated region
    $region98: #{encode_image_pallas.1} parent=1 // pred_check
      _
    $region99: #{encode_image_pallas.1} parent=1 // pred_check_branch
      %6911 = sbr.rel (0) target = $region101
    $region100: #{encode_image_pallas.1} parent=1 // pred_region
      %6912 = dma.done [#allocation3], 128
    $region101: #{encode_image_pallas.1} parent=1 // pred_fallthru
      _
    %6913 = vsyncpa [#allocation3], 1

</llo_original>
